<compile_context>
chip_gen: v7x
topology: tpu7x:2x2x1
jax: 0.10.0
libtpu: 0.0.40
codegen_flags: <defaults>
</compile_context>

<pallas_src>
import functools
import math

import jax
import jax.numpy as jnp
from jax.experimental import pallas as pl
from jax.experimental.pallas import tpu as pltpu

BN_EPS = 1e-5


def _round_up(x, m):
    return -(-x // m) * m


# ----------------------------------------------------------------------------
# Kernel 1: TriangleConv-1 (folded triangle features + 3-layer MLP, fused)
# ----------------------------------------------------------------------------
def _tri_mlp3_kernel(x_ref, p_ref, n_ref,
                     wx_ref, wp_ref, wn_ref, b1_ref,
                     w2_ref, b2_ref, w3_ref, b3_ref, o_ref):
    f32, bf16 = jnp.float32, jnp.bfloat16
    acc = jnp.dot(x_ref[...].astype(bf16), wx_ref[...], preferred_element_type=f32)
    acc = acc + jnp.dot(p_ref[...].astype(bf16), wp_ref[...], preferred_element_type=f32)
    acc = acc + jnp.dot(n_ref[...].astype(bf16), wn_ref[...], preferred_element_type=f32)
    h = jnp.maximum(acc + b1_ref[...], 0.0).astype(bf16)
    h = jnp.maximum(jnp.dot(h, w2_ref[...], preferred_element_type=f32) + b2_ref[...],
                    0.0).astype(bf16)
    h = jnp.maximum(jnp.dot(h, w3_ref[...], preferred_element_type=f32) + b3_ref[...], 0.0)
    o_ref[...] = h.astype(o_ref.dtype)


def triangle_conv1(xf, pf, nf, p, *, tile):
    m, fin = xf.shape
    cout = p["w3"].shape[1]
    row = pl.BlockSpec((tile, fin), lambda i: (i, 0))
    full = lambda a: pl.BlockSpec(a.shape, lambda i: (0,) * a.ndim)
    return pl.pallas_call(
        _tri_mlp3_kernel,
        out_shape=jax.ShapeDtypeStruct((m, cout), jnp.bfloat16),
        grid=(m // tile,),
        in_specs=[row, row, row,
                  full(p["wx1"]), full(p["wp1"]), full(p["wn1"]), full(p["b1"]),
                  full(p["w2"]), full(p["b2"]), full(p["w3"]), full(p["b3"])],
        out_specs=pl.BlockSpec((tile, cout), lambda i: (i, 0)),
        compiler_params=pltpu.CompilerParams(dimension_semantics=("parallel",)),
    )(xf, pf, nf, p["wx1"], p["wp1"], p["wn1"], p["b1"],
      p["w2"], p["b2"], p["w3"], p["b3"])


# ----------------------------------------------------------------------------
# Kernel 2: TriangleConv-2 (2-layer MLP) fused with the global max-pool
# ----------------------------------------------------------------------------
def _tri_mlp2_pool_kernel(x_ref, p_ref, n_ref,
                          wx_ref, wp_ref, wn_ref, b4_ref,
                          w5_ref, b5_ref, o_ref, *, n_valid, tile, need_mask):
    f32, bf16 = jnp.float32, jnp.bfloat16
    j = pl.program_id(1)
    acc = jnp.dot(x_ref[...], wx_ref[...], preferred_element_type=f32)
    acc = acc + jnp.dot(p_ref[...], wp_ref[...], preferred_element_type=f32)
    acc = acc + jnp.dot(n_ref[...], wn_ref[...], preferred_element_type=f32)
    h = jnp.maximum(acc + b4_ref[...], 0.0).astype(bf16)
    h = jnp.maximum(jnp.dot(h, w5_ref[...], preferred_element_type=f32) + b5_ref[...], 0.0)
    if need_mask:
        # Padded point rows: 0 is the identity for max over post-ReLU (>= 0) values.
        r = j * tile + jax.lax.broadcasted_iota(jnp.int32, h.shape, 0)
        h = jnp.where(r < n_valid, h, 0.0)
    blk = jnp.broadcast_to(jnp.max(h, axis=0, keepdims=True), o_ref.shape)

    @pl.when(j == 0)
    def _():
        o_ref[...] = blk

    @pl.when(j > 0)
    def _():
        o_ref[...] = jnp.maximum(o_ref[...], blk)


def triangle_conv2_pool(hf, hpf, hnf, p, *, batch, n_pad, n_valid, tile):
    fin = hf.shape[1]
    cout = p["w5"].shape[1]
    jb = n_pad // tile
    row = pl.BlockSpec((tile, fin), lambda b, j: (b * jb + j, 0))
    full = lambda a: pl.BlockSpec(a.shape, lambda b, j: (0,) * a.ndim)
    out = pl.pallas_call(
        functools.partial(_tri_mlp2_pool_kernel, n_valid=n_valid, tile=tile,
                          need_mask=(n_pad != n_valid)),
        out_shape=jax.ShapeDtypeStruct((batch * 8, cout), jnp.float32),
        grid=(batch, jb),
        in_specs=[row, row, row,
                  full(p["wx4"]), full(p["wp4"]), full(p["wn4"]), full(p["b4"]),
                  full(p["w5"]), full(p["b5"])],
        out_specs=pl.BlockSpec((8, cout), lambda b, j: (b, 0)),
        compiler_params=pltpu.CompilerParams(
            dimension_semantics=("parallel", "arbitrary")),
    )(hf, hpf, hnf, p["wx4"], p["wp4"], p["wn4"], p["b4"], p["w5"], p["b5"])
    # pooled row replicated across the 8 sublanes of each batch block
    return out.reshape(batch, 8, cout)[:, 0, :]


# ----------------------------------------------------------------------------
# Kernel 3: fc head 1024 -> 512 -> 256 -> num_classes + log_softmax
# ----------------------------------------------------------------------------
def _fc_head_kernel(g_ref, w6_ref, b6_ref, w7_ref, b7_ref, w8_ref, b8_ref, o_ref):
    f32, bf16 = jnp.float32, jnp.bfloat16
    g = g_ref[...].astype(bf16)
    h = jnp.maximum(jnp.dot(g, w6_ref[...], preferred_element_type=f32) + b6_ref[...],
                    0.0).astype(bf16)
    # TODO(synk): nn.Dropout(0.5) after fc_block_4 / fc_block_5 is identity (eval forward).
    h = jnp.maximum(jnp.dot(h, w7_ref[...], preferred_element_type=f32) + b7_ref[...],
                    0.0).astype(bf16)
    logits = jnp.dot(h, w8_ref[...], preferred_element_type=f32) + b8_ref[...]
    z = logits - jnp.max(logits, axis=-1, keepdims=True)
    o_ref[...] = z - jnp.log(jnp.sum(jnp.exp(z), axis=-1, keepdims=True))


def fc_head(g, p):
    b, fin = g.shape
    nc = p["w8"].shape[1]
    bp = _round_up(b, 8)                   # sublane-aligned row block
    if bp != b:
        g = jnp.pad(g, ((0, bp - b), (0, 0)))
    full = lambda a: pl.BlockSpec(a.shape, lambda i: (0,) * a.ndim)
    out = pl.pallas_call(
        _fc_head_kernel,
        out_shape=jax.ShapeDtypeStruct((bp, nc), jnp.float32),
        grid=(1,),
        in_specs=[pl.BlockSpec((bp, fin), lambda i: (0, 0)),
                  full(p["w6"]), full(p["b6"]), full(p["w7"]), full(p["b7"]),
                  full(p["w8"]), full(p["b8"])],
        out_specs=pl.BlockSpec((bp, nc), lambda i: (0, 0)),
    )(g, p["w6"], p["b6"], p["w7"], p["b7"], p["w8"], p["b8"])
    return out[:b]


# ----------------------------------------------------------------------------
# Parameters (xavier-normal weights, zero bias — matches _initialize_weights)
# ----------------------------------------------------------------------------
def xavier_normal(key, fan_in, fan_out):
    std = math.sqrt(2.0 / (fan_in + fan_out))
    return jax.random.normal(key, (fan_in, fan_out), jnp.float32) * std


def build_raw_params(key, num_classes):
    dims = [(4 * 2, 64), (64, 64), (64, 64),     # TriangleConv 1 mlp
            (4 * 64, 512), (512, 1024),          # TriangleConv 2 mlp
            (1024, 512), (512, 256),             # fc_block_4, fc_block_5
            (256, num_classes)]                  # fc_6
    raw = []
    for fin, fout in dims:
        key, k = jax.random.split(key)
        raw.append((xavier_normal(k, fin, fout), jnp.zeros((fout,), jnp.float32)))
    return raw


def fold_params(raw):
    """Fold eval-mode BN (mean=0, var=1, gamma=1, beta=0) and the triangle-feature
    construction into bf16 weights / f32 biases.
    # TODO(synk): for a trained checkpoint, fold the real gamma/beta/mean/var here.
    """
    s = 1.0 / math.sqrt(1.0 + BN_EPS)
    bf16 = jnp.bfloat16

    def bn(w, b):
        return (w * s).astype(bf16), (b * s)[None, :].astype(jnp.float32)

    def tri(w, b):
        # concat([x, x-prev, x-nxt, (x-prev)-(x-nxt)]) @ [W0;W1;W2;W3]
        #   == x @ (W0+W1+W2) + prev @ (-(W1+W3)) + nxt @ (W3-W2)
        f = w.shape[0] // 4
        w0, w1, w2, w3 = w[:f], w[f:2 * f], w[2 * f:3 * f], w[3 * f:]
        wx = ((w0 + w1 + w2) * s).astype(bf16)
        wp = (-(w1 + w3) * s).astype(bf16)
        wn = ((w3 - w2) * s).astype(bf16)
        return wx, wp, wn, (b * s)[None, :].astype(jnp.float32)

    p = {}
    p["wx1"], p["wp1"], p["wn1"], p["b1"] = tri(*raw[0])
    p["w2"], p["b2"] = bn(*raw[1])
    p["w3"], p["b3"] = bn(*raw[2])
    p["wx4"], p["wp4"], p["wn4"], p["b4"] = tri(*raw[3])
    p["w5"], p["b5"] = bn(*raw[4])
    p["w6"], p["b6"] = bn(*raw[5])
    p["w7"], p["b7"] = bn(*raw[6])
    w8, b8 = raw[7]                              # fc_6: no BN, no ReLU
    p["w8"] = w8.astype(bf16)
    p["b8"] = b8[None, :].astype(jnp.float32)
    return p


# ----------------------------------------------------------------------------
# Forward pass
# ----------------------------------------------------------------------------
def dpcn_forward(x, p):
    b, n, c = x.shape
    assert c == 2, "dimension of x does not match"

    tile = min(512, _round_up(n, 16))    # per-batch point tile (bf16-sublane aligned)
    n_pad = _round_up(n, tile)

    def pad_flat(a):                     # (B, n, F) -> (B * n_pad, F)
        if n_pad != n:
            a = jnp.pad(a, ((0, 0), (0, n_pad - n), (0, 0)))
        return a.reshape(b * n_pad, a.shape[-1])

    # TriangleConv 1 (neighbor rolls wrap per batch -> done in JAX)
    h = triangle_conv1(pad_flat(x),
                       pad_flat(jnp.roll(x, 1, axis=1)),
                       pad_flat(jnp.roll(x, -1, axis=1)), p, tile=tile)

    h = h.reshape(b, n_pad, -1)
    if n_pad != n:
        h = h[:, :n]

    # TriangleConv 2 + fused global max-pool over the point axis
    g = triangle_conv2_pool(pad_flat(h),
                            pad_flat(jnp.roll(h, 1, axis=1)),
                            pad_flat(jnp.roll(h, -1, axis=1)), p,
                            batch=b, n_pad=n_pad, n_valid=n, tile=tile)

    # fc head (+ in-kernel log_softmax)
    return fc_head(g, p)


if __name__ == "__main__":
    num_classes = 10
    B, N, C = 2, 64, 2

    key = jax.random.PRNGKey(0)
    k_params, k_x = jax.random.split(key)
    params = fold_params(build_raw_params(k_params, num_classes))
    x = jax.random.normal(k_x, (B, N, C), jnp.float32)

    fwd = jax.jit(dpcn_forward)
    out = jax.block_until_ready(fwd(x, params))

    assert out.shape == (B, num_classes)
    assert bool(jnp.all(jnp.isfinite(out)))
    # log-probs must normalize
    assert bool(jnp.allclose(jnp.sum(jnp.exp(out), axis=-1), 1.0, atol=1e-3))
    print("KERNEL_OK")
</pallas_src>

<mosaic_0001>
module attributes {stable_mosaic.version = 11 : i64} {
  func.func @_tri_mlp3_kernel(%arg0: i32, %arg1: memref<64x2xf32, #tpu.memory_space<vmem>>, %arg2: memref<64x2xf32, #tpu.memory_space<vmem>>, %arg3: memref<64x2xf32, #tpu.memory_space<vmem>>, %arg4: memref<2x64xbf16, #tpu.memory_space<vmem>>, %arg5: memref<2x64xbf16, #tpu.memory_space<vmem>>, %arg6: memref<2x64xbf16, #tpu.memory_space<vmem>>, %arg7: memref<1x64xf32, #tpu.memory_space<vmem>>, %arg8: memref<64x64xbf16, #tpu.memory_space<vmem>>, %arg9: memref<1x64xf32, #tpu.memory_space<vmem>>, %arg10: memref<64x64xbf16, #tpu.memory_space<vmem>>, %arg11: memref<1x64xf32, #tpu.memory_space<vmem>>, %arg12: memref<64x64xbf16, #tpu.memory_space<vmem>>) attributes {dimension_semantics = [#tpu.dimension_semantics<parallel>], iteration_bounds = array<i64: 2>, scalar_prefetch = 0 : i64, scratch_operands = 0 : i64, tpu.core_type = #tpu.core_type<tc>, window_params = [{transform_indices = @transform_0, window_bounds = array<i64: 64, 2>}, {transform_indices = @transform_1, window_bounds = array<i64: 64, 2>}, {transform_indices = @transform_2, window_bounds = array<i64: 64, 2>}, {pipeline_mode = #tpu.pipeline_mode<synchronous>, transform_indices = @transform_3, window_bounds = array<i64: 2, 64>}, {pipeline_mode = #tpu.pipeline_mode<synchronous>, transform_indices = @transform_4, window_bounds = array<i64: 2, 64>}, {pipeline_mode = #tpu.pipeline_mode<synchronous>, transform_indices = @transform_5, window_bounds = array<i64: 2, 64>}, {pipeline_mode = #tpu.pipeline_mode<synchronous>, transform_indices = @transform_6, window_bounds = array<i64: 1, 64>}, {pipeline_mode = #tpu.pipeline_mode<synchronous>, transform_indices = @transform_7, window_bounds = array<i64: 64, 64>}, {pipeline_mode = #tpu.pipeline_mode<synchronous>, transform_indices = @transform_8, window_bounds = array<i64: 1, 64>}, {pipeline_mode = #tpu.pipeline_mode<synchronous>, transform_indices = @transform_9, window_bounds = array<i64: 64, 64>}, {pipeline_mode = #tpu.pipeline_mode<synchronous>, transform_indices = @transform_10, window_bounds = array<i64: 1, 64>}, {transform_indices = @transform_11, window_bounds = array<i64: 64, 64>}]} {
    %c0 = arith.constant 0 : index
    %c0_0 = arith.constant 0 : index
    %0 = vector.load %arg1[%c0, %c0_0] : memref<64x2xf32, #tpu.memory_space<vmem>>, vector<64x2xf32>
    %1 = arith.truncf %0 : vector<64x2xf32> to vector<64x2xbf16>
    %c0_1 = arith.constant 0 : index
    %c0_2 = arith.constant 0 : index
    %2 = vector.load %arg4[%c0_1, %c0_2] : memref<2x64xbf16, #tpu.memory_space<vmem>>, vector<2x64xbf16>
    %cst = arith.constant dense<0.000000e+00> : vector<64x64xf32>
    %3 = tpu.matmul %1, %2, %cst {dimension_numbers = #tpu.dot_dimension_numbers<[1], [0], [0], [1], [0, 0, 1, 1], [], []>} : vector<64x2xbf16>, vector<2x64xbf16>, vector<64x64xf32> -> vector<64x64xf32>
    %c0_3 = arith.constant 0 : index
    %c0_4 = arith.constant 0 : index
    %4 = vector.load %arg2[%c0_3, %c0_4] : memref<64x2xf32, #tpu.memory_space<vmem>>, vector<64x2xf32>
    %5 = arith.truncf %4 : vector<64x2xf32> to vector<64x2xbf16>
    %c0_5 = arith.constant 0 : index
    %c0_6 = arith.constant 0 : index
    %6 = vector.load %arg5[%c0_5, %c0_6] : memref<2x64xbf16, #tpu.memory_space<vmem>>, vector<2x64xbf16>
    %cst_7 = arith.constant dense<0.000000e+00> : vector<64x64xf32>
    %7 = tpu.matmul %5, %6, %cst_7 {dimension_numbers = #tpu.dot_dimension_numbers<[1], [0], [0], [1], [0, 0, 1, 1], [], []>} : vector<64x2xbf16>, vector<2x64xbf16>, vector<64x64xf32> -> vector<64x64xf32>
    %8 = arith.addf %3, %7 : vector<64x64xf32>
    %c0_8 = arith.constant 0 : index
    %c0_9 = arith.constant 0 : index
    %9 = vector.load %arg3[%c0_8, %c0_9] : memref<64x2xf32, #tpu.memory_space<vmem>>, vector<64x2xf32>
    %10 = arith.truncf %9 : vector<64x2xf32> to vector<64x2xbf16>
    %c0_10 = arith.constant 0 : index
    %c0_11 = arith.constant 0 : index
    %11 = vector.load %arg6[%c0_10, %c0_11] : memref<2x64xbf16, #tpu.memory_space<vmem>>, vector<2x64xbf16>
    %cst_12 = arith.constant dense<0.000000e+00> : vector<64x64xf32>
    %12 = tpu.matmul %10, %11, %cst_12 {dimension_numbers = #tpu.dot_dimension_numbers<[1], [0], [0], [1], [0, 0, 1, 1], [], []>} : vector<64x2xbf16>, vector<2x64xbf16>, vector<64x64xf32> -> vector<64x64xf32>
    %13 = arith.addf %8, %12 : vector<64x64xf32>
    %c0_13 = arith.constant 0 : index
    %c0_14 = arith.constant 0 : index
    %14 = vector.load %arg7[%c0_13, %c0_14] : memref<1x64xf32, #tpu.memory_space<vmem>>, vector<1x64xf32>
    %15 = vector.broadcast %14 : vector<1x64xf32> to vector<64x64xf32>
    %16 = arith.addf %13, %15 : vector<64x64xf32>
    %cst_15 = arith.constant 0.000000e+00 : f32
    %17 = vector.broadcast %cst_15 : f32 to vector<64x64xf32>
    %18 = arith.maximumf %16, %17 : vector<64x64xf32>
    %19 = arith.truncf %18 : vector<64x64xf32> to vector<64x64xbf16>
    %c0_16 = arith.constant 0 : index
    %c0_17 = arith.constant 0 : index
    %20 = vector.load %arg8[%c0_16, %c0_17] : memref<64x64xbf16, #tpu.memory_space<vmem>>, vector<64x64xbf16>
    %cst_18 = arith.constant dense<0.000000e+00> : vector<64x64xf32>
    %21 = tpu.matmul %19, %20, %cst_18 {dimension_numbers = #tpu.dot_dimension_numbers<[1], [0], [0], [1], [0, 0, 1, 1], [], []>} : vector<64x64xbf16>, vector<64x64xbf16>, vector<64x64xf32> -> vector<64x64xf32>
    %c0_19 = arith.constant 0 : index
    %c0_20 = arith.constant 0 : index
    %22 = vector.load %arg9[%c0_19, %c0_20] : memref<1x64xf32, #tpu.memory_space<vmem>>, vector<1x64xf32>
    %23 = vector.broadcast %22 : vector<1x64xf32> to vector<64x64xf32>
    %24 = arith.addf %21, %23 : vector<64x64xf32>
    %cst_21 = arith.constant 0.000000e+00 : f32
    %25 = vector.broadcast %cst_21 : f32 to vector<64x64xf32>
    %26 = arith.maximumf %24, %25 : vector<64x64xf32>
    %27 = arith.truncf %26 : vector<64x64xf32> to vector<64x64xbf16>
    %c0_22 = arith.constant 0 : index
    %c0_23 = arith.constant 0 : index
    %28 = vector.load %arg10[%c0_22, %c0_23] : memref<64x64xbf16, #tpu.memory_space<vmem>>, vector<64x64xbf16>
    %cst_24 = arith.constant dense<0.000000e+00> : vector<64x64xf32>
    %29 = tpu.matmul %27, %28, %cst_24 {dimension_numbers = #tpu.dot_dimension_numbers<[1], [0], [0], [1], [0, 0, 1, 1], [], []>} : vector<64x64xbf16>, vector<64x64xbf16>, vector<64x64xf32> -> vector<64x64xf32>
    %c0_25 = arith.constant 0 : index
    %c0_26 = arith.constant 0 : index
    %30 = vector.load %arg11[%c0_25, %c0_26] : memref<1x64xf32, #tpu.memory_space<vmem>>, vector<1x64xf32>
    %31 = vector.broadcast %30 : vector<1x64xf32> to vector<64x64xf32>
    %32 = arith.addf %29, %31 : vector<64x64xf32>
    %cst_27 = arith.constant 0.000000e+00 : f32
    %33 = vector.broadcast %cst_27 : f32 to vector<64x64xf32>
    %34 = arith.maximumf %32, %33 : vector<64x64xf32>
    %35 = arith.truncf %34 : vector<64x64xf32> to vector<64x64xbf16>
    %c0_28 = arith.constant 0 : index
    %c0_29 = arith.constant 0 : index
    %36 = vector.load %arg12[%c0_28, %c0_29] : memref<64x64xbf16, #tpu.memory_space<vmem>>, vector<64x64xbf16>
    tpu.vector_store %arg12[%c0_28, %c0_29], %35 {strides = array<i32>} : memref<64x64xbf16, #tpu.memory_space<vmem>>, vector<64x64xbf16>,
    return
  }
  func.func @transform_0(%arg0: i32) -> (i32, i32) {
    %c0_i32 = arith.constant 0 : i32
    %c0_i32_0 = arith.constant 0 : i32
    return %arg0, %c0_i32 : i32, i32
  }
  func.func @transform_1(%arg0: i32) -> (i32, i32) {
    %c0_i32 = arith.constant 0 : i32
    %c0_i32_0 = arith.constant 0 : i32
    return %arg0, %c0_i32 : i32, i32
  }
  func.func @transform_2(%arg0: i32) -> (i32, i32) {
    %c0_i32 = arith.constant 0 : i32
    %c0_i32_0 = arith.constant 0 : i32
    return %arg0, %c0_i32 : i32, i32
  }
  func.func @transform_3(%arg0: i32) -> (i32, i32) {
    %c0_i32 = arith.constant 0 : i32
    %c0_i32_0 = arith.constant 0 : i32
    %c0_i32_1 = arith.constant 0 : i32
    return %c0_i32, %c0_i32_0 : i32, i32
  }
  func.func @transform_4(%arg0: i32) -> (i32, i32) {
    %c0_i32 = arith.constant 0 : i32
    %c0_i32_0 = arith.constant 0 : i32
    %c0_i32_1 = arith.constant 0 : i32
    return %c0_i32, %c0_i32_0 : i32, i32
  }
  func.func @transform_5(%arg0: i32) -> (i32, i32) {
    %c0_i32 = arith.constant 0 : i32
    %c0_i32_0 = arith.constant 0 : i32
    %c0_i32_1 = arith.constant 0 : i32
    return %c0_i32, %c0_i32_0 : i32, i32
  }
  func.func @transform_6(%arg0: i32) -> (i32, i32) {
    %c0_i32 = arith.constant 0 : i32
    %c0_i32_0 = arith.constant 0 : i32
    %c0_i32_1 = arith.constant 0 : i32
    return %c0_i32, %c0_i32_0 : i32, i32
  }
  func.func @transform_7(%arg0: i32) -> (i32, i32) {
    %c0_i32 = arith.constant 0 : i32
    %c0_i32_0 = arith.constant 0 : i32
    %c0_i32_1 = arith.constant 0 : i32
    return %c0_i32, %c0_i32_0 : i32, i32
  }
  func.func @transform_8(%arg0: i32) -> (i32, i32) {
    %c0_i32 = arith.constant 0 : i32
    %c0_i32_0 = arith.constant 0 : i32
    %c0_i32_1 = arith.constant 0 : i32
    return %c0_i32, %c0_i32_0 : i32, i32
  }
  func.func @transform_9(%arg0: i32) -> (i32, i32) {
    %c0_i32 = arith.constant 0 : i32
    %c0_i32_0 = arith.constant 0 : i32
    %c0_i32_1 = arith.constant 0 : i32
    return %c0_i32, %c0_i32_0 : i32, i32
  }
  func.func @transform_10(%arg0: i32) -> (i32, i32) {
    %c0_i32 = arith.constant 0 : i32
    %c0_i32_0 = arith.constant 0 : i32
    %c0_i32_1 = arith.constant 0 : i32
    return %c0_i32, %c0_i32_0 : i32, i32
  }
  func.func @transform_11(%arg0: i32) -> (i32, i32) {
    %c0_i32 = arith.constant 0 : i32
    %c0_i32_0 = arith.constant 0 : i32
    return %arg0, %c0_i32 : i32, i32
  }
}

module attributes {stable_mosaic.version = 11 : i64} {
  func.func @_tri_mlp2_pool_kernel(%arg0: i32, %arg1: i32, %arg2: memref<64x64xbf16, #tpu.memory_space<vmem>>, %arg3: memref<64x64xbf16, #tpu.memory_space<vmem>>, %arg4: memref<64x64xbf16, #tpu.memory_space<vmem>>, %arg5: memref<64x512xbf16, #tpu.memory_space<vmem>>, %arg6: memref<64x512xbf16, #tpu.memory_space<vmem>>, %arg7: memref<64x512xbf16, #tpu.memory_space<vmem>>, %arg8: memref<1x512xf32, #tpu.memory_space<vmem>>, %arg9: memref<512x1024xbf16, #tpu.memory_space<vmem>>, %arg10: memref<1x1024xf32, #tpu.memory_space<vmem>>, %arg11: memref<8x1024xf32, #tpu.memory_space<vmem>>) attributes {dimension_semantics = [#tpu.dimension_semantics<parallel>, #tpu.dimension_semantics<arbitrary>], iteration_bounds = array<i64: 2, 1>, scalar_prefetch = 0 : i64, scratch_operands = 0 : i64, tpu.core_type = #tpu.core_type<tc>, window_params = [{transform_indices = @transform_0, window_bounds = array<i64: 64, 64>}, {transform_indices = @transform_1, window_bounds = array<i64: 64, 64>}, {transform_indices = @transform_2, window_bounds = array<i64: 64, 64>}, {pipeline_mode = #tpu.pipeline_mode<synchronous>, transform_indices = @transform_3, window_bounds = array<i64: 64, 512>}, {pipeline_mode = #tpu.pipeline_mode<synchronous>, transform_indices = @transform_4, window_bounds = array<i64: 64, 512>}, {pipeline_mode = #tpu.pipeline_mode<synchronous>, transform_indices = @transform_5, window_bounds = array<i64: 64, 512>}, {pipeline_mode = #tpu.pipeline_mode<synchronous>, transform_indices = @transform_6, window_bounds = array<i64: 1, 512>}, {pipeline_mode = #tpu.pipeline_mode<synchronous>, transform_indices = @transform_7, window_bounds = array<i64: 512, 1024>}, {pipeline_mode = #tpu.pipeline_mode<synchronous>, transform_indices = @transform_8, window_bounds = array<i64: 1, 1024>}, {transform_indices = @transform_9, window_bounds = array<i64: 8, 1024>}]} {
    %c0 = arith.constant 0 : index
    %c0_0 = arith.constant 0 : index
    %0 = vector.load %arg2[%c0, %c0_0] : memref<64x64xbf16, #tpu.memory_space<vmem>>, vector<64x64xbf16>
    %c0_1 = arith.constant 0 : index
    %c0_2 = arith.constant 0 : index
    %1 = vector.load %arg5[%c0_1, %c0_2] : memref<64x512xbf16, #tpu.memory_space<vmem>>, vector<64x512xbf16>
    %cst = arith.constant dense<0.000000e+00> : vector<64x512xf32>
    %2 = tpu.matmul %0, %1, %cst {dimension_numbers = #tpu.dot_dimension_numbers<[1], [0], [0], [1], [0, 0, 1, 1], [], []>} : vector<64x64xbf16>, vector<64x512xbf16>, vector<64x512xf32> -> vector<64x512xf32>
    %c0_3 = arith.constant 0 : index
    %c0_4 = arith.constant 0 : index
    %3 = vector.load %arg3[%c0_3, %c0_4] : memref<64x64xbf16, #tpu.memory_space<vmem>>, vector<64x64xbf16>
    %c0_5 = arith.constant 0 : index
    %c0_6 = arith.constant 0 : index
    %4 = vector.load %arg6[%c0_5, %c0_6] : memref<64x512xbf16, #tpu.memory_space<vmem>>, vector<64x512xbf16>
    %cst_7 = arith.constant dense<0.000000e+00> : vector<64x512xf32>
    %5 = tpu.matmul %3, %4, %cst_7 {dimension_numbers = #tpu.dot_dimension_numbers<[1], [0], [0], [1], [0, 0, 1, 1], [], []>} : vector<64x64xbf16>, vector<64x512xbf16>, vector<64x512xf32> -> vector<64x512xf32>
    %6 = arith.addf %2, %5 : vector<64x512xf32>
    %c0_8 = arith.constant 0 : index
    %c0_9 = arith.constant 0 : index
    %7 = vector.load %arg4[%c0_8, %c0_9] : memref<64x64xbf16, #tpu.memory_space<vmem>>, vector<64x64xbf16>
    %c0_10 = arith.constant 0 : index
    %c0_11 = arith.constant 0 : index
    %8 = vector.load %arg7[%c0_10, %c0_11] : memref<64x512xbf16, #tpu.memory_space<vmem>>, vector<64x512xbf16>
    %cst_12 = arith.constant dense<0.000000e+00> : vector<64x512xf32>
    %9 = tpu.matmul %7, %8, %cst_12 {dimension_numbers = #tpu.dot_dimension_numbers<[1], [0], [0], [1], [0, 0, 1, 1], [], []>} : vector<64x64xbf16>, vector<64x512xbf16>, vector<64x512xf32> -> vector<64x512xf32>
    %10 = arith.addf %6, %9 : vector<64x512xf32>
    %c0_13 = arith.constant 0 : index
    %c0_14 = arith.constant 0 : index
    %11 = vector.load %arg8[%c0_13, %c0_14] : memref<1x512xf32, #tpu.memory_space<vmem>>, vector<1x512xf32>
    %12 = vector.broadcast %11 : vector<1x512xf32> to vector<64x512xf32>
    %13 = arith.addf %10, %12 : vector<64x512xf32>
    %cst_15 = arith.constant 0.000000e+00 : f32
    %14 = vector.broadcast %cst_15 : f32 to vector<64x512xf32>
    %15 = arith.maximumf %13, %14 : vector<64x512xf32>
    %16 = arith.truncf %15 : vector<64x512xf32> to vector<64x512xbf16>
    %c0_16 = arith.constant 0 : index
    %c0_17 = arith.constant 0 : index
    %17 = vector.load %arg9[%c0_16, %c0_17] : memref<512x1024xbf16, #tpu.memory_space<vmem>>, vector<512x1024xbf16>
    %cst_18 = arith.constant dense<0.000000e+00> : vector<64x1024xf32>
    %18 = tpu.matmul %16, %17, %cst_18 {dimension_numbers = #tpu.dot_dimension_numbers<[1], [0], [0], [1], [0, 0, 1, 1], [], []>} : vector<64x512xbf16>, vector<512x1024xbf16>, vector<64x1024xf32> -> vector<64x1024xf32>
    %c0_19 = arith.constant 0 : index
    %c0_20 = arith.constant 0 : index
    %19 = vector.load %arg10[%c0_19, %c0_20] : memref<1x1024xf32, #tpu.memory_space<vmem>>, vector<1x1024xf32>
    %20 = vector.broadcast %19 : vector<1x1024xf32> to vector<64x1024xf32>
    %21 = arith.addf %18, %20 : vector<64x1024xf32>
    %cst_21 = arith.constant 0.000000e+00 : f32
    %22 = vector.broadcast %cst_21 : f32 to vector<64x1024xf32>
    %23 = arith.maximumf %21, %22 : vector<64x1024xf32>
    %cst_22 = arith.constant dense<0xFF800000> : vector<1024xf32>
    %24 = vector.multi_reduction <maximumf>, %23, %cst_22 [0] : vector<64x1024xf32> to vector<1024xf32>
    %25 = vector.shape_cast %24 : vector<1024xf32> to vector<1x1024xf32>
    %26 = vector.shape_cast %25 : vector<1x1024xf32> to vector<1x1024xf32>
    %27 = vector.broadcast %26 : vector<1x1024xf32> to vector<8x1024xf32>
    %c0_i32 = arith.constant 0 : i32
    %28 = arith.cmpi eq, %arg1, %c0_i32 : i32
    %29 = arith.extui %28 : i1 to i32
    %c0_i32_23 = arith.constant 0 : i32
    %30 = arith.cmpi ne, %29, %c0_i32_23 : i32
    scf.if %30 {
      %c0_26 = arith.constant 0 : index
      %c0_27 = arith.constant 0 : index
      %34 = vector.load %arg11[%c0_26, %c0_27] : memref<8x1024xf32, #tpu.memory_space<vmem>>, vector<8x1024xf32>
      tpu.vector_store %arg11[%c0_26, %c0_27], %27 {strides = array<i32>} : memref<8x1024xf32, #tpu.memory_space<vmem>>, vector<8x1024xf32>,
    } else {
    }
    %c0_i32_24 = arith.constant 0 : i32
    %31 = arith.cmpi sgt, %arg1, %c0_i32_24 : i32
    %32 = arith.extui %31 : i1 to i32
    %c0_i32_25 = arith.constant 0 : i32
    %33 = arith.cmpi ne, %32, %c0_i32_25 : i32
    scf.if %33 {
      %c0_26 = arith.constant 0 : index
      %c0_27 = arith.constant 0 : index
      %34 = vector.load %arg11[%c0_26, %c0_27] : memref<8x1024xf32, #tpu.memory_space<vmem>>, vector<8x1024xf32>
      %35 = arith.maximumf %34, %27 : vector<8x1024xf32>
      %c0_28 = arith.constant 0 : index
      %c0_29 = arith.constant 0 : index
      %36 = vector.load %arg11[%c0_28, %c0_29] : memref<8x1024xf32, #tpu.memory_space<vmem>>, vector<8x1024xf32>
      tpu.vector_store %arg11[%c0_28, %c0_29], %35 {strides = array<i32>} : memref<8x1024xf32, #tpu.memory_space<vmem>>, vector<8x1024xf32>,
    } else {
    }
    return
  }
  func.func @transform_0(%arg0: i32, %arg1: i32) -> (i32, i32) {
    %c1_i32 = arith.constant 1 : i32
    %0 = arith.muli %arg0, %c1_i32 : i32
    %1 = arith.addi %0, %arg1 : i32
    %c0_i32 = arith.constant 0 : i32
    %c0_i32_0 = arith.constant 0 : i32
    return %1, %c0_i32 : i32, i32
  }
  func.func @transform_1(%arg0: i32, %arg1: i32) -> (i32, i32) {
    %c1_i32 = arith.constant 1 : i32
    %0 = arith.muli %arg0, %c1_i32 : i32
    %1 = arith.addi %0, %arg1 : i32
    %c0_i32 = arith.constant 0 : i32
    %c0_i32_0 = arith.constant 0 : i32
    return %1, %c0_i32 : i32, i32
  }
  func.func @transform_2(%arg0: i32, %arg1: i32) -> (i32, i32) {
    %c1_i32 = arith.constant 1 : i32
    %0 = arith.muli %arg0, %c1_i32 : i32
    %1 = arith.addi %0, %arg1 : i32
    %c0_i32 = arith.constant 0 : i32
    %c0_i32_0 = arith.constant 0 : i32
    return %1, %c0_i32 : i32, i32
  }
  func.func @transform_3(%arg0: i32, %arg1: i32) -> (i32, i32) {
    %c0_i32 = arith.constant 0 : i32
    %c0_i32_0 = arith.constant 0 : i32
    %c0_i32_1 = arith.constant 0 : i32
    return %c0_i32, %c0_i32_0 : i32, i32
  }
  func.func @transform_4(%arg0: i32, %arg1: i32) -> (i32, i32) {
    %c0_i32 = arith.constant 0 : i32
    %c0_i32_0 = arith.constant 0 : i32
    %c0_i32_1 = arith.constant 0 : i32
    return %c0_i32, %c0_i32_0 : i32, i32
  }
  func.func @transform_5(%arg0: i32, %arg1: i32) -> (i32, i32) {
    %c0_i32 = arith.constant 0 : i32
    %c0_i32_0 = arith.constant 0 : i32
    %c0_i32_1 = arith.constant 0 : i32
    return %c0_i32, %c0_i32_0 : i32, i32
  }
  func.func @transform_6(%arg0: i32, %arg1: i32) -> (i32, i32) {
    %c0_i32 = arith.constant 0 : i32
    %c0_i32_0 = arith.constant 0 : i32
    %c0_i32_1 = arith.constant 0 : i32
    return %c0_i32, %c0_i32_0 : i32, i32
  }
  func.func @transform_7(%arg0: i32, %arg1: i32) -> (i32, i32) {
    %c0_i32 = arith.constant 0 : i32
    %c0_i32_0 = arith.constant 0 : i32
    %c0_i32_1 = arith.constant 0 : i32
    return %c0_i32, %c0_i32_0 : i32, i32
  }
  func.func @transform_8(%arg0: i32, %arg1: i32) -> (i32, i32) {
    %c0_i32 = arith.constant 0 : i32
    %c0_i32_0 = arith.constant 0 : i32
    %c0_i32_1 = arith.constant 0 : i32
    return %c0_i32, %c0_i32_0 : i32, i32
  }
  func.func @transform_9(%arg0: i32, %arg1: i32) -> (i32, i32) {
    %c0_i32 = arith.constant 0 : i32
    %c0_i32_0 = arith.constant 0 : i32
    return %arg0, %c0_i32 : i32, i32
  }
}

module attributes {stable_mosaic.version = 11 : i64} {
  func.func @_fc_head_kernel(%arg0: i32, %arg1: memref<8x1024xf32, #tpu.memory_space<vmem>>, %arg2: memref<1024x512xbf16, #tpu.memory_space<vmem>>, %arg3: memref<1x512xf32, #tpu.memory_space<vmem>>, %arg4: memref<512x256xbf16, #tpu.memory_space<vmem>>, %arg5: memref<1x256xf32, #tpu.memory_space<vmem>>, %arg6: memref<256x10xbf16, #tpu.memory_space<vmem>>, %arg7: memref<1x10xf32, #tpu.memory_space<vmem>>, %arg8: memref<8x10xf32, #tpu.memory_space<vmem>>) attributes {dimension_semantics = [#tpu.dimension_semantics<arbitrary>], iteration_bounds = array<i64: 1>, scalar_prefetch = 0 : i64, scratch_operands = 0 : i64, tpu.core_type = #tpu.core_type<tc>, window_params = [{pipeline_mode = #tpu.pipeline_mode<synchronous>, transform_indices = @transform_0, window_bounds = array<i64: 8, 1024>}, {pipeline_mode = #tpu.pipeline_mode<synchronous>, transform_indices = @transform_1, window_bounds = array<i64: 1024, 512>}, {pipeline_mode = #tpu.pipeline_mode<synchronous>, transform_indices = @transform_2, window_bounds = array<i64: 1, 512>}, {pipeline_mode = #tpu.pipeline_mode<synchronous>, transform_indices = @transform_3, window_bounds = array<i64: 512, 256>}, {pipeline_mode = #tpu.pipeline_mode<synchronous>, transform_indices = @transform_4, window_bounds = array<i64: 1, 256>}, {pipeline_mode = #tpu.pipeline_mode<synchronous>, transform_indices = @transform_5, window_bounds = array<i64: 256, 10>}, {pipeline_mode = #tpu.pipeline_mode<synchronous>, transform_indices = @transform_6, window_bounds = array<i64: 1, 10>}, {pipeline_mode = #tpu.pipeline_mode<synchronous>, transform_indices = @transform_7, window_bounds = array<i64: 8, 10>}]} {
    %c0 = arith.constant 0 : index
    %c0_0 = arith.constant 0 : index
    %0 = vector.load %arg1[%c0, %c0_0] : memref<8x1024xf32, #tpu.memory_space<vmem>>, vector<8x1024xf32>
    %1 = arith.truncf %0 : vector<8x1024xf32> to vector<8x1024xbf16>
    %c0_1 = arith.constant 0 : index
    %c0_2 = arith.constant 0 : index
    %2 = vector.load %arg2[%c0_1, %c0_2] : memref<1024x512xbf16, #tpu.memory_space<vmem>>, vector<1024x512xbf16>
    %cst = arith.constant dense<0.000000e+00> : vector<8x512xf32>
    %3 = tpu.matmul %1, %2, %cst {dimension_numbers = #tpu.dot_dimension_numbers<[1], [0], [0], [1], [0, 0, 1, 1], [], []>} : vector<8x1024xbf16>, vector<1024x512xbf16>, vector<8x512xf32> -> vector<8x512xf32>
    %c0_3 = arith.constant 0 : index
    %c0_4 = arith.constant 0 : index
    %4 = vector.load %arg3[%c0_3, %c0_4] : memref<1x512xf32, #tpu.memory_space<vmem>>, vector<1x512xf32>
    %5 = vector.broadcast %4 : vector<1x512xf32> to vector<8x512xf32>
    %6 = arith.addf %3, %5 : vector<8x512xf32>
    %cst_5 = arith.constant 0.000000e+00 : f32
    %7 = vector.broadcast %cst_5 : f32 to vector<8x512xf32>
    %8 = arith.maximumf %6, %7 : vector<8x512xf32>
    %9 = arith.truncf %8 : vector<8x512xf32> to vector<8x512xbf16>
    %c0_6 = arith.constant 0 : index
    %c0_7 = arith.constant 0 : index
    %10 = vector.load %arg4[%c0_6, %c0_7] : memref<512x256xbf16, #tpu.memory_space<vmem>>, vector<512x256xbf16>
    %cst_8 = arith.constant dense<0.000000e+00> : vector<8x256xf32>
    %11 = tpu.matmul %9, %10, %cst_8 {dimension_numbers = #tpu.dot_dimension_numbers<[1], [0], [0], [1], [0, 0, 1, 1], [], []>} : vector<8x512xbf16>, vector<512x256xbf16>, vector<8x256xf32> -> vector<8x256xf32>
    %c0_9 = arith.constant 0 : index
    %c0_10 = arith.constant 0 : index
    %12 = vector.load %arg5[%c0_9, %c0_10] : memref<1x256xf32, #tpu.memory_space<vmem>>, vector<1x256xf32>
    %13 = vector.broadcast %12 : vector<1x256xf32> to vector<8x256xf32>
    %14 = arith.addf %11, %13 : vector<8x256xf32>
    %cst_11 = arith.constant 0.000000e+00 : f32
    %15 = vector.broadcast %cst_11 : f32 to vector<8x256xf32>
    %16 = arith.maximumf %14, %15 : vector<8x256xf32>
    %17 = arith.truncf %16 : vector<8x256xf32> to vector<8x256xbf16>
    %c0_12 = arith.constant 0 : index
    %c0_13 = arith.constant 0 : index
    %18 = vector.load %arg6[%c0_12, %c0_13] : memref<256x10xbf16, #tpu.memory_space<vmem>>, vector<256x10xbf16>
    %cst_14 = arith.constant dense<0.000000e+00> : vector<8x10xf32>
    %19 = tpu.matmul %17, %18, %cst_14 {dimension_numbers = #tpu.dot_dimension_numbers<[1], [0], [0], [1], [0, 0, 1, 1], [], []>} : vector<8x256xbf16>, vector<256x10xbf16>, vector<8x10xf32> -> vector<8x10xf32>
    %c0_15 = arith.constant 0 : index
    %c0_16 = arith.constant 0 : index
    %20 = vector.load %arg7[%c0_15, %c0_16] : memref<1x10xf32, #tpu.memory_space<vmem>>, vector<1x10xf32>
    %21 = vector.broadcast %20 : vector<1x10xf32> to vector<8x10xf32>
    %22 = arith.addf %19, %21 : vector<8x10xf32>
    %cst_17 = arith.constant dense<0xFF800000> : vector<8xf32>
    %23 = vector.multi_reduction <maximumf>, %22, %cst_17 [1] : vector<8x10xf32> to vector<8xf32>
    %24 = vector.shape_cast %23 : vector<8xf32> to vector<8x1xf32>
    %25 = vector.broadcast %24 : vector<8x1xf32> to vector<8x10xf32>
    %26 = arith.subf %22, %25 : vector<8x10xf32>
    %27 = math.exp %26 : vector<8x10xf32>
    %cst_18 = arith.constant dense<0.000000e+00> : vector<8xf32>
    %28 = vector.multi_reduction <add>, %27, %cst_18 [1] : vector<8x10xf32> to vector<8xf32>
    %29 = vector.shape_cast %28 : vector<8xf32> to vector<8x1xf32>
    %30 = math.log %29 : vector<8x1xf32>
    %31 = vector.broadcast %30 : vector<8x1xf32> to vector<8x10xf32>
    %32 = arith.subf %26, %31 : vector<8x10xf32>
    %c0_19 = arith.constant 0 : index
    %c0_20 = arith.constant 0 : index
    %33 = vector.load %arg8[%c0_19, %c0_20] : memref<8x10xf32, #tpu.memory_space<vmem>>, vector<8x10xf32>
    tpu.vector_store %arg8[%c0_19, %c0_20], %32 {strides = array<i32>} : memref<8x10xf32, #tpu.memory_space<vmem>>, vector<8x10xf32>,
    return
  }
  func.func @transform_0(%arg0: i32) -> (i32, i32) {
    %c0_i32 = arith.constant 0 : i32
    %c0_i32_0 = arith.constant 0 : i32
    %c0_i32_1 = arith.constant 0 : i32
    return %c0_i32, %c0_i32_0 : i32, i32
  }
  func.func @transform_1(%arg0: i32) -> (i32, i32) {
    %c0_i32 = arith.constant 0 : i32
    %c0_i32_0 = arith.constant 0 : i32
    %c0_i32_1 = arith.constant 0 : i32
    return %c0_i32, %c0_i32_0 : i32, i32
  }
  func.func @transform_2(%arg0: i32) -> (i32, i32) {
    %c0_i32 = arith.constant 0 : i32
    %c0_i32_0 = arith.constant 0 : i32
    %c0_i32_1 = arith.constant 0 : i32
    return %c0_i32, %c0_i32_0 : i32, i32
  }
  func.func @transform_3(%arg0: i32) -> (i32, i32) {
    %c0_i32 = arith.constant 0 : i32
    %c0_i32_0 = arith.constant 0 : i32
    %c0_i32_1 = arith.constant 0 : i32
    return %c0_i32, %c0_i32_0 : i32, i32
  }
  func.func @transform_4(%arg0: i32) -> (i32, i32) {
    %c0_i32 = arith.constant 0 : i32
    %c0_i32_0 = arith.constant 0 : i32
    %c0_i32_1 = arith.constant 0 : i32
    return %c0_i32, %c0_i32_0 : i32, i32
  }
  func.func @transform_5(%arg0: i32) -> (i32, i32) {
    %c0_i32 = arith.constant 0 : i32
    %c0_i32_0 = arith.constant 0 : i32
    %c0_i32_1 = arith.constant 0 : i32
    return %c0_i32, %c0_i32_0 : i32, i32
  }
  func.func @transform_6(%arg0: i32) -> (i32, i32) {
    %c0_i32 = arith.constant 0 : i32
    %c0_i32_0 = arith.constant 0 : i32
    %c0_i32_1 = arith.constant 0 : i32
    return %c0_i32, %c0_i32_0 : i32, i32
  }
  func.func @transform_7(%arg0: i32) -> (i32, i32) {
    %c0_i32 = arith.constant 0 : i32
    %c0_i32_0 = arith.constant 0 : i32
    %c0_i32_1 = arith.constant 0 : i32
    return %c0_i32, %c0_i32_0 : i32, i32
  }
}

</mosaic_0001>

<llo_original>
// kernel: dpcn_forward.3
$region0: #{dpcn_forward.3}
  #allocation0 [shape = 'u32[]', space=smem, size = 0x4, offset = 0x4, fixed_abs, tag = 'smem constant byte address 0x4 - core index']
  #allocation1 [shape = 'u32[144,128]{1,0:T(1,128)}', space=vmem, size = 0x12000, scoped, tag = 'internal scratch']
  %s0 = inlined_call_operand.vmem [shape: f32[128,2], index: 0, kind: input, shape index: {}]
  %s1 = inlined_call_operand.vmem [shape: f32[128,2], index: 1, kind: input, shape index: {}]
  %s2 = inlined_call_operand.vmem [shape: f32[128,2], index: 2, kind: input, shape index: {}]
  %s3 = inlined_call_operand.vmem [shape: bf16[2,64], index: 3, kind: input, shape index: {}]
  %s4 = inlined_call_operand.vmem [shape: bf16[2,64], index: 4, kind: input, shape index: {}]
  %s5 = inlined_call_operand.vmem [shape: bf16[2,64], index: 5, kind: input, shape index: {}]
  %s6 = inlined_call_operand.vmem [shape: f32[1,64], index: 6, kind: input, shape index: {}]
  %s7 = inlined_call_operand.vmem [shape: bf16[64,64], index: 7, kind: input, shape index: {}]
  %s8 = inlined_call_operand.vmem [shape: f32[1,64], index: 8, kind: input, shape index: {}]
  %s9 = inlined_call_operand.vmem [shape: bf16[64,64], index: 9, kind: input, shape index: {}]
  %s10 = inlined_call_operand.vmem [shape: f32[1,64], index: 10, kind: input, shape index: {}]
  %s11 = inlined_call_operand.vmem [shape: bf16[128,64], index: 11, kind: output, shape index: {}]
  %s12 = sld [smem:[#allocation0]]
  $region77: #{dpcn_forward.3} parent=0
    _
  %s14 = ssub.s32 1, %s12
  %s15 = scalar_select 0, %s14, %s12
  loop: start=0, step=1, limit=4
  $region2: #{dpcn_forward.3} parent=0 // loop_pre_header
    _
  $region3: #{dpcn_forward.3} parent=0 // loop_header
    %s17 = sphi 0, %s21
    %p18 = scmp.ge.s32.totalorder %s17, 4
    %s27 = sphi 0, %s29
    %s30 = sphi 0, %s27
    %s31 = sphi 0, %s30
    %s47 = sphi 0, %s31
    %s53 = sphi 0, %s55
    %s56 = sphi 0, %s53
    %s57 = sphi 0, %s56
    %s73 = sphi 0, %s57
    %s79 = sphi 0, %s81
    %s82 = sphi 0, %s79
    %s83 = sphi 0, %s82
    %s99 = sphi 0, %s83
    %s103 = sphi 0, %s103
    %s105 = sphi 0, %s103
    %s106 = sphi 0, %s105
    %s120 = sphi 0, %s106
    %s124 = sphi 0, %s124
    %s126 = sphi 0, %s124
    %s127 = sphi 0, %s126
    %s141 = sphi 0, %s127
    %s145 = sphi 0, %s145
    %s147 = sphi 0, %s145
    %s148 = sphi 0, %s147
    %s162 = sphi 0, %s148
    %s166 = sphi 0, %s166
    %s168 = sphi 0, %s166
    %s169 = sphi 0, %s168
    %s183 = sphi 0, %s169
    %s187 = sphi 0, %s187
    %s189 = sphi 0, %s187
    %s190 = sphi 0, %s189
    %s204 = sphi 0, %s190
    %s208 = sphi 0, %s208
    %s210 = sphi 0, %s208
    %s211 = sphi 0, %s210
    %s225 = sphi 0, %s211
    %s229 = sphi 0, %s229
    %s231 = sphi 0, %s229
    %s232 = sphi 0, %s231
    %s246 = sphi 0, %s232
    %s250 = sphi 0, %s250
    %s252 = sphi 0, %s250
    %s253 = sphi 0, %s252
    %s267 = sphi 0, %s253
    %s273 = sphi 0, %s275
    %s276 = sphi 0, %s273
    %s277 = sphi 0, %s276
    %s293 = sphi 0, %s277
  $region4: #{dpcn_forward.3} parent=0 // loop_header_branch
    %20 = sbr.rel (%p18) target = $region8
  $region5: #{dpcn_forward.3} parent=0 // loop_body
    %s22 = ssub.s32 %s17, 1
    %s23 = ssub.s32 %s17, 2
    %s24 = sadd.s32 %s17, 1
    %s25 = ssub.s32 %s17, %s24
    %p26 = scmp.eq.s32.totalorder %s25, 0
    %s28 = sadd.s32 %s27, 1
    %s29 = scalar_select %p26, %s27, %s28
    %p32 = pneg %p26
    %p33 = scmp.eq.s32.totalorder %s17, 1
    %p34 = por %p32, %p33
    %p35 = scmp.ne.s32.totalorder %s27, %s30
    %p36 = scmp.eq.s32.totalorder %s17, 0
    %p37 = por %p35, %p36
    %p38 = scmp.ne.s32.totalorder %s27, %s30
    %p39 = scmp.eq.s32.totalorder %s22, 1
    %p40 = por %p38, %p39
    %p41 = scmp.ne.s32.totalorder %s30, %s31
    %p42 = scmp.eq.s32.totalorder %s22, 0
    %p43 = por %p41, %p42
    %p44 = scmp.ne.s32.totalorder %s30, %s31
    %p45 = scmp.eq.s32.totalorder %s23, 1
    %p46 = por %p44, %p45
    %p48 = scmp.ne.s32.totalorder %s31, %s47
    %p49 = scmp.eq.s32.totalorder %s23, 0
    %p50 = por %p48, %p49
    %s51 = ssub.s32 %s17, %s24
    %p52 = scmp.eq.s32.totalorder %s51, 0
    %s54 = sadd.s32 %s53, 1
    %s55 = scalar_select %p52, %s53, %s54
    %p58 = pneg %p52
    %p59 = scmp.eq.s32.totalorder %s17, 1
    %p60 = por %p58, %p59
    %p61 = scmp.ne.s32.totalorder %s53, %s56
    %p62 = scmp.eq.s32.totalorder %s17, 0
    %p63 = por %p61, %p62
    %p64 = scmp.ne.s32.totalorder %s53, %s56
    %p65 = scmp.eq.s32.totalorder %s22, 1
    %p66 = por %p64, %p65
    %p67 = scmp.ne.s32.totalorder %s56, %s57
    %p68 = scmp.eq.s32.totalorder %s22, 0
    %p69 = por %p67, %p68
    %p70 = scmp.ne.s32.totalorder %s56, %s57
    %p71 = scmp.eq.s32.totalorder %s23, 1
    %p72 = por %p70, %p71
    %p74 = scmp.ne.s32.totalorder %s57, %s73
    %p75 = scmp.eq.s32.totalorder %s23, 0
    %p76 = por %p74, %p75
    %s77 = ssub.s32 %s17, %s24
    %p78 = scmp.eq.s32.totalorder %s77, 0
    %s80 = sadd.s32 %s79, 1
    %s81 = scalar_select %p78, %s79, %s80
    %p84 = pneg %p78
    %p85 = scmp.eq.s32.totalorder %s17, 1
    %p86 = por %p84, %p85
    %p87 = scmp.ne.s32.totalorder %s79, %s82
    %p88 = scmp.eq.s32.totalorder %s17, 0
    %p89 = por %p87, %p88
    %p90 = scmp.ne.s32.totalorder %s79, %s82
    %p91 = scmp.eq.s32.totalorder %s22, 1
    %p92 = por %p90, %p91
    %p93 = scmp.ne.s32.totalorder %s82, %s83
    %p94 = scmp.eq.s32.totalorder %s22, 0
    %p95 = por %p93, %p94
    %p96 = scmp.ne.s32.totalorder %s82, %s83
    %p97 = scmp.eq.s32.totalorder %s23, 1
    %p98 = por %p96, %p97
    %p100 = scmp.ne.s32.totalorder %s83, %s99
    %p101 = scmp.eq.s32.totalorder %s23, 0
    %p102 = por %p100, %p101
    %s104 = sadd.s32 %s103, 1
    %p107 = scmp.eq.s32.totalorder %s17, 1
    %p108 = scmp.ne.s32.totalorder %s103, %s105
    %p109 = scmp.eq.s32.totalorder %s17, 0
    %p110 = por %p108, %p109
    %p111 = scmp.ne.s32.totalorder %s103, %s105
    %p112 = scmp.eq.s32.totalorder %s22, 1
    %p113 = por %p111, %p112
    %p114 = scmp.ne.s32.totalorder %s105, %s106
    %p115 = scmp.eq.s32.totalorder %s22, 0
    %p116 = por %p114, %p115
    %p117 = scmp.ne.s32.totalorder %s105, %s106
    %p118 = scmp.eq.s32.totalorder %s23, 1
    %p119 = por %p117, %p118
    %p121 = scmp.ne.s32.totalorder %s106, %s120
    %p122 = scmp.eq.s32.totalorder %s23, 0
    %p123 = por %p121, %p122
    %s125 = sadd.s32 %s124, 1
    %p128 = scmp.eq.s32.totalorder %s17, 1
    %p129 = scmp.ne.s32.totalorder %s124, %s126
    %p130 = scmp.eq.s32.totalorder %s17, 0
    %p131 = por %p129, %p130
    %p132 = scmp.ne.s32.totalorder %s124, %s126
    %p133 = scmp.eq.s32.totalorder %s22, 1
    %p134 = por %p132, %p133
    %p135 = scmp.ne.s32.totalorder %s126, %s127
    %p136 = scmp.eq.s32.totalorder %s22, 0
    %p137 = por %p135, %p136
    %p138 = scmp.ne.s32.totalorder %s126, %s127
    %p139 = scmp.eq.s32.totalorder %s23, 1
    %p140 = por %p138, %p139
    %p142 = scmp.ne.s32.totalorder %s127, %s141
    %p143 = scmp.eq.s32.totalorder %s23, 0
    %p144 = por %p142, %p143
    %s146 = sadd.s32 %s145, 1
    %p149 = scmp.eq.s32.totalorder %s17, 1
    %p150 = scmp.ne.s32.totalorder %s145, %s147
    %p151 = scmp.eq.s32.totalorder %s17, 0
    %p152 = por %p150, %p151
    %p153 = scmp.ne.s32.totalorder %s145, %s147
    %p154 = scmp.eq.s32.totalorder %s22, 1
    %p155 = por %p153, %p154
    %p156 = scmp.ne.s32.totalorder %s147, %s148
    %p157 = scmp.eq.s32.totalorder %s22, 0
    %p158 = por %p156, %p157
    %p159 = scmp.ne.s32.totalorder %s147, %s148
    %p160 = scmp.eq.s32.totalorder %s23, 1
    %p161 = por %p159, %p160
    %p163 = scmp.ne.s32.totalorder %s148, %s162
    %p164 = scmp.eq.s32.totalorder %s23, 0
    %p165 = por %p163, %p164
    %s167 = sadd.s32 %s166, 1
    %p170 = scmp.eq.s32.totalorder %s17, 1
    %p171 = scmp.ne.s32.totalorder %s166, %s168
    %p172 = scmp.eq.s32.totalorder %s17, 0
    %p173 = por %p171, %p172
    %p174 = scmp.ne.s32.totalorder %s166, %s168
    %p175 = scmp.eq.s32.totalorder %s22, 1
    %p176 = por %p174, %p175
    %p177 = scmp.ne.s32.totalorder %s168, %s169
    %p178 = scmp.eq.s32.totalorder %s22, 0
    %p179 = por %p177, %p178
    %p180 = scmp.ne.s32.totalorder %s168, %s169
    %p181 = scmp.eq.s32.totalorder %s23, 1
    %p182 = por %p180, %p181
    %p184 = scmp.ne.s32.totalorder %s169, %s183
    %p185 = scmp.eq.s32.totalorder %s23, 0
    %p186 = por %p184, %p185
    %s188 = sadd.s32 %s187, 1
    %p191 = scmp.eq.s32.totalorder %s17, 1
    %p192 = scmp.ne.s32.totalorder %s187, %s189
    %p193 = scmp.eq.s32.totalorder %s17, 0
    %p194 = por %p192, %p193
    %p195 = scmp.ne.s32.totalorder %s187, %s189
    %p196 = scmp.eq.s32.totalorder %s22, 1
    %p197 = por %p195, %p196
    %p198 = scmp.ne.s32.totalorder %s189, %s190
    %p199 = scmp.eq.s32.totalorder %s22, 0
    %p200 = por %p198, %p199
    %p201 = scmp.ne.s32.totalorder %s189, %s190
    %p202 = scmp.eq.s32.totalorder %s23, 1
    %p203 = por %p201, %p202
    %p205 = scmp.ne.s32.totalorder %s190, %s204
    %p206 = scmp.eq.s32.totalorder %s23, 0
    %p207 = por %p205, %p206
    %s209 = sadd.s32 %s208, 1
    %p212 = scmp.eq.s32.totalorder %s17, 1
    %p213 = scmp.ne.s32.totalorder %s208, %s210
    %p214 = scmp.eq.s32.totalorder %s17, 0
    %p215 = por %p213, %p214
    %p216 = scmp.ne.s32.totalorder %s208, %s210
    %p217 = scmp.eq.s32.totalorder %s22, 1
    %p218 = por %p216, %p217
    %p219 = scmp.ne.s32.totalorder %s210, %s211
    %p220 = scmp.eq.s32.totalorder %s22, 0
    %p221 = por %p219, %p220
    %p222 = scmp.ne.s32.totalorder %s210, %s211
    %p223 = scmp.eq.s32.totalorder %s23, 1
    %p224 = por %p222, %p223
    %p226 = scmp.ne.s32.totalorder %s211, %s225
    %p227 = scmp.eq.s32.totalorder %s23, 0
    %p228 = por %p226, %p227
    %s230 = sadd.s32 %s229, 1
    %p233 = scmp.eq.s32.totalorder %s17, 1
    %p234 = scmp.ne.s32.totalorder %s229, %s231
    %p235 = scmp.eq.s32.totalorder %s17, 0
    %p236 = por %p234, %p235
    %p237 = scmp.ne.s32.totalorder %s229, %s231
    %p238 = scmp.eq.s32.totalorder %s22, 1
    %p239 = por %p237, %p238
    %p240 = scmp.ne.s32.totalorder %s231, %s232
    %p241 = scmp.eq.s32.totalorder %s22, 0
    %p242 = por %p240, %p241
    %p243 = scmp.ne.s32.totalorder %s231, %s232
    %p244 = scmp.eq.s32.totalorder %s23, 1
    %p245 = por %p243, %p244
    %p247 = scmp.ne.s32.totalorder %s232, %s246
    %p248 = scmp.eq.s32.totalorder %s23, 0
    %p249 = por %p247, %p248
    %s251 = sadd.s32 %s250, 1
    %p254 = scmp.eq.s32.totalorder %s17, 1
    %p255 = scmp.ne.s32.totalorder %s250, %s252
    %p256 = scmp.eq.s32.totalorder %s17, 0
    %p257 = por %p255, %p256
    %p258 = scmp.ne.s32.totalorder %s250, %s252
    %p259 = scmp.eq.s32.totalorder %s22, 1
    %p260 = por %p258, %p259
    %p261 = scmp.ne.s32.totalorder %s252, %s253
    %p262 = scmp.eq.s32.totalorder %s22, 0
    %p263 = por %p261, %p262
    %p264 = scmp.ne.s32.totalorder %s252, %s253
    %p265 = scmp.eq.s32.totalorder %s23, 1
    %p266 = por %p264, %p265
    %p268 = scmp.ne.s32.totalorder %s253, %s267
    %p269 = scmp.eq.s32.totalorder %s23, 0
    %p270 = por %p268, %p269
    %s271 = ssub.s32 %s17, %s24
    %p272 = scmp.eq.s32.totalorder %s271, 0
    %s274 = sadd.s32 %s273, 1
    %s275 = scalar_select %p272, %s273, %s274
    %p278 = pneg %p272
    %p279 = scmp.eq.s32.totalorder %s17, 1
    %p280 = por %p278, %p279
    %p281 = scmp.ne.s32.totalorder %s273, %s276
    %p282 = scmp.eq.s32.totalorder %s17, 0
    %p283 = por %p281, %p282
    %p284 = scmp.ne.s32.totalorder %s273, %s276
    %p285 = scmp.eq.s32.totalorder %s22, 1
    %p286 = por %p284, %p285
    %p287 = scmp.ne.s32.totalorder %s276, %s277
    %p288 = scmp.eq.s32.totalorder %s22, 0
    %p289 = por %p287, %p288
    %p290 = scmp.ne.s32.totalorder %s276, %s277
    %p291 = scmp.eq.s32.totalorder %s23, 1
    %p292 = por %p290, %p291
    %p294 = scmp.ne.s32.totalorder %s277, %s293
    %p295 = scmp.eq.s32.totalorder %s23, 0
    %p296 = por %p294, %p295
    %p297 = scmp.le.s32.totalorder 1, %s17
    %p298 = scmp.lt.s32.totalorder %s17, 3
    %p299 = pnand %p297, %p298
    %p300 = pneg %p299
    // Predicated region
    $region9: #{dpcn_forward.3} parent=5 // pred_check
      _
    $region10: #{dpcn_forward.3} parent=5 // pred_check_branch
      %302 = sbr.rel (%p299) target = $region12
    $region11: #{dpcn_forward.3} parent=5 // pred_region
      %s303 = ssub.s32 %s17, 1
      // Predicated region
      $region13: #{dpcn_forward.3} parent=11 // pred_check
        %p304 = pneg %p116
      $region14: #{dpcn_forward.3} parent=11 // pred_check_branch
        %306 = sbr.rel (%p304) target = $region16
      $region15: #{dpcn_forward.3} parent=11 // pred_region
        _
      $region16: #{dpcn_forward.3} parent=11 // pred_fallthru
        _
      // Predicated region
      $region17: #{dpcn_forward.3} parent=11 // pred_check
        %p307 = pneg %p137
      $region18: #{dpcn_forward.3} parent=11 // pred_check_branch
        %309 = sbr.rel (%p307) target = $region20
      $region19: #{dpcn_forward.3} parent=11 // pred_region
        _
      $region20: #{dpcn_forward.3} parent=11 // pred_fallthru
        _
      // Predicated region
      $region21: #{dpcn_forward.3} parent=11 // pred_check
        %p310 = pneg %p158
      $region22: #{dpcn_forward.3} parent=11 // pred_check_branch
        %312 = sbr.rel (%p310) target = $region24
      $region23: #{dpcn_forward.3} parent=11 // pred_region
        _
      $region24: #{dpcn_forward.3} parent=11 // pred_fallthru
        _
      // Predicated region
      $region25: #{dpcn_forward.3} parent=11 // pred_check
        %p313 = pneg %p179
      $region26: #{dpcn_forward.3} parent=11 // pred_check_branch
        %315 = sbr.rel (%p313) target = $region28
      $region27: #{dpcn_forward.3} parent=11 // pred_region
        _
      $region28: #{dpcn_forward.3} parent=11 // pred_fallthru
        _
      // Predicated region
      $region29: #{dpcn_forward.3} parent=11 // pred_check
        %p316 = pneg %p200
      $region30: #{dpcn_forward.3} parent=11 // pred_check_branch
        %318 = sbr.rel (%p316) target = $region32
      $region31: #{dpcn_forward.3} parent=11 // pred_region
        _
      $region32: #{dpcn_forward.3} parent=11 // pred_fallthru
        _
      // Predicated region
      $region33: #{dpcn_forward.3} parent=11 // pred_check
        %p319 = pneg %p221
      $region34: #{dpcn_forward.3} parent=11 // pred_check_branch
        %321 = sbr.rel (%p319) target = $region36
      $region35: #{dpcn_forward.3} parent=11 // pred_region
        _
      $region36: #{dpcn_forward.3} parent=11 // pred_fallthru
        _
      // Predicated region
      $region37: #{dpcn_forward.3} parent=11 // pred_check
        %p322 = pneg %p242
      $region38: #{dpcn_forward.3} parent=11 // pred_check_branch
        %324 = sbr.rel (%p322) target = $region40
      $region39: #{dpcn_forward.3} parent=11 // pred_region
        _
      $region40: #{dpcn_forward.3} parent=11 // pred_fallthru
        _
      // Predicated region
      $region41: #{dpcn_forward.3} parent=11 // pred_check
        %p325 = pneg %p263
      $region42: #{dpcn_forward.3} parent=11 // pred_check_branch
        %327 = sbr.rel (%p325) target = $region44
      $region43: #{dpcn_forward.3} parent=11 // pred_region
        _
      $region44: #{dpcn_forward.3} parent=11 // pred_fallthru
        _
    $region12: #{dpcn_forward.3} parent=5 // pred_fallthru
      _
    %p328 = scmp.lt.s32.totalorder %s17, 2
    // Predicated region
    $region45: #{dpcn_forward.3} parent=5 // pred_check
      %p329 = pneg %p328
    $region46: #{dpcn_forward.3} parent=5 // pred_check_branch
      %331 = sbr.rel (%p329) target = $region48
    $region47: #{dpcn_forward.3} parent=5 // pred_region
      // Predicated region
      $region49: #{dpcn_forward.3} parent=47 // pred_check
        %p332 = pneg %p37
      $region50: #{dpcn_forward.3} parent=47 // pred_check_branch
        %334 = sbr.rel (%p332) target = $region52
      $region51: #{dpcn_forward.3} parent=47 // pred_region
        %s335 = smul.u32 8, %s17
        %p336 = scmp.lt.s32.totalorder %s335, 15
        %s337 = scalar_select %p336, %s335, 15
        %s338 = smul.addr %s337, 8
        %s339 = scalar_lea.vmem %s0, %s338
        %s340 = smul.u32 8, %s17
      $region52: #{dpcn_forward.3} parent=47 // pred_fallthru
        _
      // Predicated region
      $region53: #{dpcn_forward.3} parent=47 // pred_check
        %p341 = pneg %p63
      $region54: #{dpcn_forward.3} parent=47 // pred_check_branch
        %343 = sbr.rel (%p341) target = $region56
      $region55: #{dpcn_forward.3} parent=47 // pred_region
        %s344 = smul.u32 8, %s17
        %p345 = scmp.lt.s32.totalorder %s344, 15
        %s346 = scalar_select %p345, %s344, 15
        %s347 = smul.addr %s346, 8
        %s348 = scalar_lea.vmem %s1, %s347
        %s349 = smul.u32 8, %s17
      $region56: #{dpcn_forward.3} parent=47 // pred_fallthru
        _
      // Predicated region
      $region57: #{dpcn_forward.3} parent=47 // pred_check
        %p350 = pneg %p89
      $region58: #{dpcn_forward.3} parent=47 // pred_check_branch
        %352 = sbr.rel (%p350) target = $region60
      $region59: #{dpcn_forward.3} parent=47 // pred_region
        %s353 = smul.u32 8, %s17
        %p354 = scmp.lt.s32.totalorder %s353, 15
        %s355 = scalar_select %p354, %s353, 15
        %s356 = smul.addr %s355, 8
        %s357 = scalar_lea.vmem %s2, %s356
        %s358 = smul.u32 8, %s17
      $region60: #{dpcn_forward.3} parent=47 // pred_fallthru
        _
    $region48: #{dpcn_forward.3} parent=5 // pred_fallthru
      _
    %p359 = scmp.le.s32.totalorder 1, %s17
    %p360 = scmp.lt.s32.totalorder %s17, 3
    %p361 = pnand %p359, %p360
    %p362 = pneg %p361
    // Predicated region
    $region61: #{dpcn_forward.3} parent=5 // pred_check
      _
    $region62: #{dpcn_forward.3} parent=5 // pred_check_branch
      %364 = sbr.rel (%p361) target = $region64
    $region63: #{dpcn_forward.3} parent=5 // pred_region
      %s365 = ssub.s32 %s17, 1
      %s366 = smul.u32 8, %s22
      %p367 = scmp.lt.s32.totalorder %s366, 15
      %s368 = scalar_select %p367, %s366, 15
      %s369 = smul.addr %s368, 8
      %s370 = scalar_lea.vmem %s0, %s369
      %p371 = pneg %p43
      %p372 = pneg %p40
      %s373 = smul.u32 8, %s22
      %p374 = scmp.lt.s32.totalorder %s373, 15
      %s375 = scalar_select %p374, %s373, 15
      %s376 = smul.addr %s375, 8
      %s377 = scalar_lea.vmem %s1, %s376
      %p378 = pneg %p69
      %p379 = pneg %p66
      %s380 = smul.u32 8, %s22
      %p381 = scmp.lt.s32.totalorder %s380, 15
      %s382 = scalar_select %p381, %s380, 15
      %s383 = smul.addr %s382, 8
      %s384 = scalar_lea.vmem %s2, %s383
      %p385 = pneg %p95
      %p386 = pneg %p92
      %p387 = pneg %p116
      %p388 = pneg %p113
      %p389 = pneg %p137
      %p390 = pneg %p134
      %p391 = pneg %p158
      %p392 = pneg %p155
      %p393 = pneg %p179
      %p394 = pneg %p176
      %p395 = pneg %p200
      %p396 = pneg %p197
      %p397 = pneg %p221
      %p398 = pneg %p218
      %p399 = pneg %p242
      %p400 = pneg %p239
      %p401 = pneg %p263
      %p402 = pneg %p260
      %p403 = pneg %p289
      %p404 = pneg %p286
      %s405 = smul.u32 8, %s22
      %p406 = scmp.lt.s32.totalorder %s405, 15
      %s407 = scalar_select %p406, %s405, 15
      %s408 = smul.addr %s407, 4
      %s409 = scalar_lea.vmem %s11, %s408
      %s410 = smul.u32 8, %s22
      %p411 = scmp.lt.s32.totalorder %s410, 15
      %s412 = scalar_select %p411, %s410, 15
      %s413 = smul.addr %s412, 8
      %s414 = scalar_lea.vmem %s0, %s413
      %s415 = smul.u32 8, %s22
      %s416 = smul.u32 8, %s22
      %p417 = scmp.lt.s32.totalorder %s416, 15
      %s418 = scalar_select %p417, %s416, 15
      %s419 = smul.addr %s418, 8
      %s420 = scalar_lea.vmem %s1, %s419
      %s421 = smul.u32 8, %s22
      %s422 = smul.u32 8, %s22
      %p423 = scmp.lt.s32.totalorder %s422, 15
      %s424 = scalar_select %p423, %s422, 15
      %s425 = smul.addr %s424, 8
      %s426 = scalar_lea.vmem %s2, %s425
      %s427 = smul.u32 8, %s22
      %s428 = smul.u32 8, %s22
      %p429 = scmp.lt.s32.totalorder %s428, 15
      %s430 = scalar_select %p429, %s428, 15
      %s431 = smul.addr %s430, 4
      %s432 = scalar_lea.vmem %s11, %s431
      %s433 = smul.u32 8, %s22
      %v435 = vld [vmem:[%s414] sm:$0xff]
      %v436 = vld [vmem:[%s414 + $0x8] sm:$0xff]
      %v437 = vld [vmem:[%s414 + $0x10] sm:$0xff]
      %v438 = vld [vmem:[%s414 + $0x18] sm:$0xff]
      %v439 = vld [vmem:[%s414 + $0x20] sm:$0xff]
      %v440 = vld [vmem:[%s414 + $0x28] sm:$0xff]
      %v441 = vld [vmem:[%s414 + $0x30] sm:$0xff]
      %v442 = vld [vmem:[%s414 + $0x38] sm:$0xff]
      %v443 = vpack.c.bf16 %v436, %v435
      %v444 = vpack.c.bf16 %v438, %v437
      %v445 = vpack.c.bf16 %v440, %v439
      %v446 = vpack.c.bf16 %v442, %v441
      %v447 = vld [vmem:[%s3] sm:$0x1]
      %v448 = vld [vmem:[%s420] sm:$0xff]
      %v449 = vld [vmem:[%s420 + $0x8] sm:$0xff]
      %v450 = vld [vmem:[%s420 + $0x10] sm:$0xff]
      %v451 = vld [vmem:[%s420 + $0x18] sm:$0xff]
      %v452 = vld [vmem:[%s420 + $0x20] sm:$0xff]
      %v453 = vld [vmem:[%s420 + $0x28] sm:$0xff]
      %v454 = vld [vmem:[%s420 + $0x30] sm:$0xff]
      %v455 = vld [vmem:[%s420 + $0x38] sm:$0xff]
      %v456 = vpack.c.bf16 %v449, %v448
      %v457 = vpack.c.bf16 %v451, %v450
      %v458 = vpack.c.bf16 %v453, %v452
      %v459 = vpack.c.bf16 %v455, %v454
      %v460 = vld [vmem:[%s4] sm:$0x1]
      %vm461 = vcmask 15360
      %v463 = vsel %vm461, %v456, 0
      %v466 = vsel %vm461, %v457, 0
      %v469 = vsel %vm461, %v458, 0
      %v472 = vsel %vm461, %v459, 0
      %vm474 = vcmask 1040384
      %v476 = vsel %vm474, %v460, 0
      %478 = vmatprep.subr.bf16.mxu0 0
      %479 = vmatpush1.bf16.msra.mxu0 %v476
      %480 = vmatprep.subr.bf16.mxu0 0
      %481 = vmatpush1.bf16.msra.mxu0 0
      %482 = vmatprep.subr.bf16.mxu0 0
      %483 = vmatpush1.bf16.msra.mxu0 0
      %484 = vmatprep.subr.bf16.mxu0 0
      %485 = vmatpush1.bf16.msra.mxu0 0
      %486 = vmatprep.subr.bf16.mxu0 0
      %487 = vmatpush1.bf16.msra.mxu0 0
      %488 = vmatprep.subr.bf16.mxu0 0
      %489 = vmatpush1.bf16.msra.mxu0 0
      %490 = vmatprep.subr.bf16.mxu0 0
      %491 = vmatpush1.bf16.msra.mxu0 0
      %492 = vmatprep.subr.bf16.mxu0 0
      %493 = vmatpush1.bf16.msra.mxu0 0
      %494 = vmatprep.subr.bf16.mxu0 0
      %495 = vmatpush1.bf16.msra.mxu0 0
      %496 = vmatprep.subr.bf16.mxu0 0
      %497 = vmatpush1.bf16.msra.mxu0 0
      %498 = vmatprep.subr.bf16.mxu0 0
      %499 = vmatpush1.bf16.msra.mxu0 0
      %500 = vmatprep.subr.bf16.mxu0 0
      %501 = vmatpush1.bf16.msra.mxu0 0
      %502 = vmatprep.subr.bf16.mxu0 0
      %503 = vmatpush1.bf16.msra.mxu0 0
      %504 = vmatprep.subr.bf16.mxu0 0
      %505 = vmatpush1.bf16.msra.mxu0 0
      %506 = vmatprep.subr.bf16.mxu0 0
      %507 = vmatpush1.bf16.msra.mxu0 0
      %508 = vmatprep.subr.bf16.mxu0 0
      %509 = vmatpush1.bf16.msra.mxu0 0
      %510 = vmatprep.mubr.bf16.mxu0 0
      %511 = vmatmul.mubr.bf16.gmra.mrb[0].mxu0 %v463
      %v512 = vpop.f32.mrb[0].mxu0
      %v513 = vadd.f32 0.0, %v512
      %v514 = vpop.f32.mrb[0].mxu0
      %v515 = vpop.f32.mrb[0].mxu0
      %v516 = vadd.f32 0.0, %v515
      %v517 = vpop.f32.mrb[0].mxu0
      %518 = vmatprep.mubr.bf16.mxu0 0
      %519 = vmatmul.mubr.bf16.gmra.mrb[0].mxu0 %v466
      %v520 = vpop.f32.mrb[0].mxu0
      %v521 = vadd.f32 0.0, %v520
      %v522 = vpop.f32.mrb[0].mxu0
      %v523 = vpop.f32.mrb[0].mxu0
      %v524 = vadd.f32 0.0, %v523
      %v525 = vpop.f32.mrb[0].mxu0
      %526 = vmatprep.mubr.bf16.mxu0 0
      %527 = vmatmul.mubr.bf16.gmra.mrb[0].mxu0 %v469
      %v528 = vpop.f32.mrb[0].mxu0
      %v529 = vadd.f32 0.0, %v528
      %v530 = vpop.f32.mrb[0].mxu0
      %v531 = vpop.f32.mrb[0].mxu0
      %v532 = vadd.f32 0.0, %v531
      %v533 = vpop.f32.mrb[0].mxu0
      %534 = vmatprep.mubr.bf16.mxu0 0
      %535 = vmatmul.mubr.bf16.gmra.mrb[0].mxu0 %v472
      %v536 = vpop.f32.mrb[0].mxu0
      %v537 = vadd.f32 0.0, %v536
      %v538 = vpop.f32.mrb[0].mxu0
      %v539 = vpop.f32.mrb[0].mxu0
      %v540 = vadd.f32 0.0, %v539
      %v541 = vpop.f32.mrb[0].mxu0
      %542 = vdwg.mxu0
      %v544 = vsel %vm461, %v443, 0
      %v547 = vsel %vm461, %v444, 0
      %v550 = vsel %vm461, %v445, 0
      %v553 = vsel %vm461, %v446, 0
      %v556 = vsel %vm474, %v447, 0
      %558 = vmatprep.subr.bf16.mxu0 0
      %559 = vmatpush1.bf16.msra.mxu0 %v556
      %560 = vmatprep.subr.bf16.mxu0 0
      %561 = vmatpush1.bf16.msra.mxu0 0
      %562 = vmatprep.subr.bf16.mxu0 0
      %563 = vmatpush1.bf16.msra.mxu0 0
      %564 = vmatprep.subr.bf16.mxu0 0
      %565 = vmatpush1.bf16.msra.mxu0 0
      %566 = vmatprep.subr.bf16.mxu0 0
      %567 = vmatpush1.bf16.msra.mxu0 0
      %568 = vmatprep.subr.bf16.mxu0 0
      %569 = vmatpush1.bf16.msra.mxu0 0
      %570 = vmatprep.subr.bf16.mxu0 0
      %571 = vmatpush1.bf16.msra.mxu0 0
      %572 = vmatprep.subr.bf16.mxu0 0
      %573 = vmatpush1.bf16.msra.mxu0 0
      %574 = vmatprep.subr.bf16.mxu0 0
      %575 = vmatpush1.bf16.msra.mxu0 0
      %576 = vmatprep.subr.bf16.mxu0 0
      %577 = vmatpush1.bf16.msra.mxu0 0
      %578 = vmatprep.subr.bf16.mxu0 0
      %579 = vmatpush1.bf16.msra.mxu0 0
      %580 = vmatprep.subr.bf16.mxu0 0
      %581 = vmatpush1.bf16.msra.mxu0 0
      %582 = vmatprep.subr.bf16.mxu0 0
      %583 = vmatpush1.bf16.msra.mxu0 0
      %584 = vmatprep.subr.bf16.mxu0 0
      %585 = vmatpush1.bf16.msra.mxu0 0
      %586 = vmatprep.subr.bf16.mxu0 0
      %587 = vmatpush1.bf16.msra.mxu0 0
      %588 = vmatprep.subr.bf16.mxu0 0
      %589 = vmatpush1.bf16.msra.mxu0 0
      %590 = vmatprep.mubr.bf16.mxu0 0
      %591 = vmatmul.mubr.bf16.gmra.mrb[0].mxu0 %v544
      %v592 = vpop.f32.mrb[0].mxu0
      %v593 = vadd.f32 %v513, %v592
      %v594 = vpop.f32.mrb[0].mxu0
      %v595 = vpop.f32.mrb[0].mxu0
      %v596 = vadd.f32 %v516, %v595
      %v597 = vpop.f32.mrb[0].mxu0
      %598 = vmatprep.mubr.bf16.mxu0 0
      %599 = vmatmul.mubr.bf16.gmra.mrb[0].mxu0 %v547
      %v600 = vpop.f32.mrb[0].mxu0
      %v601 = vadd.f32 %v521, %v600
      %v602 = vpop.f32.mrb[0].mxu0
      %v603 = vpop.f32.mrb[0].mxu0
      %v604 = vadd.f32 %v524, %v603
      %v605 = vpop.f32.mrb[0].mxu0
      %606 = vmatprep.mubr.bf16.mxu0 0
      %607 = vmatmul.mubr.bf16.gmra.mrb[0].mxu0 %v550
      %v608 = vpop.f32.mrb[0].mxu0
      %v609 = vadd.f32 %v529, %v608
      %v610 = vpop.f32.mrb[0].mxu0
      %v611 = vpop.f32.mrb[0].mxu0
      %v612 = vadd.f32 %v532, %v611
      %v613 = vpop.f32.mrb[0].mxu0
      %614 = vmatprep.mubr.bf16.mxu0 0
      %615 = vmatmul.mubr.bf16.gmra.mrb[0].mxu0 %v553
      %v616 = vpop.f32.mrb[0].mxu0
      %v617 = vadd.f32 %v537, %v616
      %v618 = vpop.f32.mrb[0].mxu0
      %v619 = vpop.f32.mrb[0].mxu0
      %v620 = vadd.f32 %v540, %v619
      %v621 = vpop.f32.mrb[0].mxu0
      %622 = vdwg.mxu0
      %v623 = vld [vmem:[%s426] sm:$0xff]
      %v624 = vld [vmem:[%s426 + $0x8] sm:$0xff]
      %v625 = vld [vmem:[%s426 + $0x10] sm:$0xff]
      %v626 = vld [vmem:[%s426 + $0x18] sm:$0xff]
      %v627 = vld [vmem:[%s426 + $0x20] sm:$0xff]
      %v628 = vld [vmem:[%s426 + $0x28] sm:$0xff]
      %v629 = vld [vmem:[%s426 + $0x30] sm:$0xff]
      %v630 = vld [vmem:[%s426 + $0x38] sm:$0xff]
      %v631 = vpack.c.bf16 %v624, %v623
      %v632 = vpack.c.bf16 %v626, %v625
      %v633 = vpack.c.bf16 %v628, %v627
      %v634 = vpack.c.bf16 %v630, %v629
      %v635 = vld [vmem:[%s5] sm:$0x1]
      %v637 = vsel %vm461, %v631, 0
      %v640 = vsel %vm461, %v632, 0
      %v643 = vsel %vm461, %v633, 0
      %v646 = vsel %vm461, %v634, 0
      %v649 = vsel %vm474, %v635, 0
      %651 = vmatprep.subr.bf16.mxu0 0
      %652 = vmatpush1.bf16.msra.mxu0 %v649
      %653 = vmatprep.subr.bf16.mxu0 0
      %654 = vmatpush1.bf16.msra.mxu0 0
      %655 = vmatprep.subr.bf16.mxu0 0
      %656 = vmatpush1.bf16.msra.mxu0 0
      %657 = vmatprep.subr.bf16.mxu0 0
      %658 = vmatpush1.bf16.msra.mxu0 0
      %659 = vmatprep.subr.bf16.mxu0 0
      %660 = vmatpush1.bf16.msra.mxu0 0
      %661 = vmatprep.subr.bf16.mxu0 0
      %662 = vmatpush1.bf16.msra.mxu0 0
      %663 = vmatprep.subr.bf16.mxu0 0
      %664 = vmatpush1.bf16.msra.mxu0 0
      %665 = vmatprep.subr.bf16.mxu0 0
      %666 = vmatpush1.bf16.msra.mxu0 0
      %667 = vmatprep.subr.bf16.mxu0 0
      %668 = vmatpush1.bf16.msra.mxu0 0
      %669 = vmatprep.subr.bf16.mxu0 0
      %670 = vmatpush1.bf16.msra.mxu0 0
      %671 = vmatprep.subr.bf16.mxu0 0
      %672 = vmatpush1.bf16.msra.mxu0 0
      %673 = vmatprep.subr.bf16.mxu0 0
      %674 = vmatpush1.bf16.msra.mxu0 0
      %675 = vmatprep.subr.bf16.mxu0 0
      %676 = vmatpush1.bf16.msra.mxu0 0
      %677 = vmatprep.subr.bf16.mxu0 0
      %678 = vmatpush1.bf16.msra.mxu0 0
      %679 = vmatprep.subr.bf16.mxu0 0
      %680 = vmatpush1.bf16.msra.mxu0 0
      %681 = vmatprep.subr.bf16.mxu0 0
      %682 = vmatpush1.bf16.msra.mxu0 0
      %683 = vmatprep.mubr.bf16.mxu0 0
      %684 = vmatmul.mubr.bf16.gmra.mrb[0].mxu0 %v637
      %v685 = vpop.f32.mrb[0].mxu0
      %v686 = vadd.f32 0.0, %v685
      %v687 = vpop.f32.mrb[0].mxu0
      %v688 = vpop.f32.mrb[0].mxu0
      %v689 = vadd.f32 0.0, %v688
      %v690 = vpop.f32.mrb[0].mxu0
      %691 = vmatprep.mubr.bf16.mxu0 0
      %692 = vmatmul.mubr.bf16.gmra.mrb[0].mxu0 %v640
      %v693 = vpop.f32.mrb[0].mxu0
      %v694 = vadd.f32 0.0, %v693
      %v695 = vpop.f32.mrb[0].mxu0
      %v696 = vpop.f32.mrb[0].mxu0
      %v697 = vadd.f32 0.0, %v696
      %v698 = vpop.f32.mrb[0].mxu0
      %699 = vmatprep.mubr.bf16.mxu0 0
      %700 = vmatmul.mubr.bf16.gmra.mrb[0].mxu0 %v643
      %v701 = vpop.f32.mrb[0].mxu0
      %v702 = vadd.f32 0.0, %v701
      %v703 = vpop.f32.mrb[0].mxu0
      %v704 = vpop.f32.mrb[0].mxu0
      %v705 = vadd.f32 0.0, %v704
      %v706 = vpop.f32.mrb[0].mxu0
      %707 = vmatprep.mubr.bf16.mxu0 0
      %708 = vmatmul.mubr.bf16.gmra.mrb[0].mxu0 %v646
      %v709 = vpop.f32.mrb[0].mxu0
      %v710 = vadd.f32 0.0, %v709
      %v711 = vpop.f32.mrb[0].mxu0
      %v712 = vpop.f32.mrb[0].mxu0
      %v713 = vadd.f32 0.0, %v712
      %v714 = vpop.f32.mrb[0].mxu0
      %715 = vdwg.mxu0
      %v716 = vadd.f32 %v593, %v686
      %v717 = vadd.f32 %v596, %v689
      %v718 = vadd.f32 %v601, %v694
      %v719 = vadd.f32 %v604, %v697
      %v720 = vadd.f32 %v609, %v702
      %v721 = vadd.f32 %v612, %v705
      %v722 = vadd.f32 %v617, %v710
      %v723 = vadd.f32 %v620, %v713
      %v724 = vld [vmem:[%s6] sm:$0x1]
      %v726 = vlaneseq
      %v727 = vshrl.u32 %v726, 7
      %v728 = vsub.s32 0, %v727
      %v729 = vrot.slane %v724, %v728
      %v731 = vadd.f32 %v716, %v729
      %v732 = vadd.f32 %v717, %v729
      %v733 = vadd.f32 %v718, %v729
      %v734 = vadd.f32 %v719, %v729
      %v735 = vadd.f32 %v720, %v729
      %v736 = vadd.f32 %v721, %v729
      %v737 = vadd.f32 %v722, %v729
      %v738 = vadd.f32 %v723, %v729
      %v739 = vmax.f32 %v731, 0.0
      %v740 = vmax.f32 %v732, 0.0
      %v741 = vmax.f32 %v733, 0.0
      %v742 = vmax.f32 %v734, 0.0
      %v743 = vmax.f32 %v735, 0.0
      %v744 = vmax.f32 %v736, 0.0
      %v745 = vmax.f32 %v737, 0.0
      %v746 = vmax.f32 %v738, 0.0
      %v747 = vpack.c.bf16 %v740, %v739
      %v748 = vpack.c.bf16 %v742, %v741
      %v749 = vpack.c.bf16 %v744, %v743
      %v750 = vpack.c.bf16 %v746, %v745
      %v751 = vld [vmem:[%s7] sm:$0xf]
      %v752 = vld [vmem:[%s7 + $0x4] sm:$0xf]
      %v753 = vld [vmem:[%s7 + $0x8] sm:$0xf]
      %v754 = vld [vmem:[%s7 + $0xc] sm:$0xf]
      %v755 = vld [vmem:[%s7 + $0x10] sm:$0xf]
      %v756 = vld [vmem:[%s7 + $0x14] sm:$0xf]
      %v757 = vld [vmem:[%s7 + $0x18] sm:$0xf]
      %v758 = vld [vmem:[%s7 + $0x1c] sm:$0xf]
      %v759 = vld [vmem:[%s8] sm:$0x1]
      %v761 = vlaneseq
      %v762 = vshrl.u32 %v761, 7
      %v763 = vsub.s32 0, %v762
      %v764 = vrot.slane %v759, %v763
      %v774 = vunpack.c.l.b16 %v751
      %v775 = vunpack.c.l.b16 %v752
      %v776 = vunpack.c.l.b16 %v753
      %v777 = vunpack.c.l.b16 %v754
      %v778 = vunpack.c.l.b16 %v755
      %v779 = vunpack.c.l.b16 %v756
      %v780 = vunpack.c.l.b16 %v757
      %v781 = vunpack.c.l.b16 %v758
      %v782 = vpack.c.b16 %v775, %v774
      %v783 = vpack.c.b16 %v777, %v776
      %v784 = vpack.c.b16 %v779, %v778
      %v785 = vpack.c.b16 %v781, %v780
      %vm790 = vcmask 523264
      %v792 = vsel %vm790, %v747, 0
      %v795 = vsel %vm790, %v748, 0
      %v798 = vsel %vm790, %v749, 0
      %v801 = vsel %vm790, %v750, 0
      %803 = vmatprep.subr.bf16.mxu0 0
      %804 = vmatpush1.bf16.msra.mxu0 %v782
      %805 = vmatprep.subr.bf16.mxu0 0
      %806 = vmatpush1.bf16.msra.mxu0 %v783
      %807 = vmatprep.subr.bf16.mxu0 0
      %808 = vmatpush1.bf16.msra.mxu0 %v784
      %809 = vmatprep.subr.bf16.mxu0 0
      %810 = vmatpush1.bf16.msra.mxu0 %v785
      %811 = vmatprep.subr.bf16.mxu0 0
      %812 = vmatpush1.bf16.msra.mxu0 0
      %813 = vmatprep.subr.bf16.mxu0 0
      %814 = vmatpush1.bf16.msra.mxu0 0
      %815 = vmatprep.subr.bf16.mxu0 0
      %816 = vmatpush1.bf16.msra.mxu0 0
      %817 = vmatprep.subr.bf16.mxu0 0
      %818 = vmatpush1.bf16.msra.mxu0 0
      %819 = vmatprep.subr.bf16.mxu0 0
      %820 = vmatpush1.bf16.msra.mxu0 0
      %821 = vmatprep.subr.bf16.mxu0 0
      %822 = vmatpush1.bf16.msra.mxu0 0
      %823 = vmatprep.subr.bf16.mxu0 0
      %824 = vmatpush1.bf16.msra.mxu0 0
      %825 = vmatprep.subr.bf16.mxu0 0
      %826 = vmatpush1.bf16.msra.mxu0 0
      %827 = vmatprep.subr.bf16.mxu0 0
      %828 = vmatpush1.bf16.msra.mxu0 0
      %829 = vmatprep.subr.bf16.mxu0 0
      %830 = vmatpush1.bf16.msra.mxu0 0
      %831 = vmatprep.subr.bf16.mxu0 0
      %832 = vmatpush1.bf16.msra.mxu0 0
      %833 = vmatprep.subr.bf16.mxu0 0
      %834 = vmatpush1.bf16.msra.mxu0 0
      %835 = vmatprep.mubr.bf16.mxu0 0
      %836 = vmatmul.mubr.bf16.gmra.mrb[0].mxu0 %v792
      %v837 = vpop.f32.mrb[0].mxu0
      %v838 = vadd.f32 %v764, %v837
      %v839 = vpop.f32.mrb[0].mxu0
      %v840 = vpop.f32.mrb[0].mxu0
      %v841 = vadd.f32 %v764, %v840
      %v842 = vpop.f32.mrb[0].mxu0
      %843 = vmatprep.mubr.bf16.mxu0 0
      %844 = vmatmul.mubr.bf16.gmra.mrb[0].mxu0 %v795
      %v845 = vpop.f32.mrb[0].mxu0
      %v846 = vadd.f32 %v764, %v845
      %v847 = vpop.f32.mrb[0].mxu0
      %v848 = vpop.f32.mrb[0].mxu0
      %v849 = vadd.f32 %v764, %v848
      %v850 = vpop.f32.mrb[0].mxu0
      %851 = vmatprep.mubr.bf16.mxu0 0
      %852 = vmatmul.mubr.bf16.gmra.mrb[0].mxu0 %v798
      %v853 = vpop.f32.mrb[0].mxu0
      %v854 = vadd.f32 %v764, %v853
      %v855 = vpop.f32.mrb[0].mxu0
      %v856 = vpop.f32.mrb[0].mxu0
      %v857 = vadd.f32 %v764, %v856
      %v858 = vpop.f32.mrb[0].mxu0
      %859 = vmatprep.mubr.bf16.mxu0 0
      %860 = vmatmul.mubr.bf16.gmra.mrb[0].mxu0 %v801
      %v861 = vpop.f32.mrb[0].mxu0
      %v862 = vadd.f32 %v764, %v861
      %v863 = vpop.f32.mrb[0].mxu0
      %v864 = vpop.f32.mrb[0].mxu0
      %v865 = vadd.f32 %v764, %v864
      %v866 = vpop.f32.mrb[0].mxu0
      %867 = vdwg.mxu0
      %v868 = vmax.f32 %v838, 0.0
      %v869 = vmax.f32 %v841, 0.0
      %v870 = vmax.f32 %v846, 0.0
      %v871 = vmax.f32 %v849, 0.0
      %v872 = vmax.f32 %v854, 0.0
      %v873 = vmax.f32 %v857, 0.0
      %v874 = vmax.f32 %v862, 0.0
      %v875 = vmax.f32 %v865, 0.0
      %v876 = vpack.c.bf16 %v869, %v868
      %v877 = vpack.c.bf16 %v871, %v870
      %v878 = vpack.c.bf16 %v873, %v872
      %v879 = vpack.c.bf16 %v875, %v874
      %v880 = vld [vmem:[%s9] sm:$0xf]
      %v881 = vld [vmem:[%s9 + $0x4] sm:$0xf]
      %v882 = vld [vmem:[%s9 + $0x8] sm:$0xf]
      %v883 = vld [vmem:[%s9 + $0xc] sm:$0xf]
      %v884 = vld [vmem:[%s9 + $0x10] sm:$0xf]
      %v885 = vld [vmem:[%s9 + $0x14] sm:$0xf]
      %v886 = vld [vmem:[%s9 + $0x18] sm:$0xf]
      %v887 = vld [vmem:[%s9 + $0x1c] sm:$0xf]
      %v888 = vld [vmem:[%s10] sm:$0x1]
      %v890 = vlaneseq
      %v891 = vshrl.u32 %v890, 7
      %v892 = vsub.s32 0, %v891
      %v893 = vrot.slane %v888, %v892
      %v903 = vunpack.c.l.b16 %v880
      %v904 = vunpack.c.l.b16 %v881
      %v905 = vunpack.c.l.b16 %v882
      %v906 = vunpack.c.l.b16 %v883
      %v907 = vunpack.c.l.b16 %v884
      %v908 = vunpack.c.l.b16 %v885
      %v909 = vunpack.c.l.b16 %v886
      %v910 = vunpack.c.l.b16 %v887
      %v911 = vpack.c.b16 %v904, %v903
      %v912 = vpack.c.b16 %v906, %v905
      %v913 = vpack.c.b16 %v908, %v907
      %v914 = vpack.c.b16 %v910, %v909
      %v920 = vsel %vm790, %v876, 0
      %v923 = vsel %vm790, %v877, 0
      %v926 = vsel %vm790, %v878, 0
      %v929 = vsel %vm790, %v879, 0
      %931 = vmatprep.subr.bf16.mxu0 0
      %932 = vmatpush1.bf16.msra.mxu0 %v911
      %933 = vmatprep.subr.bf16.mxu0 0
      %934 = vmatpush1.bf16.msra.mxu0 %v912
      %935 = vmatprep.subr.bf16.mxu0 0
      %936 = vmatpush1.bf16.msra.mxu0 %v913
      %937 = vmatprep.subr.bf16.mxu0 0
      %938 = vmatpush1.bf16.msra.mxu0 %v914
      %939 = vmatprep.subr.bf16.mxu0 0
      %940 = vmatpush1.bf16.msra.mxu0 0
      %941 = vmatprep.subr.bf16.mxu0 0
      %942 = vmatpush1.bf16.msra.mxu0 0
      %943 = vmatprep.subr.bf16.mxu0 0
      %944 = vmatpush1.bf16.msra.mxu0 0
      %945 = vmatprep.subr.bf16.mxu0 0
      %946 = vmatpush1.bf16.msra.mxu0 0
      %947 = vmatprep.subr.bf16.mxu0 0
      %948 = vmatpush1.bf16.msra.mxu0 0
      %949 = vmatprep.subr.bf16.mxu0 0
      %950 = vmatpush1.bf16.msra.mxu0 0
      %951 = vmatprep.subr.bf16.mxu0 0
      %952 = vmatpush1.bf16.msra.mxu0 0
      %953 = vmatprep.subr.bf16.mxu0 0
      %954 = vmatpush1.bf16.msra.mxu0 0
      %955 = vmatprep.subr.bf16.mxu0 0
      %956 = vmatpush1.bf16.msra.mxu0 0
      %957 = vmatprep.subr.bf16.mxu0 0
      %958 = vmatpush1.bf16.msra.mxu0 0
      %959 = vmatprep.subr.bf16.mxu0 0
      %960 = vmatpush1.bf16.msra.mxu0 0
      %961 = vmatprep.subr.bf16.mxu0 0
      %962 = vmatpush1.bf16.msra.mxu0 0
      %963 = vmatprep.mubr.bf16.mxu0 0
      %964 = vmatmul.mubr.bf16.gmra.mrb[0].mxu0 %v920
      %v965 = vpop.f32.mrb[0].mxu0
      %v966 = vadd.f32 %v893, %v965
      %v967 = vpop.f32.mrb[0].mxu0
      %v968 = vpop.f32.mrb[0].mxu0
      %v969 = vadd.f32 %v893, %v968
      %v970 = vpop.f32.mrb[0].mxu0
      %971 = vmatprep.mubr.bf16.mxu0 0
      %972 = vmatmul.mubr.bf16.gmra.mrb[0].mxu0 %v923
      %v973 = vpop.f32.mrb[0].mxu0
      %v974 = vadd.f32 %v893, %v973
      %v975 = vpop.f32.mrb[0].mxu0
      %v976 = vpop.f32.mrb[0].mxu0
      %v977 = vadd.f32 %v893, %v976
      %v978 = vpop.f32.mrb[0].mxu0
      %979 = vmatprep.mubr.bf16.mxu0 0
      %980 = vmatmul.mubr.bf16.gmra.mrb[0].mxu0 %v926
      %v981 = vpop.f32.mrb[0].mxu0
      %v982 = vadd.f32 %v893, %v981
      %v983 = vpop.f32.mrb[0].mxu0
      %v984 = vpop.f32.mrb[0].mxu0
      %v985 = vadd.f32 %v893, %v984
      %v986 = vpop.f32.mrb[0].mxu0
      %987 = vmatprep.mubr.bf16.mxu0 0
      %988 = vmatmul.mubr.bf16.gmra.mrb[0].mxu0 %v929
      %v989 = vpop.f32.mrb[0].mxu0
      %v990 = vadd.f32 %v893, %v989
      %v991 = vpop.f32.mrb[0].mxu0
      %v992 = vpop.f32.mrb[0].mxu0
      %v993 = vadd.f32 %v893, %v992
      %v994 = vpop.f32.mrb[0].mxu0
      %995 = vdwg.mxu0
      %v996 = vmax.f32 %v966, 0.0
      %v997 = vmax.f32 %v969, 0.0
      %v998 = vmax.f32 %v974, 0.0
      %v999 = vmax.f32 %v977, 0.0
      %v1000 = vmax.f32 %v982, 0.0
      %v1001 = vmax.f32 %v985, 0.0
      %v1002 = vmax.f32 %v990, 0.0
      %v1003 = vmax.f32 %v993, 0.0
      %v1004 = vpack.c.bf16 %v997, %v996
      %v1005 = vpack.c.bf16 %v999, %v998
      %v1006 = vpack.c.bf16 %v1001, %v1000
      %v1007 = vpack.c.bf16 %v1003, %v1002
      %v1012 = vunpack.c.l.b16 %v1004
      %v1013 = vunpack.c.h.b16 %v1004
      %v1014 = vunpack.c.l.b16 %v1005
      %v1015 = vunpack.c.h.b16 %v1005
      %v1016 = vunpack.c.l.b16 %v1006
      %v1017 = vunpack.c.h.b16 %v1006
      %v1018 = vunpack.c.l.b16 %v1007
      %v1019 = vunpack.c.h.b16 %v1007
      %v1020 = vpack.c.b16 %v1012, %v1012
      %v1021 = vpack.c.b16 %v1013, %v1013
      %v1022 = vpack.c.b16 %v1014, %v1014
      %v1023 = vpack.c.b16 %v1015, %v1015
      %v1024 = vpack.c.b16 %v1016, %v1016
      %v1025 = vpack.c.b16 %v1017, %v1017
      %v1026 = vpack.c.b16 %v1018, %v1018
      %v1027 = vpack.c.b16 %v1019, %v1019
      %vm1036 = vcmask 519168
      %1037 = vst.msk [vmem:[%s432] sm:$0xf] %vm1036, %v1020
      %1038 = vst.msk [vmem:[%s432 + $0x4] sm:$0xf] %vm1036, %v1021
      %1039 = vst.msk [vmem:[%s432 + $0x8] sm:$0xf] %vm1036, %v1022
      %1040 = vst.msk [vmem:[%s432 + $0xc] sm:$0xf] %vm1036, %v1023
      %1041 = vst.msk [vmem:[%s432 + $0x10] sm:$0xf] %vm1036, %v1024
      %1042 = vst.msk [vmem:[%s432 + $0x14] sm:$0xf] %vm1036, %v1025
      %1043 = vst.msk [vmem:[%s432 + $0x18] sm:$0xf] %vm1036, %v1026
      %1044 = vst.msk [vmem:[%s432 + $0x1c] sm:$0xf] %vm1036, %v1027
      %s1045 = smul.u32 8, %s22
      %p1046 = scmp.lt.s32.totalorder %s1045, 15
      %s1047 = scalar_select %p1046, %s1045, 15
      %s1048 = smul.addr %s1047, 4
      %s1049 = scalar_lea.vmem %s11, %s1048
      // Predicated region
      $region65: #{dpcn_forward.3} parent=63 // pred_check
        %p1050 = pneg %p286
      $region66: #{dpcn_forward.3} parent=63 // pred_check_branch
        %1052 = sbr.rel (%p1050) target = $region68
      $region67: #{dpcn_forward.3} parent=63 // pred_region
        %s1053 = smul.u32 8, %s22
      $region68: #{dpcn_forward.3} parent=63 // pred_fallthru
        _
    $region64: #{dpcn_forward.3} parent=5 // pred_fallthru
      _
    %p1054 = scmp.le.s32.totalorder 2, %s17
    // Predicated region
    $region69: #{dpcn_forward.3} parent=5 // pred_check
      %p1055 = pneg %p1054
    $region70: #{dpcn_forward.3} parent=5 // pred_check_branch
      %1057 = sbr.rel (%p1055) target = $region72
    $region71: #{dpcn_forward.3} parent=5 // pred_region
      %s1058 = ssub.s32 %s17, 2
      // Predicated region
      $region73: #{dpcn_forward.3} parent=71 // pred_check
        %p1059 = pneg %p292
      $region74: #{dpcn_forward.3} parent=71 // pred_check_branch
        %1061 = sbr.rel (%p1059) target = $region76
      $region75: #{dpcn_forward.3} parent=71 // pred_region
        %s1062 = smul.u32 8, %s23
        %p1063 = scmp.lt.s32.totalorder %s1062, 15
        %s1064 = scalar_select %p1063, %s1062, 15
        %s1065 = smul.addr %s1064, 4
        %s1066 = scalar_lea.vmem %s11, %s1065
      $region76: #{dpcn_forward.3} parent=71 // pred_fallthru
        _
    $region72: #{dpcn_forward.3} parent=5 // pred_fallthru
      _
  $region6: #{dpcn_forward.3} parent=0 // loop_footer
    %s21 = sadd.s32 1, %s17
  $region7: #{dpcn_forward.3} parent=0 // loop_footer_branch
    %16 = sbr.rel target = $region3
  $region8: #{dpcn_forward.3} parent=0 // loop_exit
    _

// kernel: dpcn_forward.5
$region0: #{dpcn_forward.5}
  #allocation0 [shape = 'u32[]', space=smem, size = 0x4, offset = 0x4, fixed_abs, tag = 'smem constant byte address 0x4 - core index']
  #allocation1 [shape = 'u32[144,128]{1,0:T(1,128)}', space=vmem, size = 0x12000, scoped, tag = 'internal scratch']
  %s0 = inlined_call_operand.vmem [shape: f32[8,1024], index: 0, kind: input, shape index: {}]
  %s1 = inlined_call_operand.vmem [shape: bf16[1024,512], index: 1, kind: input, shape index: {}]
  %s2 = inlined_call_operand.vmem [shape: f32[1,512], index: 2, kind: input, shape index: {}]
  %s3 = inlined_call_operand.vmem [shape: bf16[512,256], index: 3, kind: input, shape index: {}]
  %s4 = inlined_call_operand.vmem [shape: f32[1,256], index: 4, kind: input, shape index: {}]
  %s5 = inlined_call_operand.vmem [shape: bf16[256,10], index: 5, kind: input, shape index: {}]
  %s6 = inlined_call_operand.vmem [shape: f32[1,10], index: 6, kind: input, shape index: {}]
  %s7 = inlined_call_operand.vmem [shape: f32[8,10], index: 7, kind: output, shape index: {}]
  %s8 = sld [smem:[#allocation0]]
  $region38: #{dpcn_forward.5} parent=0
    _
  %s10 = ssub.s32 1, %s8
  %s11 = scalar_select 0, %s10, %s8
  // Predicated region
  $region2: #{dpcn_forward.5} parent=0 // pred_check
    _
  $region3: #{dpcn_forward.5} parent=0 // pred_check_branch
    %13 = sbr.rel (0) target = $region5
  $region4: #{dpcn_forward.5} parent=0 // pred_region
    _
  $region5: #{dpcn_forward.5} parent=0 // pred_fallthru
    _
  // Predicated region
  $region6: #{dpcn_forward.5} parent=0 // pred_check
    _
  $region7: #{dpcn_forward.5} parent=0 // pred_check_branch
    %15 = sbr.rel (0) target = $region9
  $region8: #{dpcn_forward.5} parent=0 // pred_region
    _
  $region9: #{dpcn_forward.5} parent=0 // pred_fallthru
    _
  // Predicated region
  $region10: #{dpcn_forward.5} parent=0 // pred_check
    _
  $region11: #{dpcn_forward.5} parent=0 // pred_check_branch
    %17 = sbr.rel (0) target = $region13
  $region12: #{dpcn_forward.5} parent=0 // pred_region
    _
  $region13: #{dpcn_forward.5} parent=0 // pred_fallthru
    _
  // Predicated region
  $region14: #{dpcn_forward.5} parent=0 // pred_check
    _
  $region15: #{dpcn_forward.5} parent=0 // pred_check_branch
    %19 = sbr.rel (0) target = $region17
  $region16: #{dpcn_forward.5} parent=0 // pred_region
    _
  $region17: #{dpcn_forward.5} parent=0 // pred_fallthru
    _
  // Predicated region
  $region18: #{dpcn_forward.5} parent=0 // pred_check
    _
  $region19: #{dpcn_forward.5} parent=0 // pred_check_branch
    %21 = sbr.rel (0) target = $region21
  $region20: #{dpcn_forward.5} parent=0 // pred_region
    _
  $region21: #{dpcn_forward.5} parent=0 // pred_fallthru
    _
  // Predicated region
  $region22: #{dpcn_forward.5} parent=0 // pred_check
    _
  $region23: #{dpcn_forward.5} parent=0 // pred_check_branch
    %23 = sbr.rel (0) target = $region25
  $region24: #{dpcn_forward.5} parent=0 // pred_region
    _
  $region25: #{dpcn_forward.5} parent=0 // pred_fallthru
    _
  // Predicated region
  $region26: #{dpcn_forward.5} parent=0 // pred_check
    _
  $region27: #{dpcn_forward.5} parent=0 // pred_check_branch
    %25 = sbr.rel (0) target = $region29
  $region28: #{dpcn_forward.5} parent=0 // pred_region
    _
  $region29: #{dpcn_forward.5} parent=0 // pred_fallthru
    _
  %v27 = vld [vmem:[%s0] sm:$0xff]
  %v28 = vld [vmem:[%s0 + $0x8] sm:$0xff]
  %v29 = vld [vmem:[%s0 + $0x10] sm:$0xff]
  %v30 = vld [vmem:[%s0 + $0x18] sm:$0xff]
  %v31 = vld [vmem:[%s0 + $0x20] sm:$0xff]
  %v32 = vld [vmem:[%s0 + $0x28] sm:$0xff]
  %v33 = vld [vmem:[%s0 + $0x30] sm:$0xff]
  %v34 = vld [vmem:[%s0 + $0x38] sm:$0xff]
  %v35 = vpack.c.bf16 %v27, %v27
  %v36 = vpack.c.bf16 %v28, %v28
  %v37 = vpack.c.bf16 %v29, %v29
  %v38 = vpack.c.bf16 %v30, %v30
  %v39 = vpack.c.bf16 %v31, %v31
  %v40 = vpack.c.bf16 %v32, %v32
  %v41 = vpack.c.bf16 %v33, %v33
  %v42 = vpack.c.bf16 %v34, %v34
  %v43 = vld [vmem:[%s1] sm:$0xff]
  %v44 = vld [vmem:[%s1 + $0x8] sm:$0xff]
  %v45 = vld [vmem:[%s1 + $0x10] sm:$0xff]
  %v46 = vld [vmem:[%s1 + $0x18] sm:$0xff]
  %v47 = vld [vmem:[%s1 + $0x20] sm:$0xff]
  %v48 = vld [vmem:[%s1 + $0x28] sm:$0xff]
  %v49 = vld [vmem:[%s1 + $0x30] sm:$0xff]
  %v50 = vld [vmem:[%s1 + $0x38] sm:$0xff]
  %v51 = vld [vmem:[%s1 + $0x40] sm:$0xff]
  %v52 = vld [vmem:[%s1 + $0x48] sm:$0xff]
  %v53 = vld [vmem:[%s1 + $0x50] sm:$0xff]
  %v54 = vld [vmem:[%s1 + $0x58] sm:$0xff]
  %v55 = vld [vmem:[%s1 + $0x60] sm:$0xff]
  %v56 = vld [vmem:[%s1 + $0x68] sm:$0xff]
  %v57 = vld [vmem:[%s1 + $0x70] sm:$0xff]
  %v58 = vld [vmem:[%s1 + $0x78] sm:$0xff]
  %v59 = vld [vmem:[%s1 + $0x80] sm:$0xff]
  %v60 = vld [vmem:[%s1 + $0x88] sm:$0xff]
  %v61 = vld [vmem:[%s1 + $0x90] sm:$0xff]
  %v62 = vld [vmem:[%s1 + $0x98] sm:$0xff]
  %v63 = vld [vmem:[%s1 + $0xa0] sm:$0xff]
  %v64 = vld [vmem:[%s1 + $0xa8] sm:$0xff]
  %v65 = vld [vmem:[%s1 + $0xb0] sm:$0xff]
  %v66 = vld [vmem:[%s1 + $0xb8] sm:$0xff]
  %v67 = vld [vmem:[%s1 + $0xc0] sm:$0xff]
  %v68 = vld [vmem:[%s1 + $0xc8] sm:$0xff]
  %v69 = vld [vmem:[%s1 + $0xd0] sm:$0xff]
  %v70 = vld [vmem:[%s1 + $0xd8] sm:$0xff]
  %v71 = vld [vmem:[%s1 + $0xe0] sm:$0xff]
  %v72 = vld [vmem:[%s1 + $0xe8] sm:$0xff]
  %v73 = vld [vmem:[%s1 + $0xf0] sm:$0xff]
  %v74 = vld [vmem:[%s1 + $0xf8] sm:$0xff]
  %v75 = vld [vmem:[%s1 + $0x100] sm:$0xff]
  %v76 = vld [vmem:[%s1 + $0x108] sm:$0xff]
  %v77 = vld [vmem:[%s1 + $0x110] sm:$0xff]
  %v78 = vld [vmem:[%s1 + $0x118] sm:$0xff]
  %v79 = vld [vmem:[%s1 + $0x120] sm:$0xff]
  %v80 = vld [vmem:[%s1 + $0x128] sm:$0xff]
  %v81 = vld [vmem:[%s1 + $0x130] sm:$0xff]
  %v82 = vld [vmem:[%s1 + $0x138] sm:$0xff]
  %v83 = vld [vmem:[%s1 + $0x140] sm:$0xff]
  %v84 = vld [vmem:[%s1 + $0x148] sm:$0xff]
  %v85 = vld [vmem:[%s1 + $0x150] sm:$0xff]
  %v86 = vld [vmem:[%s1 + $0x158] sm:$0xff]
  %v87 = vld [vmem:[%s1 + $0x160] sm:$0xff]
  %v88 = vld [vmem:[%s1 + $0x168] sm:$0xff]
  %v89 = vld [vmem:[%s1 + $0x170] sm:$0xff]
  %v90 = vld [vmem:[%s1 + $0x178] sm:$0xff]
  %v91 = vld [vmem:[%s1 + $0x180] sm:$0xff]
  %v92 = vld [vmem:[%s1 + $0x188] sm:$0xff]
  %v93 = vld [vmem:[%s1 + $0x190] sm:$0xff]
  %v94 = vld [vmem:[%s1 + $0x198] sm:$0xff]
  %v95 = vld [vmem:[%s1 + $0x1a0] sm:$0xff]
  %v96 = vld [vmem:[%s1 + $0x1a8] sm:$0xff]
  %v97 = vld [vmem:[%s1 + $0x1b0] sm:$0xff]
  %v98 = vld [vmem:[%s1 + $0x1b8] sm:$0xff]
  %v99 = vld [vmem:[%s1 + $0x1c0] sm:$0xff]
  %v100 = vld [vmem:[%s1 + $0x1c8] sm:$0xff]
  %v101 = vld [vmem:[%s1 + $0x1d0] sm:$0xff]
  %v102 = vld [vmem:[%s1 + $0x1d8] sm:$0xff]
  %v103 = vld [vmem:[%s1 + $0x1e0] sm:$0xff]
  %v104 = vld [vmem:[%s1 + $0x1e8] sm:$0xff]
  %v105 = vld [vmem:[%s1 + $0x1f0] sm:$0xff]
  %v106 = vld [vmem:[%s1 + $0x1f8] sm:$0xff]
  %v107 = vld [vmem:[%s1 + $0x200] sm:$0xff]
  %v108 = vld [vmem:[%s1 + $0x208] sm:$0xff]
  %v109 = vld [vmem:[%s1 + $0x210] sm:$0xff]
  %v110 = vld [vmem:[%s1 + $0x218] sm:$0xff]
  %v111 = vld [vmem:[%s1 + $0x220] sm:$0xff]
  %v112 = vld [vmem:[%s1 + $0x228] sm:$0xff]
  %v113 = vld [vmem:[%s1 + $0x230] sm:$0xff]
  %v114 = vld [vmem:[%s1 + $0x238] sm:$0xff]
  %v115 = vld [vmem:[%s1 + $0x240] sm:$0xff]
  %v116 = vld [vmem:[%s1 + $0x248] sm:$0xff]
  %v117 = vld [vmem:[%s1 + $0x250] sm:$0xff]
  %v118 = vld [vmem:[%s1 + $0x258] sm:$0xff]
  %v119 = vld [vmem:[%s1 + $0x260] sm:$0xff]
  %v120 = vld [vmem:[%s1 + $0x268] sm:$0xff]
  %v121 = vld [vmem:[%s1 + $0x270] sm:$0xff]
  %v122 = vld [vmem:[%s1 + $0x278] sm:$0xff]
  %v123 = vld [vmem:[%s1 + $0x280] sm:$0xff]
  %v124 = vld [vmem:[%s1 + $0x288] sm:$0xff]
  %v125 = vld [vmem:[%s1 + $0x290] sm:$0xff]
  %v126 = vld [vmem:[%s1 + $0x298] sm:$0xff]
  %v127 = vld [vmem:[%s1 + $0x2a0] sm:$0xff]
  %v128 = vld [vmem:[%s1 + $0x2a8] sm:$0xff]
  %v129 = vld [vmem:[%s1 + $0x2b0] sm:$0xff]
  %v130 = vld [vmem:[%s1 + $0x2b8] sm:$0xff]
  %v131 = vld [vmem:[%s1 + $0x2c0] sm:$0xff]
  %v132 = vld [vmem:[%s1 + $0x2c8] sm:$0xff]
  %v133 = vld [vmem:[%s1 + $0x2d0] sm:$0xff]
  %v134 = vld [vmem:[%s1 + $0x2d8] sm:$0xff]
  %v135 = vld [vmem:[%s1 + $0x2e0] sm:$0xff]
  %v136 = vld [vmem:[%s1 + $0x2e8] sm:$0xff]
  %v137 = vld [vmem:[%s1 + $0x2f0] sm:$0xff]
  %v138 = vld [vmem:[%s1 + $0x2f8] sm:$0xff]
  %v139 = vld [vmem:[%s1 + $0x300] sm:$0xff]
  %v140 = vld [vmem:[%s1 + $0x308] sm:$0xff]
  %v141 = vld [vmem:[%s1 + $0x310] sm:$0xff]
  %v142 = vld [vmem:[%s1 + $0x318] sm:$0xff]
  %v143 = vld [vmem:[%s1 + $0x320] sm:$0xff]
  %v144 = vld [vmem:[%s1 + $0x328] sm:$0xff]
  %v145 = vld [vmem:[%s1 + $0x330] sm:$0xff]
  %v146 = vld [vmem:[%s1 + $0x338] sm:$0xff]
  %v147 = vld [vmem:[%s1 + $0x340] sm:$0xff]
  %v148 = vld [vmem:[%s1 + $0x348] sm:$0xff]
  %v149 = vld [vmem:[%s1 + $0x350] sm:$0xff]
  %v150 = vld [vmem:[%s1 + $0x358] sm:$0xff]
  %v151 = vld [vmem:[%s1 + $0x360] sm:$0xff]
  %v152 = vld [vmem:[%s1 + $0x368] sm:$0xff]
  %v153 = vld [vmem:[%s1 + $0x370] sm:$0xff]
  %v154 = vld [vmem:[%s1 + $0x378] sm:$0xff]
  %v155 = vld [vmem:[%s1 + $0x380] sm:$0xff]
  %v156 = vld [vmem:[%s1 + $0x388] sm:$0xff]
  %v157 = vld [vmem:[%s1 + $0x390] sm:$0xff]
  %v158 = vld [vmem:[%s1 + $0x398] sm:$0xff]
  %v159 = vld [vmem:[%s1 + $0x3a0] sm:$0xff]
  %v160 = vld [vmem:[%s1 + $0x3a8] sm:$0xff]
  %v161 = vld [vmem:[%s1 + $0x3b0] sm:$0xff]
  %v162 = vld [vmem:[%s1 + $0x3b8] sm:$0xff]
  %v163 = vld [vmem:[%s1 + $0x3c0] sm:$0xff]
  %v164 = vld [vmem:[%s1 + $0x3c8] sm:$0xff]
  %v165 = vld [vmem:[%s1 + $0x3d0] sm:$0xff]
  %v166 = vld [vmem:[%s1 + $0x3d8] sm:$0xff]
  %v167 = vld [vmem:[%s1 + $0x3e0] sm:$0xff]
  %v168 = vld [vmem:[%s1 + $0x3e8] sm:$0xff]
  %v169 = vld [vmem:[%s1 + $0x3f0] sm:$0xff]
  %v170 = vld [vmem:[%s1 + $0x3f8] sm:$0xff]
  %v171 = vld [vmem:[%s1 + $0x400] sm:$0xff]
  %v172 = vld [vmem:[%s1 + $0x408] sm:$0xff]
  %v173 = vld [vmem:[%s1 + $0x410] sm:$0xff]
  %v174 = vld [vmem:[%s1 + $0x418] sm:$0xff]
  %v175 = vld [vmem:[%s1 + $0x420] sm:$0xff]
  %v176 = vld [vmem:[%s1 + $0x428] sm:$0xff]
  %v177 = vld [vmem:[%s1 + $0x430] sm:$0xff]
  %v178 = vld [vmem:[%s1 + $0x438] sm:$0xff]
  %v179 = vld [vmem:[%s1 + $0x440] sm:$0xff]
  %v180 = vld [vmem:[%s1 + $0x448] sm:$0xff]
  %v181 = vld [vmem:[%s1 + $0x450] sm:$0xff]
  %v182 = vld [vmem:[%s1 + $0x458] sm:$0xff]
  %v183 = vld [vmem:[%s1 + $0x460] sm:$0xff]
  %v184 = vld [vmem:[%s1 + $0x468] sm:$0xff]
  %v185 = vld [vmem:[%s1 + $0x470] sm:$0xff]
  %v186 = vld [vmem:[%s1 + $0x478] sm:$0xff]
  %v187 = vld [vmem:[%s1 + $0x480] sm:$0xff]
  %v188 = vld [vmem:[%s1 + $0x488] sm:$0xff]
  %v189 = vld [vmem:[%s1 + $0x490] sm:$0xff]
  %v190 = vld [vmem:[%s1 + $0x498] sm:$0xff]
  %v191 = vld [vmem:[%s1 + $0x4a0] sm:$0xff]
  %v192 = vld [vmem:[%s1 + $0x4a8] sm:$0xff]
  %v193 = vld [vmem:[%s1 + $0x4b0] sm:$0xff]
  %v194 = vld [vmem:[%s1 + $0x4b8] sm:$0xff]
  %v195 = vld [vmem:[%s1 + $0x4c0] sm:$0xff]
  %v196 = vld [vmem:[%s1 + $0x4c8] sm:$0xff]
  %v197 = vld [vmem:[%s1 + $0x4d0] sm:$0xff]
  %v198 = vld [vmem:[%s1 + $0x4d8] sm:$0xff]
  %v199 = vld [vmem:[%s1 + $0x4e0] sm:$0xff]
  %v200 = vld [vmem:[%s1 + $0x4e8] sm:$0xff]
  %v201 = vld [vmem:[%s1 + $0x4f0] sm:$0xff]
  %v202 = vld [vmem:[%s1 + $0x4f8] sm:$0xff]
  %v203 = vld [vmem:[%s1 + $0x500] sm:$0xff]
  %v204 = vld [vmem:[%s1 + $0x508] sm:$0xff]
  %v205 = vld [vmem:[%s1 + $0x510] sm:$0xff]
  %v206 = vld [vmem:[%s1 + $0x518] sm:$0xff]
  %v207 = vld [vmem:[%s1 + $0x520] sm:$0xff]
  %v208 = vld [vmem:[%s1 + $0x528] sm:$0xff]
  %v209 = vld [vmem:[%s1 + $0x530] sm:$0xff]
  %v210 = vld [vmem:[%s1 + $0x538] sm:$0xff]
  %v211 = vld [vmem:[%s1 + $0x540] sm:$0xff]
  %v212 = vld [vmem:[%s1 + $0x548] sm:$0xff]
  %v213 = vld [vmem:[%s1 + $0x550] sm:$0xff]
  %v214 = vld [vmem:[%s1 + $0x558] sm:$0xff]
  %v215 = vld [vmem:[%s1 + $0x560] sm:$0xff]
  %v216 = vld [vmem:[%s1 + $0x568] sm:$0xff]
  %v217 = vld [vmem:[%s1 + $0x570] sm:$0xff]
  %v218 = vld [vmem:[%s1 + $0x578] sm:$0xff]
  %v219 = vld [vmem:[%s1 + $0x580] sm:$0xff]
  %v220 = vld [vmem:[%s1 + $0x588] sm:$0xff]
  %v221 = vld [vmem:[%s1 + $0x590] sm:$0xff]
  %v222 = vld [vmem:[%s1 + $0x598] sm:$0xff]
  %v223 = vld [vmem:[%s1 + $0x5a0] sm:$0xff]
  %v224 = vld [vmem:[%s1 + $0x5a8] sm:$0xff]
  %v225 = vld [vmem:[%s1 + $0x5b0] sm:$0xff]
  %v226 = vld [vmem:[%s1 + $0x5b8] sm:$0xff]
  %v227 = vld [vmem:[%s1 + $0x5c0] sm:$0xff]
  %v228 = vld [vmem:[%s1 + $0x5c8] sm:$0xff]
  %v229 = vld [vmem:[%s1 + $0x5d0] sm:$0xff]
  %v230 = vld [vmem:[%s1 + $0x5d8] sm:$0xff]
  %v231 = vld [vmem:[%s1 + $0x5e0] sm:$0xff]
  %v232 = vld [vmem:[%s1 + $0x5e8] sm:$0xff]
  %v233 = vld [vmem:[%s1 + $0x5f0] sm:$0xff]
  %v234 = vld [vmem:[%s1 + $0x5f8] sm:$0xff]
  %v235 = vld [vmem:[%s1 + $0x600] sm:$0xff]
  %v236 = vld [vmem:[%s1 + $0x608] sm:$0xff]
  %v237 = vld [vmem:[%s1 + $0x610] sm:$0xff]
  %v238 = vld [vmem:[%s1 + $0x618] sm:$0xff]
  %v239 = vld [vmem:[%s1 + $0x620] sm:$0xff]
  %v240 = vld [vmem:[%s1 + $0x628] sm:$0xff]
  %v241 = vld [vmem:[%s1 + $0x630] sm:$0xff]
  %v242 = vld [vmem:[%s1 + $0x638] sm:$0xff]
  %v243 = vld [vmem:[%s1 + $0x640] sm:$0xff]
  %v244 = vld [vmem:[%s1 + $0x648] sm:$0xff]
  %v245 = vld [vmem:[%s1 + $0x650] sm:$0xff]
  %v246 = vld [vmem:[%s1 + $0x658] sm:$0xff]
  %v247 = vld [vmem:[%s1 + $0x660] sm:$0xff]
  %v248 = vld [vmem:[%s1 + $0x668] sm:$0xff]
  %v249 = vld [vmem:[%s1 + $0x670] sm:$0xff]
  %v250 = vld [vmem:[%s1 + $0x678] sm:$0xff]
  %v251 = vld [vmem:[%s1 + $0x680] sm:$0xff]
  %v252 = vld [vmem:[%s1 + $0x688] sm:$0xff]
  %v253 = vld [vmem:[%s1 + $0x690] sm:$0xff]
  %v254 = vld [vmem:[%s1 + $0x698] sm:$0xff]
  %v255 = vld [vmem:[%s1 + $0x6a0] sm:$0xff]
  %v256 = vld [vmem:[%s1 + $0x6a8] sm:$0xff]
  %v257 = vld [vmem:[%s1 + $0x6b0] sm:$0xff]
  %v258 = vld [vmem:[%s1 + $0x6b8] sm:$0xff]
  %v259 = vld [vmem:[%s1 + $0x6c0] sm:$0xff]
  %v260 = vld [vmem:[%s1 + $0x6c8] sm:$0xff]
  %v261 = vld [vmem:[%s1 + $0x6d0] sm:$0xff]
  %v262 = vld [vmem:[%s1 + $0x6d8] sm:$0xff]
  %v263 = vld [vmem:[%s1 + $0x6e0] sm:$0xff]
  %v264 = vld [vmem:[%s1 + $0x6e8] sm:$0xff]
  %v265 = vld [vmem:[%s1 + $0x6f0] sm:$0xff]
  %v266 = vld [vmem:[%s1 + $0x6f8] sm:$0xff]
  %v267 = vld [vmem:[%s1 + $0x700] sm:$0xff]
  %v268 = vld [vmem:[%s1 + $0x708] sm:$0xff]
  %v269 = vld [vmem:[%s1 + $0x710] sm:$0xff]
  %v270 = vld [vmem:[%s1 + $0x718] sm:$0xff]
  %v271 = vld [vmem:[%s1 + $0x720] sm:$0xff]
  %v272 = vld [vmem:[%s1 + $0x728] sm:$0xff]
  %v273 = vld [vmem:[%s1 + $0x730] sm:$0xff]
  %v274 = vld [vmem:[%s1 + $0x738] sm:$0xff]
  %v275 = vld [vmem:[%s1 + $0x740] sm:$0xff]
  %v276 = vld [vmem:[%s1 + $0x748] sm:$0xff]
  %v277 = vld [vmem:[%s1 + $0x750] sm:$0xff]
  %v278 = vld [vmem:[%s1 + $0x758] sm:$0xff]
  %v279 = vld [vmem:[%s1 + $0x760] sm:$0xff]
  %v280 = vld [vmem:[%s1 + $0x768] sm:$0xff]
  %v281 = vld [vmem:[%s1 + $0x770] sm:$0xff]
  %v282 = vld [vmem:[%s1 + $0x778] sm:$0xff]
  %v283 = vld [vmem:[%s1 + $0x780] sm:$0xff]
  %v284 = vld [vmem:[%s1 + $0x788] sm:$0xff]
  %v285 = vld [vmem:[%s1 + $0x790] sm:$0xff]
  %v286 = vld [vmem:[%s1 + $0x798] sm:$0xff]
  %v287 = vld [vmem:[%s1 + $0x7a0] sm:$0xff]
  %v288 = vld [vmem:[%s1 + $0x7a8] sm:$0xff]
  %v289 = vld [vmem:[%s1 + $0x7b0] sm:$0xff]
  %v290 = vld [vmem:[%s1 + $0x7b8] sm:$0xff]
  %v291 = vld [vmem:[%s1 + $0x7c0] sm:$0xff]
  %v292 = vld [vmem:[%s1 + $0x7c8] sm:$0xff]
  %v293 = vld [vmem:[%s1 + $0x7d0] sm:$0xff]
  %v294 = vld [vmem:[%s1 + $0x7d8] sm:$0xff]
  %v295 = vld [vmem:[%s1 + $0x7e0] sm:$0xff]
  %v296 = vld [vmem:[%s1 + $0x7e8] sm:$0xff]
  %v297 = vld [vmem:[%s1 + $0x7f0] sm:$0xff]
  %v298 = vld [vmem:[%s1 + $0x7f8] sm:$0xff]
  %v299 = vld [vmem:[%s2] sm:$0xf]
  %v301 = vlaneseq
  %v302 = vshrl.u32 %v301, 7
  %v303 = vsub.s32 0, %v302
  %v304 = vrot.slane %v299, %v303
  %v305 = vlaneseq
  %v306 = vshrl.u32 %v305, 7
  %v307 = vsub.s32 1, %v306
  %v308 = vrot.slane %v299, %v307
  %v309 = vlaneseq
  %v310 = vshrl.u32 %v309, 7
  %v311 = vsub.s32 2, %v310
  %v312 = vrot.slane %v299, %v311
  %v313 = vlaneseq
  %v314 = vshrl.u32 %v313, 7
  %v315 = vsub.s32 3, %v314
  %v316 = vrot.slane %v299, %v315
  %v577 = vunpack.c.l.b16 %v43
  %v578 = vunpack.c.h.b16 %v43
  %v579 = vunpack.c.l.b16 %v44
  %v580 = vunpack.c.h.b16 %v44
  %v581 = vunpack.c.l.b16 %v45
  %v582 = vunpack.c.h.b16 %v45
  %v583 = vunpack.c.l.b16 %v46
  %v584 = vunpack.c.h.b16 %v46
  %v585 = vunpack.c.l.b16 %v47
  %v586 = vunpack.c.h.b16 %v47
  %v587 = vunpack.c.l.b16 %v48
  %v588 = vunpack.c.h.b16 %v48
  %v589 = vunpack.c.l.b16 %v49
  %v590 = vunpack.c.h.b16 %v49
  %v591 = vunpack.c.l.b16 %v50
  %v592 = vunpack.c.h.b16 %v50
  %v593 = vunpack.c.l.b16 %v51
  %v594 = vunpack.c.h.b16 %v51
  %v595 = vunpack.c.l.b16 %v52
  %v596 = vunpack.c.h.b16 %v52
  %v597 = vunpack.c.l.b16 %v53
  %v598 = vunpack.c.h.b16 %v53
  %v599 = vunpack.c.l.b16 %v54
  %v600 = vunpack.c.h.b16 %v54
  %v601 = vunpack.c.l.b16 %v55
  %v602 = vunpack.c.h.b16 %v55
  %v603 = vunpack.c.l.b16 %v56
  %v604 = vunpack.c.h.b16 %v56
  %v605 = vunpack.c.l.b16 %v57
  %v606 = vunpack.c.h.b16 %v57
  %v607 = vunpack.c.l.b16 %v58
  %v608 = vunpack.c.h.b16 %v58
  %v609 = vunpack.c.l.b16 %v59
  %v610 = vunpack.c.h.b16 %v59
  %v611 = vunpack.c.l.b16 %v60
  %v612 = vunpack.c.h.b16 %v60
  %v613 = vunpack.c.l.b16 %v61
  %v614 = vunpack.c.h.b16 %v61
  %v615 = vunpack.c.l.b16 %v62
  %v616 = vunpack.c.h.b16 %v62
  %v617 = vunpack.c.l.b16 %v63
  %v618 = vunpack.c.h.b16 %v63
  %v619 = vunpack.c.l.b16 %v64
  %v620 = vunpack.c.h.b16 %v64
  %v621 = vunpack.c.l.b16 %v65
  %v622 = vunpack.c.h.b16 %v65
  %v623 = vunpack.c.l.b16 %v66
  %v624 = vunpack.c.h.b16 %v66
  %v625 = vunpack.c.l.b16 %v67
  %v626 = vunpack.c.h.b16 %v67
  %v627 = vunpack.c.l.b16 %v68
  %v628 = vunpack.c.h.b16 %v68
  %v629 = vunpack.c.l.b16 %v69
  %v630 = vunpack.c.h.b16 %v69
  %v631 = vunpack.c.l.b16 %v70
  %v632 = vunpack.c.h.b16 %v70
  %v633 = vunpack.c.l.b16 %v71
  %v634 = vunpack.c.h.b16 %v71
  %v635 = vunpack.c.l.b16 %v72
  %v636 = vunpack.c.h.b16 %v72
  %v637 = vunpack.c.l.b16 %v73
  %v638 = vunpack.c.h.b16 %v73
  %v639 = vunpack.c.l.b16 %v74
  %v640 = vunpack.c.h.b16 %v74
  %v641 = vunpack.c.l.b16 %v75
  %v642 = vunpack.c.h.b16 %v75
  %v643 = vunpack.c.l.b16 %v76
  %v644 = vunpack.c.h.b16 %v76
  %v645 = vunpack.c.l.b16 %v77
  %v646 = vunpack.c.h.b16 %v77
  %v647 = vunpack.c.l.b16 %v78
  %v648 = vunpack.c.h.b16 %v78
  %v649 = vunpack.c.l.b16 %v79
  %v650 = vunpack.c.h.b16 %v79
  %v651 = vunpack.c.l.b16 %v80
  %v652 = vunpack.c.h.b16 %v80
  %v653 = vunpack.c.l.b16 %v81
  %v654 = vunpack.c.h.b16 %v81
  %v655 = vunpack.c.l.b16 %v82
  %v656 = vunpack.c.h.b16 %v82
  %v657 = vunpack.c.l.b16 %v83
  %v658 = vunpack.c.h.b16 %v83
  %v659 = vunpack.c.l.b16 %v84
  %v660 = vunpack.c.h.b16 %v84
  %v661 = vunpack.c.l.b16 %v85
  %v662 = vunpack.c.h.b16 %v85
  %v663 = vunpack.c.l.b16 %v86
  %v664 = vunpack.c.h.b16 %v86
  %v665 = vunpack.c.l.b16 %v87
  %v666 = vunpack.c.h.b16 %v87
  %v667 = vunpack.c.l.b16 %v88
  %v668 = vunpack.c.h.b16 %v88
  %v669 = vunpack.c.l.b16 %v89
  %v670 = vunpack.c.h.b16 %v89
  %v671 = vunpack.c.l.b16 %v90
  %v672 = vunpack.c.h.b16 %v90
  %v673 = vunpack.c.l.b16 %v91
  %v674 = vunpack.c.h.b16 %v91
  %v675 = vunpack.c.l.b16 %v92
  %v676 = vunpack.c.h.b16 %v92
  %v677 = vunpack.c.l.b16 %v93
  %v678 = vunpack.c.h.b16 %v93
  %v679 = vunpack.c.l.b16 %v94
  %v680 = vunpack.c.h.b16 %v94
  %v681 = vunpack.c.l.b16 %v95
  %v682 = vunpack.c.h.b16 %v95
  %v683 = vunpack.c.l.b16 %v96
  %v684 = vunpack.c.h.b16 %v96
  %v685 = vunpack.c.l.b16 %v97
  %v686 = vunpack.c.h.b16 %v97
  %v687 = vunpack.c.l.b16 %v98
  %v688 = vunpack.c.h.b16 %v98
  %v689 = vunpack.c.l.b16 %v99
  %v690 = vunpack.c.h.b16 %v99
  %v691 = vunpack.c.l.b16 %v100
  %v692 = vunpack.c.h.b16 %v100
  %v693 = vunpack.c.l.b16 %v101
  %v694 = vunpack.c.h.b16 %v101
  %v695 = vunpack.c.l.b16 %v102
  %v696 = vunpack.c.h.b16 %v102
  %v697 = vunpack.c.l.b16 %v103
  %v698 = vunpack.c.h.b16 %v103
  %v699 = vunpack.c.l.b16 %v104
  %v700 = vunpack.c.h.b16 %v104
  %v701 = vunpack.c.l.b16 %v105
  %v702 = vunpack.c.h.b16 %v105
  %v703 = vunpack.c.l.b16 %v106
  %v704 = vunpack.c.h.b16 %v106
  %v705 = vunpack.c.l.b16 %v107
  %v706 = vunpack.c.h.b16 %v107
  %v707 = vunpack.c.l.b16 %v108
  %v708 = vunpack.c.h.b16 %v108
  %v709 = vunpack.c.l.b16 %v109
  %v710 = vunpack.c.h.b16 %v109
  %v711 = vunpack.c.l.b16 %v110
  %v712 = vunpack.c.h.b16 %v110
  %v713 = vunpack.c.l.b16 %v111
  %v714 = vunpack.c.h.b16 %v111
  %v715 = vunpack.c.l.b16 %v112
  %v716 = vunpack.c.h.b16 %v112
  %v717 = vunpack.c.l.b16 %v113
  %v718 = vunpack.c.h.b16 %v113
  %v719 = vunpack.c.l.b16 %v114
  %v720 = vunpack.c.h.b16 %v114
  %v721 = vunpack.c.l.b16 %v115
  %v722 = vunpack.c.h.b16 %v115
  %v723 = vunpack.c.l.b16 %v116
  %v724 = vunpack.c.h.b16 %v116
  %v725 = vunpack.c.l.b16 %v117
  %v726 = vunpack.c.h.b16 %v117
  %v727 = vunpack.c.l.b16 %v118
  %v728 = vunpack.c.h.b16 %v118
  %v729 = vunpack.c.l.b16 %v119
  %v730 = vunpack.c.h.b16 %v119
  %v731 = vunpack.c.l.b16 %v120
  %v732 = vunpack.c.h.b16 %v120
  %v733 = vunpack.c.l.b16 %v121
  %v734 = vunpack.c.h.b16 %v121
  %v735 = vunpack.c.l.b16 %v122
  %v736 = vunpack.c.h.b16 %v122
  %v737 = vunpack.c.l.b16 %v123
  %v738 = vunpack.c.h.b16 %v123
  %v739 = vunpack.c.l.b16 %v124
  %v740 = vunpack.c.h.b16 %v124
  %v741 = vunpack.c.l.b16 %v125
  %v742 = vunpack.c.h.b16 %v125
  %v743 = vunpack.c.l.b16 %v126
  %v744 = vunpack.c.h.b16 %v126
  %v745 = vunpack.c.l.b16 %v127
  %v746 = vunpack.c.h.b16 %v127
  %v747 = vunpack.c.l.b16 %v128
  %v748 = vunpack.c.h.b16 %v128
  %v749 = vunpack.c.l.b16 %v129
  %v750 = vunpack.c.h.b16 %v129
  %v751 = vunpack.c.l.b16 %v130
  %v752 = vunpack.c.h.b16 %v130
  %v753 = vunpack.c.l.b16 %v131
  %v754 = vunpack.c.h.b16 %v131
  %v755 = vunpack.c.l.b16 %v132
  %v756 = vunpack.c.h.b16 %v132
  %v757 = vunpack.c.l.b16 %v133
  %v758 = vunpack.c.h.b16 %v133
  %v759 = vunpack.c.l.b16 %v134
  %v760 = vunpack.c.h.b16 %v134
  %v761 = vunpack.c.l.b16 %v135
  %v762 = vunpack.c.h.b16 %v135
  %v763 = vunpack.c.l.b16 %v136
  %v764 = vunpack.c.h.b16 %v136
  %v765 = vunpack.c.l.b16 %v137
  %v766 = vunpack.c.h.b16 %v137
  %v767 = vunpack.c.l.b16 %v138
  %v768 = vunpack.c.h.b16 %v138
  %v769 = vunpack.c.l.b16 %v139
  %v770 = vunpack.c.h.b16 %v139
  %v771 = vunpack.c.l.b16 %v140
  %v772 = vunpack.c.h.b16 %v140
  %v773 = vunpack.c.l.b16 %v141
  %v774 = vunpack.c.h.b16 %v141
  %v775 = vunpack.c.l.b16 %v142
  %v776 = vunpack.c.h.b16 %v142
  %v777 = vunpack.c.l.b16 %v143
  %v778 = vunpack.c.h.b16 %v143
  %v779 = vunpack.c.l.b16 %v144
  %v780 = vunpack.c.h.b16 %v144
  %v781 = vunpack.c.l.b16 %v145
  %v782 = vunpack.c.h.b16 %v145
  %v783 = vunpack.c.l.b16 %v146
  %v784 = vunpack.c.h.b16 %v146
  %v785 = vunpack.c.l.b16 %v147
  %v786 = vunpack.c.h.b16 %v147
  %v787 = vunpack.c.l.b16 %v148
  %v788 = vunpack.c.h.b16 %v148
  %v789 = vunpack.c.l.b16 %v149
  %v790 = vunpack.c.h.b16 %v149
  %v791 = vunpack.c.l.b16 %v150
  %v792 = vunpack.c.h.b16 %v150
  %v793 = vunpack.c.l.b16 %v151
  %v794 = vunpack.c.h.b16 %v151
  %v795 = vunpack.c.l.b16 %v152
  %v796 = vunpack.c.h.b16 %v152
  %v797 = vunpack.c.l.b16 %v153
  %v798 = vunpack.c.h.b16 %v153
  %v799 = vunpack.c.l.b16 %v154
  %v800 = vunpack.c.h.b16 %v154
  %v801 = vunpack.c.l.b16 %v155
  %v802 = vunpack.c.h.b16 %v155
  %v803 = vunpack.c.l.b16 %v156
  %v804 = vunpack.c.h.b16 %v156
  %v805 = vunpack.c.l.b16 %v157
  %v806 = vunpack.c.h.b16 %v157
  %v807 = vunpack.c.l.b16 %v158
  %v808 = vunpack.c.h.b16 %v158
  %v809 = vunpack.c.l.b16 %v159
  %v810 = vunpack.c.h.b16 %v159
  %v811 = vunpack.c.l.b16 %v160
  %v812 = vunpack.c.h.b16 %v160
  %v813 = vunpack.c.l.b16 %v161
  %v814 = vunpack.c.h.b16 %v161
  %v815 = vunpack.c.l.b16 %v162
  %v816 = vunpack.c.h.b16 %v162
  %v817 = vunpack.c.l.b16 %v163
  %v818 = vunpack.c.h.b16 %v163
  %v819 = vunpack.c.l.b16 %v164
  %v820 = vunpack.c.h.b16 %v164
  %v821 = vunpack.c.l.b16 %v165
  %v822 = vunpack.c.h.b16 %v165
  %v823 = vunpack.c.l.b16 %v166
  %v824 = vunpack.c.h.b16 %v166
  %v825 = vunpack.c.l.b16 %v167
  %v826 = vunpack.c.h.b16 %v167
  %v827 = vunpack.c.l.b16 %v168
  %v828 = vunpack.c.h.b16 %v168
  %v829 = vunpack.c.l.b16 %v169
  %v830 = vunpack.c.h.b16 %v169
  %v831 = vunpack.c.l.b16 %v170
  %v832 = vunpack.c.h.b16 %v170
  %v833 = vunpack.c.l.b16 %v171
  %v834 = vunpack.c.h.b16 %v171
  %v835 = vunpack.c.l.b16 %v172
  %v836 = vunpack.c.h.b16 %v172
  %v837 = vunpack.c.l.b16 %v173
  %v838 = vunpack.c.h.b16 %v173
  %v839 = vunpack.c.l.b16 %v174
  %v840 = vunpack.c.h.b16 %v174
  %v841 = vunpack.c.l.b16 %v175
  %v842 = vunpack.c.h.b16 %v175
  %v843 = vunpack.c.l.b16 %v176
  %v844 = vunpack.c.h.b16 %v176
  %v845 = vunpack.c.l.b16 %v177
  %v846 = vunpack.c.h.b16 %v177
  %v847 = vunpack.c.l.b16 %v178
  %v848 = vunpack.c.h.b16 %v178
  %v849 = vunpack.c.l.b16 %v179
  %v850 = vunpack.c.h.b16 %v179
  %v851 = vunpack.c.l.b16 %v180
  %v852 = vunpack.c.h.b16 %v180
  %v853 = vunpack.c.l.b16 %v181
  %v854 = vunpack.c.h.b16 %v181
  %v855 = vunpack.c.l.b16 %v182
  %v856 = vunpack.c.h.b16 %v182
  %v857 = vunpack.c.l.b16 %v183
  %v858 = vunpack.c.h.b16 %v183
  %v859 = vunpack.c.l.b16 %v184
  %v860 = vunpack.c.h.b16 %v184
  %v861 = vunpack.c.l.b16 %v185
  %v862 = vunpack.c.h.b16 %v185
  %v863 = vunpack.c.l.b16 %v186
  %v864 = vunpack.c.h.b16 %v186
  %v865 = vunpack.c.l.b16 %v187
  %v866 = vunpack.c.h.b16 %v187
  %v867 = vunpack.c.l.b16 %v188
  %v868 = vunpack.c.h.b16 %v188
  %v869 = vunpack.c.l.b16 %v189
  %v870 = vunpack.c.h.b16 %v189
  %v871 = vunpack.c.l.b16 %v190
  %v872 = vunpack.c.h.b16 %v190
  %v873 = vunpack.c.l.b16 %v191
  %v874 = vunpack.c.h.b16 %v191
  %v875 = vunpack.c.l.b16 %v192
  %v876 = vunpack.c.h.b16 %v192
  %v877 = vunpack.c.l.b16 %v193
  %v878 = vunpack.c.h.b16 %v193
  %v879 = vunpack.c.l.b16 %v194
  %v880 = vunpack.c.h.b16 %v194
  %v881 = vunpack.c.l.b16 %v195
  %v882 = vunpack.c.h.b16 %v195
  %v883 = vunpack.c.l.b16 %v196
  %v884 = vunpack.c.h.b16 %v196
  %v885 = vunpack.c.l.b16 %v197
  %v886 = vunpack.c.h.b16 %v197
  %v887 = vunpack.c.l.b16 %v198
  %v888 = vunpack.c.h.b16 %v198
  %v889 = vunpack.c.l.b16 %v199
  %v890 = vunpack.c.h.b16 %v199
  %v891 = vunpack.c.l.b16 %v200
  %v892 = vunpack.c.h.b16 %v200
  %v893 = vunpack.c.l.b16 %v201
  %v894 = vunpack.c.h.b16 %v201
  %v895 = vunpack.c.l.b16 %v202
  %v896 = vunpack.c.h.b16 %v202
  %v897 = vunpack.c.l.b16 %v203
  %v898 = vunpack.c.h.b16 %v203
  %v899 = vunpack.c.l.b16 %v204
  %v900 = vunpack.c.h.b16 %v204
  %v901 = vunpack.c.l.b16 %v205
  %v902 = vunpack.c.h.b16 %v205
  %v903 = vunpack.c.l.b16 %v206
  %v904 = vunpack.c.h.b16 %v206
  %v905 = vunpack.c.l.b16 %v207
  %v906 = vunpack.c.h.b16 %v207
  %v907 = vunpack.c.l.b16 %v208
  %v908 = vunpack.c.h.b16 %v208
  %v909 = vunpack.c.l.b16 %v209
  %v910 = vunpack.c.h.b16 %v209
  %v911 = vunpack.c.l.b16 %v210
  %v912 = vunpack.c.h.b16 %v210
  %v913 = vunpack.c.l.b16 %v211
  %v914 = vunpack.c.h.b16 %v211
  %v915 = vunpack.c.l.b16 %v212
  %v916 = vunpack.c.h.b16 %v212
  %v917 = vunpack.c.l.b16 %v213
  %v918 = vunpack.c.h.b16 %v213
  %v919 = vunpack.c.l.b16 %v214
  %v920 = vunpack.c.h.b16 %v214
  %v921 = vunpack.c.l.b16 %v215
  %v922 = vunpack.c.h.b16 %v215
  %v923 = vunpack.c.l.b16 %v216
  %v924 = vunpack.c.h.b16 %v216
  %v925 = vunpack.c.l.b16 %v217
  %v926 = vunpack.c.h.b16 %v217
  %v927 = vunpack.c.l.b16 %v218
  %v928 = vunpack.c.h.b16 %v218
  %v929 = vunpack.c.l.b16 %v219
  %v930 = vunpack.c.h.b16 %v219
  %v931 = vunpack.c.l.b16 %v220
  %v932 = vunpack.c.h.b16 %v220
  %v933 = vunpack.c.l.b16 %v221
  %v934 = vunpack.c.h.b16 %v221
  %v935 = vunpack.c.l.b16 %v222
  %v936 = vunpack.c.h.b16 %v222
  %v937 = vunpack.c.l.b16 %v223
  %v938 = vunpack.c.h.b16 %v223
  %v939 = vunpack.c.l.b16 %v224
  %v940 = vunpack.c.h.b16 %v224
  %v941 = vunpack.c.l.b16 %v225
  %v942 = vunpack.c.h.b16 %v225
  %v943 = vunpack.c.l.b16 %v226
  %v944 = vunpack.c.h.b16 %v226
  %v945 = vunpack.c.l.b16 %v227
  %v946 = vunpack.c.h.b16 %v227
  %v947 = vunpack.c.l.b16 %v228
  %v948 = vunpack.c.h.b16 %v228
  %v949 = vunpack.c.l.b16 %v229
  %v950 = vunpack.c.h.b16 %v229
  %v951 = vunpack.c.l.b16 %v230
  %v952 = vunpack.c.h.b16 %v230
  %v953 = vunpack.c.l.b16 %v231
  %v954 = vunpack.c.h.b16 %v231
  %v955 = vunpack.c.l.b16 %v232
  %v956 = vunpack.c.h.b16 %v232
  %v957 = vunpack.c.l.b16 %v233
  %v958 = vunpack.c.h.b16 %v233
  %v959 = vunpack.c.l.b16 %v234
  %v960 = vunpack.c.h.b16 %v234
  %v961 = vunpack.c.l.b16 %v235
  %v962 = vunpack.c.h.b16 %v235
  %v963 = vunpack.c.l.b16 %v236
  %v964 = vunpack.c.h.b16 %v236
  %v965 = vunpack.c.l.b16 %v237
  %v966 = vunpack.c.h.b16 %v237
  %v967 = vunpack.c.l.b16 %v238
  %v968 = vunpack.c.h.b16 %v238
  %v969 = vunpack.c.l.b16 %v239
  %v970 = vunpack.c.h.b16 %v239
  %v971 = vunpack.c.l.b16 %v240
  %v972 = vunpack.c.h.b16 %v240
  %v973 = vunpack.c.l.b16 %v241
  %v974 = vunpack.c.h.b16 %v241
  %v975 = vunpack.c.l.b16 %v242
  %v976 = vunpack.c.h.b16 %v242
  %v977 = vunpack.c.l.b16 %v243
  %v978 = vunpack.c.h.b16 %v243
  %v979 = vunpack.c.l.b16 %v244
  %v980 = vunpack.c.h.b16 %v244
  %v981 = vunpack.c.l.b16 %v245
  %v982 = vunpack.c.h.b16 %v245
  %v983 = vunpack.c.l.b16 %v246
  %v984 = vunpack.c.h.b16 %v246
  %v985 = vunpack.c.l.b16 %v247
  %v986 = vunpack.c.h.b16 %v247
  %v987 = vunpack.c.l.b16 %v248
  %v988 = vunpack.c.h.b16 %v248
  %v989 = vunpack.c.l.b16 %v249
  %v990 = vunpack.c.h.b16 %v249
  %v991 = vunpack.c.l.b16 %v250
  %v992 = vunpack.c.h.b16 %v250
  %v993 = vunpack.c.l.b16 %v251
  %v994 = vunpack.c.h.b16 %v251
  %v995 = vunpack.c.l.b16 %v252
  %v996 = vunpack.c.h.b16 %v252
  %v997 = vunpack.c.l.b16 %v253
  %v998 = vunpack.c.h.b16 %v253
  %v999 = vunpack.c.l.b16 %v254
  %v1000 = vunpack.c.h.b16 %v254
  %v1001 = vunpack.c.l.b16 %v255
  %v1002 = vunpack.c.h.b16 %v255
  %v1003 = vunpack.c.l.b16 %v256
  %v1004 = vunpack.c.h.b16 %v256
  %v1005 = vunpack.c.l.b16 %v257
  %v1006 = vunpack.c.h.b16 %v257
  %v1007 = vunpack.c.l.b16 %v258
  %v1008 = vunpack.c.h.b16 %v258
  %v1009 = vunpack.c.l.b16 %v259
  %v1010 = vunpack.c.h.b16 %v259
  %v1011 = vunpack.c.l.b16 %v260
  %v1012 = vunpack.c.h.b16 %v260
  %v1013 = vunpack.c.l.b16 %v261
  %v1014 = vunpack.c.h.b16 %v261
  %v1015 = vunpack.c.l.b16 %v262
  %v1016 = vunpack.c.h.b16 %v262
  %v1017 = vunpack.c.l.b16 %v263
  %v1018 = vunpack.c.h.b16 %v263
  %v1019 = vunpack.c.l.b16 %v264
  %v1020 = vunpack.c.h.b16 %v264
  %v1021 = vunpack.c.l.b16 %v265
  %v1022 = vunpack.c.h.b16 %v265
  %v1023 = vunpack.c.l.b16 %v266
  %v1024 = vunpack.c.h.b16 %v266
  %v1025 = vunpack.c.l.b16 %v267
  %v1026 = vunpack.c.h.b16 %v267
  %v1027 = vunpack.c.l.b16 %v268
  %v1028 = vunpack.c.h.b16 %v268
  %v1029 = vunpack.c.l.b16 %v269
  %v1030 = vunpack.c.h.b16 %v269
  %v1031 = vunpack.c.l.b16 %v270
  %v1032 = vunpack.c.h.b16 %v270
  %v1033 = vunpack.c.l.b16 %v271
  %v1034 = vunpack.c.h.b16 %v271
  %v1035 = vunpack.c.l.b16 %v272
  %v1036 = vunpack.c.h.b16 %v272
  %v1037 = vunpack.c.l.b16 %v273
  %v1038 = vunpack.c.h.b16 %v273
  %v1039 = vunpack.c.l.b16 %v274
  %v1040 = vunpack.c.h.b16 %v274
  %v1041 = vunpack.c.l.b16 %v275
  %v1042 = vunpack.c.h.b16 %v275
  %v1043 = vunpack.c.l.b16 %v276
  %v1044 = vunpack.c.h.b16 %v276
  %v1045 = vunpack.c.l.b16 %v277
  %v1046 = vunpack.c.h.b16 %v277
  %v1047 = vunpack.c.l.b16 %v278
  %v1048 = vunpack.c.h.b16 %v278
  %v1049 = vunpack.c.l.b16 %v279
  %v1050 = vunpack.c.h.b16 %v279
  %v1051 = vunpack.c.l.b16 %v280
  %v1052 = vunpack.c.h.b16 %v280
  %v1053 = vunpack.c.l.b16 %v281
  %v1054 = vunpack.c.h.b16 %v281
  %v1055 = vunpack.c.l.b16 %v282
  %v1056 = vunpack.c.h.b16 %v282
  %v1057 = vunpack.c.l.b16 %v283
  %v1058 = vunpack.c.h.b16 %v283
  %v1059 = vunpack.c.l.b16 %v284
  %v1060 = vunpack.c.h.b16 %v284
  %v1061 = vunpack.c.l.b16 %v285
  %v1062 = vunpack.c.h.b16 %v285
  %v1063 = vunpack.c.l.b16 %v286
  %v1064 = vunpack.c.h.b16 %v286
  %v1065 = vunpack.c.l.b16 %v287
  %v1066 = vunpack.c.h.b16 %v287
  %v1067 = vunpack.c.l.b16 %v288
  %v1068 = vunpack.c.h.b16 %v288
  %v1069 = vunpack.c.l.b16 %v289
  %v1070 = vunpack.c.h.b16 %v289
  %v1071 = vunpack.c.l.b16 %v290
  %v1072 = vunpack.c.h.b16 %v290
  %v1073 = vunpack.c.l.b16 %v291
  %v1074 = vunpack.c.h.b16 %v291
  %v1075 = vunpack.c.l.b16 %v292
  %v1076 = vunpack.c.h.b16 %v292
  %v1077 = vunpack.c.l.b16 %v293
  %v1078 = vunpack.c.h.b16 %v293
  %v1079 = vunpack.c.l.b16 %v294
  %v1080 = vunpack.c.h.b16 %v294
  %v1081 = vunpack.c.l.b16 %v295
  %v1082 = vunpack.c.h.b16 %v295
  %v1083 = vunpack.c.l.b16 %v296
  %v1084 = vunpack.c.h.b16 %v296
  %v1085 = vunpack.c.l.b16 %v297
  %v1086 = vunpack.c.h.b16 %v297
  %v1087 = vunpack.c.l.b16 %v298
  %v1088 = vunpack.c.h.b16 %v298
  %v1089 = vpack.c.b16 %v581, %v577
  %v1090 = vpack.c.b16 %v582, %v578
  %v1091 = vpack.c.b16 %v583, %v579
  %v1092 = vpack.c.b16 %v584, %v580
  %v1093 = vpack.c.b16 %v589, %v585
  %v1094 = vpack.c.b16 %v590, %v586
  %v1095 = vpack.c.b16 %v591, %v587
  %v1096 = vpack.c.b16 %v592, %v588
  %v1097 = vpack.c.b16 %v597, %v593
  %v1098 = vpack.c.b16 %v598, %v594
  %v1099 = vpack.c.b16 %v599, %v595
  %v1100 = vpack.c.b16 %v600, %v596
  %v1101 = vpack.c.b16 %v605, %v601
  %v1102 = vpack.c.b16 %v606, %v602
  %v1103 = vpack.c.b16 %v607, %v603
  %v1104 = vpack.c.b16 %v608, %v604
  %v1105 = vpack.c.b16 %v613, %v609
  %v1106 = vpack.c.b16 %v614, %v610
  %v1107 = vpack.c.b16 %v615, %v611
  %v1108 = vpack.c.b16 %v616, %v612
  %v1109 = vpack.c.b16 %v621, %v617
  %v1110 = vpack.c.b16 %v622, %v618
  %v1111 = vpack.c.b16 %v623, %v619
  %v1112 = vpack.c.b16 %v624, %v620
  %v1113 = vpack.c.b16 %v629, %v625
  %v1114 = vpack.c.b16 %v630, %v626
  %v1115 = vpack.c.b16 %v631, %v627
  %v1116 = vpack.c.b16 %v632, %v628
  %v1117 = vpack.c.b16 %v637, %v633
  %v1118 = vpack.c.b16 %v638, %v634
  %v1119 = vpack.c.b16 %v639, %v635
  %v1120 = vpack.c.b16 %v640, %v636
  %v1121 = vpack.c.b16 %v645, %v641
  %v1122 = vpack.c.b16 %v646, %v642
  %v1123 = vpack.c.b16 %v647, %v643
  %v1124 = vpack.c.b16 %v648, %v644
  %v1125 = vpack.c.b16 %v653, %v649
  %v1126 = vpack.c.b16 %v654, %v650
  %v1127 = vpack.c.b16 %v655, %v651
  %v1128 = vpack.c.b16 %v656, %v652
  %v1129 = vpack.c.b16 %v661, %v657
  %v1130 = vpack.c.b16 %v662, %v658
  %v1131 = vpack.c.b16 %v663, %v659
  %v1132 = vpack.c.b16 %v664, %v660
  %v1133 = vpack.c.b16 %v669, %v665
  %v1134 = vpack.c.b16 %v670, %v666
  %v1135 = vpack.c.b16 %v671, %v667
  %v1136 = vpack.c.b16 %v672, %v668
  %v1137 = vpack.c.b16 %v677, %v673
  %v1138 = vpack.c.b16 %v678, %v674
  %v1139 = vpack.c.b16 %v679, %v675
  %v1140 = vpack.c.b16 %v680, %v676
  %v1141 = vpack.c.b16 %v685, %v681
  %v1142 = vpack.c.b16 %v686, %v682
  %v1143 = vpack.c.b16 %v687, %v683
  %v1144 = vpack.c.b16 %v688, %v684
  %v1145 = vpack.c.b16 %v693, %v689
  %v1146 = vpack.c.b16 %v694, %v690
  %v1147 = vpack.c.b16 %v695, %v691
  %v1148 = vpack.c.b16 %v696, %v692
  %v1149 = vpack.c.b16 %v701, %v697
  %v1150 = vpack.c.b16 %v702, %v698
  %v1151 = vpack.c.b16 %v703, %v699
  %v1152 = vpack.c.b16 %v704, %v700
  %v1153 = vpack.c.b16 %v709, %v705
  %v1154 = vpack.c.b16 %v710, %v706
  %v1155 = vpack.c.b16 %v711, %v707
  %v1156 = vpack.c.b16 %v712, %v708
  %v1157 = vpack.c.b16 %v717, %v713
  %v1158 = vpack.c.b16 %v718, %v714
  %v1159 = vpack.c.b16 %v719, %v715
  %v1160 = vpack.c.b16 %v720, %v716
  %v1161 = vpack.c.b16 %v725, %v721
  %v1162 = vpack.c.b16 %v726, %v722
  %v1163 = vpack.c.b16 %v727, %v723
  %v1164 = vpack.c.b16 %v728, %v724
  %v1165 = vpack.c.b16 %v733, %v729
  %v1166 = vpack.c.b16 %v734, %v730
  %v1167 = vpack.c.b16 %v735, %v731
  %v1168 = vpack.c.b16 %v736, %v732
  %v1169 = vpack.c.b16 %v741, %v737
  %v1170 = vpack.c.b16 %v742, %v738
  %v1171 = vpack.c.b16 %v743, %v739
  %v1172 = vpack.c.b16 %v744, %v740
  %v1173 = vpack.c.b16 %v749, %v745
  %v1174 = vpack.c.b16 %v750, %v746
  %v1175 = vpack.c.b16 %v751, %v747
  %v1176 = vpack.c.b16 %v752, %v748
  %v1177 = vpack.c.b16 %v757, %v753
  %v1178 = vpack.c.b16 %v758, %v754
  %v1179 = vpack.c.b16 %v759, %v755
  %v1180 = vpack.c.b16 %v760, %v756
  %v1181 = vpack.c.b16 %v765, %v761
  %v1182 = vpack.c.b16 %v766, %v762
  %v1183 = vpack.c.b16 %v767, %v763
  %v1184 = vpack.c.b16 %v768, %v764
  %v1185 = vpack.c.b16 %v773, %v769
  %v1186 = vpack.c.b16 %v774, %v770
  %v1187 = vpack.c.b16 %v775, %v771
  %v1188 = vpack.c.b16 %v776, %v772
  %v1189 = vpack.c.b16 %v781, %v777
  %v1190 = vpack.c.b16 %v782, %v778
  %v1191 = vpack.c.b16 %v783, %v779
  %v1192 = vpack.c.b16 %v784, %v780
  %v1193 = vpack.c.b16 %v789, %v785
  %v1194 = vpack.c.b16 %v790, %v786
  %v1195 = vpack.c.b16 %v791, %v787
  %v1196 = vpack.c.b16 %v792, %v788
  %v1197 = vpack.c.b16 %v797, %v793
  %v1198 = vpack.c.b16 %v798, %v794
  %v1199 = vpack.c.b16 %v799, %v795
  %v1200 = vpack.c.b16 %v800, %v796
  %v1201 = vpack.c.b16 %v805, %v801
  %v1202 = vpack.c.b16 %v806, %v802
  %v1203 = vpack.c.b16 %v807, %v803
  %v1204 = vpack.c.b16 %v808, %v804
  %v1205 = vpack.c.b16 %v813, %v809
  %v1206 = vpack.c.b16 %v814, %v810
  %v1207 = vpack.c.b16 %v815, %v811
  %v1208 = vpack.c.b16 %v816, %v812
  %v1209 = vpack.c.b16 %v821, %v817
  %v1210 = vpack.c.b16 %v822, %v818
  %v1211 = vpack.c.b16 %v823, %v819
  %v1212 = vpack.c.b16 %v824, %v820
  %v1213 = vpack.c.b16 %v829, %v825
  %v1214 = vpack.c.b16 %v830, %v826
  %v1215 = vpack.c.b16 %v831, %v827
  %v1216 = vpack.c.b16 %v832, %v828
  %v1217 = vpack.c.b16 %v837, %v833
  %v1218 = vpack.c.b16 %v838, %v834
  %v1219 = vpack.c.b16 %v839, %v835
  %v1220 = vpack.c.b16 %v840, %v836
  %v1221 = vpack.c.b16 %v845, %v841
  %v1222 = vpack.c.b16 %v846, %v842
  %v1223 = vpack.c.b16 %v847, %v843
  %v1224 = vpack.c.b16 %v848, %v844
  %v1225 = vpack.c.b16 %v853, %v849
  %v1226 = vpack.c.b16 %v854, %v850
  %v1227 = vpack.c.b16 %v855, %v851
  %v1228 = vpack.c.b16 %v856, %v852
  %v1229 = vpack.c.b16 %v861, %v857
  %v1230 = vpack.c.b16 %v862, %v858
  %v1231 = vpack.c.b16 %v863, %v859
  %v1232 = vpack.c.b16 %v864, %v860
  %v1233 = vpack.c.b16 %v869, %v865
  %v1234 = vpack.c.b16 %v870, %v866
  %v1235 = vpack.c.b16 %v871, %v867
  %v1236 = vpack.c.b16 %v872, %v868
  %v1237 = vpack.c.b16 %v877, %v873
  %v1238 = vpack.c.b16 %v878, %v874
  %v1239 = vpack.c.b16 %v879, %v875
  %v1240 = vpack.c.b16 %v880, %v876
  %v1241 = vpack.c.b16 %v885, %v881
  %v1242 = vpack.c.b16 %v886, %v882
  %v1243 = vpack.c.b16 %v887, %v883
  %v1244 = vpack.c.b16 %v888, %v884
  %v1245 = vpack.c.b16 %v893, %v889
  %v1246 = vpack.c.b16 %v894, %v890
  %v1247 = vpack.c.b16 %v895, %v891
  %v1248 = vpack.c.b16 %v896, %v892
  %v1249 = vpack.c.b16 %v901, %v897
  %v1250 = vpack.c.b16 %v902, %v898
  %v1251 = vpack.c.b16 %v903, %v899
  %v1252 = vpack.c.b16 %v904, %v900
  %v1253 = vpack.c.b16 %v909, %v905
  %v1254 = vpack.c.b16 %v910, %v906
  %v1255 = vpack.c.b16 %v911, %v907
  %v1256 = vpack.c.b16 %v912, %v908
  %v1257 = vpack.c.b16 %v917, %v913
  %v1258 = vpack.c.b16 %v918, %v914
  %v1259 = vpack.c.b16 %v919, %v915
  %v1260 = vpack.c.b16 %v920, %v916
  %v1261 = vpack.c.b16 %v925, %v921
  %v1262 = vpack.c.b16 %v926, %v922
  %v1263 = vpack.c.b16 %v927, %v923
  %v1264 = vpack.c.b16 %v928, %v924
  %v1265 = vpack.c.b16 %v933, %v929
  %v1266 = vpack.c.b16 %v934, %v930
  %v1267 = vpack.c.b16 %v935, %v931
  %v1268 = vpack.c.b16 %v936, %v932
  %v1269 = vpack.c.b16 %v941, %v937
  %v1270 = vpack.c.b16 %v942, %v938
  %v1271 = vpack.c.b16 %v943, %v939
  %v1272 = vpack.c.b16 %v944, %v940
  %v1273 = vpack.c.b16 %v949, %v945
  %v1274 = vpack.c.b16 %v950, %v946
  %v1275 = vpack.c.b16 %v951, %v947
  %v1276 = vpack.c.b16 %v952, %v948
  %v1277 = vpack.c.b16 %v957, %v953
  %v1278 = vpack.c.b16 %v958, %v954
  %v1279 = vpack.c.b16 %v959, %v955
  %v1280 = vpack.c.b16 %v960, %v956
  %v1281 = vpack.c.b16 %v965, %v961
  %v1282 = vpack.c.b16 %v966, %v962
  %v1283 = vpack.c.b16 %v967, %v963
  %v1284 = vpack.c.b16 %v968, %v964
  %v1285 = vpack.c.b16 %v973, %v969
  %v1286 = vpack.c.b16 %v974, %v970
  %v1287 = vpack.c.b16 %v975, %v971
  %v1288 = vpack.c.b16 %v976, %v972
  %v1289 = vpack.c.b16 %v981, %v977
  %v1290 = vpack.c.b16 %v982, %v978
  %v1291 = vpack.c.b16 %v983, %v979
  %v1292 = vpack.c.b16 %v984, %v980
  %v1293 = vpack.c.b16 %v989, %v985
  %v1294 = vpack.c.b16 %v990, %v986
  %v1295 = vpack.c.b16 %v991, %v987
  %v1296 = vpack.c.b16 %v992, %v988
  %v1297 = vpack.c.b16 %v997, %v993
  %v1298 = vpack.c.b16 %v998, %v994
  %v1299 = vpack.c.b16 %v999, %v995
  %v1300 = vpack.c.b16 %v1000, %v996
  %v1301 = vpack.c.b16 %v1005, %v1001
  %v1302 = vpack.c.b16 %v1006, %v1002
  %v1303 = vpack.c.b16 %v1007, %v1003
  %v1304 = vpack.c.b16 %v1008, %v1004
  %v1305 = vpack.c.b16 %v1013, %v1009
  %v1306 = vpack.c.b16 %v1014, %v1010
  %v1307 = vpack.c.b16 %v1015, %v1011
  %v1308 = vpack.c.b16 %v1016, %v1012
  %v1309 = vpack.c.b16 %v1021, %v1017
  %v1310 = vpack.c.b16 %v1022, %v1018
  %v1311 = vpack.c.b16 %v1023, %v1019
  %v1312 = vpack.c.b16 %v1024, %v1020
  %v1313 = vpack.c.b16 %v1029, %v1025
  %v1314 = vpack.c.b16 %v1030, %v1026
  %v1315 = vpack.c.b16 %v1031, %v1027
  %v1316 = vpack.c.b16 %v1032, %v1028
  %v1317 = vpack.c.b16 %v1037, %v1033
  %v1318 = vpack.c.b16 %v1038, %v1034
  %v1319 = vpack.c.b16 %v1039, %v1035
  %v1320 = vpack.c.b16 %v1040, %v1036
  %v1321 = vpack.c.b16 %v1045, %v1041
  %v1322 = vpack.c.b16 %v1046, %v1042
  %v1323 = vpack.c.b16 %v1047, %v1043
  %v1324 = vpack.c.b16 %v1048, %v1044
  %v1325 = vpack.c.b16 %v1053, %v1049
  %v1326 = vpack.c.b16 %v1054, %v1050
  %v1327 = vpack.c.b16 %v1055, %v1051
  %v1328 = vpack.c.b16 %v1056, %v1052
  %v1329 = vpack.c.b16 %v1061, %v1057
  %v1330 = vpack.c.b16 %v1062, %v1058
  %v1331 = vpack.c.b16 %v1063, %v1059
  %v1332 = vpack.c.b16 %v1064, %v1060
  %v1333 = vpack.c.b16 %v1069, %v1065
  %v1334 = vpack.c.b16 %v1070, %v1066
  %v1335 = vpack.c.b16 %v1071, %v1067
  %v1336 = vpack.c.b16 %v1072, %v1068
  %v1337 = vpack.c.b16 %v1077, %v1073
  %v1338 = vpack.c.b16 %v1078, %v1074
  %v1339 = vpack.c.b16 %v1079, %v1075
  %v1340 = vpack.c.b16 %v1080, %v1076
  %v1341 = vpack.c.b16 %v1085, %v1081
  %v1342 = vpack.c.b16 %v1086, %v1082
  %v1343 = vpack.c.b16 %v1087, %v1083
  %v1344 = vpack.c.b16 %v1088, %v1084
  %1601 = vmatprep.subr.bf16.mxu0 %v1090
  %1602 = vmatpush1.bf16.msra.mxu0 %v1089
  %1603 = vmatprep.subr.bf16.mxu0 %v1094
  %1604 = vmatpush1.bf16.msra.mxu0 %v1093
  %1605 = vmatprep.subr.bf16.mxu0 %v1098
  %1606 = vmatpush1.bf16.msra.mxu0 %v1097
  %1607 = vmatprep.subr.bf16.mxu0 %v1102
  %1608 = vmatpush1.bf16.msra.mxu0 %v1101
  %1609 = vmatprep.subr.bf16.mxu0 %v1106
  %1610 = vmatpush1.bf16.msra.mxu0 %v1105
  %1611 = vmatprep.subr.bf16.mxu0 %v1110
  %1612 = vmatpush1.bf16.msra.mxu0 %v1109
  %1613 = vmatprep.subr.bf16.mxu0 %v1114
  %1614 = vmatpush1.bf16.msra.mxu0 %v1113
  %1615 = vmatprep.subr.bf16.mxu0 %v1118
  %1616 = vmatpush1.bf16.msra.mxu0 %v1117
  %1617 = vmatprep.subr.bf16.mxu0 %v1122
  %1618 = vmatpush1.bf16.msra.mxu0 %v1121
  %1619 = vmatprep.subr.bf16.mxu0 %v1126
  %1620 = vmatpush1.bf16.msra.mxu0 %v1125
  %1621 = vmatprep.subr.bf16.mxu0 %v1130
  %1622 = vmatpush1.bf16.msra.mxu0 %v1129
  %1623 = vmatprep.subr.bf16.mxu0 %v1134
  %1624 = vmatpush1.bf16.msra.mxu0 %v1133
  %1625 = vmatprep.subr.bf16.mxu0 %v1138
  %1626 = vmatpush1.bf16.msra.mxu0 %v1137
  %1627 = vmatprep.subr.bf16.mxu0 %v1142
  %1628 = vmatpush1.bf16.msra.mxu0 %v1141
  %1629 = vmatprep.subr.bf16.mxu0 %v1146
  %1630 = vmatpush1.bf16.msra.mxu0 %v1145
  %1631 = vmatprep.subr.bf16.mxu0 %v1150
  %1632 = vmatpush1.bf16.msra.mxu0 %v1149
  %1633 = vmatprep.mubr.bf16.mxu0 %v36
  %1634 = vmatmul.mubr.bf16.gmra.mrb[0].mxu0 %v35
  %v1635 = vpop.f32.mrb[0].mxu0
  %v1636 = vadd.f32 %v304, %v1635
  %v1637 = vpop.f32.mrb[0].mxu0
  %v1638 = vadd.f32 %v308, %v1637
  %v1639 = vpop.f32.mrb[0].mxu0
  %v1640 = vpop.f32.mrb[0].mxu0
  %1641 = vdwg.mxu0
  %1642 = vmatprep.subr.bf16.mxu0 %v1154
  %1643 = vmatpush1.bf16.msra.mxu0 %v1153
  %1644 = vmatprep.subr.bf16.mxu0 %v1158
  %1645 = vmatpush1.bf16.msra.mxu0 %v1157
  %1646 = vmatprep.subr.bf16.mxu0 %v1162
  %1647 = vmatpush1.bf16.msra.mxu0 %v1161
  %1648 = vmatprep.subr.bf16.mxu0 %v1166
  %1649 = vmatpush1.bf16.msra.mxu0 %v1165
  %1650 = vmatprep.subr.bf16.mxu0 %v1170
  %1651 = vmatpush1.bf16.msra.mxu0 %v1169
  %1652 = vmatprep.subr.bf16.mxu0 %v1174
  %1653 = vmatpush1.bf16.msra.mxu0 %v1173
  %1654 = vmatprep.subr.bf16.mxu0 %v1178
  %1655 = vmatpush1.bf16.msra.mxu0 %v1177
  %1656 = vmatprep.subr.bf16.mxu0 %v1182
  %1657 = vmatpush1.bf16.msra.mxu0 %v1181
  %1658 = vmatprep.subr.bf16.mxu0 %v1186
  %1659 = vmatpush1.bf16.msra.mxu0 %v1185
  %1660 = vmatprep.subr.bf16.mxu0 %v1190
  %1661 = vmatpush1.bf16.msra.mxu0 %v1189
  %1662 = vmatprep.subr.bf16.mxu0 %v1194
  %1663 = vmatpush1.bf16.msra.mxu0 %v1193
  %1664 = vmatprep.subr.bf16.mxu0 %v1198
  %1665 = vmatpush1.bf16.msra.mxu0 %v1197
  %1666 = vmatprep.subr.bf16.mxu0 %v1202
  %1667 = vmatpush1.bf16.msra.mxu0 %v1201
  %1668 = vmatprep.subr.bf16.mxu0 %v1206
  %1669 = vmatpush1.bf16.msra.mxu0 %v1205
  %1670 = vmatprep.subr.bf16.mxu0 %v1210
  %1671 = vmatpush1.bf16.msra.mxu0 %v1209
  %1672 = vmatprep.subr.bf16.mxu0 %v1214
  %1673 = vmatpush1.bf16.msra.mxu0 %v1213
  %1674 = vmatprep.mubr.bf16.mxu0 %v38
  %1675 = vmatmul.mubr.bf16.gmra.mrb[0].mxu0 %v37
  %v1676 = vpop.f32.mrb[0].mxu0
  %v1677 = vadd.f32 %v1636, %v1676
  %v1678 = vpop.f32.mrb[0].mxu0
  %v1679 = vadd.f32 %v1638, %v1678
  %v1680 = vpop.f32.mrb[0].mxu0
  %v1681 = vpop.f32.mrb[0].mxu0
  %1682 = vdwg.mxu0
  %1683 = vmatprep.subr.bf16.mxu0 %v1218
  %1684 = vmatpush1.bf16.msra.mxu0 %v1217
  %1685 = vmatprep.subr.bf16.mxu0 %v1222
  %1686 = vmatpush1.bf16.msra.mxu0 %v1221
  %1687 = vmatprep.subr.bf16.mxu0 %v1226
  %1688 = vmatpush1.bf16.msra.mxu0 %v1225
  %1689 = vmatprep.subr.bf16.mxu0 %v1230
  %1690 = vmatpush1.bf16.msra.mxu0 %v1229
  %1691 = vmatprep.subr.bf16.mxu0 %v1234
  %1692 = vmatpush1.bf16.msra.mxu0 %v1233
  %1693 = vmatprep.subr.bf16.mxu0 %v1238
  %1694 = vmatpush1.bf16.msra.mxu0 %v1237
  %1695 = vmatprep.subr.bf16.mxu0 %v1242
  %1696 = vmatpush1.bf16.msra.mxu0 %v1241
  %1697 = vmatprep.subr.bf16.mxu0 %v1246
  %1698 = vmatpush1.bf16.msra.mxu0 %v1245
  %1699 = vmatprep.subr.bf16.mxu0 %v1250
  %1700 = vmatpush1.bf16.msra.mxu0 %v1249
  %1701 = vmatprep.subr.bf16.mxu0 %v1254
  %1702 = vmatpush1.bf16.msra.mxu0 %v1253
  %1703 = vmatprep.subr.bf16.mxu0 %v1258
  %1704 = vmatpush1.bf16.msra.mxu0 %v1257
  %1705 = vmatprep.subr.bf16.mxu0 %v1262
  %1706 = vmatpush1.bf16.msra.mxu0 %v1261
  %1707 = vmatprep.subr.bf16.mxu0 %v1266
  %1708 = vmatpush1.bf16.msra.mxu0 %v1265
  %1709 = vmatprep.subr.bf16.mxu0 %v1270
  %1710 = vmatpush1.bf16.msra.mxu0 %v1269
  %1711 = vmatprep.subr.bf16.mxu0 %v1274
  %1712 = vmatpush1.bf16.msra.mxu0 %v1273
  %1713 = vmatprep.subr.bf16.mxu0 %v1278
  %1714 = vmatpush1.bf16.msra.mxu0 %v1277
  %1715 = vmatprep.mubr.bf16.mxu0 %v40
  %1716 = vmatmul.mubr.bf16.gmra.mrb[0].mxu0 %v39
  %v1717 = vpop.f32.mrb[0].mxu0
  %v1718 = vadd.f32 %v1677, %v1717
  %v1719 = vpop.f32.mrb[0].mxu0
  %v1720 = vadd.f32 %v1679, %v1719
  %v1721 = vpop.f32.mrb[0].mxu0
  %v1722 = vpop.f32.mrb[0].mxu0
  %1723 = vdwg.mxu0
  %1724 = vmatprep.subr.bf16.mxu0 %v1282
  %1725 = vmatpush1.bf16.msra.mxu0 %v1281
  %1726 = vmatprep.subr.bf16.mxu0 %v1286
  %1727 = vmatpush1.bf16.msra.mxu0 %v1285
  %1728 = vmatprep.subr.bf16.mxu0 %v1290
  %1729 = vmatpush1.bf16.msra.mxu0 %v1289
  %1730 = vmatprep.subr.bf16.mxu0 %v1294
  %1731 = vmatpush1.bf16.msra.mxu0 %v1293
  %1732 = vmatprep.subr.bf16.mxu0 %v1298
  %1733 = vmatpush1.bf16.msra.mxu0 %v1297
  %1734 = vmatprep.subr.bf16.mxu0 %v1302
  %1735 = vmatpush1.bf16.msra.mxu0 %v1301
  %1736 = vmatprep.subr.bf16.mxu0 %v1306
  %1737 = vmatpush1.bf16.msra.mxu0 %v1305
  %1738 = vmatprep.subr.bf16.mxu0 %v1310
  %1739 = vmatpush1.bf16.msra.mxu0 %v1309
  %1740 = vmatprep.subr.bf16.mxu0 %v1314
  %1741 = vmatpush1.bf16.msra.mxu0 %v1313
  %1742 = vmatprep.subr.bf16.mxu0 %v1318
  %1743 = vmatpush1.bf16.msra.mxu0 %v1317
  %1744 = vmatprep.subr.bf16.mxu0 %v1322
  %1745 = vmatpush1.bf16.msra.mxu0 %v1321
  %1746 = vmatprep.subr.bf16.mxu0 %v1326
  %1747 = vmatpush1.bf16.msra.mxu0 %v1325
  %1748 = vmatprep.subr.bf16.mxu0 %v1330
  %1749 = vmatpush1.bf16.msra.mxu0 %v1329
  %1750 = vmatprep.subr.bf16.mxu0 %v1334
  %1751 = vmatpush1.bf16.msra.mxu0 %v1333
  %1752 = vmatprep.subr.bf16.mxu0 %v1338
  %1753 = vmatpush1.bf16.msra.mxu0 %v1337
  %1754 = vmatprep.subr.bf16.mxu0 %v1342
  %1755 = vmatpush1.bf16.msra.mxu0 %v1341
  %1756 = vmatprep.mubr.bf16.mxu0 %v42
  %1757 = vmatmul.mubr.bf16.gmra.mrb[0].mxu0 %v41
  %v1758 = vpop.f32.mrb[0].mxu0
  %v1759 = vadd.f32 %v1718, %v1758
  %v1760 = vpop.f32.mrb[0].mxu0
  %v1761 = vadd.f32 %v1720, %v1760
  %v1762 = vpop.f32.mrb[0].mxu0
  %v1763 = vpop.f32.mrb[0].mxu0
  %1764 = vdwg.mxu0
  %1765 = vmatprep.subr.bf16.mxu0 %v1092
  %1766 = vmatpush1.bf16.msra.mxu0 %v1091
  %1767 = vmatprep.subr.bf16.mxu0 %v1096
  %1768 = vmatpush1.bf16.msra.mxu0 %v1095
  %1769 = vmatprep.subr.bf16.mxu0 %v1100
  %1770 = vmatpush1.bf16.msra.mxu0 %v1099
  %1771 = vmatprep.subr.bf16.mxu0 %v1104
  %1772 = vmatpush1.bf16.msra.mxu0 %v1103
  %1773 = vmatprep.subr.bf16.mxu0 %v1108
  %1774 = vmatpush1.bf16.msra.mxu0 %v1107
  %1775 = vmatprep.subr.bf16.mxu0 %v1112
  %1776 = vmatpush1.bf16.msra.mxu0 %v1111
  %1777 = vmatprep.subr.bf16.mxu0 %v1116
  %1778 = vmatpush1.bf16.msra.mxu0 %v1115
  %1779 = vmatprep.subr.bf16.mxu0 %v1120
  %1780 = vmatpush1.bf16.msra.mxu0 %v1119
  %1781 = vmatprep.subr.bf16.mxu0 %v1124
  %1782 = vmatpush1.bf16.msra.mxu0 %v1123
  %1783 = vmatprep.subr.bf16.mxu0 %v1128
  %1784 = vmatpush1.bf16.msra.mxu0 %v1127
  %1785 = vmatprep.subr.bf16.mxu0 %v1132
  %1786 = vmatpush1.bf16.msra.mxu0 %v1131
  %1787 = vmatprep.subr.bf16.mxu0 %v1136
  %1788 = vmatpush1.bf16.msra.mxu0 %v1135
  %1789 = vmatprep.subr.bf16.mxu0 %v1140
  %1790 = vmatpush1.bf16.msra.mxu0 %v1139
  %1791 = vmatprep.subr.bf16.mxu0 %v1144
  %1792 = vmatpush1.bf16.msra.mxu0 %v1143
  %1793 = vmatprep.subr.bf16.mxu0 %v1148
  %1794 = vmatpush1.bf16.msra.mxu0 %v1147
  %1795 = vmatprep.subr.bf16.mxu0 %v1152
  %1796 = vmatpush1.bf16.msra.mxu0 %v1151
  %1797 = vmatprep.mubr.bf16.mxu0 %v36
  %1798 = vmatmul.mubr.bf16.gmra.mrb[0].mxu0 %v35
  %v1799 = vpop.f32.mrb[0].mxu0
  %v1800 = vadd.f32 %v312, %v1799
  %v1801 = vpop.f32.mrb[0].mxu0
  %v1802 = vadd.f32 %v316, %v1801
  %v1803 = vpop.f32.mrb[0].mxu0
  %v1804 = vpop.f32.mrb[0].mxu0
  %1805 = vdwg.mxu0
  %1806 = vmatprep.subr.bf16.mxu0 %v1156
  %1807 = vmatpush1.bf16.msra.mxu0 %v1155
  %1808 = vmatprep.subr.bf16.mxu0 %v1160
  %1809 = vmatpush1.bf16.msra.mxu0 %v1159
  %1810 = vmatprep.subr.bf16.mxu0 %v1164
  %1811 = vmatpush1.bf16.msra.mxu0 %v1163
  %1812 = vmatprep.subr.bf16.mxu0 %v1168
  %1813 = vmatpush1.bf16.msra.mxu0 %v1167
  %1814 = vmatprep.subr.bf16.mxu0 %v1172
  %1815 = vmatpush1.bf16.msra.mxu0 %v1171
  %1816 = vmatprep.subr.bf16.mxu0 %v1176
  %1817 = vmatpush1.bf16.msra.mxu0 %v1175
  %1818 = vmatprep.subr.bf16.mxu0 %v1180
  %1819 = vmatpush1.bf16.msra.mxu0 %v1179
  %1820 = vmatprep.subr.bf16.mxu0 %v1184
  %1821 = vmatpush1.bf16.msra.mxu0 %v1183
  %1822 = vmatprep.subr.bf16.mxu0 %v1188
  %1823 = vmatpush1.bf16.msra.mxu0 %v1187
  %1824 = vmatprep.subr.bf16.mxu0 %v1192
  %1825 = vmatpush1.bf16.msra.mxu0 %v1191
  %1826 = vmatprep.subr.bf16.mxu0 %v1196
  %1827 = vmatpush1.bf16.msra.mxu0 %v1195
  %1828 = vmatprep.subr.bf16.mxu0 %v1200
  %1829 = vmatpush1.bf16.msra.mxu0 %v1199
  %1830 = vmatprep.subr.bf16.mxu0 %v1204
  %1831 = vmatpush1.bf16.msra.mxu0 %v1203
  %1832 = vmatprep.subr.bf16.mxu0 %v1208
  %1833 = vmatpush1.bf16.msra.mxu0 %v1207
  %1834 = vmatprep.subr.bf16.mxu0 %v1212
  %1835 = vmatpush1.bf16.msra.mxu0 %v1211
  %1836 = vmatprep.subr.bf16.mxu0 %v1216
  %1837 = vmatpush1.bf16.msra.mxu0 %v1215
  %1838 = vmatprep.mubr.bf16.mxu0 %v38
  %1839 = vmatmul.mubr.bf16.gmra.mrb[0].mxu0 %v37
  %v1840 = vpop.f32.mrb[0].mxu0
  %v1841 = vadd.f32 %v1800, %v1840
  %v1842 = vpop.f32.mrb[0].mxu0
  %v1843 = vadd.f32 %v1802, %v1842
  %v1844 = vpop.f32.mrb[0].mxu0
  %v1845 = vpop.f32.mrb[0].mxu0
  %1846 = vdwg.mxu0
  %1847 = vmatprep.subr.bf16.mxu0 %v1220
  %1848 = vmatpush1.bf16.msra.mxu0 %v1219
  %1849 = vmatprep.subr.bf16.mxu0 %v1224
  %1850 = vmatpush1.bf16.msra.mxu0 %v1223
  %1851 = vmatprep.subr.bf16.mxu0 %v1228
  %1852 = vmatpush1.bf16.msra.mxu0 %v1227
  %1853 = vmatprep.subr.bf16.mxu0 %v1232
  %1854 = vmatpush1.bf16.msra.mxu0 %v1231
  %1855 = vmatprep.subr.bf16.mxu0 %v1236
  %1856 = vmatpush1.bf16.msra.mxu0 %v1235
  %1857 = vmatprep.subr.bf16.mxu0 %v1240
  %1858 = vmatpush1.bf16.msra.mxu0 %v1239
  %1859 = vmatprep.subr.bf16.mxu0 %v1244
  %1860 = vmatpush1.bf16.msra.mxu0 %v1243
  %1861 = vmatprep.subr.bf16.mxu0 %v1248
  %1862 = vmatpush1.bf16.msra.mxu0 %v1247
  %1863 = vmatprep.subr.bf16.mxu0 %v1252
  %1864 = vmatpush1.bf16.msra.mxu0 %v1251
  %1865 = vmatprep.subr.bf16.mxu0 %v1256
  %1866 = vmatpush1.bf16.msra.mxu0 %v1255
  %1867 = vmatprep.subr.bf16.mxu0 %v1260
  %1868 = vmatpush1.bf16.msra.mxu0 %v1259
  %1869 = vmatprep.subr.bf16.mxu0 %v1264
  %1870 = vmatpush1.bf16.msra.mxu0 %v1263
  %1871 = vmatprep.subr.bf16.mxu0 %v1268
  %1872 = vmatpush1.bf16.msra.mxu0 %v1267
  %1873 = vmatprep.subr.bf16.mxu0 %v1272
  %1874 = vmatpush1.bf16.msra.mxu0 %v1271
  %1875 = vmatprep.subr.bf16.mxu0 %v1276
  %1876 = vmatpush1.bf16.msra.mxu0 %v1275
  %1877 = vmatprep.subr.bf16.mxu0 %v1280
  %1878 = vmatpush1.bf16.msra.mxu0 %v1279
  %1879 = vmatprep.mubr.bf16.mxu0 %v40
  %1880 = vmatmul.mubr.bf16.gmra.mrb[0].mxu0 %v39
  %v1881 = vpop.f32.mrb[0].mxu0
  %v1882 = vadd.f32 %v1841, %v1881
  %v1883 = vpop.f32.mrb[0].mxu0
  %v1884 = vadd.f32 %v1843, %v1883
  %v1885 = vpop.f32.mrb[0].mxu0
  %v1886 = vpop.f32.mrb[0].mxu0
  %1887 = vdwg.mxu0
  %1888 = vmatprep.subr.bf16.mxu0 %v1284
  %1889 = vmatpush1.bf16.msra.mxu0 %v1283
  %1890 = vmatprep.subr.bf16.mxu0 %v1288
  %1891 = vmatpush1.bf16.msra.mxu0 %v1287
  %1892 = vmatprep.subr.bf16.mxu0 %v1292
  %1893 = vmatpush1.bf16.msra.mxu0 %v1291
  %1894 = vmatprep.subr.bf16.mxu0 %v1296
  %1895 = vmatpush1.bf16.msra.mxu0 %v1295
  %1896 = vmatprep.subr.bf16.mxu0 %v1300
  %1897 = vmatpush1.bf16.msra.mxu0 %v1299
  %1898 = vmatprep.subr.bf16.mxu0 %v1304
  %1899 = vmatpush1.bf16.msra.mxu0 %v1303
  %1900 = vmatprep.subr.bf16.mxu0 %v1308
  %1901 = vmatpush1.bf16.msra.mxu0 %v1307
  %1902 = vmatprep.subr.bf16.mxu0 %v1312
  %1903 = vmatpush1.bf16.msra.mxu0 %v1311
  %1904 = vmatprep.subr.bf16.mxu0 %v1316
  %1905 = vmatpush1.bf16.msra.mxu0 %v1315
  %1906 = vmatprep.subr.bf16.mxu0 %v1320
  %1907 = vmatpush1.bf16.msra.mxu0 %v1319
  %1908 = vmatprep.subr.bf16.mxu0 %v1324
  %1909 = vmatpush1.bf16.msra.mxu0 %v1323
  %1910 = vmatprep.subr.bf16.mxu0 %v1328
  %1911 = vmatpush1.bf16.msra.mxu0 %v1327
  %1912 = vmatprep.subr.bf16.mxu0 %v1332
  %1913 = vmatpush1.bf16.msra.mxu0 %v1331
  %1914 = vmatprep.subr.bf16.mxu0 %v1336
  %1915 = vmatpush1.bf16.msra.mxu0 %v1335
  %1916 = vmatprep.subr.bf16.mxu0 %v1340
  %1917 = vmatpush1.bf16.msra.mxu0 %v1339
  %1918 = vmatprep.subr.bf16.mxu0 %v1344
  %1919 = vmatpush1.bf16.msra.mxu0 %v1343
  %1920 = vmatprep.mubr.bf16.mxu0 %v42
  %1921 = vmatmul.mubr.bf16.gmra.mrb[0].mxu0 %v41
  %v1922 = vpop.f32.mrb[0].mxu0
  %v1923 = vadd.f32 %v1882, %v1922
  %v1924 = vpop.f32.mrb[0].mxu0
  %v1925 = vadd.f32 %v1884, %v1924
  %v1926 = vpop.f32.mrb[0].mxu0
  %v1927 = vpop.f32.mrb[0].mxu0
  %1928 = vdwg.mxu0
  %v1929 = vmax.f32 %v1759, 0.0
  %v1930 = vmax.f32 %v1761, 0.0
  %v1931 = vmax.f32 %v1923, 0.0
  %v1932 = vmax.f32 %v1925, 0.0
  %v1933 = vpack.c.bf16 %v1929, %v1929
  %v1934 = vpack.c.bf16 %v1930, %v1930
  %v1935 = vpack.c.bf16 %v1931, %v1931
  %v1936 = vpack.c.bf16 %v1932, %v1932
  %v1937 = vld [vmem:[%s3] sm:$0xff]
  %v1938 = vld [vmem:[%s3 + $0x8] sm:$0xff]
  %v1939 = vld [vmem:[%s3 + $0x10] sm:$0xff]
  %v1940 = vld [vmem:[%s3 + $0x18] sm:$0xff]
  %v1941 = vld [vmem:[%s3 + $0x20] sm:$0xff]
  %v1942 = vld [vmem:[%s3 + $0x28] sm:$0xff]
  %v1943 = vld [vmem:[%s3 + $0x30] sm:$0xff]
  %v1944 = vld [vmem:[%s3 + $0x38] sm:$0xff]
  %v1945 = vld [vmem:[%s3 + $0x40] sm:$0xff]
  %v1946 = vld [vmem:[%s3 + $0x48] sm:$0xff]
  %v1947 = vld [vmem:[%s3 + $0x50] sm:$0xff]
  %v1948 = vld [vmem:[%s3 + $0x58] sm:$0xff]
  %v1949 = vld [vmem:[%s3 + $0x60] sm:$0xff]
  %v1950 = vld [vmem:[%s3 + $0x68] sm:$0xff]
  %v1951 = vld [vmem:[%s3 + $0x70] sm:$0xff]
  %v1952 = vld [vmem:[%s3 + $0x78] sm:$0xff]
  %v1953 = vld [vmem:[%s3 + $0x80] sm:$0xff]
  %v1954 = vld [vmem:[%s3 + $0x88] sm:$0xff]
  %v1955 = vld [vmem:[%s3 + $0x90] sm:$0xff]
  %v1956 = vld [vmem:[%s3 + $0x98] sm:$0xff]
  %v1957 = vld [vmem:[%s3 + $0xa0] sm:$0xff]
  %v1958 = vld [vmem:[%s3 + $0xa8] sm:$0xff]
  %v1959 = vld [vmem:[%s3 + $0xb0] sm:$0xff]
  %v1960 = vld [vmem:[%s3 + $0xb8] sm:$0xff]
  %v1961 = vld [vmem:[%s3 + $0xc0] sm:$0xff]
  %v1962 = vld [vmem:[%s3 + $0xc8] sm:$0xff]
  %v1963 = vld [vmem:[%s3 + $0xd0] sm:$0xff]
  %v1964 = vld [vmem:[%s3 + $0xd8] sm:$0xff]
  %v1965 = vld [vmem:[%s3 + $0xe0] sm:$0xff]
  %v1966 = vld [vmem:[%s3 + $0xe8] sm:$0xff]
  %v1967 = vld [vmem:[%s3 + $0xf0] sm:$0xff]
  %v1968 = vld [vmem:[%s3 + $0xf8] sm:$0xff]
  %v1969 = vld [vmem:[%s3 + $0x100] sm:$0xff]
  %v1970 = vld [vmem:[%s3 + $0x108] sm:$0xff]
  %v1971 = vld [vmem:[%s3 + $0x110] sm:$0xff]
  %v1972 = vld [vmem:[%s3 + $0x118] sm:$0xff]
  %v1973 = vld [vmem:[%s3 + $0x120] sm:$0xff]
  %v1974 = vld [vmem:[%s3 + $0x128] sm:$0xff]
  %v1975 = vld [vmem:[%s3 + $0x130] sm:$0xff]
  %v1976 = vld [vmem:[%s3 + $0x138] sm:$0xff]
  %v1977 = vld [vmem:[%s3 + $0x140] sm:$0xff]
  %v1978 = vld [vmem:[%s3 + $0x148] sm:$0xff]
  %v1979 = vld [vmem:[%s3 + $0x150] sm:$0xff]
  %v1980 = vld [vmem:[%s3 + $0x158] sm:$0xff]
  %v1981 = vld [vmem:[%s3 + $0x160] sm:$0xff]
  %v1982 = vld [vmem:[%s3 + $0x168] sm:$0xff]
  %v1983 = vld [vmem:[%s3 + $0x170] sm:$0xff]
  %v1984 = vld [vmem:[%s3 + $0x178] sm:$0xff]
  %v1985 = vld [vmem:[%s3 + $0x180] sm:$0xff]
  %v1986 = vld [vmem:[%s3 + $0x188] sm:$0xff]
  %v1987 = vld [vmem:[%s3 + $0x190] sm:$0xff]
  %v1988 = vld [vmem:[%s3 + $0x198] sm:$0xff]
  %v1989 = vld [vmem:[%s3 + $0x1a0] sm:$0xff]
  %v1990 = vld [vmem:[%s3 + $0x1a8] sm:$0xff]
  %v1991 = vld [vmem:[%s3 + $0x1b0] sm:$0xff]
  %v1992 = vld [vmem:[%s3 + $0x1b8] sm:$0xff]
  %v1993 = vld [vmem:[%s3 + $0x1c0] sm:$0xff]
  %v1994 = vld [vmem:[%s3 + $0x1c8] sm:$0xff]
  %v1995 = vld [vmem:[%s3 + $0x1d0] sm:$0xff]
  %v1996 = vld [vmem:[%s3 + $0x1d8] sm:$0xff]
  %v1997 = vld [vmem:[%s3 + $0x1e0] sm:$0xff]
  %v1998 = vld [vmem:[%s3 + $0x1e8] sm:$0xff]
  %v1999 = vld [vmem:[%s3 + $0x1f0] sm:$0xff]
  %v2000 = vld [vmem:[%s3 + $0x1f8] sm:$0xff]
  %v2001 = vld [vmem:[%s4] sm:$0x3]
  %v2003 = vlaneseq
  %v2004 = vshrl.u32 %v2003, 7
  %v2005 = vsub.s32 0, %v2004
  %v2006 = vrot.slane %v2001, %v2005
  %v2007 = vlaneseq
  %v2008 = vshrl.u32 %v2007, 7
  %v2009 = vsub.s32 1, %v2008
  %v2010 = vrot.slane %v2001, %v2009
  %v2077 = vunpack.c.l.b16 %v1937
  %v2078 = vunpack.c.h.b16 %v1937
  %v2079 = vunpack.c.l.b16 %v1938
  %v2080 = vunpack.c.h.b16 %v1938
  %v2081 = vunpack.c.l.b16 %v1939
  %v2082 = vunpack.c.h.b16 %v1939
  %v2083 = vunpack.c.l.b16 %v1940
  %v2084 = vunpack.c.h.b16 %v1940
  %v2085 = vunpack.c.l.b16 %v1941
  %v2086 = vunpack.c.h.b16 %v1941
  %v2087 = vunpack.c.l.b16 %v1942
  %v2088 = vunpack.c.h.b16 %v1942
  %v2089 = vunpack.c.l.b16 %v1943
  %v2090 = vunpack.c.h.b16 %v1943
  %v2091 = vunpack.c.l.b16 %v1944
  %v2092 = vunpack.c.h.b16 %v1944
  %v2093 = vunpack.c.l.b16 %v1945
  %v2094 = vunpack.c.h.b16 %v1945
  %v2095 = vunpack.c.l.b16 %v1946
  %v2096 = vunpack.c.h.b16 %v1946
  %v2097 = vunpack.c.l.b16 %v1947
  %v2098 = vunpack.c.h.b16 %v1947
  %v2099 = vunpack.c.l.b16 %v1948
  %v2100 = vunpack.c.h.b16 %v1948
  %v2101 = vunpack.c.l.b16 %v1949
  %v2102 = vunpack.c.h.b16 %v1949
  %v2103 = vunpack.c.l.b16 %v1950
  %v2104 = vunpack.c.h.b16 %v1950
  %v2105 = vunpack.c.l.b16 %v1951
  %v2106 = vunpack.c.h.b16 %v1951
  %v2107 = vunpack.c.l.b16 %v1952
  %v2108 = vunpack.c.h.b16 %v1952
  %v2109 = vunpack.c.l.b16 %v1953
  %v2110 = vunpack.c.h.b16 %v1953
  %v2111 = vunpack.c.l.b16 %v1954
  %v2112 = vunpack.c.h.b16 %v1954
  %v2113 = vunpack.c.l.b16 %v1955
  %v2114 = vunpack.c.h.b16 %v1955
  %v2115 = vunpack.c.l.b16 %v1956
  %v2116 = vunpack.c.h.b16 %v1956
  %v2117 = vunpack.c.l.b16 %v1957
  %v2118 = vunpack.c.h.b16 %v1957
  %v2119 = vunpack.c.l.b16 %v1958
  %v2120 = vunpack.c.h.b16 %v1958
  %v2121 = vunpack.c.l.b16 %v1959
  %v2122 = vunpack.c.h.b16 %v1959
  %v2123 = vunpack.c.l.b16 %v1960
  %v2124 = vunpack.c.h.b16 %v1960
  %v2125 = vunpack.c.l.b16 %v1961
  %v2126 = vunpack.c.h.b16 %v1961
  %v2127 = vunpack.c.l.b16 %v1962
  %v2128 = vunpack.c.h.b16 %v1962
  %v2129 = vunpack.c.l.b16 %v1963
  %v2130 = vunpack.c.h.b16 %v1963
  %v2131 = vunpack.c.l.b16 %v1964
  %v2132 = vunpack.c.h.b16 %v1964
  %v2133 = vunpack.c.l.b16 %v1965
  %v2134 = vunpack.c.h.b16 %v1965
  %v2135 = vunpack.c.l.b16 %v1966
  %v2136 = vunpack.c.h.b16 %v1966
  %v2137 = vunpack.c.l.b16 %v1967
  %v2138 = vunpack.c.h.b16 %v1967
  %v2139 = vunpack.c.l.b16 %v1968
  %v2140 = vunpack.c.h.b16 %v1968
  %v2141 = vunpack.c.l.b16 %v1969
  %v2142 = vunpack.c.h.b16 %v1969
  %v2143 = vunpack.c.l.b16 %v1970
  %v2144 = vunpack.c.h.b16 %v1970
  %v2145 = vunpack.c.l.b16 %v1971
  %v2146 = vunpack.c.h.b16 %v1971
  %v2147 = vunpack.c.l.b16 %v1972
  %v2148 = vunpack.c.h.b16 %v1972
  %v2149 = vunpack.c.l.b16 %v1973
  %v2150 = vunpack.c.h.b16 %v1973
  %v2151 = vunpack.c.l.b16 %v1974
  %v2152 = vunpack.c.h.b16 %v1974
  %v2153 = vunpack.c.l.b16 %v1975
  %v2154 = vunpack.c.h.b16 %v1975
  %v2155 = vunpack.c.l.b16 %v1976
  %v2156 = vunpack.c.h.b16 %v1976
  %v2157 = vunpack.c.l.b16 %v1977
  %v2158 = vunpack.c.h.b16 %v1977
  %v2159 = vunpack.c.l.b16 %v1978
  %v2160 = vunpack.c.h.b16 %v1978
  %v2161 = vunpack.c.l.b16 %v1979
  %v2162 = vunpack.c.h.b16 %v1979
  %v2163 = vunpack.c.l.b16 %v1980
  %v2164 = vunpack.c.h.b16 %v1980
  %v2165 = vunpack.c.l.b16 %v1981
  %v2166 = vunpack.c.h.b16 %v1981
  %v2167 = vunpack.c.l.b16 %v1982
  %v2168 = vunpack.c.h.b16 %v1982
  %v2169 = vunpack.c.l.b16 %v1983
  %v2170 = vunpack.c.h.b16 %v1983
  %v2171 = vunpack.c.l.b16 %v1984
  %v2172 = vunpack.c.h.b16 %v1984
  %v2173 = vunpack.c.l.b16 %v1985
  %v2174 = vunpack.c.h.b16 %v1985
  %v2175 = vunpack.c.l.b16 %v1986
  %v2176 = vunpack.c.h.b16 %v1986
  %v2177 = vunpack.c.l.b16 %v1987
  %v2178 = vunpack.c.h.b16 %v1987
  %v2179 = vunpack.c.l.b16 %v1988
  %v2180 = vunpack.c.h.b16 %v1988
  %v2181 = vunpack.c.l.b16 %v1989
  %v2182 = vunpack.c.h.b16 %v1989
  %v2183 = vunpack.c.l.b16 %v1990
  %v2184 = vunpack.c.h.b16 %v1990
  %v2185 = vunpack.c.l.b16 %v1991
  %v2186 = vunpack.c.h.b16 %v1991
  %v2187 = vunpack.c.l.b16 %v1992
  %v2188 = vunpack.c.h.b16 %v1992
  %v2189 = vunpack.c.l.b16 %v1993
  %v2190 = vunpack.c.h.b16 %v1993
  %v2191 = vunpack.c.l.b16 %v1994
  %v2192 = vunpack.c.h.b16 %v1994
  %v2193 = vunpack.c.l.b16 %v1995
  %v2194 = vunpack.c.h.b16 %v1995
  %v2195 = vunpack.c.l.b16 %v1996
  %v2196 = vunpack.c.h.b16 %v1996
  %v2197 = vunpack.c.l.b16 %v1997
  %v2198 = vunpack.c.h.b16 %v1997
  %v2199 = vunpack.c.l.b16 %v1998
  %v2200 = vunpack.c.h.b16 %v1998
  %v2201 = vunpack.c.l.b16 %v1999
  %v2202 = vunpack.c.h.b16 %v1999
  %v2203 = vunpack.c.l.b16 %v2000
  %v2204 = vunpack.c.h.b16 %v2000
  %v2205 = vpack.c.b16 %v2079, %v2077
  %v2206 = vpack.c.b16 %v2080, %v2078
  %v2207 = vpack.c.b16 %v2083, %v2081
  %v2208 = vpack.c.b16 %v2084, %v2082
  %v2209 = vpack.c.b16 %v2087, %v2085
  %v2210 = vpack.c.b16 %v2088, %v2086
  %v2211 = vpack.c.b16 %v2091, %v2089
  %v2212 = vpack.c.b16 %v2092, %v2090
  %v2213 = vpack.c.b16 %v2095, %v2093
  %v2214 = vpack.c.b16 %v2096, %v2094
  %v2215 = vpack.c.b16 %v2099, %v2097
  %v2216 = vpack.c.b16 %v2100, %v2098
  %v2217 = vpack.c.b16 %v2103, %v2101
  %v2218 = vpack.c.b16 %v2104, %v2102
  %v2219 = vpack.c.b16 %v2107, %v2105
  %v2220 = vpack.c.b16 %v2108, %v2106
  %v2221 = vpack.c.b16 %v2111, %v2109
  %v2222 = vpack.c.b16 %v2112, %v2110
  %v2223 = vpack.c.b16 %v2115, %v2113
  %v2224 = vpack.c.b16 %v2116, %v2114
  %v2225 = vpack.c.b16 %v2119, %v2117
  %v2226 = vpack.c.b16 %v2120, %v2118
  %v2227 = vpack.c.b16 %v2123, %v2121
  %v2228 = vpack.c.b16 %v2124, %v2122
  %v2229 = vpack.c.b16 %v2127, %v2125
  %v2230 = vpack.c.b16 %v2128, %v2126
  %v2231 = vpack.c.b16 %v2131, %v2129
  %v2232 = vpack.c.b16 %v2132, %v2130
  %v2233 = vpack.c.b16 %v2135, %v2133
  %v2234 = vpack.c.b16 %v2136, %v2134
  %v2235 = vpack.c.b16 %v2139, %v2137
  %v2236 = vpack.c.b16 %v2140, %v2138
  %v2237 = vpack.c.b16 %v2143, %v2141
  %v2238 = vpack.c.b16 %v2144, %v2142
  %v2239 = vpack.c.b16 %v2147, %v2145
  %v2240 = vpack.c.b16 %v2148, %v2146
  %v2241 = vpack.c.b16 %v2151, %v2149
  %v2242 = vpack.c.b16 %v2152, %v2150
  %v2243 = vpack.c.b16 %v2155, %v2153
  %v2244 = vpack.c.b16 %v2156, %v2154
  %v2245 = vpack.c.b16 %v2159, %v2157
  %v2246 = vpack.c.b16 %v2160, %v2158
  %v2247 = vpack.c.b16 %v2163, %v2161
  %v2248 = vpack.c.b16 %v2164, %v2162
  %v2249 = vpack.c.b16 %v2167, %v2165
  %v2250 = vpack.c.b16 %v2168, %v2166
  %v2251 = vpack.c.b16 %v2171, %v2169
  %v2252 = vpack.c.b16 %v2172, %v2170
  %v2253 = vpack.c.b16 %v2175, %v2173
  %v2254 = vpack.c.b16 %v2176, %v2174
  %v2255 = vpack.c.b16 %v2179, %v2177
  %v2256 = vpack.c.b16 %v2180, %v2178
  %v2257 = vpack.c.b16 %v2183, %v2181
  %v2258 = vpack.c.b16 %v2184, %v2182
  %v2259 = vpack.c.b16 %v2187, %v2185
  %v2260 = vpack.c.b16 %v2188, %v2186
  %v2261 = vpack.c.b16 %v2191, %v2189
  %v2262 = vpack.c.b16 %v2192, %v2190
  %v2263 = vpack.c.b16 %v2195, %v2193
  %v2264 = vpack.c.b16 %v2196, %v2194
  %v2265 = vpack.c.b16 %v2199, %v2197
  %v2266 = vpack.c.b16 %v2200, %v2198
  %v2267 = vpack.c.b16 %v2203, %v2201
  %v2268 = vpack.c.b16 %v2204, %v2202
  %2333 = vmatprep.subr.bf16.mxu0 %v2206
  %2334 = vmatpush1.bf16.msra.mxu0 %v2205
  %2335 = vmatprep.subr.bf16.mxu0 %v2208
  %2336 = vmatpush1.bf16.msra.mxu0 %v2207
  %2337 = vmatprep.subr.bf16.mxu0 %v2210
  %2338 = vmatpush1.bf16.msra.mxu0 %v2209
  %2339 = vmatprep.subr.bf16.mxu0 %v2212
  %2340 = vmatpush1.bf16.msra.mxu0 %v2211
  %2341 = vmatprep.subr.bf16.mxu0 %v2214
  %2342 = vmatpush1.bf16.msra.mxu0 %v2213
  %2343 = vmatprep.subr.bf16.mxu0 %v2216
  %2344 = vmatpush1.bf16.msra.mxu0 %v2215
  %2345 = vmatprep.subr.bf16.mxu0 %v2218
  %2346 = vmatpush1.bf16.msra.mxu0 %v2217
  %2347 = vmatprep.subr.bf16.mxu0 %v2220
  %2348 = vmatpush1.bf16.msra.mxu0 %v2219
  %2349 = vmatprep.subr.bf16.mxu0 %v2222
  %2350 = vmatpush1.bf16.msra.mxu0 %v2221
  %2351 = vmatprep.subr.bf16.mxu0 %v2224
  %2352 = vmatpush1.bf16.msra.mxu0 %v2223
  %2353 = vmatprep.subr.bf16.mxu0 %v2226
  %2354 = vmatpush1.bf16.msra.mxu0 %v2225
  %2355 = vmatprep.subr.bf16.mxu0 %v2228
  %2356 = vmatpush1.bf16.msra.mxu0 %v2227
  %2357 = vmatprep.subr.bf16.mxu0 %v2230
  %2358 = vmatpush1.bf16.msra.mxu0 %v2229
  %2359 = vmatprep.subr.bf16.mxu0 %v2232
  %2360 = vmatpush1.bf16.msra.mxu0 %v2231
  %2361 = vmatprep.subr.bf16.mxu0 %v2234
  %2362 = vmatpush1.bf16.msra.mxu0 %v2233
  %2363 = vmatprep.subr.bf16.mxu0 %v2236
  %2364 = vmatpush1.bf16.msra.mxu0 %v2235
  %2365 = vmatprep.mubr.bf16.mxu0 %v1934
  %2366 = vmatmul.mubr.bf16.gmra.mrb[0].mxu0 %v1933
  %v2367 = vpop.f32.mrb[0].mxu0
  %v2368 = vadd.f32 %v2006, %v2367
  %v2369 = vpop.f32.mrb[0].mxu0
  %v2370 = vadd.f32 %v2010, %v2369
  %v2371 = vpop.f32.mrb[0].mxu0
  %v2372 = vpop.f32.mrb[0].mxu0
  %2373 = vdwg.mxu0
  %2374 = vmatprep.subr.bf16.mxu0 %v2238
  %2375 = vmatpush1.bf16.msra.mxu0 %v2237
  %2376 = vmatprep.subr.bf16.mxu0 %v2240
  %2377 = vmatpush1.bf16.msra.mxu0 %v2239
  %2378 = vmatprep.subr.bf16.mxu0 %v2242
  %2379 = vmatpush1.bf16.msra.mxu0 %v2241
  %2380 = vmatprep.subr.bf16.mxu0 %v2244
  %2381 = vmatpush1.bf16.msra.mxu0 %v2243
  %2382 = vmatprep.subr.bf16.mxu0 %v2246
  %2383 = vmatpush1.bf16.msra.mxu0 %v2245
  %2384 = vmatprep.subr.bf16.mxu0 %v2248
  %2385 = vmatpush1.bf16.msra.mxu0 %v2247
  %2386 = vmatprep.subr.bf16.mxu0 %v2250
  %2387 = vmatpush1.bf16.msra.mxu0 %v2249
  %2388 = vmatprep.subr.bf16.mxu0 %v2252
  %2389 = vmatpush1.bf16.msra.mxu0 %v2251
  %2390 = vmatprep.subr.bf16.mxu0 %v2254
  %2391 = vmatpush1.bf16.msra.mxu0 %v2253
  %2392 = vmatprep.subr.bf16.mxu0 %v2256
  %2393 = vmatpush1.bf16.msra.mxu0 %v2255
  %2394 = vmatprep.subr.bf16.mxu0 %v2258
  %2395 = vmatpush1.bf16.msra.mxu0 %v2257
  %2396 = vmatprep.subr.bf16.mxu0 %v2260
  %2397 = vmatpush1.bf16.msra.mxu0 %v2259
  %2398 = vmatprep.subr.bf16.mxu0 %v2262
  %2399 = vmatpush1.bf16.msra.mxu0 %v2261
  %2400 = vmatprep.subr.bf16.mxu0 %v2264
  %2401 = vmatpush1.bf16.msra.mxu0 %v2263
  %2402 = vmatprep.subr.bf16.mxu0 %v2266
  %2403 = vmatpush1.bf16.msra.mxu0 %v2265
  %2404 = vmatprep.subr.bf16.mxu0 %v2268
  %2405 = vmatpush1.bf16.msra.mxu0 %v2267
  %2406 = vmatprep.mubr.bf16.mxu0 %v1936
  %2407 = vmatmul.mubr.bf16.gmra.mrb[0].mxu0 %v1935
  %v2408 = vpop.f32.mrb[0].mxu0
  %v2409 = vadd.f32 %v2368, %v2408
  %v2410 = vpop.f32.mrb[0].mxu0
  %v2411 = vadd.f32 %v2370, %v2410
  %v2412 = vpop.f32.mrb[0].mxu0
  %v2413 = vpop.f32.mrb[0].mxu0
  %2414 = vdwg.mxu0
  %v2415 = vmax.f32 %v2409, 0.0
  %v2416 = vmax.f32 %v2411, 0.0
  %v2417 = vpack.c.bf16 %v2415, %v2415
  %v2418 = vpack.c.bf16 %v2416, %v2416
  %v2419 = vld [vmem:[%s5] sm:$0xf]
  %v2420 = vld [vmem:[%s5 + $0x4] sm:$0xf]
  %v2421 = vld [vmem:[%s5 + $0x8] sm:$0xf]
  %v2422 = vld [vmem:[%s5 + $0xc] sm:$0xf]
  %v2423 = vld [vmem:[%s5 + $0x10] sm:$0xf]
  %v2424 = vld [vmem:[%s5 + $0x14] sm:$0xf]
  %v2425 = vld [vmem:[%s5 + $0x18] sm:$0xf]
  %v2426 = vld [vmem:[%s5 + $0x1c] sm:$0xf]
  %v2427 = vld [vmem:[%s5 + $0x20] sm:$0xf]
  %v2428 = vld [vmem:[%s5 + $0x24] sm:$0xf]
  %v2429 = vld [vmem:[%s5 + $0x28] sm:$0xf]
  %v2430 = vld [vmem:[%s5 + $0x2c] sm:$0xf]
  %v2431 = vld [vmem:[%s5 + $0x30] sm:$0xf]
  %v2432 = vld [vmem:[%s5 + $0x34] sm:$0xf]
  %v2433 = vld [vmem:[%s5 + $0x38] sm:$0xf]
  %v2434 = vld [vmem:[%s5 + $0x3c] sm:$0xf]
  %v2435 = vld [vmem:[%s5 + $0x40] sm:$0xf]
  %v2436 = vld [vmem:[%s5 + $0x44] sm:$0xf]
  %v2437 = vld [vmem:[%s5 + $0x48] sm:$0xf]
  %v2438 = vld [vmem:[%s5 + $0x4c] sm:$0xf]
  %v2439 = vld [vmem:[%s5 + $0x50] sm:$0xf]
  %v2440 = vld [vmem:[%s5 + $0x54] sm:$0xf]
  %v2441 = vld [vmem:[%s5 + $0x58] sm:$0xf]
  %v2442 = vld [vmem:[%s5 + $0x5c] sm:$0xf]
  %v2443 = vld [vmem:[%s5 + $0x60] sm:$0xf]
  %v2444 = vld [vmem:[%s5 + $0x64] sm:$0xf]
  %v2445 = vld [vmem:[%s5 + $0x68] sm:$0xf]
  %v2446 = vld [vmem:[%s5 + $0x6c] sm:$0xf]
  %v2447 = vld [vmem:[%s5 + $0x70] sm:$0xf]
  %v2448 = vld [vmem:[%s5 + $0x74] sm:$0xf]
  %v2449 = vld [vmem:[%s5 + $0x78] sm:$0xf]
  %v2450 = vld [vmem:[%s5 + $0x7c] sm:$0xf]
  %v2451 = vld [vmem:[%s6] sm:$0x1]
  %v2453 = vlaneseq
  %v2454 = vshrl.u32 %v2453, 7
  %v2455 = vsub.s32 0, %v2454
  %v2456 = vrot.slane %v2451, %v2455
  %v2490 = vunpack.c.l.b16 %v2419
  %v2491 = vunpack.c.l.b16 %v2420
  %v2492 = vunpack.c.l.b16 %v2421
  %v2493 = vunpack.c.l.b16 %v2422
  %v2494 = vunpack.c.l.b16 %v2423
  %v2495 = vunpack.c.l.b16 %v2424
  %v2496 = vunpack.c.l.b16 %v2425
  %v2497 = vunpack.c.l.b16 %v2426
  %v2498 = vunpack.c.l.b16 %v2427
  %v2499 = vunpack.c.l.b16 %v2428
  %v2500 = vunpack.c.l.b16 %v2429
  %v2501 = vunpack.c.l.b16 %v2430
  %v2502 = vunpack.c.l.b16 %v2431
  %v2503 = vunpack.c.l.b16 %v2432
  %v2504 = vunpack.c.l.b16 %v2433
  %v2505 = vunpack.c.l.b16 %v2434
  %v2506 = vunpack.c.l.b16 %v2435
  %v2507 = vunpack.c.l.b16 %v2436
  %v2508 = vunpack.c.l.b16 %v2437
  %v2509 = vunpack.c.l.b16 %v2438
  %v2510 = vunpack.c.l.b16 %v2439
  %v2511 = vunpack.c.l.b16 %v2440
  %v2512 = vunpack.c.l.b16 %v2441
  %v2513 = vunpack.c.l.b16 %v2442
  %v2514 = vunpack.c.l.b16 %v2443
  %v2515 = vunpack.c.l.b16 %v2444
  %v2516 = vunpack.c.l.b16 %v2445
  %v2517 = vunpack.c.l.b16 %v2446
  %v2518 = vunpack.c.l.b16 %v2447
  %v2519 = vunpack.c.l.b16 %v2448
  %v2520 = vunpack.c.l.b16 %v2449
  %v2521 = vunpack.c.l.b16 %v2450
  %v2522 = vpack.c.b16 %v2491, %v2490
  %v2523 = vpack.c.b16 %v2493, %v2492
  %v2524 = vpack.c.b16 %v2495, %v2494
  %v2525 = vpack.c.b16 %v2497, %v2496
  %v2526 = vpack.c.b16 %v2499, %v2498
  %v2527 = vpack.c.b16 %v2501, %v2500
  %v2528 = vpack.c.b16 %v2503, %v2502
  %v2529 = vpack.c.b16 %v2505, %v2504
  %v2530 = vpack.c.b16 %v2507, %v2506
  %v2531 = vpack.c.b16 %v2509, %v2508
  %v2532 = vpack.c.b16 %v2511, %v2510
  %v2533 = vpack.c.b16 %v2513, %v2512
  %v2534 = vpack.c.b16 %v2515, %v2514
  %v2535 = vpack.c.b16 %v2517, %v2516
  %v2536 = vpack.c.b16 %v2519, %v2518
  %v2537 = vpack.c.b16 %v2521, %v2520
  %2554 = vmatprep.subr.bf16.mxu0 0
  %2555 = vmatpush1.bf16.msra.mxu0 %v2522
  %2556 = vmatprep.subr.bf16.mxu0 0
  %2557 = vmatpush1.bf16.msra.mxu0 %v2523
  %2558 = vmatprep.subr.bf16.mxu0 0
  %2559 = vmatpush1.bf16.msra.mxu0 %v2524
  %2560 = vmatprep.subr.bf16.mxu0 0
  %2561 = vmatpush1.bf16.msra.mxu0 %v2525
  %2562 = vmatprep.subr.bf16.mxu0 0
  %2563 = vmatpush1.bf16.msra.mxu0 %v2526
  %2564 = vmatprep.subr.bf16.mxu0 0
  %2565 = vmatpush1.bf16.msra.mxu0 %v2527
  %2566 = vmatprep.subr.bf16.mxu0 0
  %2567 = vmatpush1.bf16.msra.mxu0 %v2528
  %2568 = vmatprep.subr.bf16.mxu0 0
  %2569 = vmatpush1.bf16.msra.mxu0 %v2529
  %2570 = vmatprep.subr.bf16.mxu0 0
  %2571 = vmatpush1.bf16.msra.mxu0 %v2530
  %2572 = vmatprep.subr.bf16.mxu0 0
  %2573 = vmatpush1.bf16.msra.mxu0 %v2531
  %2574 = vmatprep.subr.bf16.mxu0 0
  %2575 = vmatpush1.bf16.msra.mxu0 %v2532
  %2576 = vmatprep.subr.bf16.mxu0 0
  %2577 = vmatpush1.bf16.msra.mxu0 %v2533
  %2578 = vmatprep.subr.bf16.mxu0 0
  %2579 = vmatpush1.bf16.msra.mxu0 %v2534
  %2580 = vmatprep.subr.bf16.mxu0 0
  %2581 = vmatpush1.bf16.msra.mxu0 %v2535
  %2582 = vmatprep.subr.bf16.mxu0 0
  %2583 = vmatpush1.bf16.msra.mxu0 %v2536
  %2584 = vmatprep.subr.bf16.mxu0 0
  %2585 = vmatpush1.bf16.msra.mxu0 %v2537
  %2586 = vmatprep.mubr.bf16.mxu0 %v2418
  %2587 = vmatmul.mubr.bf16.gmra.mrb[0].mxu0 %v2417
  %v2588 = vpop.f32.mrb[0].mxu0
  %v2589 = vadd.f32 %v2456, %v2588
  %v2590 = vpop.f32.mrb[0].mxu0
  %v2591 = vpop.f32.mrb[0].mxu0
  %v2592 = vpop.f32.mrb[0].mxu0
  %2593 = vdwg.mxu0
  %vm2594 = vcmask 80896
  %v2595 = vsel %vm2594, %v2589, -inf
  %2596 = vmax.xlane.f32.xlu0 %v2595
  %v2597 = vpop.xlane.xlu0 %2596
  %v2598 = vsub.f32 %v2589, %v2597
  %v2599 = vmul.f32 %v2598, 1.442695
  %v2600 = vpow.pop %v2599
  %v2601 = vsel %vm2594, %v2600, 0.0
  %2602 = vadd.xlane.f32.xlu0 %v2601
  %v2603 = vpop.xlane.xlu0 %2602
  %v2604 = vlog2.pop %v2603
  %v2605 = vmul.f32 %v2604, 0.6931472
  %v2606 = vsub.f32 %v2598, %v2605
  %2607 = vst.msk [vmem:[%s7] sm:$0xff] %vm2594, %v2606
  // Predicated region
  $region30: #{dpcn_forward.5} parent=0 // pred_check
    _
  $region31: #{dpcn_forward.5} parent=0 // pred_check_branch
    %2609 = sbr.rel (0) target = $region33
  $region32: #{dpcn_forward.5} parent=0 // pred_region
    _
  $region33: #{dpcn_forward.5} parent=0 // pred_fallthru
    _
  // Predicated region
  $region34: #{dpcn_forward.5} parent=0 // pred_check
    _
  $region35: #{dpcn_forward.5} parent=0 // pred_check_branch
    %2611 = sbr.rel (0) target = $region37
  $region36: #{dpcn_forward.5} parent=0 // pred_region
    _
  $region37: #{dpcn_forward.5} parent=0 // pred_fallthru
    _

// kernel: dpcn_forward.4
$region0: #{dpcn_forward.4}
  #allocation0 [shape = 'u32[]', space=smem, size = 0x4, offset = 0x4, fixed_abs, tag = 'smem constant byte address 0x4 - core index']
  #allocation1 [shape = 'u32[144,128]{1,0:T(1,128)}', space=vmem, size = 0x12000, scoped, tag = 'internal scratch']
  %s0 = inlined_call_operand.vmem [shape: bf16[128,64], index: 0, kind: input, shape index: {}]
  %s1 = inlined_call_operand.vmem [shape: bf16[128,64], index: 1, kind: input, shape index: {}]
  %s2 = inlined_call_operand.vmem [shape: bf16[128,64], index: 2, kind: input, shape index: {}]
  %s3 = inlined_call_operand.vmem [shape: bf16[64,512], index: 3, kind: input, shape index: {}]
  %s4 = inlined_call_operand.vmem [shape: bf16[64,512], index: 4, kind: input, shape index: {}]
  %s5 = inlined_call_operand.vmem [shape: bf16[64,512], index: 5, kind: input, shape index: {}]
  %s6 = inlined_call_operand.vmem [shape: f32[1,512], index: 6, kind: input, shape index: {}]
  %s7 = inlined_call_operand.hbm [shape: bf16[512,1024], index: 7, kind: input, shape index: {}]
  %s8 = inlined_call_operand.vmem [shape: f32[1,1024], index: 8, kind: input, shape index: {}]
  %s9 = inlined_call_operand.vmem [shape: f32[16,1024], index: 9, kind: output, shape index: {}]
  %s10 = sld [smem:[#allocation0]]
  $region81: #{dpcn_forward.4} parent=0
    _
  %s12 = ssub.s32 1, %s10
  %s13 = scalar_select 0, %s12, %s10
  $region1: #{dpcn_forward.4} parent=0
    #allocation2 [shape = 'u8[1048576]{0}', space=vmem, size = 0x100000, scoped, tag = 'input window, operand 7, single buffered']
    #allocation3 [shape = 's32[2]{0}', space=sflag, size = 0x8, scoped, tag = 'scoped memory for dpcn_forward.4']
    %14 = vsyncpa [#allocation3], 0
    loop: start=0, step=1, limit=4
    $region2: #{dpcn_forward.4} parent=1 // loop_pre_header
      _
    $region3: #{dpcn_forward.4} parent=1 // loop_header
      %s16 = sphi 0, %s20
      %p17 = scmp.ge.s32.totalorder %s16, 4
      %s23 = sphi 0, %s35
      %s24 = sphi 0, %s31
      %s25 = sphi 0, %s23
      %s26 = sphi 0, %s24
      %s27 = sphi 0, %s25
      %s28 = sphi 0, %s26
      %s40 = sphi 0, %s42
      %s43 = sphi 0, %s40
      %s44 = sphi 0, %s43
      %s60 = sphi 0, %s44
      %s68 = sphi 0, %s70
      %s71 = sphi 0, %s68
      %s72 = sphi 0, %s71
      %s88 = sphi 0, %s72
      %s96 = sphi 0, %s98
      %s99 = sphi 0, %s96
      %s100 = sphi 0, %s99
      %s116 = sphi 0, %s100
      %s120 = sphi 0, %s120
      %s122 = sphi 0, %s120
      %s123 = sphi 0, %s122
      %s137 = sphi 0, %s123
      %s141 = sphi 0, %s141
      %s143 = sphi 0, %s141
      %s144 = sphi 0, %s143
      %s158 = sphi 0, %s144
      %s162 = sphi 0, %s162
      %s164 = sphi 0, %s162
      %s165 = sphi 0, %s164
      %s179 = sphi 0, %s165
      %s183 = sphi 0, %s183
      %s185 = sphi 0, %s183
      %s186 = sphi 0, %s185
      %s200 = sphi 0, %s186
      %s204 = sphi 0, %s204
      %s206 = sphi 0, %s204
      %s207 = sphi 0, %s206
      %s221 = sphi 0, %s207
      %s225 = sphi 0, %s225
      %s227 = sphi 0, %s225
      %s228 = sphi 0, %s227
      %s242 = sphi 0, %s228
      %s248 = sphi 0, %s250
      %s251 = sphi 0, %s248
      %s252 = sphi 0, %s251
      %s268 = sphi 0, %s252
    $region4: #{dpcn_forward.4} parent=1 // loop_header_branch
      %19 = sbr.rel (%p17) target = $region8
    $region5: #{dpcn_forward.4} parent=1 // loop_body
      %s21 = ssub.s32 %s16, 1
      %s22 = ssub.s32 %s16, 2
      %s29 = sadd.s32 1, %s24
      %p30 = scmp.ge.s32.totalorder %s29, 1
      %s31 = scalar_select %p30, 0, %s29
      %s32 = sadd.s32 1, %s23
      %s33 = scalar_select %p30, %s32, %s23
      %p34 = scmp.ge.s32.totalorder %s33, 2
      %s35 = scalar_select %p34, 0, %s33
      %s36 = sadd.s32 %s23, %s24
      %s37 = sadd.s32 %s35, %s31
      %s38 = ssub.s32 %s36, %s37
      %p39 = scmp.eq.s32.totalorder %s38, 0
      %s41 = sadd.s32 %s40, 1
      %s42 = scalar_select %p39, %s40, %s41
      %p45 = pneg %p39
      %p46 = scmp.eq.s32.totalorder %s16, 1
      %p47 = por %p45, %p46
      %p48 = scmp.ne.s32.totalorder %s40, %s43
      %p49 = scmp.eq.s32.totalorder %s16, 0
      %p50 = por %p48, %p49
      %p51 = scmp.ne.s32.totalorder %s40, %s43
      %p52 = scmp.eq.s32.totalorder %s21, 1
      %p53 = por %p51, %p52
      %p54 = scmp.ne.s32.totalorder %s43, %s44
      %p55 = scmp.eq.s32.totalorder %s21, 0
      %p56 = por %p54, %p55
      %p57 = scmp.ne.s32.totalorder %s43, %s44
      %p58 = scmp.eq.s32.totalorder %s22, 1
      %p59 = por %p57, %p58
      %p61 = scmp.ne.s32.totalorder %s44, %s60
      %p62 = scmp.eq.s32.totalorder %s22, 0
      %p63 = por %p61, %p62
      %s64 = sadd.s32 %s23, %s24
      %s65 = sadd.s32 %s35, %s31
      %s66 = ssub.s32 %s64, %s65
      %p67 = scmp.eq.s32.totalorder %s66, 0
      %s69 = sadd.s32 %s68, 1
      %s70 = scalar_select %p67, %s68, %s69
      %p73 = pneg %p67
      %p74 = scmp.eq.s32.totalorder %s16, 1
      %p75 = por %p73, %p74
      %p76 = scmp.ne.s32.totalorder %s68, %s71
      %p77 = scmp.eq.s32.totalorder %s16, 0
      %p78 = por %p76, %p77
      %p79 = scmp.ne.s32.totalorder %s68, %s71
      %p80 = scmp.eq.s32.totalorder %s21, 1
      %p81 = por %p79, %p80
      %p82 = scmp.ne.s32.totalorder %s71, %s72
      %p83 = scmp.eq.s32.totalorder %s21, 0
      %p84 = por %p82, %p83
      %p85 = scmp.ne.s32.totalorder %s71, %s72
      %p86 = scmp.eq.s32.totalorder %s22, 1
      %p87 = por %p85, %p86
      %p89 = scmp.ne.s32.totalorder %s72, %s88
      %p90 = scmp.eq.s32.totalorder %s22, 0
      %p91 = por %p89, %p90
      %s92 = sadd.s32 %s23, %s24
      %s93 = sadd.s32 %s35, %s31
      %s94 = ssub.s32 %s92, %s93
      %p95 = scmp.eq.s32.totalorder %s94, 0
      %s97 = sadd.s32 %s96, 1
      %s98 = scalar_select %p95, %s96, %s97
      %p101 = pneg %p95
      %p102 = scmp.eq.s32.totalorder %s16, 1
      %p103 = por %p101, %p102
      %p104 = scmp.ne.s32.totalorder %s96, %s99
      %p105 = scmp.eq.s32.totalorder %s16, 0
      %p106 = por %p104, %p105
      %p107 = scmp.ne.s32.totalorder %s96, %s99
      %p108 = scmp.eq.s32.totalorder %s21, 1
      %p109 = por %p107, %p108
      %p110 = scmp.ne.s32.totalorder %s99, %s100
      %p111 = scmp.eq.s32.totalorder %s21, 0
      %p112 = por %p110, %p111
      %p113 = scmp.ne.s32.totalorder %s99, %s100
      %p114 = scmp.eq.s32.totalorder %s22, 1
      %p115 = por %p113, %p114
      %p117 = scmp.ne.s32.totalorder %s100, %s116
      %p118 = scmp.eq.s32.totalorder %s22, 0
      %p119 = por %p117, %p118
      %s121 = sadd.s32 %s120, 1
      %p124 = scmp.eq.s32.totalorder %s16, 1
      %p125 = scmp.ne.s32.totalorder %s120, %s122
      %p126 = scmp.eq.s32.totalorder %s16, 0
      %p127 = por %p125, %p126
      %p128 = scmp.ne.s32.totalorder %s120, %s122
      %p129 = scmp.eq.s32.totalorder %s21, 1
      %p130 = por %p128, %p129
      %p131 = scmp.ne.s32.totalorder %s122, %s123
      %p132 = scmp.eq.s32.totalorder %s21, 0
      %p133 = por %p131, %p132
      %p134 = scmp.ne.s32.totalorder %s122, %s123
      %p135 = scmp.eq.s32.totalorder %s22, 1
      %p136 = por %p134, %p135
      %p138 = scmp.ne.s32.totalorder %s123, %s137
      %p139 = scmp.eq.s32.totalorder %s22, 0
      %p140 = por %p138, %p139
      %s142 = sadd.s32 %s141, 1
      %p145 = scmp.eq.s32.totalorder %s16, 1
      %p146 = scmp.ne.s32.totalorder %s141, %s143
      %p147 = scmp.eq.s32.totalorder %s16, 0
      %p148 = por %p146, %p147
      %p149 = scmp.ne.s32.totalorder %s141, %s143
      %p150 = scmp.eq.s32.totalorder %s21, 1
      %p151 = por %p149, %p150
      %p152 = scmp.ne.s32.totalorder %s143, %s144
      %p153 = scmp.eq.s32.totalorder %s21, 0
      %p154 = por %p152, %p153
      %p155 = scmp.ne.s32.totalorder %s143, %s144
      %p156 = scmp.eq.s32.totalorder %s22, 1
      %p157 = por %p155, %p156
      %p159 = scmp.ne.s32.totalorder %s144, %s158
      %p160 = scmp.eq.s32.totalorder %s22, 0
      %p161 = por %p159, %p160
      %s163 = sadd.s32 %s162, 1
      %p166 = scmp.eq.s32.totalorder %s16, 1
      %p167 = scmp.ne.s32.totalorder %s162, %s164
      %p168 = scmp.eq.s32.totalorder %s16, 0
      %p169 = por %p167, %p168
      %p170 = scmp.ne.s32.totalorder %s162, %s164
      %p171 = scmp.eq.s32.totalorder %s21, 1
      %p172 = por %p170, %p171
      %p173 = scmp.ne.s32.totalorder %s164, %s165
      %p174 = scmp.eq.s32.totalorder %s21, 0
      %p175 = por %p173, %p174
      %p176 = scmp.ne.s32.totalorder %s164, %s165
      %p177 = scmp.eq.s32.totalorder %s22, 1
      %p178 = por %p176, %p177
      %p180 = scmp.ne.s32.totalorder %s165, %s179
      %p181 = scmp.eq.s32.totalorder %s22, 0
      %p182 = por %p180, %p181
      %s184 = sadd.s32 %s183, 1
      %p187 = scmp.eq.s32.totalorder %s16, 1
      %p188 = scmp.ne.s32.totalorder %s183, %s185
      %p189 = scmp.eq.s32.totalorder %s16, 0
      %p190 = por %p188, %p189
      %p191 = scmp.ne.s32.totalorder %s183, %s185
      %p192 = scmp.eq.s32.totalorder %s21, 1
      %p193 = por %p191, %p192
      %p194 = scmp.ne.s32.totalorder %s185, %s186
      %p195 = scmp.eq.s32.totalorder %s21, 0
      %p196 = por %p194, %p195
      %p197 = scmp.ne.s32.totalorder %s185, %s186
      %p198 = scmp.eq.s32.totalorder %s22, 1
      %p199 = por %p197, %p198
      %p201 = scmp.ne.s32.totalorder %s186, %s200
      %p202 = scmp.eq.s32.totalorder %s22, 0
      %p203 = por %p201, %p202
      %s205 = sadd.s32 %s204, 1
      %p208 = scmp.eq.s32.totalorder %s16, 1
      %p209 = scmp.ne.s32.totalorder %s204, %s206
      %p210 = scmp.eq.s32.totalorder %s16, 0
      %p211 = por %p209, %p210
      %p212 = scmp.ne.s32.totalorder %s204, %s206
      %p213 = scmp.eq.s32.totalorder %s21, 1
      %p214 = por %p212, %p213
      %p215 = scmp.ne.s32.totalorder %s206, %s207
      %p216 = scmp.eq.s32.totalorder %s21, 0
      %p217 = por %p215, %p216
      %p218 = scmp.ne.s32.totalorder %s206, %s207
      %p219 = scmp.eq.s32.totalorder %s22, 1
      %p220 = por %p218, %p219
      %p222 = scmp.ne.s32.totalorder %s207, %s221
      %p223 = scmp.eq.s32.totalorder %s22, 0
      %p224 = por %p222, %p223
      %s226 = sadd.s32 %s225, 1
      %p229 = scmp.eq.s32.totalorder %s16, 1
      %p230 = scmp.ne.s32.totalorder %s225, %s227
      %p231 = scmp.eq.s32.totalorder %s16, 0
      %p232 = por %p230, %p231
      %p233 = scmp.ne.s32.totalorder %s225, %s227
      %p234 = scmp.eq.s32.totalorder %s21, 1
      %p235 = por %p233, %p234
      %p236 = scmp.ne.s32.totalorder %s227, %s228
      %p237 = scmp.eq.s32.totalorder %s21, 0
      %p238 = por %p236, %p237
      %p239 = scmp.ne.s32.totalorder %s227, %s228
      %p240 = scmp.eq.s32.totalorder %s22, 1
      %p241 = por %p239, %p240
      %p243 = scmp.ne.s32.totalorder %s228, %s242
      %p244 = scmp.eq.s32.totalorder %s22, 0
      %p245 = por %p243, %p244
      %s246 = ssub.s32 %s23, %s35
      %p247 = scmp.eq.s32.totalorder %s246, 0
      %s249 = sadd.s32 %s248, 1
      %s250 = scalar_select %p247, %s248, %s249
      %p253 = pneg %p247
      %p254 = scmp.eq.s32.totalorder %s16, 1
      %p255 = por %p253, %p254
      %p256 = scmp.ne.s32.totalorder %s248, %s251
      %p257 = scmp.eq.s32.totalorder %s16, 0
      %p258 = por %p256, %p257
      %p259 = scmp.ne.s32.totalorder %s248, %s251
      %p260 = scmp.eq.s32.totalorder %s21, 1
      %p261 = por %p259, %p260
      %p262 = scmp.ne.s32.totalorder %s251, %s252
      %p263 = scmp.eq.s32.totalorder %s21, 0
      %p264 = por %p262, %p263
      %p265 = scmp.ne.s32.totalorder %s251, %s252
      %p266 = scmp.eq.s32.totalorder %s22, 1
      %p267 = por %p265, %p266
      %p269 = scmp.ne.s32.totalorder %s252, %s268
      %p270 = scmp.eq.s32.totalorder %s22, 0
      %p271 = por %p269, %p270
      %p272 = scmp.le.s32.totalorder 1, %s16
      %p273 = scmp.lt.s32.totalorder %s16, 3
      %p274 = pnand %p272, %p273
      %p275 = pneg %p274
      // Predicated region
      $region9: #{dpcn_forward.4} parent=5 // pred_check
        _
      $region10: #{dpcn_forward.4} parent=5 // pred_check_branch
        %277 = sbr.rel (%p274) target = $region12
      $region11: #{dpcn_forward.4} parent=5 // pred_region
        %s278 = ssub.s32 %s16, 1
        // Predicated region
        $region13: #{dpcn_forward.4} parent=11 // pred_check
          %p279 = pneg %p133
        $region14: #{dpcn_forward.4} parent=11 // pred_check_branch
          %281 = sbr.rel (%p279) target = $region16
        $region15: #{dpcn_forward.4} parent=11 // pred_region
          _
        $region16: #{dpcn_forward.4} parent=11 // pred_fallthru
          _
        // Predicated region
        $region17: #{dpcn_forward.4} parent=11 // pred_check
          %p282 = pneg %p154
        $region18: #{dpcn_forward.4} parent=11 // pred_check_branch
          %284 = sbr.rel (%p282) target = $region20
        $region19: #{dpcn_forward.4} parent=11 // pred_region
          _
        $region20: #{dpcn_forward.4} parent=11 // pred_fallthru
          _
        // Predicated region
        $region21: #{dpcn_forward.4} parent=11 // pred_check
          %p285 = pneg %p175
        $region22: #{dpcn_forward.4} parent=11 // pred_check_branch
          %287 = sbr.rel (%p285) target = $region24
        $region23: #{dpcn_forward.4} parent=11 // pred_region
          _
        $region24: #{dpcn_forward.4} parent=11 // pred_fallthru
          _
        // Predicated region
        $region25: #{dpcn_forward.4} parent=11 // pred_check
          %p288 = pneg %p196
        $region26: #{dpcn_forward.4} parent=11 // pred_check_branch
          %290 = sbr.rel (%p288) target = $region28
        $region27: #{dpcn_forward.4} parent=11 // pred_region
          _
        $region28: #{dpcn_forward.4} parent=11 // pred_fallthru
          _
        // Predicated region
        $region29: #{dpcn_forward.4} parent=11 // pred_check
          %p291 = pneg %p217
        $region30: #{dpcn_forward.4} parent=11 // pred_check_branch
          %293 = sbr.rel (%p291) target = $region32
        $region31: #{dpcn_forward.4} parent=11 // pred_region
          %s295 = ssub.s32 32768, 32768
          %296 = vsyncadd [#allocation3], %s295
          %s297 = sshll.u32 [#allocation2], 4
          %s298 = int_to_ptr.vmem [resolvable:$true] %s297
          %303 = dma.hbm_to_vmem [thread:$0]  %s7, 32768, %s298, [#allocation3], 512, 512, 32
        $region32: #{dpcn_forward.4} parent=11 // pred_fallthru
          _
        // Predicated region
        $region33: #{dpcn_forward.4} parent=11 // pred_check
          %p304 = pneg %p238
        $region34: #{dpcn_forward.4} parent=11 // pred_check_branch
          %306 = sbr.rel (%p304) target = $region36
        $region35: #{dpcn_forward.4} parent=11 // pred_region
          _
        $region36: #{dpcn_forward.4} parent=11 // pred_fallthru
          _
      $region12: #{dpcn_forward.4} parent=5 // pred_fallthru
        _
      %p307 = scmp.lt.s32.totalorder %s16, 2
      // Predicated region
      $region37: #{dpcn_forward.4} parent=5 // pred_check
        %p308 = pneg %p307
      $region38: #{dpcn_forward.4} parent=5 // pred_check_branch
        %310 = sbr.rel (%p308) target = $region40
      $region39: #{dpcn_forward.4} parent=5 // pred_region
        // Predicated region
        $region41: #{dpcn_forward.4} parent=39 // pred_check
          %p311 = pneg %p50
        $region42: #{dpcn_forward.4} parent=39 // pred_check_branch
          %313 = sbr.rel (%p311) target = $region44
        $region43: #{dpcn_forward.4} parent=39 // pred_region
          %s314 = sadd.s32 %s23, %s24
          %s315 = smul.u32 8, %s314
          %p316 = scmp.lt.s32.totalorder %s315, 15
          %s317 = scalar_select %p316, %s315, 15
          %s318 = smul.addr %s317, 4
          %s319 = scalar_lea.vmem %s0, %s318
          %s320 = sadd.s32 %s23, %s24
          %s321 = smul.u32 8, %s320
        $region44: #{dpcn_forward.4} parent=39 // pred_fallthru
          _
        // Predicated region
        $region45: #{dpcn_forward.4} parent=39 // pred_check
          %p322 = pneg %p78
        $region46: #{dpcn_forward.4} parent=39 // pred_check_branch
          %324 = sbr.rel (%p322) target = $region48
        $region47: #{dpcn_forward.4} parent=39 // pred_region
          %s325 = sadd.s32 %s23, %s24
          %s326 = smul.u32 8, %s325
          %p327 = scmp.lt.s32.totalorder %s326, 15
          %s328 = scalar_select %p327, %s326, 15
          %s329 = smul.addr %s328, 4
          %s330 = scalar_lea.vmem %s1, %s329
          %s331 = sadd.s32 %s23, %s24
          %s332 = smul.u32 8, %s331
        $region48: #{dpcn_forward.4} parent=39 // pred_fallthru
          _
        // Predicated region
        $region49: #{dpcn_forward.4} parent=39 // pred_check
          %p333 = pneg %p106
        $region50: #{dpcn_forward.4} parent=39 // pred_check_branch
          %335 = sbr.rel (%p333) target = $region52
        $region51: #{dpcn_forward.4} parent=39 // pred_region
          %s336 = sadd.s32 %s23, %s24
          %s337 = smul.u32 8, %s336
          %p338 = scmp.lt.s32.totalorder %s337, 15
          %s339 = scalar_select %p338, %s337, 15
          %s340 = smul.addr %s339, 4
          %s341 = scalar_lea.vmem %s2, %s340
          %s342 = sadd.s32 %s23, %s24
          %s343 = smul.u32 8, %s342
        $region52: #{dpcn_forward.4} parent=39 // pred_fallthru
          _
      $region40: #{dpcn_forward.4} parent=5 // pred_fallthru
        _
      %p344 = scmp.le.s32.totalorder 1, %s16
      %p345 = scmp.lt.s32.totalorder %s16, 3
      %p346 = pnand %p344, %p345
      %p347 = pneg %p346
      // Predicated region
      $region53: #{dpcn_forward.4} parent=5 // pred_check
        _
      $region54: #{dpcn_forward.4} parent=5 // pred_check_branch
        %349 = sbr.rel (%p346) target = $region56
      $region55: #{dpcn_forward.4} parent=5 // pred_region
        %s350 = ssub.s32 %s16, 1
        // Predicated region
        $region57: #{dpcn_forward.4} parent=55 // pred_check
          %p351 = pneg %p217
        $region58: #{dpcn_forward.4} parent=55 // pred_check_branch
          %353 = sbr.rel (%p351) target = $region60
        $region59: #{dpcn_forward.4} parent=55 // pred_region
          %354 = dma.done [#allocation3], 32768
        $region60: #{dpcn_forward.4} parent=55 // pred_fallthru
          _
        %s355 = sadd.s32 %s25, %s26
        %s356 = smul.u32 8, %s355
        %p357 = scmp.lt.s32.totalorder %s356, 15
        %s358 = scalar_select %p357, %s356, 15
        %s359 = smul.addr %s358, 4
        %s360 = scalar_lea.vmem %s0, %s359
        %p361 = pneg %p56
        %p362 = pneg %p53
        %s363 = sadd.s32 %s25, %s26
        %s364 = smul.u32 8, %s363
        %p365 = scmp.lt.s32.totalorder %s364, 15
        %s366 = scalar_select %p365, %s364, 15
        %s367 = smul.addr %s366, 4
        %s368 = scalar_lea.vmem %s1, %s367
        %p369 = pneg %p84
        %p370 = pneg %p81
        %s371 = sadd.s32 %s25, %s26
        %s372 = smul.u32 8, %s371
        %p373 = scmp.lt.s32.totalorder %s372, 15
        %s374 = scalar_select %p373, %s372, 15
        %s375 = smul.addr %s374, 4
        %s376 = scalar_lea.vmem %s2, %s375
        %p377 = pneg %p112
        %p378 = pneg %p109
        %p379 = pneg %p133
        %p380 = pneg %p130
        %p381 = pneg %p154
        %p382 = pneg %p151
        %p383 = pneg %p175
        %p384 = pneg %p172
        %p385 = pneg %p196
        %p386 = pneg %p193
        %p387 = pneg %p217
        %p388 = pneg %p214
        %p389 = pneg %p238
        %p390 = pneg %p235
        %p391 = pneg %p264
        %p392 = pneg %p261
        %p393 = scmp.lt.s32.totalorder %s25, 1
        %s394 = scalar_select %p393, %s25, 1
        %s395 = smul.addr %s394, 8
        %s396 = smul.addr %s395, 8
        %s397 = scalar_lea.vmem %s9, %s396
        %s398 = sadd.s32 %s25, %s26
        %s399 = smul.u32 8, %s398
        %p400 = scmp.lt.s32.totalorder %s399, 15
        %s401 = scalar_select %p400, %s399, 15
        %s402 = smul.addr %s401, 4
        %s403 = scalar_lea.vmem %s0, %s402
        %s404 = sadd.s32 %s25, %s26
        %s405 = smul.u32 8, %s404
        %s406 = sadd.s32 %s25, %s26
        %s407 = smul.u32 8, %s406
        %p408 = scmp.lt.s32.totalorder %s407, 15
        %s409 = scalar_select %p408, %s407, 15
        %s410 = smul.addr %s409, 4
        %s411 = scalar_lea.vmem %s1, %s410
        %s412 = sadd.s32 %s25, %s26
        %s413 = smul.u32 8, %s412
        %s414 = sadd.s32 %s25, %s26
        %s415 = smul.u32 8, %s414
        %p416 = scmp.lt.s32.totalorder %s415, 15
        %s417 = scalar_select %p416, %s415, 15
        %s418 = smul.addr %s417, 4
        %s419 = scalar_lea.vmem %s2, %s418
        %s420 = sadd.s32 %s25, %s26
        %s421 = smul.u32 8, %s420
        %p422 = scmp.lt.s32.totalorder %s25, 1
        %s423 = scalar_select %p422, %s25, 1
        %s424 = smul.addr %s423, 8
        %s425 = smul.addr %s424, 8
        %s426 = scalar_lea.vmem %s9, %s425
        %v428 = vld [vmem:[%s403] sm:$0xf]
        %v429 = vld [vmem:[%s403 + $0x4] sm:$0xf]
        %v430 = vld [vmem:[%s403 + $0x8] sm:$0xf]
        %v431 = vld [vmem:[%s403 + $0xc] sm:$0xf]
        %v432 = vld [vmem:[%s403 + $0x10] sm:$0xf]
        %v433 = vld [vmem:[%s403 + $0x14] sm:$0xf]
        %v434 = vld [vmem:[%s403 + $0x18] sm:$0xf]
        %v435 = vld [vmem:[%s403 + $0x1c] sm:$0xf]
        %v436 = vld [vmem:[%s3] sm:$0xff]
        %v437 = vld [vmem:[%s3 + $0x8] sm:$0xff]
        %v438 = vld [vmem:[%s3 + $0x10] sm:$0xff]
        %v439 = vld [vmem:[%s3 + $0x18] sm:$0xff]
        %v440 = vld [vmem:[%s3 + $0x20] sm:$0xff]
        %v441 = vld [vmem:[%s3 + $0x28] sm:$0xff]
        %v442 = vld [vmem:[%s3 + $0x30] sm:$0xff]
        %v443 = vld [vmem:[%s3 + $0x38] sm:$0xff]
        %v444 = vld [vmem:[%s3 + $0x40] sm:$0xff]
        %v445 = vld [vmem:[%s3 + $0x48] sm:$0xff]
        %v446 = vld [vmem:[%s3 + $0x50] sm:$0xff]
        %v447 = vld [vmem:[%s3 + $0x58] sm:$0xff]
        %v448 = vld [vmem:[%s3 + $0x60] sm:$0xff]
        %v449 = vld [vmem:[%s3 + $0x68] sm:$0xff]
        %v450 = vld [vmem:[%s3 + $0x70] sm:$0xff]
        %v451 = vld [vmem:[%s3 + $0x78] sm:$0xff]
        %v452 = vld [vmem:[%s411] sm:$0xf]
        %v453 = vld [vmem:[%s411 + $0x4] sm:$0xf]
        %v454 = vld [vmem:[%s411 + $0x8] sm:$0xf]
        %v455 = vld [vmem:[%s411 + $0xc] sm:$0xf]
        %v456 = vld [vmem:[%s411 + $0x10] sm:$0xf]
        %v457 = vld [vmem:[%s411 + $0x14] sm:$0xf]
        %v458 = vld [vmem:[%s411 + $0x18] sm:$0xf]
        %v459 = vld [vmem:[%s411 + $0x1c] sm:$0xf]
        %v460 = vld [vmem:[%s4] sm:$0xff]
        %v461 = vld [vmem:[%s4 + $0x8] sm:$0xff]
        %v462 = vld [vmem:[%s4 + $0x10] sm:$0xff]
        %v463 = vld [vmem:[%s4 + $0x18] sm:$0xff]
        %v464 = vld [vmem:[%s4 + $0x20] sm:$0xff]
        %v465 = vld [vmem:[%s4 + $0x28] sm:$0xff]
        %v466 = vld [vmem:[%s4 + $0x30] sm:$0xff]
        %v467 = vld [vmem:[%s4 + $0x38] sm:$0xff]
        %v468 = vld [vmem:[%s4 + $0x40] sm:$0xff]
        %v469 = vld [vmem:[%s4 + $0x48] sm:$0xff]
        %v470 = vld [vmem:[%s4 + $0x50] sm:$0xff]
        %v471 = vld [vmem:[%s4 + $0x58] sm:$0xff]
        %v472 = vld [vmem:[%s4 + $0x60] sm:$0xff]
        %v473 = vld [vmem:[%s4 + $0x68] sm:$0xff]
        %v474 = vld [vmem:[%s4 + $0x70] sm:$0xff]
        %v475 = vld [vmem:[%s4 + $0x78] sm:$0xff]
        %v484 = vunpack.c.l.b16 %v452
        %v485 = vunpack.c.l.b16 %v453
        %v486 = vunpack.c.l.b16 %v454
        %v487 = vunpack.c.l.b16 %v455
        %v488 = vunpack.c.l.b16 %v456
        %v489 = vunpack.c.l.b16 %v457
        %v490 = vunpack.c.l.b16 %v458
        %v491 = vunpack.c.l.b16 %v459
        %v492 = vpack.c.b16 %v485, %v484
        %v493 = vpack.c.b16 %v487, %v486
        %v494 = vpack.c.b16 %v489, %v488
        %v495 = vpack.c.b16 %v491, %v490
        %v512 = vunpack.c.l.b16 %v460
        %v513 = vunpack.c.h.b16 %v460
        %v514 = vunpack.c.l.b16 %v461
        %v515 = vunpack.c.h.b16 %v461
        %v516 = vunpack.c.l.b16 %v462
        %v517 = vunpack.c.h.b16 %v462
        %v518 = vunpack.c.l.b16 %v463
        %v519 = vunpack.c.h.b16 %v463
        %v520 = vunpack.c.l.b16 %v464
        %v521 = vunpack.c.h.b16 %v464
        %v522 = vunpack.c.l.b16 %v465
        %v523 = vunpack.c.h.b16 %v465
        %v524 = vunpack.c.l.b16 %v466
        %v525 = vunpack.c.h.b16 %v466
        %v526 = vunpack.c.l.b16 %v467
        %v527 = vunpack.c.h.b16 %v467
        %v528 = vunpack.c.l.b16 %v468
        %v529 = vunpack.c.h.b16 %v468
        %v530 = vunpack.c.l.b16 %v469
        %v531 = vunpack.c.h.b16 %v469
        %v532 = vunpack.c.l.b16 %v470
        %v533 = vunpack.c.h.b16 %v470
        %v534 = vunpack.c.l.b16 %v471
        %v535 = vunpack.c.h.b16 %v471
        %v536 = vunpack.c.l.b16 %v472
        %v537 = vunpack.c.h.b16 %v472
        %v538 = vunpack.c.l.b16 %v473
        %v539 = vunpack.c.h.b16 %v473
        %v540 = vunpack.c.l.b16 %v474
        %v541 = vunpack.c.h.b16 %v474
        %v542 = vunpack.c.l.b16 %v475
        %v543 = vunpack.c.h.b16 %v475
        %v544 = vpack.c.b16 %v516, %v512
        %v545 = vpack.c.b16 %v517, %v513
        %v546 = vpack.c.b16 %v518, %v514
        %v547 = vpack.c.b16 %v519, %v515
        %v548 = vpack.c.b16 %v524, %v520
        %v549 = vpack.c.b16 %v525, %v521
        %v550 = vpack.c.b16 %v526, %v522
        %v551 = vpack.c.b16 %v527, %v523
        %v552 = vpack.c.b16 %v532, %v528
        %v553 = vpack.c.b16 %v533, %v529
        %v554 = vpack.c.b16 %v534, %v530
        %v555 = vpack.c.b16 %v535, %v531
        %v556 = vpack.c.b16 %v540, %v536
        %v557 = vpack.c.b16 %v541, %v537
        %v558 = vpack.c.b16 %v542, %v538
        %v559 = vpack.c.b16 %v543, %v539
        %vm576 = vcmask 523264
        %v578 = vsel %vm576, %v492, 0
        %v581 = vsel %vm576, %v493, 0
        %v584 = vsel %vm576, %v494, 0
        %v587 = vsel %vm576, %v495, 0
        %589 = vmatprep.subr.bf16.mxu0 %v545
        %590 = vmatpush1.bf16.msra.mxu0 %v544
        %591 = vmatprep.subr.bf16.mxu0 %v549
        %592 = vmatpush1.bf16.msra.mxu0 %v548
        %593 = vmatprep.subr.bf16.mxu0 %v553
        %594 = vmatpush1.bf16.msra.mxu0 %v552
        %595 = vmatprep.subr.bf16.mxu0 %v557
        %596 = vmatpush1.bf16.msra.mxu0 %v556
        %597 = vmatprep.subr.bf16.mxu0 0
        %598 = vmatpush1.bf16.msra.mxu0 0
        %599 = vmatprep.subr.bf16.mxu0 0
        %600 = vmatpush1.bf16.msra.mxu0 0
        %601 = vmatprep.subr.bf16.mxu0 0
        %602 = vmatpush1.bf16.msra.mxu0 0
        %603 = vmatprep.subr.bf16.mxu0 0
        %604 = vmatpush1.bf16.msra.mxu0 0
        %605 = vmatprep.subr.bf16.mxu0 0
        %606 = vmatpush1.bf16.msra.mxu0 0
        %607 = vmatprep.subr.bf16.mxu0 0
        %608 = vmatpush1.bf16.msra.mxu0 0
        %609 = vmatprep.subr.bf16.mxu0 0
        %610 = vmatpush1.bf16.msra.mxu0 0
        %611 = vmatprep.subr.bf16.mxu0 0
        %612 = vmatpush1.bf16.msra.mxu0 0
        %613 = vmatprep.subr.bf16.mxu0 0
        %614 = vmatpush1.bf16.msra.mxu0 0
        %615 = vmatprep.subr.bf16.mxu0 0
        %616 = vmatpush1.bf16.msra.mxu0 0
        %617 = vmatprep.subr.bf16.mxu0 0
        %618 = vmatpush1.bf16.msra.mxu0 0
        %619 = vmatprep.subr.bf16.mxu0 0
        %620 = vmatpush1.bf16.msra.mxu0 0
        %621 = vmatprep.mubr.bf16.mxu0 0
        %622 = vmatmul.mubr.bf16.gmra.mrb[0].mxu0 %v578
        %v623 = vpop.f32.mrb[0].mxu0
        %v624 = vadd.f32 0.0, %v623
        %v625 = vpop.f32.mrb[0].mxu0
        %v626 = vadd.f32 0.0, %v625
        %v627 = vpop.f32.mrb[0].mxu0
        %v628 = vadd.f32 0.0, %v627
        %v629 = vpop.f32.mrb[0].mxu0
        %v630 = vadd.f32 0.0, %v629
        %631 = vmatprep.mubr.bf16.mxu0 0
        %632 = vmatmul.mubr.bf16.gmra.mrb[0].mxu0 %v581
        %v633 = vpop.f32.mrb[0].mxu0
        %v634 = vadd.f32 0.0, %v633
        %v635 = vpop.f32.mrb[0].mxu0
        %v636 = vadd.f32 0.0, %v635
        %v637 = vpop.f32.mrb[0].mxu0
        %v638 = vadd.f32 0.0, %v637
        %v639 = vpop.f32.mrb[0].mxu0
        %v640 = vadd.f32 0.0, %v639
        %641 = vmatprep.mubr.bf16.mxu0 0
        %642 = vmatmul.mubr.bf16.gmra.mrb[0].mxu0 %v584
        %v643 = vpop.f32.mrb[0].mxu0
        %v644 = vadd.f32 0.0, %v643
        %v645 = vpop.f32.mrb[0].mxu0
        %v646 = vadd.f32 0.0, %v645
        %v647 = vpop.f32.mrb[0].mxu0
        %v648 = vadd.f32 0.0, %v647
        %v649 = vpop.f32.mrb[0].mxu0
        %v650 = vadd.f32 0.0, %v649
        %651 = vmatprep.mubr.bf16.mxu0 0
        %652 = vmatmul.mubr.bf16.gmra.mrb[0].mxu0 %v587
        %v653 = vpop.f32.mrb[0].mxu0
        %v654 = vadd.f32 0.0, %v653
        %v655 = vpop.f32.mrb[0].mxu0
        %v656 = vadd.f32 0.0, %v655
        %v657 = vpop.f32.mrb[0].mxu0
        %v658 = vadd.f32 0.0, %v657
        %v659 = vpop.f32.mrb[0].mxu0
        %v660 = vadd.f32 0.0, %v659
        %661 = vdwg.mxu0
        %662 = vmatprep.subr.bf16.mxu0 %v547
        %663 = vmatpush1.bf16.msra.mxu0 %v546
        %664 = vmatprep.subr.bf16.mxu0 %v551
        %665 = vmatpush1.bf16.msra.mxu0 %v550
        %666 = vmatprep.subr.bf16.mxu0 %v555
        %667 = vmatpush1.bf16.msra.mxu0 %v554
        %668 = vmatprep.subr.bf16.mxu0 %v559
        %669 = vmatpush1.bf16.msra.mxu0 %v558
        %670 = vmatprep.subr.bf16.mxu0 0
        %671 = vmatpush1.bf16.msra.mxu0 0
        %672 = vmatprep.subr.bf16.mxu0 0
        %673 = vmatpush1.bf16.msra.mxu0 0
        %674 = vmatprep.subr.bf16.mxu0 0
        %675 = vmatpush1.bf16.msra.mxu0 0
        %676 = vmatprep.subr.bf16.mxu0 0
        %677 = vmatpush1.bf16.msra.mxu0 0
        %678 = vmatprep.subr.bf16.mxu0 0
        %679 = vmatpush1.bf16.msra.mxu0 0
        %680 = vmatprep.subr.bf16.mxu0 0
        %681 = vmatpush1.bf16.msra.mxu0 0
        %682 = vmatprep.subr.bf16.mxu0 0
        %683 = vmatpush1.bf16.msra.mxu0 0
        %684 = vmatprep.subr.bf16.mxu0 0
        %685 = vmatpush1.bf16.msra.mxu0 0
        %686 = vmatprep.subr.bf16.mxu0 0
        %687 = vmatpush1.bf16.msra.mxu0 0
        %688 = vmatprep.subr.bf16.mxu0 0
        %689 = vmatpush1.bf16.msra.mxu0 0
        %690 = vmatprep.subr.bf16.mxu0 0
        %691 = vmatpush1.bf16.msra.mxu0 0
        %692 = vmatprep.subr.bf16.mxu0 0
        %693 = vmatpush1.bf16.msra.mxu0 0
        %694 = vmatprep.mubr.bf16.mxu0 0
        %695 = vmatmul.mubr.bf16.gmra.mrb[0].mxu0 %v578
        %v696 = vpop.f32.mrb[0].mxu0
        %v697 = vadd.f32 0.0, %v696
        %v698 = vpop.f32.mrb[0].mxu0
        %v699 = vadd.f32 0.0, %v698
        %v700 = vpop.f32.mrb[0].mxu0
        %v701 = vadd.f32 0.0, %v700
        %v702 = vpop.f32.mrb[0].mxu0
        %v703 = vadd.f32 0.0, %v702
        %704 = vmatprep.mubr.bf16.mxu0 0
        %705 = vmatmul.mubr.bf16.gmra.mrb[0].mxu0 %v581
        %v706 = vpop.f32.mrb[0].mxu0
        %v707 = vadd.f32 0.0, %v706
        %v708 = vpop.f32.mrb[0].mxu0
        %v709 = vadd.f32 0.0, %v708
        %v710 = vpop.f32.mrb[0].mxu0
        %v711 = vadd.f32 0.0, %v710
        %v712 = vpop.f32.mrb[0].mxu0
        %v713 = vadd.f32 0.0, %v712
        %714 = vmatprep.mubr.bf16.mxu0 0
        %715 = vmatmul.mubr.bf16.gmra.mrb[0].mxu0 %v584
        %v716 = vpop.f32.mrb[0].mxu0
        %v717 = vadd.f32 0.0, %v716
        %v718 = vpop.f32.mrb[0].mxu0
        %v719 = vadd.f32 0.0, %v718
        %v720 = vpop.f32.mrb[0].mxu0
        %v721 = vadd.f32 0.0, %v720
        %v722 = vpop.f32.mrb[0].mxu0
        %v723 = vadd.f32 0.0, %v722
        %724 = vmatprep.mubr.bf16.mxu0 0
        %725 = vmatmul.mubr.bf16.gmra.mrb[0].mxu0 %v587
        %v726 = vpop.f32.mrb[0].mxu0
        %v727 = vadd.f32 0.0, %v726
        %v728 = vpop.f32.mrb[0].mxu0
        %v729 = vadd.f32 0.0, %v728
        %v730 = vpop.f32.mrb[0].mxu0
        %v731 = vadd.f32 0.0, %v730
        %v732 = vpop.f32.mrb[0].mxu0
        %v733 = vadd.f32 0.0, %v732
        %734 = vdwg.mxu0
        %v743 = vunpack.c.l.b16 %v428
        %v744 = vunpack.c.l.b16 %v429
        %v745 = vunpack.c.l.b16 %v430
        %v746 = vunpack.c.l.b16 %v431
        %v747 = vunpack.c.l.b16 %v432
        %v748 = vunpack.c.l.b16 %v433
        %v749 = vunpack.c.l.b16 %v434
        %v750 = vunpack.c.l.b16 %v435
        %v751 = vpack.c.b16 %v744, %v743
        %v752 = vpack.c.b16 %v746, %v745
        %v753 = vpack.c.b16 %v748, %v747
        %v754 = vpack.c.b16 %v750, %v749
        %v771 = vunpack.c.l.b16 %v436
        %v772 = vunpack.c.h.b16 %v436
        %v773 = vunpack.c.l.b16 %v437
        %v774 = vunpack.c.h.b16 %v437
        %v775 = vunpack.c.l.b16 %v438
        %v776 = vunpack.c.h.b16 %v438
        %v777 = vunpack.c.l.b16 %v439
        %v778 = vunpack.c.h.b16 %v439
        %v779 = vunpack.c.l.b16 %v440
        %v780 = vunpack.c.h.b16 %v440
        %v781 = vunpack.c.l.b16 %v441
        %v782 = vunpack.c.h.b16 %v441
        %v783 = vunpack.c.l.b16 %v442
        %v784 = vunpack.c.h.b16 %v442
        %v785 = vunpack.c.l.b16 %v443
        %v786 = vunpack.c.h.b16 %v443
        %v787 = vunpack.c.l.b16 %v444
        %v788 = vunpack.c.h.b16 %v444
        %v789 = vunpack.c.l.b16 %v445
        %v790 = vunpack.c.h.b16 %v445
        %v791 = vunpack.c.l.b16 %v446
        %v792 = vunpack.c.h.b16 %v446
        %v793 = vunpack.c.l.b16 %v447
        %v794 = vunpack.c.h.b16 %v447
        %v795 = vunpack.c.l.b16 %v448
        %v796 = vunpack.c.h.b16 %v448
        %v797 = vunpack.c.l.b16 %v449
        %v798 = vunpack.c.h.b16 %v449
        %v799 = vunpack.c.l.b16 %v450
        %v800 = vunpack.c.h.b16 %v450
        %v801 = vunpack.c.l.b16 %v451
        %v802 = vunpack.c.h.b16 %v451
        %v803 = vpack.c.b16 %v775, %v771
        %v804 = vpack.c.b16 %v776, %v772
        %v805 = vpack.c.b16 %v777, %v773
        %v806 = vpack.c.b16 %v778, %v774
        %v807 = vpack.c.b16 %v783, %v779
        %v808 = vpack.c.b16 %v784, %v780
        %v809 = vpack.c.b16 %v785, %v781
        %v810 = vpack.c.b16 %v786, %v782
        %v811 = vpack.c.b16 %v791, %v787
        %v812 = vpack.c.b16 %v792, %v788
        %v813 = vpack.c.b16 %v793, %v789
        %v814 = vpack.c.b16 %v794, %v790
        %v815 = vpack.c.b16 %v799, %v795
        %v816 = vpack.c.b16 %v800, %v796
        %v817 = vpack.c.b16 %v801, %v797
        %v818 = vpack.c.b16 %v802, %v798
        %v836 = vsel %vm576, %v751, 0
        %v839 = vsel %vm576, %v752, 0
        %v842 = vsel %vm576, %v753, 0
        %v845 = vsel %vm576, %v754, 0
        %847 = vmatprep.subr.bf16.mxu0 %v804
        %848 = vmatpush1.bf16.msra.mxu0 %v803
        %849 = vmatprep.subr.bf16.mxu0 %v808
        %850 = vmatpush1.bf16.msra.mxu0 %v807
        %851 = vmatprep.subr.bf16.mxu0 %v812
        %852 = vmatpush1.bf16.msra.mxu0 %v811
        %853 = vmatprep.subr.bf16.mxu0 %v816
        %854 = vmatpush1.bf16.msra.mxu0 %v815
        %855 = vmatprep.subr.bf16.mxu0 0
        %856 = vmatpush1.bf16.msra.mxu0 0
        %857 = vmatprep.subr.bf16.mxu0 0
        %858 = vmatpush1.bf16.msra.mxu0 0
        %859 = vmatprep.subr.bf16.mxu0 0
        %860 = vmatpush1.bf16.msra.mxu0 0
        %861 = vmatprep.subr.bf16.mxu0 0
        %862 = vmatpush1.bf16.msra.mxu0 0
        %863 = vmatprep.subr.bf16.mxu0 0
        %864 = vmatpush1.bf16.msra.mxu0 0
        %865 = vmatprep.subr.bf16.mxu0 0
        %866 = vmatpush1.bf16.msra.mxu0 0
        %867 = vmatprep.subr.bf16.mxu0 0
        %868 = vmatpush1.bf16.msra.mxu0 0
        %869 = vmatprep.subr.bf16.mxu0 0
        %870 = vmatpush1.bf16.msra.mxu0 0
        %871 = vmatprep.subr.bf16.mxu0 0
        %872 = vmatpush1.bf16.msra.mxu0 0
        %873 = vmatprep.subr.bf16.mxu0 0
        %874 = vmatpush1.bf16.msra.mxu0 0
        %875 = vmatprep.subr.bf16.mxu0 0
        %876 = vmatpush1.bf16.msra.mxu0 0
        %877 = vmatprep.subr.bf16.mxu0 0
        %878 = vmatpush1.bf16.msra.mxu0 0
        %879 = vmatprep.mubr.bf16.mxu0 0
        %880 = vmatmul.mubr.bf16.gmra.mrb[0].mxu0 %v836
        %v881 = vpop.f32.mrb[0].mxu0
        %v882 = vadd.f32 %v624, %v881
        %v883 = vpop.f32.mrb[0].mxu0
        %v884 = vadd.f32 %v626, %v883
        %v885 = vpop.f32.mrb[0].mxu0
        %v886 = vadd.f32 %v628, %v885
        %v887 = vpop.f32.mrb[0].mxu0
        %v888 = vadd.f32 %v630, %v887
        %889 = vmatprep.mubr.bf16.mxu0 0
        %890 = vmatmul.mubr.bf16.gmra.mrb[0].mxu0 %v839
        %v891 = vpop.f32.mrb[0].mxu0
        %v892 = vadd.f32 %v634, %v891
        %v893 = vpop.f32.mrb[0].mxu0
        %v894 = vadd.f32 %v636, %v893
        %v895 = vpop.f32.mrb[0].mxu0
        %v896 = vadd.f32 %v638, %v895
        %v897 = vpop.f32.mrb[0].mxu0
        %v898 = vadd.f32 %v640, %v897
        %899 = vmatprep.mubr.bf16.mxu0 0
        %900 = vmatmul.mubr.bf16.gmra.mrb[0].mxu0 %v842
        %v901 = vpop.f32.mrb[0].mxu0
        %v902 = vadd.f32 %v644, %v901
        %v903 = vpop.f32.mrb[0].mxu0
        %v904 = vadd.f32 %v646, %v903
        %v905 = vpop.f32.mrb[0].mxu0
        %v906 = vadd.f32 %v648, %v905
        %v907 = vpop.f32.mrb[0].mxu0
        %v908 = vadd.f32 %v650, %v907
        %909 = vmatprep.mubr.bf16.mxu0 0
        %910 = vmatmul.mubr.bf16.gmra.mrb[0].mxu0 %v845
        %v911 = vpop.f32.mrb[0].mxu0
        %v912 = vadd.f32 %v654, %v911
        %v913 = vpop.f32.mrb[0].mxu0
        %v914 = vadd.f32 %v656, %v913
        %v915 = vpop.f32.mrb[0].mxu0
        %v916 = vadd.f32 %v658, %v915
        %v917 = vpop.f32.mrb[0].mxu0
        %v918 = vadd.f32 %v660, %v917
        %919 = vdwg.mxu0
        %920 = vmatprep.subr.bf16.mxu0 %v806
        %921 = vmatpush1.bf16.msra.mxu0 %v805
        %922 = vmatprep.subr.bf16.mxu0 %v810
        %923 = vmatpush1.bf16.msra.mxu0 %v809
        %924 = vmatprep.subr.bf16.mxu0 %v814
        %925 = vmatpush1.bf16.msra.mxu0 %v813
        %926 = vmatprep.subr.bf16.mxu0 %v818
        %927 = vmatpush1.bf16.msra.mxu0 %v817
        %928 = vmatprep.subr.bf16.mxu0 0
        %929 = vmatpush1.bf16.msra.mxu0 0
        %930 = vmatprep.subr.bf16.mxu0 0
        %931 = vmatpush1.bf16.msra.mxu0 0
        %932 = vmatprep.subr.bf16.mxu0 0
        %933 = vmatpush1.bf16.msra.mxu0 0
        %934 = vmatprep.subr.bf16.mxu0 0
        %935 = vmatpush1.bf16.msra.mxu0 0
        %936 = vmatprep.subr.bf16.mxu0 0
        %937 = vmatpush1.bf16.msra.mxu0 0
        %938 = vmatprep.subr.bf16.mxu0 0
        %939 = vmatpush1.bf16.msra.mxu0 0
        %940 = vmatprep.subr.bf16.mxu0 0
        %941 = vmatpush1.bf16.msra.mxu0 0
        %942 = vmatprep.subr.bf16.mxu0 0
        %943 = vmatpush1.bf16.msra.mxu0 0
        %944 = vmatprep.subr.bf16.mxu0 0
        %945 = vmatpush1.bf16.msra.mxu0 0
        %946 = vmatprep.subr.bf16.mxu0 0
        %947 = vmatpush1.bf16.msra.mxu0 0
        %948 = vmatprep.subr.bf16.mxu0 0
        %949 = vmatpush1.bf16.msra.mxu0 0
        %950 = vmatprep.subr.bf16.mxu0 0
        %951 = vmatpush1.bf16.msra.mxu0 0
        %952 = vmatprep.mubr.bf16.mxu0 0
        %953 = vmatmul.mubr.bf16.gmra.mrb[0].mxu0 %v836
        %v954 = vpop.f32.mrb[0].mxu0
        %v955 = vadd.f32 %v697, %v954
        %v956 = vpop.f32.mrb[0].mxu0
        %v957 = vadd.f32 %v699, %v956
        %v958 = vpop.f32.mrb[0].mxu0
        %v959 = vadd.f32 %v701, %v958
        %v960 = vpop.f32.mrb[0].mxu0
        %v961 = vadd.f32 %v703, %v960
        %962 = vmatprep.mubr.bf16.mxu0 0
        %963 = vmatmul.mubr.bf16.gmra.mrb[0].mxu0 %v839
        %v964 = vpop.f32.mrb[0].mxu0
        %v965 = vadd.f32 %v707, %v964
        %v966 = vpop.f32.mrb[0].mxu0
        %v967 = vadd.f32 %v709, %v966
        %v968 = vpop.f32.mrb[0].mxu0
        %v969 = vadd.f32 %v711, %v968
        %v970 = vpop.f32.mrb[0].mxu0
        %v971 = vadd.f32 %v713, %v970
        %972 = vmatprep.mubr.bf16.mxu0 0
        %973 = vmatmul.mubr.bf16.gmra.mrb[0].mxu0 %v842
        %v974 = vpop.f32.mrb[0].mxu0
        %v975 = vadd.f32 %v717, %v974
        %v976 = vpop.f32.mrb[0].mxu0
        %v977 = vadd.f32 %v719, %v976
        %v978 = vpop.f32.mrb[0].mxu0
        %v979 = vadd.f32 %v721, %v978
        %v980 = vpop.f32.mrb[0].mxu0
        %v981 = vadd.f32 %v723, %v980
        %982 = vmatprep.mubr.bf16.mxu0 0
        %983 = vmatmul.mubr.bf16.gmra.mrb[0].mxu0 %v845
        %v984 = vpop.f32.mrb[0].mxu0
        %v985 = vadd.f32 %v727, %v984
        %v986 = vpop.f32.mrb[0].mxu0
        %v987 = vadd.f32 %v729, %v986
        %v988 = vpop.f32.mrb[0].mxu0
        %v989 = vadd.f32 %v731, %v988
        %v990 = vpop.f32.mrb[0].mxu0
        %v991 = vadd.f32 %v733, %v990
        %992 = vdwg.mxu0
        %v993 = vld [vmem:[%s419] sm:$0xf]
        %v994 = vld [vmem:[%s419 + $0x4] sm:$0xf]
        %v995 = vld [vmem:[%s419 + $0x8] sm:$0xf]
        %v996 = vld [vmem:[%s419 + $0xc] sm:$0xf]
        %v997 = vld [vmem:[%s419 + $0x10] sm:$0xf]
        %v998 = vld [vmem:[%s419 + $0x14] sm:$0xf]
        %v999 = vld [vmem:[%s419 + $0x18] sm:$0xf]
        %v1000 = vld [vmem:[%s419 + $0x1c] sm:$0xf]
        %v1001 = vld [vmem:[%s5] sm:$0xff]
        %v1002 = vld [vmem:[%s5 + $0x8] sm:$0xff]
        %v1003 = vld [vmem:[%s5 + $0x10] sm:$0xff]
        %v1004 = vld [vmem:[%s5 + $0x18] sm:$0xff]
        %v1005 = vld [vmem:[%s5 + $0x20] sm:$0xff]
        %v1006 = vld [vmem:[%s5 + $0x28] sm:$0xff]
        %v1007 = vld [vmem:[%s5 + $0x30] sm:$0xff]
        %v1008 = vld [vmem:[%s5 + $0x38] sm:$0xff]
        %v1009 = vld [vmem:[%s5 + $0x40] sm:$0xff]
        %v1010 = vld [vmem:[%s5 + $0x48] sm:$0xff]
        %v1011 = vld [vmem:[%s5 + $0x50] sm:$0xff]
        %v1012 = vld [vmem:[%s5 + $0x58] sm:$0xff]
        %v1013 = vld [vmem:[%s5 + $0x60] sm:$0xff]
        %v1014 = vld [vmem:[%s5 + $0x68] sm:$0xff]
        %v1015 = vld [vmem:[%s5 + $0x70] sm:$0xff]
        %v1016 = vld [vmem:[%s5 + $0x78] sm:$0xff]
        %v1025 = vunpack.c.l.b16 %v993
        %v1026 = vunpack.c.l.b16 %v994
        %v1027 = vunpack.c.l.b16 %v995
        %v1028 = vunpack.c.l.b16 %v996
        %v1029 = vunpack.c.l.b16 %v997
        %v1030 = vunpack.c.l.b16 %v998
        %v1031 = vunpack.c.l.b16 %v999
        %v1032 = vunpack.c.l.b16 %v1000
        %v1033 = vpack.c.b16 %v1026, %v1025
        %v1034 = vpack.c.b16 %v1028, %v1027
        %v1035 = vpack.c.b16 %v1030, %v1029
        %v1036 = vpack.c.b16 %v1032, %v1031
        %v1053 = vunpack.c.l.b16 %v1001
        %v1054 = vunpack.c.h.b16 %v1001
        %v1055 = vunpack.c.l.b16 %v1002
        %v1056 = vunpack.c.h.b16 %v1002
        %v1057 = vunpack.c.l.b16 %v1003
        %v1058 = vunpack.c.h.b16 %v1003
        %v1059 = vunpack.c.l.b16 %v1004
        %v1060 = vunpack.c.h.b16 %v1004
        %v1061 = vunpack.c.l.b16 %v1005
        %v1062 = vunpack.c.h.b16 %v1005
        %v1063 = vunpack.c.l.b16 %v1006
        %v1064 = vunpack.c.h.b16 %v1006
        %v1065 = vunpack.c.l.b16 %v1007
        %v1066 = vunpack.c.h.b16 %v1007
        %v1067 = vunpack.c.l.b16 %v1008
        %v1068 = vunpack.c.h.b16 %v1008
        %v1069 = vunpack.c.l.b16 %v1009
        %v1070 = vunpack.c.h.b16 %v1009
        %v1071 = vunpack.c.l.b16 %v1010
        %v1072 = vunpack.c.h.b16 %v1010
        %v1073 = vunpack.c.l.b16 %v1011
        %v1074 = vunpack.c.h.b16 %v1011
        %v1075 = vunpack.c.l.b16 %v1012
        %v1076 = vunpack.c.h.b16 %v1012
        %v1077 = vunpack.c.l.b16 %v1013
        %v1078 = vunpack.c.h.b16 %v1013
        %v1079 = vunpack.c.l.b16 %v1014
        %v1080 = vunpack.c.h.b16 %v1014
        %v1081 = vunpack.c.l.b16 %v1015
        %v1082 = vunpack.c.h.b16 %v1015
        %v1083 = vunpack.c.l.b16 %v1016
        %v1084 = vunpack.c.h.b16 %v1016
        %v1085 = vpack.c.b16 %v1057, %v1053
        %v1086 = vpack.c.b16 %v1058, %v1054
        %v1087 = vpack.c.b16 %v1059, %v1055
        %v1088 = vpack.c.b16 %v1060, %v1056
        %v1089 = vpack.c.b16 %v1065, %v1061
        %v1090 = vpack.c.b16 %v1066, %v1062
        %v1091 = vpack.c.b16 %v1067, %v1063
        %v1092 = vpack.c.b16 %v1068, %v1064
        %v1093 = vpack.c.b16 %v1073, %v1069
        %v1094 = vpack.c.b16 %v1074, %v1070
        %v1095 = vpack.c.b16 %v1075, %v1071
        %v1096 = vpack.c.b16 %v1076, %v1072
        %v1097 = vpack.c.b16 %v1081, %v1077
        %v1098 = vpack.c.b16 %v1082, %v1078
        %v1099 = vpack.c.b16 %v1083, %v1079
        %v1100 = vpack.c.b16 %v1084, %v1080
        %v1118 = vsel %vm576, %v1033, 0
        %v1121 = vsel %vm576, %v1034, 0
        %v1124 = vsel %vm576, %v1035, 0
        %v1127 = vsel %vm576, %v1036, 0
        %1129 = vmatprep.subr.bf16.mxu0 %v1086
        %1130 = vmatpush1.bf16.msra.mxu0 %v1085
        %1131 = vmatprep.subr.bf16.mxu0 %v1090
        %1132 = vmatpush1.bf16.msra.mxu0 %v1089
        %1133 = vmatprep.subr.bf16.mxu0 %v1094
        %1134 = vmatpush1.bf16.msra.mxu0 %v1093
        %1135 = vmatprep.subr.bf16.mxu0 %v1098
        %1136 = vmatpush1.bf16.msra.mxu0 %v1097
        %1137 = vmatprep.subr.bf16.mxu0 0
        %1138 = vmatpush1.bf16.msra.mxu0 0
        %1139 = vmatprep.subr.bf16.mxu0 0
        %1140 = vmatpush1.bf16.msra.mxu0 0
        %1141 = vmatprep.subr.bf16.mxu0 0
        %1142 = vmatpush1.bf16.msra.mxu0 0
        %1143 = vmatprep.subr.bf16.mxu0 0
        %1144 = vmatpush1.bf16.msra.mxu0 0
        %1145 = vmatprep.subr.bf16.mxu0 0
        %1146 = vmatpush1.bf16.msra.mxu0 0
        %1147 = vmatprep.subr.bf16.mxu0 0
        %1148 = vmatpush1.bf16.msra.mxu0 0
        %1149 = vmatprep.subr.bf16.mxu0 0
        %1150 = vmatpush1.bf16.msra.mxu0 0
        %1151 = vmatprep.subr.bf16.mxu0 0
        %1152 = vmatpush1.bf16.msra.mxu0 0
        %1153 = vmatprep.subr.bf16.mxu0 0
        %1154 = vmatpush1.bf16.msra.mxu0 0
        %1155 = vmatprep.subr.bf16.mxu0 0
        %1156 = vmatpush1.bf16.msra.mxu0 0
        %1157 = vmatprep.subr.bf16.mxu0 0
        %1158 = vmatpush1.bf16.msra.mxu0 0
        %1159 = vmatprep.subr.bf16.mxu0 0
        %1160 = vmatpush1.bf16.msra.mxu0 0
        %1161 = vmatprep.mubr.bf16.mxu0 0
        %1162 = vmatmul.mubr.bf16.gmra.mrb[0].mxu0 %v1118
        %v1163 = vpop.f32.mrb[0].mxu0
        %v1164 = vadd.f32 0.0, %v1163
        %v1165 = vpop.f32.mrb[0].mxu0
        %v1166 = vadd.f32 0.0, %v1165
        %v1167 = vpop.f32.mrb[0].mxu0
        %v1168 = vadd.f32 0.0, %v1167
        %v1169 = vpop.f32.mrb[0].mxu0
        %v1170 = vadd.f32 0.0, %v1169
        %1171 = vmatprep.mubr.bf16.mxu0 0
        %1172 = vmatmul.mubr.bf16.gmra.mrb[0].mxu0 %v1121
        %v1173 = vpop.f32.mrb[0].mxu0
        %v1174 = vadd.f32 0.0, %v1173
        %v1175 = vpop.f32.mrb[0].mxu0
        %v1176 = vadd.f32 0.0, %v1175
        %v1177 = vpop.f32.mrb[0].mxu0
        %v1178 = vadd.f32 0.0, %v1177
        %v1179 = vpop.f32.mrb[0].mxu0
        %v1180 = vadd.f32 0.0, %v1179
        %1181 = vmatprep.mubr.bf16.mxu0 0
        %1182 = vmatmul.mubr.bf16.gmra.mrb[0].mxu0 %v1124
        %v1183 = vpop.f32.mrb[0].mxu0
        %v1184 = vadd.f32 0.0, %v1183
        %v1185 = vpop.f32.mrb[0].mxu0
        %v1186 = vadd.f32 0.0, %v1185
        %v1187 = vpop.f32.mrb[0].mxu0
        %v1188 = vadd.f32 0.0, %v1187
        %v1189 = vpop.f32.mrb[0].mxu0
        %v1190 = vadd.f32 0.0, %v1189
        %1191 = vmatprep.mubr.bf16.mxu0 0
        %1192 = vmatmul.mubr.bf16.gmra.mrb[0].mxu0 %v1127
        %v1193 = vpop.f32.mrb[0].mxu0
        %v1194 = vadd.f32 0.0, %v1193
        %v1195 = vpop.f32.mrb[0].mxu0
        %v1196 = vadd.f32 0.0, %v1195
        %v1197 = vpop.f32.mrb[0].mxu0
        %v1198 = vadd.f32 0.0, %v1197
        %v1199 = vpop.f32.mrb[0].mxu0
        %v1200 = vadd.f32 0.0, %v1199
        %1201 = vdwg.mxu0
        %1202 = vmatprep.subr.bf16.mxu0 %v1088
        %1203 = vmatpush1.bf16.msra.mxu0 %v1087
        %1204 = vmatprep.subr.bf16.mxu0 %v1092
        %1205 = vmatpush1.bf16.msra.mxu0 %v1091
        %1206 = vmatprep.subr.bf16.mxu0 %v1096
        %1207 = vmatpush1.bf16.msra.mxu0 %v1095
        %1208 = vmatprep.subr.bf16.mxu0 %v1100
        %1209 = vmatpush1.bf16.msra.mxu0 %v1099
        %1210 = vmatprep.subr.bf16.mxu0 0
        %1211 = vmatpush1.bf16.msra.mxu0 0
        %1212 = vmatprep.subr.bf16.mxu0 0
        %1213 = vmatpush1.bf16.msra.mxu0 0
        %1214 = vmatprep.subr.bf16.mxu0 0
        %1215 = vmatpush1.bf16.msra.mxu0 0
        %1216 = vmatprep.subr.bf16.mxu0 0
        %1217 = vmatpush1.bf16.msra.mxu0 0
        %1218 = vmatprep.subr.bf16.mxu0 0
        %1219 = vmatpush1.bf16.msra.mxu0 0
        %1220 = vmatprep.subr.bf16.mxu0 0
        %1221 = vmatpush1.bf16.msra.mxu0 0
        %1222 = vmatprep.subr.bf16.mxu0 0
        %1223 = vmatpush1.bf16.msra.mxu0 0
        %1224 = vmatprep.subr.bf16.mxu0 0
        %1225 = vmatpush1.bf16.msra.mxu0 0
        %1226 = vmatprep.subr.bf16.mxu0 0
        %1227 = vmatpush1.bf16.msra.mxu0 0
        %1228 = vmatprep.subr.bf16.mxu0 0
        %1229 = vmatpush1.bf16.msra.mxu0 0
        %1230 = vmatprep.subr.bf16.mxu0 0
        %1231 = vmatpush1.bf16.msra.mxu0 0
        %1232 = vmatprep.subr.bf16.mxu0 0
        %1233 = vmatpush1.bf16.msra.mxu0 0
        %1234 = vmatprep.mubr.bf16.mxu0 0
        %1235 = vmatmul.mubr.bf16.gmra.mrb[0].mxu0 %v1118
        %v1236 = vpop.f32.mrb[0].mxu0
        %v1237 = vadd.f32 0.0, %v1236
        %v1238 = vpop.f32.mrb[0].mxu0
        %v1239 = vadd.f32 0.0, %v1238
        %v1240 = vpop.f32.mrb[0].mxu0
        %v1241 = vadd.f32 0.0, %v1240
        %v1242 = vpop.f32.mrb[0].mxu0
        %v1243 = vadd.f32 0.0, %v1242
        %1244 = vmatprep.mubr.bf16.mxu0 0
        %1245 = vmatmul.mubr.bf16.gmra.mrb[0].mxu0 %v1121
        %v1246 = vpop.f32.mrb[0].mxu0
        %v1247 = vadd.f32 0.0, %v1246
        %v1248 = vpop.f32.mrb[0].mxu0
        %v1249 = vadd.f32 0.0, %v1248
        %v1250 = vpop.f32.mrb[0].mxu0
        %v1251 = vadd.f32 0.0, %v1250
        %v1252 = vpop.f32.mrb[0].mxu0
        %v1253 = vadd.f32 0.0, %v1252
        %1254 = vmatprep.mubr.bf16.mxu0 0
        %1255 = vmatmul.mubr.bf16.gmra.mrb[0].mxu0 %v1124
        %v1256 = vpop.f32.mrb[0].mxu0
        %v1257 = vadd.f32 0.0, %v1256
        %v1258 = vpop.f32.mrb[0].mxu0
        %v1259 = vadd.f32 0.0, %v1258
        %v1260 = vpop.f32.mrb[0].mxu0
        %v1261 = vadd.f32 0.0, %v1260
        %v1262 = vpop.f32.mrb[0].mxu0
        %v1263 = vadd.f32 0.0, %v1262
        %1264 = vmatprep.mubr.bf16.mxu0 0
        %1265 = vmatmul.mubr.bf16.gmra.mrb[0].mxu0 %v1127
        %v1266 = vpop.f32.mrb[0].mxu0
        %v1267 = vadd.f32 0.0, %v1266
        %v1268 = vpop.f32.mrb[0].mxu0
        %v1269 = vadd.f32 0.0, %v1268
        %v1270 = vpop.f32.mrb[0].mxu0
        %v1271 = vadd.f32 0.0, %v1270
        %v1272 = vpop.f32.mrb[0].mxu0
        %v1273 = vadd.f32 0.0, %v1272
        %1274 = vdwg.mxu0
        %v1275 = vadd.f32 %v882, %v1164
        %v1276 = vadd.f32 %v884, %v1166
        %v1277 = vadd.f32 %v955, %v1237
        %v1278 = vadd.f32 %v957, %v1239
        %v1279 = vadd.f32 %v886, %v1168
        %v1280 = vadd.f32 %v888, %v1170
        %v1281 = vadd.f32 %v959, %v1241
        %v1282 = vadd.f32 %v961, %v1243
        %v1283 = vadd.f32 %v892, %v1174
        %v1284 = vadd.f32 %v894, %v1176
        %v1285 = vadd.f32 %v965, %v1247
        %v1286 = vadd.f32 %v967, %v1249
        %v1287 = vadd.f32 %v896, %v1178
        %v1288 = vadd.f32 %v898, %v1180
        %v1289 = vadd.f32 %v969, %v1251
        %v1290 = vadd.f32 %v971, %v1253
        %v1291 = vadd.f32 %v902, %v1184
        %v1292 = vadd.f32 %v904, %v1186
        %v1293 = vadd.f32 %v975, %v1257
        %v1294 = vadd.f32 %v977, %v1259
        %v1295 = vadd.f32 %v906, %v1188
        %v1296 = vadd.f32 %v908, %v1190
        %v1297 = vadd.f32 %v979, %v1261
        %v1298 = vadd.f32 %v981, %v1263
        %v1299 = vadd.f32 %v912, %v1194
        %v1300 = vadd.f32 %v914, %v1196
        %v1301 = vadd.f32 %v985, %v1267
        %v1302 = vadd.f32 %v987, %v1269
        %v1303 = vadd.f32 %v916, %v1198
        %v1304 = vadd.f32 %v918, %v1200
        %v1305 = vadd.f32 %v989, %v1271
        %v1306 = vadd.f32 %v991, %v1273
        %v1307 = vld [vmem:[%s6] sm:$0xf]
        %v1309 = vlaneseq
        %v1310 = vshrl.u32 %v1309, 7
        %v1311 = vsub.s32 0, %v1310
        %v1312 = vrot.slane %v1307, %v1311
        %v1313 = vlaneseq
        %v1314 = vshrl.u32 %v1313, 7
        %v1315 = vsub.s32 1, %v1314
        %v1316 = vrot.slane %v1307, %v1315
        %v1317 = vlaneseq
        %v1318 = vshrl.u32 %v1317, 7
        %v1319 = vsub.s32 2, %v1318
        %v1320 = vrot.slane %v1307, %v1319
        %v1321 = vlaneseq
        %v1322 = vshrl.u32 %v1321, 7
        %v1323 = vsub.s32 3, %v1322
        %v1324 = vrot.slane %v1307, %v1323
        %v1329 = vadd.f32 %v1275, %v1312
        %v1330 = vadd.f32 %v1276, %v1316
        %v1331 = vadd.f32 %v1277, %v1320
        %v1332 = vadd.f32 %v1278, %v1324
        %v1333 = vadd.f32 %v1279, %v1312
        %v1334 = vadd.f32 %v1280, %v1316
        %v1335 = vadd.f32 %v1281, %v1320
        %v1336 = vadd.f32 %v1282, %v1324
        %v1337 = vadd.f32 %v1283, %v1312
        %v1338 = vadd.f32 %v1284, %v1316
        %v1339 = vadd.f32 %v1285, %v1320
        %v1340 = vadd.f32 %v1286, %v1324
        %v1341 = vadd.f32 %v1287, %v1312
        %v1342 = vadd.f32 %v1288, %v1316
        %v1343 = vadd.f32 %v1289, %v1320
        %v1344 = vadd.f32 %v1290, %v1324
        %v1345 = vadd.f32 %v1291, %v1312
        %v1346 = vadd.f32 %v1292, %v1316
        %v1347 = vadd.f32 %v1293, %v1320
        %v1348 = vadd.f32 %v1294, %v1324
        %v1349 = vadd.f32 %v1295, %v1312
        %v1350 = vadd.f32 %v1296, %v1316
        %v1351 = vadd.f32 %v1297, %v1320
        %v1352 = vadd.f32 %v1298, %v1324
        %v1353 = vadd.f32 %v1299, %v1312
        %v1354 = vadd.f32 %v1300, %v1316
        %v1355 = vadd.f32 %v1301, %v1320
        %v1356 = vadd.f32 %v1302, %v1324
        %v1357 = vadd.f32 %v1303, %v1312
        %v1358 = vadd.f32 %v1304, %v1316
        %v1359 = vadd.f32 %v1305, %v1320
        %v1360 = vadd.f32 %v1306, %v1324
        %v1361 = vmax.f32 %v1329, 0.0
        %v1362 = vmax.f32 %v1330, 0.0
        %v1363 = vmax.f32 %v1331, 0.0
        %v1364 = vmax.f32 %v1332, 0.0
        %v1365 = vmax.f32 %v1333, 0.0
        %v1366 = vmax.f32 %v1334, 0.0
        %v1367 = vmax.f32 %v1335, 0.0
        %v1368 = vmax.f32 %v1336, 0.0
        %v1369 = vmax.f32 %v1337, 0.0
        %v1370 = vmax.f32 %v1338, 0.0
        %v1371 = vmax.f32 %v1339, 0.0
        %v1372 = vmax.f32 %v1340, 0.0
        %v1373 = vmax.f32 %v1341, 0.0
        %v1374 = vmax.f32 %v1342, 0.0
        %v1375 = vmax.f32 %v1343, 0.0
        %v1376 = vmax.f32 %v1344, 0.0
        %v1377 = vmax.f32 %v1345, 0.0
        %v1378 = vmax.f32 %v1346, 0.0
        %v1379 = vmax.f32 %v1347, 0.0
        %v1380 = vmax.f32 %v1348, 0.0
        %v1381 = vmax.f32 %v1349, 0.0
        %v1382 = vmax.f32 %v1350, 0.0
        %v1383 = vmax.f32 %v1351, 0.0
        %v1384 = vmax.f32 %v1352, 0.0
        %v1385 = vmax.f32 %v1353, 0.0
        %v1386 = vmax.f32 %v1354, 0.0
        %v1387 = vmax.f32 %v1355, 0.0
        %v1388 = vmax.f32 %v1356, 0.0
        %v1389 = vmax.f32 %v1357, 0.0
        %v1390 = vmax.f32 %v1358, 0.0
        %v1391 = vmax.f32 %v1359, 0.0
        %v1392 = vmax.f32 %v1360, 0.0
        %v1393 = vpack.c.bf16 %v1365, %v1361
        %v1394 = vpack.c.bf16 %v1366, %v1362
        %v1395 = vpack.c.bf16 %v1367, %v1363
        %v1396 = vpack.c.bf16 %v1368, %v1364
        %v1397 = vpack.c.bf16 %v1373, %v1369
        %v1398 = vpack.c.bf16 %v1374, %v1370
        %v1399 = vpack.c.bf16 %v1375, %v1371
        %v1400 = vpack.c.bf16 %v1376, %v1372
        %v1401 = vpack.c.bf16 %v1381, %v1377
        %v1402 = vpack.c.bf16 %v1382, %v1378
        %v1403 = vpack.c.bf16 %v1383, %v1379
        %v1404 = vpack.c.bf16 %v1384, %v1380
        %v1405 = vpack.c.bf16 %v1389, %v1385
        %v1406 = vpack.c.bf16 %v1390, %v1386
        %v1407 = vpack.c.bf16 %v1391, %v1387
        %v1408 = vpack.c.bf16 %v1392, %v1388
        %v1409 = vld [vmem:[#allocation2] sm:$0xff]
        %v1410 = vld [vmem:[#allocation2 + $0x8] sm:$0xff]
        %v1411 = vld [vmem:[#allocation2 + $0x10] sm:$0xff]
        %v1412 = vld [vmem:[#allocation2 + $0x18] sm:$0xff]
        %v1413 = vld [vmem:[#allocation2 + $0x20] sm:$0xff]
        %v1414 = vld [vmem:[#allocation2 + $0x28] sm:$0xff]
        %v1415 = vld [vmem:[#allocation2 + $0x30] sm:$0xff]
        %v1416 = vld [vmem:[#allocation2 + $0x38] sm:$0xff]
        %v1417 = vld [vmem:[#allocation2 + $0x40] sm:$0xff]
        %v1418 = vld [vmem:[#allocation2 + $0x48] sm:$0xff]
        %v1419 = vld [vmem:[#allocation2 + $0x50] sm:$0xff]
        %v1420 = vld [vmem:[#allocation2 + $0x58] sm:$0xff]
        %v1421 = vld [vmem:[#allocation2 + $0x60] sm:$0xff]
        %v1422 = vld [vmem:[#allocation2 + $0x68] sm:$0xff]
        %v1423 = vld [vmem:[#allocation2 + $0x70] sm:$0xff]
        %v1424 = vld [vmem:[#allocation2 + $0x78] sm:$0xff]
        %v1425 = vld [vmem:[#allocation2 + $0x80] sm:$0xff]
        %v1426 = vld [vmem:[#allocation2 + $0x88] sm:$0xff]
        %v1427 = vld [vmem:[#allocation2 + $0x90] sm:$0xff]
        %v1428 = vld [vmem:[#allocation2 + $0x98] sm:$0xff]
        %v1429 = vld [vmem:[#allocation2 + $0xa0] sm:$0xff]
        %v1430 = vld [vmem:[#allocation2 + $0xa8] sm:$0xff]
        %v1431 = vld [vmem:[#allocation2 + $0xb0] sm:$0xff]
        %v1432 = vld [vmem:[#allocation2 + $0xb8] sm:$0xff]
        %v1433 = vld [vmem:[#allocation2 + $0xc0] sm:$0xff]
        %v1434 = vld [vmem:[#allocation2 + $0xc8] sm:$0xff]
        %v1435 = vld [vmem:[#allocation2 + $0xd0] sm:$0xff]
        %v1436 = vld [vmem:[#allocation2 + $0xd8] sm:$0xff]
        %v1437 = vld [vmem:[#allocation2 + $0xe0] sm:$0xff]
        %v1438 = vld [vmem:[#allocation2 + $0xe8] sm:$0xff]
        %v1439 = vld [vmem:[#allocation2 + $0xf0] sm:$0xff]
        %v1440 = vld [vmem:[#allocation2 + $0xf8] sm:$0xff]
        %v1441 = vld [vmem:[#allocation2 + $0x100] sm:$0xff]
        %v1442 = vld [vmem:[#allocation2 + $0x108] sm:$0xff]
        %v1443 = vld [vmem:[#allocation2 + $0x110] sm:$0xff]
        %v1444 = vld [vmem:[#allocation2 + $0x118] sm:$0xff]
        %v1445 = vld [vmem:[#allocation2 + $0x120] sm:$0xff]
        %v1446 = vld [vmem:[#allocation2 + $0x128] sm:$0xff]
        %v1447 = vld [vmem:[#allocation2 + $0x130] sm:$0xff]
        %v1448 = vld [vmem:[#allocation2 + $0x138] sm:$0xff]
        %v1449 = vld [vmem:[#allocation2 + $0x140] sm:$0xff]
        %v1450 = vld [vmem:[#allocation2 + $0x148] sm:$0xff]
        %v1451 = vld [vmem:[#allocation2 + $0x150] sm:$0xff]
        %v1452 = vld [vmem:[#allocation2 + $0x158] sm:$0xff]
        %v1453 = vld [vmem:[#allocation2 + $0x160] sm:$0xff]
        %v1454 = vld [vmem:[#allocation2 + $0x168] sm:$0xff]
        %v1455 = vld [vmem:[#allocation2 + $0x170] sm:$0xff]
        %v1456 = vld [vmem:[#allocation2 + $0x178] sm:$0xff]
        %v1457 = vld [vmem:[#allocation2 + $0x180] sm:$0xff]
        %v1458 = vld [vmem:[#allocation2 + $0x188] sm:$0xff]
        %v1459 = vld [vmem:[#allocation2 + $0x190] sm:$0xff]
        %v1460 = vld [vmem:[#allocation2 + $0x198] sm:$0xff]
        %v1461 = vld [vmem:[#allocation2 + $0x1a0] sm:$0xff]
        %v1462 = vld [vmem:[#allocation2 + $0x1a8] sm:$0xff]
        %v1463 = vld [vmem:[#allocation2 + $0x1b0] sm:$0xff]
        %v1464 = vld [vmem:[#allocation2 + $0x1b8] sm:$0xff]
        %v1465 = vld [vmem:[#allocation2 + $0x1c0] sm:$0xff]
        %v1466 = vld [vmem:[#allocation2 + $0x1c8] sm:$0xff]
        %v1467 = vld [vmem:[#allocation2 + $0x1d0] sm:$0xff]
        %v1468 = vld [vmem:[#allocation2 + $0x1d8] sm:$0xff]
        %v1469 = vld [vmem:[#allocation2 + $0x1e0] sm:$0xff]
        %v1470 = vld [vmem:[#allocation2 + $0x1e8] sm:$0xff]
        %v1471 = vld [vmem:[#allocation2 + $0x1f0] sm:$0xff]
        %v1472 = vld [vmem:[#allocation2 + $0x1f8] sm:$0xff]
        %v1473 = vld [vmem:[#allocation2 + $0x200] sm:$0xff]
        %v1474 = vld [vmem:[#allocation2 + $0x208] sm:$0xff]
        %v1475 = vld [vmem:[#allocation2 + $0x210] sm:$0xff]
        %v1476 = vld [vmem:[#allocation2 + $0x218] sm:$0xff]
        %v1477 = vld [vmem:[#allocation2 + $0x220] sm:$0xff]
        %v1478 = vld [vmem:[#allocation2 + $0x228] sm:$0xff]
        %v1479 = vld [vmem:[#allocation2 + $0x230] sm:$0xff]
        %v1480 = vld [vmem:[#allocation2 + $0x238] sm:$0xff]
        %v1481 = vld [vmem:[#allocation2 + $0x240] sm:$0xff]
        %v1482 = vld [vmem:[#allocation2 + $0x248] sm:$0xff]
        %v1483 = vld [vmem:[#allocation2 + $0x250] sm:$0xff]
        %v1484 = vld [vmem:[#allocation2 + $0x258] sm:$0xff]
        %v1485 = vld [vmem:[#allocation2 + $0x260] sm:$0xff]
        %v1486 = vld [vmem:[#allocation2 + $0x268] sm:$0xff]
        %v1487 = vld [vmem:[#allocation2 + $0x270] sm:$0xff]
        %v1488 = vld [vmem:[#allocation2 + $0x278] sm:$0xff]
        %v1489 = vld [vmem:[#allocation2 + $0x280] sm:$0xff]
        %v1490 = vld [vmem:[#allocation2 + $0x288] sm:$0xff]
        %v1491 = vld [vmem:[#allocation2 + $0x290] sm:$0xff]
        %v1492 = vld [vmem:[#allocation2 + $0x298] sm:$0xff]
        %v1493 = vld [vmem:[#allocation2 + $0x2a0] sm:$0xff]
        %v1494 = vld [vmem:[#allocation2 + $0x2a8] sm:$0xff]
        %v1495 = vld [vmem:[#allocation2 + $0x2b0] sm:$0xff]
        %v1496 = vld [vmem:[#allocation2 + $0x2b8] sm:$0xff]
        %v1497 = vld [vmem:[#allocation2 + $0x2c0] sm:$0xff]
        %v1498 = vld [vmem:[#allocation2 + $0x2c8] sm:$0xff]
        %v1499 = vld [vmem:[#allocation2 + $0x2d0] sm:$0xff]
        %v1500 = vld [vmem:[#allocation2 + $0x2d8] sm:$0xff]
        %v1501 = vld [vmem:[#allocation2 + $0x2e0] sm:$0xff]
        %v1502 = vld [vmem:[#allocation2 + $0x2e8] sm:$0xff]
        %v1503 = vld [vmem:[#allocation2 + $0x2f0] sm:$0xff]
        %v1504 = vld [vmem:[#allocation2 + $0x2f8] sm:$0xff]
        %v1505 = vld [vmem:[#allocation2 + $0x300] sm:$0xff]
        %v1506 = vld [vmem:[#allocation2 + $0x308] sm:$0xff]
        %v1507 = vld [vmem:[#allocation2 + $0x310] sm:$0xff]
        %v1508 = vld [vmem:[#allocation2 + $0x318] sm:$0xff]
        %v1509 = vld [vmem:[#allocation2 + $0x320] sm:$0xff]
        %v1510 = vld [vmem:[#allocation2 + $0x328] sm:$0xff]
        %v1511 = vld [vmem:[#allocation2 + $0x330] sm:$0xff]
        %v1512 = vld [vmem:[#allocation2 + $0x338] sm:$0xff]
        %v1513 = vld [vmem:[#allocation2 + $0x340] sm:$0xff]
        %v1514 = vld [vmem:[#allocation2 + $0x348] sm:$0xff]
        %v1515 = vld [vmem:[#allocation2 + $0x350] sm:$0xff]
        %v1516 = vld [vmem:[#allocation2 + $0x358] sm:$0xff]
        %v1517 = vld [vmem:[#allocation2 + $0x360] sm:$0xff]
        %v1518 = vld [vmem:[#allocation2 + $0x368] sm:$0xff]
        %v1519 = vld [vmem:[#allocation2 + $0x370] sm:$0xff]
        %v1520 = vld [vmem:[#allocation2 + $0x378] sm:$0xff]
        %v1521 = vld [vmem:[#allocation2 + $0x380] sm:$0xff]
        %v1522 = vld [vmem:[#allocation2 + $0x388] sm:$0xff]
        %v1523 = vld [vmem:[#allocation2 + $0x390] sm:$0xff]
        %v1524 = vld [vmem:[#allocation2 + $0x398] sm:$0xff]
        %v1525 = vld [vmem:[#allocation2 + $0x3a0] sm:$0xff]
        %v1526 = vld [vmem:[#allocation2 + $0x3a8] sm:$0xff]
        %v1527 = vld [vmem:[#allocation2 + $0x3b0] sm:$0xff]
        %v1528 = vld [vmem:[#allocation2 + $0x3b8] sm:$0xff]
        %v1529 = vld [vmem:[#allocation2 + $0x3c0] sm:$0xff]
        %v1530 = vld [vmem:[#allocation2 + $0x3c8] sm:$0xff]
        %v1531 = vld [vmem:[#allocation2 + $0x3d0] sm:$0xff]
        %v1532 = vld [vmem:[#allocation2 + $0x3d8] sm:$0xff]
        %v1533 = vld [vmem:[#allocation2 + $0x3e0] sm:$0xff]
        %v1534 = vld [vmem:[#allocation2 + $0x3e8] sm:$0xff]
        %v1535 = vld [vmem:[#allocation2 + $0x3f0] sm:$0xff]
        %v1536 = vld [vmem:[#allocation2 + $0x3f8] sm:$0xff]
        %v1537 = vld [vmem:[#allocation2 + $0x400] sm:$0xff]
        %v1538 = vld [vmem:[#allocation2 + $0x408] sm:$0xff]
        %v1539 = vld [vmem:[#allocation2 + $0x410] sm:$0xff]
        %v1540 = vld [vmem:[#allocation2 + $0x418] sm:$0xff]
        %v1541 = vld [vmem:[#allocation2 + $0x420] sm:$0xff]
        %v1542 = vld [vmem:[#allocation2 + $0x428] sm:$0xff]
        %v1543 = vld [vmem:[#allocation2 + $0x430] sm:$0xff]
        %v1544 = vld [vmem:[#allocation2 + $0x438] sm:$0xff]
        %v1545 = vld [vmem:[#allocation2 + $0x440] sm:$0xff]
        %v1546 = vld [vmem:[#allocation2 + $0x448] sm:$0xff]
        %v1547 = vld [vmem:[#allocation2 + $0x450] sm:$0xff]
        %v1548 = vld [vmem:[#allocation2 + $0x458] sm:$0xff]
        %v1549 = vld [vmem:[#allocation2 + $0x460] sm:$0xff]
        %v1550 = vld [vmem:[#allocation2 + $0x468] sm:$0xff]
        %v1551 = vld [vmem:[#allocation2 + $0x470] sm:$0xff]
        %v1552 = vld [vmem:[#allocation2 + $0x478] sm:$0xff]
        %v1553 = vld [vmem:[#allocation2 + $0x480] sm:$0xff]
        %v1554 = vld [vmem:[#allocation2 + $0x488] sm:$0xff]
        %v1555 = vld [vmem:[#allocation2 + $0x490] sm:$0xff]
        %v1556 = vld [vmem:[#allocation2 + $0x498] sm:$0xff]
        %v1557 = vld [vmem:[#allocation2 + $0x4a0] sm:$0xff]
        %v1558 = vld [vmem:[#allocation2 + $0x4a8] sm:$0xff]
        %v1559 = vld [vmem:[#allocation2 + $0x4b0] sm:$0xff]
        %v1560 = vld [vmem:[#allocation2 + $0x4b8] sm:$0xff]
        %v1561 = vld [vmem:[#allocation2 + $0x4c0] sm:$0xff]
        %v1562 = vld [vmem:[#allocation2 + $0x4c8] sm:$0xff]
        %v1563 = vld [vmem:[#allocation2 + $0x4d0] sm:$0xff]
        %v1564 = vld [vmem:[#allocation2 + $0x4d8] sm:$0xff]
        %v1565 = vld [vmem:[#allocation2 + $0x4e0] sm:$0xff]
        %v1566 = vld [vmem:[#allocation2 + $0x4e8] sm:$0xff]
        %v1567 = vld [vmem:[#allocation2 + $0x4f0] sm:$0xff]
        %v1568 = vld [vmem:[#allocation2 + $0x4f8] sm:$0xff]
        %v1569 = vld [vmem:[#allocation2 + $0x500] sm:$0xff]
        %v1570 = vld [vmem:[#allocation2 + $0x508] sm:$0xff]
        %v1571 = vld [vmem:[#allocation2 + $0x510] sm:$0xff]
        %v1572 = vld [vmem:[#allocation2 + $0x518] sm:$0xff]
        %v1573 = vld [vmem:[#allocation2 + $0x520] sm:$0xff]
        %v1574 = vld [vmem:[#allocation2 + $0x528] sm:$0xff]
        %v1575 = vld [vmem:[#allocation2 + $0x530] sm:$0xff]
        %v1576 = vld [vmem:[#allocation2 + $0x538] sm:$0xff]
        %v1577 = vld [vmem:[#allocation2 + $0x540] sm:$0xff]
        %v1578 = vld [vmem:[#allocation2 + $0x548] sm:$0xff]
        %v1579 = vld [vmem:[#allocation2 + $0x550] sm:$0xff]
        %v1580 = vld [vmem:[#allocation2 + $0x558] sm:$0xff]
        %v1581 = vld [vmem:[#allocation2 + $0x560] sm:$0xff]
        %v1582 = vld [vmem:[#allocation2 + $0x568] sm:$0xff]
        %v1583 = vld [vmem:[#allocation2 + $0x570] sm:$0xff]
        %v1584 = vld [vmem:[#allocation2 + $0x578] sm:$0xff]
        %v1585 = vld [vmem:[#allocation2 + $0x580] sm:$0xff]
        %v1586 = vld [vmem:[#allocation2 + $0x588] sm:$0xff]
        %v1587 = vld [vmem:[#allocation2 + $0x590] sm:$0xff]
        %v1588 = vld [vmem:[#allocation2 + $0x598] sm:$0xff]
        %v1589 = vld [vmem:[#allocation2 + $0x5a0] sm:$0xff]
        %v1590 = vld [vmem:[#allocation2 + $0x5a8] sm:$0xff]
        %v1591 = vld [vmem:[#allocation2 + $0x5b0] sm:$0xff]
        %v1592 = vld [vmem:[#allocation2 + $0x5b8] sm:$0xff]
        %v1593 = vld [vmem:[#allocation2 + $0x5c0] sm:$0xff]
        %v1594 = vld [vmem:[#allocation2 + $0x5c8] sm:$0xff]
        %v1595 = vld [vmem:[#allocation2 + $0x5d0] sm:$0xff]
        %v1596 = vld [vmem:[#allocation2 + $0x5d8] sm:$0xff]
        %v1597 = vld [vmem:[#allocation2 + $0x5e0] sm:$0xff]
        %v1598 = vld [vmem:[#allocation2 + $0x5e8] sm:$0xff]
        %v1599 = vld [vmem:[#allocation2 + $0x5f0] sm:$0xff]
        %v1600 = vld [vmem:[#allocation2 + $0x5f8] sm:$0xff]
        %v1601 = vld [vmem:[#allocation2 + $0x600] sm:$0xff]
        %v1602 = vld [vmem:[#allocation2 + $0x608] sm:$0xff]
        %v1603 = vld [vmem:[#allocation2 + $0x610] sm:$0xff]
        %v1604 = vld [vmem:[#allocation2 + $0x618] sm:$0xff]
        %v1605 = vld [vmem:[#allocation2 + $0x620] sm:$0xff]
        %v1606 = vld [vmem:[#allocation2 + $0x628] sm:$0xff]
        %v1607 = vld [vmem:[#allocation2 + $0x630] sm:$0xff]
        %v1608 = vld [vmem:[#allocation2 + $0x638] sm:$0xff]
        %v1609 = vld [vmem:[#allocation2 + $0x640] sm:$0xff]
        %v1610 = vld [vmem:[#allocation2 + $0x648] sm:$0xff]
        %v1611 = vld [vmem:[#allocation2 + $0x650] sm:$0xff]
        %v1612 = vld [vmem:[#allocation2 + $0x658] sm:$0xff]
        %v1613 = vld [vmem:[#allocation2 + $0x660] sm:$0xff]
        %v1614 = vld [vmem:[#allocation2 + $0x668] sm:$0xff]
        %v1615 = vld [vmem:[#allocation2 + $0x670] sm:$0xff]
        %v1616 = vld [vmem:[#allocation2 + $0x678] sm:$0xff]
        %v1617 = vld [vmem:[#allocation2 + $0x680] sm:$0xff]
        %v1618 = vld [vmem:[#allocation2 + $0x688] sm:$0xff]
        %v1619 = vld [vmem:[#allocation2 + $0x690] sm:$0xff]
        %v1620 = vld [vmem:[#allocation2 + $0x698] sm:$0xff]
        %v1621 = vld [vmem:[#allocation2 + $0x6a0] sm:$0xff]
        %v1622 = vld [vmem:[#allocation2 + $0x6a8] sm:$0xff]
        %v1623 = vld [vmem:[#allocation2 + $0x6b0] sm:$0xff]
        %v1624 = vld [vmem:[#allocation2 + $0x6b8] sm:$0xff]
        %v1625 = vld [vmem:[#allocation2 + $0x6c0] sm:$0xff]
        %v1626 = vld [vmem:[#allocation2 + $0x6c8] sm:$0xff]
        %v1627 = vld [vmem:[#allocation2 + $0x6d0] sm:$0xff]
        %v1628 = vld [vmem:[#allocation2 + $0x6d8] sm:$0xff]
        %v1629 = vld [vmem:[#allocation2 + $0x6e0] sm:$0xff]
        %v1630 = vld [vmem:[#allocation2 + $0x6e8] sm:$0xff]
        %v1631 = vld [vmem:[#allocation2 + $0x6f0] sm:$0xff]
        %v1632 = vld [vmem:[#allocation2 + $0x6f8] sm:$0xff]
        %v1633 = vld [vmem:[#allocation2 + $0x700] sm:$0xff]
        %v1634 = vld [vmem:[#allocation2 + $0x708] sm:$0xff]
        %v1635 = vld [vmem:[#allocation2 + $0x710] sm:$0xff]
        %v1636 = vld [vmem:[#allocation2 + $0x718] sm:$0xff]
        %v1637 = vld [vmem:[#allocation2 + $0x720] sm:$0xff]
        %v1638 = vld [vmem:[#allocation2 + $0x728] sm:$0xff]
        %v1639 = vld [vmem:[#allocation2 + $0x730] sm:$0xff]
        %v1640 = vld [vmem:[#allocation2 + $0x738] sm:$0xff]
        %v1641 = vld [vmem:[#allocation2 + $0x740] sm:$0xff]
        %v1642 = vld [vmem:[#allocation2 + $0x748] sm:$0xff]
        %v1643 = vld [vmem:[#allocation2 + $0x750] sm:$0xff]
        %v1644 = vld [vmem:[#allocation2 + $0x758] sm:$0xff]
        %v1645 = vld [vmem:[#allocation2 + $0x760] sm:$0xff]
        %v1646 = vld [vmem:[#allocation2 + $0x768] sm:$0xff]
        %v1647 = vld [vmem:[#allocation2 + $0x770] sm:$0xff]
        %v1648 = vld [vmem:[#allocation2 + $0x778] sm:$0xff]
        %v1649 = vld [vmem:[#allocation2 + $0x780] sm:$0xff]
        %v1650 = vld [vmem:[#allocation2 + $0x788] sm:$0xff]
        %v1651 = vld [vmem:[#allocation2 + $0x790] sm:$0xff]
        %v1652 = vld [vmem:[#allocation2 + $0x798] sm:$0xff]
        %v1653 = vld [vmem:[#allocation2 + $0x7a0] sm:$0xff]
        %v1654 = vld [vmem:[#allocation2 + $0x7a8] sm:$0xff]
        %v1655 = vld [vmem:[#allocation2 + $0x7b0] sm:$0xff]
        %v1656 = vld [vmem:[#allocation2 + $0x7b8] sm:$0xff]
        %v1657 = vld [vmem:[#allocation2 + $0x7c0] sm:$0xff]
        %v1658 = vld [vmem:[#allocation2 + $0x7c8] sm:$0xff]
        %v1659 = vld [vmem:[#allocation2 + $0x7d0] sm:$0xff]
        %v1660 = vld [vmem:[#allocation2 + $0x7d8] sm:$0xff]
        %v1661 = vld [vmem:[#allocation2 + $0x7e0] sm:$0xff]
        %v1662 = vld [vmem:[#allocation2 + $0x7e8] sm:$0xff]
        %v1663 = vld [vmem:[#allocation2 + $0x7f0] sm:$0xff]
        %v1664 = vld [vmem:[#allocation2 + $0x7f8] sm:$0xff]
        %v1665 = vld [vmem:[%s8] sm:$0xff]
        %v1667 = vlaneseq
        %v1668 = vshrl.u32 %v1667, 7
        %v1669 = vsub.s32 0, %v1668
        %v1670 = vrot.slane %v1665, %v1669
        %v1671 = vlaneseq
        %v1672 = vshrl.u32 %v1671, 7
        %v1673 = vsub.s32 1, %v1672
        %v1674 = vrot.slane %v1665, %v1673
        %v1675 = vlaneseq
        %v1676 = vshrl.u32 %v1675, 7
        %v1677 = vsub.s32 2, %v1676
        %v1678 = vrot.slane %v1665, %v1677
        %v1679 = vlaneseq
        %v1680 = vshrl.u32 %v1679, 7
        %v1681 = vsub.s32 3, %v1680
        %v1682 = vrot.slane %v1665, %v1681
        %v1683 = vlaneseq
        %v1684 = vshrl.u32 %v1683, 7
        %v1685 = vsub.s32 4, %v1684
        %v1686 = vrot.slane %v1665, %v1685
        %v1687 = vlaneseq
        %v1688 = vshrl.u32 %v1687, 7
        %v1689 = vsub.s32 5, %v1688
        %v1690 = vrot.slane %v1665, %v1689
        %v1691 = vlaneseq
        %v1692 = vshrl.u32 %v1691, 7
        %v1693 = vsub.s32 6, %v1692
        %v1694 = vrot.slane %v1665, %v1693
        %v1695 = vlaneseq
        %v1696 = vshrl.u32 %v1695, 7
        %v1697 = vsub.s32 7, %v1696
        %v1698 = vrot.slane %v1665, %v1697
        %v1963 = vunpack.c.l.b16 %v1409
        %v1964 = vunpack.c.h.b16 %v1409
        %v1965 = vunpack.c.l.b16 %v1410
        %v1966 = vunpack.c.h.b16 %v1410
        %v1967 = vunpack.c.l.b16 %v1411
        %v1968 = vunpack.c.h.b16 %v1411
        %v1969 = vunpack.c.l.b16 %v1412
        %v1970 = vunpack.c.h.b16 %v1412
        %v1971 = vunpack.c.l.b16 %v1413
        %v1972 = vunpack.c.h.b16 %v1413
        %v1973 = vunpack.c.l.b16 %v1414
        %v1974 = vunpack.c.h.b16 %v1414
        %v1975 = vunpack.c.l.b16 %v1415
        %v1976 = vunpack.c.h.b16 %v1415
        %v1977 = vunpack.c.l.b16 %v1416
        %v1978 = vunpack.c.h.b16 %v1416
        %v1979 = vunpack.c.l.b16 %v1417
        %v1980 = vunpack.c.h.b16 %v1417
        %v1981 = vunpack.c.l.b16 %v1418
        %v1982 = vunpack.c.h.b16 %v1418
        %v1983 = vunpack.c.l.b16 %v1419
        %v1984 = vunpack.c.h.b16 %v1419
        %v1985 = vunpack.c.l.b16 %v1420
        %v1986 = vunpack.c.h.b16 %v1420
        %v1987 = vunpack.c.l.b16 %v1421
        %v1988 = vunpack.c.h.b16 %v1421
        %v1989 = vunpack.c.l.b16 %v1422
        %v1990 = vunpack.c.h.b16 %v1422
        %v1991 = vunpack.c.l.b16 %v1423
        %v1992 = vunpack.c.h.b16 %v1423
        %v1993 = vunpack.c.l.b16 %v1424
        %v1994 = vunpack.c.h.b16 %v1424
        %v1995 = vunpack.c.l.b16 %v1425
        %v1996 = vunpack.c.h.b16 %v1425
        %v1997 = vunpack.c.l.b16 %v1426
        %v1998 = vunpack.c.h.b16 %v1426
        %v1999 = vunpack.c.l.b16 %v1427
        %v2000 = vunpack.c.h.b16 %v1427
        %v2001 = vunpack.c.l.b16 %v1428
        %v2002 = vunpack.c.h.b16 %v1428
        %v2003 = vunpack.c.l.b16 %v1429
        %v2004 = vunpack.c.h.b16 %v1429
        %v2005 = vunpack.c.l.b16 %v1430
        %v2006 = vunpack.c.h.b16 %v1430
        %v2007 = vunpack.c.l.b16 %v1431
        %v2008 = vunpack.c.h.b16 %v1431
        %v2009 = vunpack.c.l.b16 %v1432
        %v2010 = vunpack.c.h.b16 %v1432
        %v2011 = vunpack.c.l.b16 %v1433
        %v2012 = vunpack.c.h.b16 %v1433
        %v2013 = vunpack.c.l.b16 %v1434
        %v2014 = vunpack.c.h.b16 %v1434
        %v2015 = vunpack.c.l.b16 %v1435
        %v2016 = vunpack.c.h.b16 %v1435
        %v2017 = vunpack.c.l.b16 %v1436
        %v2018 = vunpack.c.h.b16 %v1436
        %v2019 = vunpack.c.l.b16 %v1437
        %v2020 = vunpack.c.h.b16 %v1437
        %v2021 = vunpack.c.l.b16 %v1438
        %v2022 = vunpack.c.h.b16 %v1438
        %v2023 = vunpack.c.l.b16 %v1439
        %v2024 = vunpack.c.h.b16 %v1439
        %v2025 = vunpack.c.l.b16 %v1440
        %v2026 = vunpack.c.h.b16 %v1440
        %v2027 = vunpack.c.l.b16 %v1441
        %v2028 = vunpack.c.h.b16 %v1441
        %v2029 = vunpack.c.l.b16 %v1442
        %v2030 = vunpack.c.h.b16 %v1442
        %v2031 = vunpack.c.l.b16 %v1443
        %v2032 = vunpack.c.h.b16 %v1443
        %v2033 = vunpack.c.l.b16 %v1444
        %v2034 = vunpack.c.h.b16 %v1444
        %v2035 = vunpack.c.l.b16 %v1445
        %v2036 = vunpack.c.h.b16 %v1445
        %v2037 = vunpack.c.l.b16 %v1446
        %v2038 = vunpack.c.h.b16 %v1446
        %v2039 = vunpack.c.l.b16 %v1447
        %v2040 = vunpack.c.h.b16 %v1447
        %v2041 = vunpack.c.l.b16 %v1448
        %v2042 = vunpack.c.h.b16 %v1448
        %v2043 = vunpack.c.l.b16 %v1449
        %v2044 = vunpack.c.h.b16 %v1449
        %v2045 = vunpack.c.l.b16 %v1450
        %v2046 = vunpack.c.h.b16 %v1450
        %v2047 = vunpack.c.l.b16 %v1451
        %v2048 = vunpack.c.h.b16 %v1451
        %v2049 = vunpack.c.l.b16 %v1452
        %v2050 = vunpack.c.h.b16 %v1452
        %v2051 = vunpack.c.l.b16 %v1453
        %v2052 = vunpack.c.h.b16 %v1453
        %v2053 = vunpack.c.l.b16 %v1454
        %v2054 = vunpack.c.h.b16 %v1454
        %v2055 = vunpack.c.l.b16 %v1455
        %v2056 = vunpack.c.h.b16 %v1455
        %v2057 = vunpack.c.l.b16 %v1456
        %v2058 = vunpack.c.h.b16 %v1456
        %v2059 = vunpack.c.l.b16 %v1457
        %v2060 = vunpack.c.h.b16 %v1457
        %v2061 = vunpack.c.l.b16 %v1458
        %v2062 = vunpack.c.h.b16 %v1458
        %v2063 = vunpack.c.l.b16 %v1459
        %v2064 = vunpack.c.h.b16 %v1459
        %v2065 = vunpack.c.l.b16 %v1460
        %v2066 = vunpack.c.h.b16 %v1460
        %v2067 = vunpack.c.l.b16 %v1461
        %v2068 = vunpack.c.h.b16 %v1461
        %v2069 = vunpack.c.l.b16 %v1462
        %v2070 = vunpack.c.h.b16 %v1462
        %v2071 = vunpack.c.l.b16 %v1463
        %v2072 = vunpack.c.h.b16 %v1463
        %v2073 = vunpack.c.l.b16 %v1464
        %v2074 = vunpack.c.h.b16 %v1464
        %v2075 = vunpack.c.l.b16 %v1465
        %v2076 = vunpack.c.h.b16 %v1465
        %v2077 = vunpack.c.l.b16 %v1466
        %v2078 = vunpack.c.h.b16 %v1466
        %v2079 = vunpack.c.l.b16 %v1467
        %v2080 = vunpack.c.h.b16 %v1467
        %v2081 = vunpack.c.l.b16 %v1468
        %v2082 = vunpack.c.h.b16 %v1468
        %v2083 = vunpack.c.l.b16 %v1469
        %v2084 = vunpack.c.h.b16 %v1469
        %v2085 = vunpack.c.l.b16 %v1470
        %v2086 = vunpack.c.h.b16 %v1470
        %v2087 = vunpack.c.l.b16 %v1471
        %v2088 = vunpack.c.h.b16 %v1471
        %v2089 = vunpack.c.l.b16 %v1472
        %v2090 = vunpack.c.h.b16 %v1472
        %v2091 = vunpack.c.l.b16 %v1473
        %v2092 = vunpack.c.h.b16 %v1473
        %v2093 = vunpack.c.l.b16 %v1474
        %v2094 = vunpack.c.h.b16 %v1474
        %v2095 = vunpack.c.l.b16 %v1475
        %v2096 = vunpack.c.h.b16 %v1475
        %v2097 = vunpack.c.l.b16 %v1476
        %v2098 = vunpack.c.h.b16 %v1476
        %v2099 = vunpack.c.l.b16 %v1477
        %v2100 = vunpack.c.h.b16 %v1477
        %v2101 = vunpack.c.l.b16 %v1478
        %v2102 = vunpack.c.h.b16 %v1478
        %v2103 = vunpack.c.l.b16 %v1479
        %v2104 = vunpack.c.h.b16 %v1479
        %v2105 = vunpack.c.l.b16 %v1480
        %v2106 = vunpack.c.h.b16 %v1480
        %v2107 = vunpack.c.l.b16 %v1481
        %v2108 = vunpack.c.h.b16 %v1481
        %v2109 = vunpack.c.l.b16 %v1482
        %v2110 = vunpack.c.h.b16 %v1482
        %v2111 = vunpack.c.l.b16 %v1483
        %v2112 = vunpack.c.h.b16 %v1483
        %v2113 = vunpack.c.l.b16 %v1484
        %v2114 = vunpack.c.h.b16 %v1484
        %v2115 = vunpack.c.l.b16 %v1485
        %v2116 = vunpack.c.h.b16 %v1485
        %v2117 = vunpack.c.l.b16 %v1486
        %v2118 = vunpack.c.h.b16 %v1486
        %v2119 = vunpack.c.l.b16 %v1487
        %v2120 = vunpack.c.h.b16 %v1487
        %v2121 = vunpack.c.l.b16 %v1488
        %v2122 = vunpack.c.h.b16 %v1488
        %v2123 = vunpack.c.l.b16 %v1489
        %v2124 = vunpack.c.h.b16 %v1489
        %v2125 = vunpack.c.l.b16 %v1490
        %v2126 = vunpack.c.h.b16 %v1490
        %v2127 = vunpack.c.l.b16 %v1491
        %v2128 = vunpack.c.h.b16 %v1491
        %v2129 = vunpack.c.l.b16 %v1492
        %v2130 = vunpack.c.h.b16 %v1492
        %v2131 = vunpack.c.l.b16 %v1493
        %v2132 = vunpack.c.h.b16 %v1493
        %v2133 = vunpack.c.l.b16 %v1494
        %v2134 = vunpack.c.h.b16 %v1494
        %v2135 = vunpack.c.l.b16 %v1495
        %v2136 = vunpack.c.h.b16 %v1495
        %v2137 = vunpack.c.l.b16 %v1496
        %v2138 = vunpack.c.h.b16 %v1496
        %v2139 = vunpack.c.l.b16 %v1497
        %v2140 = vunpack.c.h.b16 %v1497
        %v2141 = vunpack.c.l.b16 %v1498
        %v2142 = vunpack.c.h.b16 %v1498
        %v2143 = vunpack.c.l.b16 %v1499
        %v2144 = vunpack.c.h.b16 %v1499
        %v2145 = vunpack.c.l.b16 %v1500
        %v2146 = vunpack.c.h.b16 %v1500
        %v2147 = vunpack.c.l.b16 %v1501
        %v2148 = vunpack.c.h.b16 %v1501
        %v2149 = vunpack.c.l.b16 %v1502
        %v2150 = vunpack.c.h.b16 %v1502
        %v2151 = vunpack.c.l.b16 %v1503
        %v2152 = vunpack.c.h.b16 %v1503
        %v2153 = vunpack.c.l.b16 %v1504
        %v2154 = vunpack.c.h.b16 %v1504
        %v2155 = vunpack.c.l.b16 %v1505
        %v2156 = vunpack.c.h.b16 %v1505
        %v2157 = vunpack.c.l.b16 %v1506
        %v2158 = vunpack.c.h.b16 %v1506
        %v2159 = vunpack.c.l.b16 %v1507
        %v2160 = vunpack.c.h.b16 %v1507
        %v2161 = vunpack.c.l.b16 %v1508
        %v2162 = vunpack.c.h.b16 %v1508
        %v2163 = vunpack.c.l.b16 %v1509
        %v2164 = vunpack.c.h.b16 %v1509
        %v2165 = vunpack.c.l.b16 %v1510
        %v2166 = vunpack.c.h.b16 %v1510
        %v2167 = vunpack.c.l.b16 %v1511
        %v2168 = vunpack.c.h.b16 %v1511
        %v2169 = vunpack.c.l.b16 %v1512
        %v2170 = vunpack.c.h.b16 %v1512
        %v2171 = vunpack.c.l.b16 %v1513
        %v2172 = vunpack.c.h.b16 %v1513
        %v2173 = vunpack.c.l.b16 %v1514
        %v2174 = vunpack.c.h.b16 %v1514
        %v2175 = vunpack.c.l.b16 %v1515
        %v2176 = vunpack.c.h.b16 %v1515
        %v2177 = vunpack.c.l.b16 %v1516
        %v2178 = vunpack.c.h.b16 %v1516
        %v2179 = vunpack.c.l.b16 %v1517
        %v2180 = vunpack.c.h.b16 %v1517
        %v2181 = vunpack.c.l.b16 %v1518
        %v2182 = vunpack.c.h.b16 %v1518
        %v2183 = vunpack.c.l.b16 %v1519
        %v2184 = vunpack.c.h.b16 %v1519
        %v2185 = vunpack.c.l.b16 %v1520
        %v2186 = vunpack.c.h.b16 %v1520
        %v2187 = vunpack.c.l.b16 %v1521
        %v2188 = vunpack.c.h.b16 %v1521
        %v2189 = vunpack.c.l.b16 %v1522
        %v2190 = vunpack.c.h.b16 %v1522
        %v2191 = vunpack.c.l.b16 %v1523
        %v2192 = vunpack.c.h.b16 %v1523
        %v2193 = vunpack.c.l.b16 %v1524
        %v2194 = vunpack.c.h.b16 %v1524
        %v2195 = vunpack.c.l.b16 %v1525
        %v2196 = vunpack.c.h.b16 %v1525
        %v2197 = vunpack.c.l.b16 %v1526
        %v2198 = vunpack.c.h.b16 %v1526
        %v2199 = vunpack.c.l.b16 %v1527
        %v2200 = vunpack.c.h.b16 %v1527
        %v2201 = vunpack.c.l.b16 %v1528
        %v2202 = vunpack.c.h.b16 %v1528
        %v2203 = vunpack.c.l.b16 %v1529
        %v2204 = vunpack.c.h.b16 %v1529
        %v2205 = vunpack.c.l.b16 %v1530
        %v2206 = vunpack.c.h.b16 %v1530
        %v2207 = vunpack.c.l.b16 %v1531
        %v2208 = vunpack.c.h.b16 %v1531
        %v2209 = vunpack.c.l.b16 %v1532
        %v2210 = vunpack.c.h.b16 %v1532
        %v2211 = vunpack.c.l.b16 %v1533
        %v2212 = vunpack.c.h.b16 %v1533
        %v2213 = vunpack.c.l.b16 %v1534
        %v2214 = vunpack.c.h.b16 %v1534
        %v2215 = vunpack.c.l.b16 %v1535
        %v2216 = vunpack.c.h.b16 %v1535
        %v2217 = vunpack.c.l.b16 %v1536
        %v2218 = vunpack.c.h.b16 %v1536
        %v2219 = vunpack.c.l.b16 %v1537
        %v2220 = vunpack.c.h.b16 %v1537
        %v2221 = vunpack.c.l.b16 %v1538
        %v2222 = vunpack.c.h.b16 %v1538
        %v2223 = vunpack.c.l.b16 %v1539
        %v2224 = vunpack.c.h.b16 %v1539
        %v2225 = vunpack.c.l.b16 %v1540
        %v2226 = vunpack.c.h.b16 %v1540
        %v2227 = vunpack.c.l.b16 %v1541
        %v2228 = vunpack.c.h.b16 %v1541
        %v2229 = vunpack.c.l.b16 %v1542
        %v2230 = vunpack.c.h.b16 %v1542
        %v2231 = vunpack.c.l.b16 %v1543
        %v2232 = vunpack.c.h.b16 %v1543
        %v2233 = vunpack.c.l.b16 %v1544
        %v2234 = vunpack.c.h.b16 %v1544
        %v2235 = vunpack.c.l.b16 %v1545
        %v2236 = vunpack.c.h.b16 %v1545
        %v2237 = vunpack.c.l.b16 %v1546
        %v2238 = vunpack.c.h.b16 %v1546
        %v2239 = vunpack.c.l.b16 %v1547
        %v2240 = vunpack.c.h.b16 %v1547
        %v2241 = vunpack.c.l.b16 %v1548
        %v2242 = vunpack.c.h.b16 %v1548
        %v2243 = vunpack.c.l.b16 %v1549
        %v2244 = vunpack.c.h.b16 %v1549
        %v2245 = vunpack.c.l.b16 %v1550
        %v2246 = vunpack.c.h.b16 %v1550
        %v2247 = vunpack.c.l.b16 %v1551
        %v2248 = vunpack.c.h.b16 %v1551
        %v2249 = vunpack.c.l.b16 %v1552
        %v2250 = vunpack.c.h.b16 %v1552
        %v2251 = vunpack.c.l.b16 %v1553
        %v2252 = vunpack.c.h.b16 %v1553
        %v2253 = vunpack.c.l.b16 %v1554
        %v2254 = vunpack.c.h.b16 %v1554
        %v2255 = vunpack.c.l.b16 %v1555
        %v2256 = vunpack.c.h.b16 %v1555
        %v2257 = vunpack.c.l.b16 %v1556
        %v2258 = vunpack.c.h.b16 %v1556
        %v2259 = vunpack.c.l.b16 %v1557
        %v2260 = vunpack.c.h.b16 %v1557
        %v2261 = vunpack.c.l.b16 %v1558
        %v2262 = vunpack.c.h.b16 %v1558
        %v2263 = vunpack.c.l.b16 %v1559
        %v2264 = vunpack.c.h.b16 %v1559
        %v2265 = vunpack.c.l.b16 %v1560
        %v2266 = vunpack.c.h.b16 %v1560
        %v2267 = vunpack.c.l.b16 %v1561
        %v2268 = vunpack.c.h.b16 %v1561
        %v2269 = vunpack.c.l.b16 %v1562
        %v2270 = vunpack.c.h.b16 %v1562
        %v2271 = vunpack.c.l.b16 %v1563
        %v2272 = vunpack.c.h.b16 %v1563
        %v2273 = vunpack.c.l.b16 %v1564
        %v2274 = vunpack.c.h.b16 %v1564
        %v2275 = vunpack.c.l.b16 %v1565
        %v2276 = vunpack.c.h.b16 %v1565
        %v2277 = vunpack.c.l.b16 %v1566
        %v2278 = vunpack.c.h.b16 %v1566
        %v2279 = vunpack.c.l.b16 %v1567
        %v2280 = vunpack.c.h.b16 %v1567
        %v2281 = vunpack.c.l.b16 %v1568
        %v2282 = vunpack.c.h.b16 %v1568
        %v2283 = vunpack.c.l.b16 %v1569
        %v2284 = vunpack.c.h.b16 %v1569
        %v2285 = vunpack.c.l.b16 %v1570
        %v2286 = vunpack.c.h.b16 %v1570
        %v2287 = vunpack.c.l.b16 %v1571
        %v2288 = vunpack.c.h.b16 %v1571
        %v2289 = vunpack.c.l.b16 %v1572
        %v2290 = vunpack.c.h.b16 %v1572
        %v2291 = vunpack.c.l.b16 %v1573
        %v2292 = vunpack.c.h.b16 %v1573
        %v2293 = vunpack.c.l.b16 %v1574
        %v2294 = vunpack.c.h.b16 %v1574
        %v2295 = vunpack.c.l.b16 %v1575
        %v2296 = vunpack.c.h.b16 %v1575
        %v2297 = vunpack.c.l.b16 %v1576
        %v2298 = vunpack.c.h.b16 %v1576
        %v2299 = vunpack.c.l.b16 %v1577
        %v2300 = vunpack.c.h.b16 %v1577
        %v2301 = vunpack.c.l.b16 %v1578
        %v2302 = vunpack.c.h.b16 %v1578
        %v2303 = vunpack.c.l.b16 %v1579
        %v2304 = vunpack.c.h.b16 %v1579
        %v2305 = vunpack.c.l.b16 %v1580
        %v2306 = vunpack.c.h.b16 %v1580
        %v2307 = vunpack.c.l.b16 %v1581
        %v2308 = vunpack.c.h.b16 %v1581
        %v2309 = vunpack.c.l.b16 %v1582
        %v2310 = vunpack.c.h.b16 %v1582
        %v2311 = vunpack.c.l.b16 %v1583
        %v2312 = vunpack.c.h.b16 %v1583
        %v2313 = vunpack.c.l.b16 %v1584
        %v2314 = vunpack.c.h.b16 %v1584
        %v2315 = vunpack.c.l.b16 %v1585
        %v2316 = vunpack.c.h.b16 %v1585
        %v2317 = vunpack.c.l.b16 %v1586
        %v2318 = vunpack.c.h.b16 %v1586
        %v2319 = vunpack.c.l.b16 %v1587
        %v2320 = vunpack.c.h.b16 %v1587
        %v2321 = vunpack.c.l.b16 %v1588
        %v2322 = vunpack.c.h.b16 %v1588
        %v2323 = vunpack.c.l.b16 %v1589
        %v2324 = vunpack.c.h.b16 %v1589
        %v2325 = vunpack.c.l.b16 %v1590
        %v2326 = vunpack.c.h.b16 %v1590
        %v2327 = vunpack.c.l.b16 %v1591
        %v2328 = vunpack.c.h.b16 %v1591
        %v2329 = vunpack.c.l.b16 %v1592
        %v2330 = vunpack.c.h.b16 %v1592
        %v2331 = vunpack.c.l.b16 %v1593
        %v2332 = vunpack.c.h.b16 %v1593
        %v2333 = vunpack.c.l.b16 %v1594
        %v2334 = vunpack.c.h.b16 %v1594
        %v2335 = vunpack.c.l.b16 %v1595
        %v2336 = vunpack.c.h.b16 %v1595
        %v2337 = vunpack.c.l.b16 %v1596
        %v2338 = vunpack.c.h.b16 %v1596
        %v2339 = vunpack.c.l.b16 %v1597
        %v2340 = vunpack.c.h.b16 %v1597
        %v2341 = vunpack.c.l.b16 %v1598
        %v2342 = vunpack.c.h.b16 %v1598
        %v2343 = vunpack.c.l.b16 %v1599
        %v2344 = vunpack.c.h.b16 %v1599
        %v2345 = vunpack.c.l.b16 %v1600
        %v2346 = vunpack.c.h.b16 %v1600
        %v2347 = vunpack.c.l.b16 %v1601
        %v2348 = vunpack.c.h.b16 %v1601
        %v2349 = vunpack.c.l.b16 %v1602
        %v2350 = vunpack.c.h.b16 %v1602
        %v2351 = vunpack.c.l.b16 %v1603
        %v2352 = vunpack.c.h.b16 %v1603
        %v2353 = vunpack.c.l.b16 %v1604
        %v2354 = vunpack.c.h.b16 %v1604
        %v2355 = vunpack.c.l.b16 %v1605
        %v2356 = vunpack.c.h.b16 %v1605
        %v2357 = vunpack.c.l.b16 %v1606
        %v2358 = vunpack.c.h.b16 %v1606
        %v2359 = vunpack.c.l.b16 %v1607
        %v2360 = vunpack.c.h.b16 %v1607
        %v2361 = vunpack.c.l.b16 %v1608
        %v2362 = vunpack.c.h.b16 %v1608
        %v2363 = vunpack.c.l.b16 %v1609
        %v2364 = vunpack.c.h.b16 %v1609
        %v2365 = vunpack.c.l.b16 %v1610
        %v2366 = vunpack.c.h.b16 %v1610
        %v2367 = vunpack.c.l.b16 %v1611
        %v2368 = vunpack.c.h.b16 %v1611
        %v2369 = vunpack.c.l.b16 %v1612
        %v2370 = vunpack.c.h.b16 %v1612
        %v2371 = vunpack.c.l.b16 %v1613
        %v2372 = vunpack.c.h.b16 %v1613
        %v2373 = vunpack.c.l.b16 %v1614
        %v2374 = vunpack.c.h.b16 %v1614
        %v2375 = vunpack.c.l.b16 %v1615
        %v2376 = vunpack.c.h.b16 %v1615
        %v2377 = vunpack.c.l.b16 %v1616
        %v2378 = vunpack.c.h.b16 %v1616
        %v2379 = vunpack.c.l.b16 %v1617
        %v2380 = vunpack.c.h.b16 %v1617
        %v2381 = vunpack.c.l.b16 %v1618
        %v2382 = vunpack.c.h.b16 %v1618
        %v2383 = vunpack.c.l.b16 %v1619
        %v2384 = vunpack.c.h.b16 %v1619
        %v2385 = vunpack.c.l.b16 %v1620
        %v2386 = vunpack.c.h.b16 %v1620
        %v2387 = vunpack.c.l.b16 %v1621
        %v2388 = vunpack.c.h.b16 %v1621
        %v2389 = vunpack.c.l.b16 %v1622
        %v2390 = vunpack.c.h.b16 %v1622
        %v2391 = vunpack.c.l.b16 %v1623
        %v2392 = vunpack.c.h.b16 %v1623
        %v2393 = vunpack.c.l.b16 %v1624
        %v2394 = vunpack.c.h.b16 %v1624
        %v2395 = vunpack.c.l.b16 %v1625
        %v2396 = vunpack.c.h.b16 %v1625
        %v2397 = vunpack.c.l.b16 %v1626
        %v2398 = vunpack.c.h.b16 %v1626
        %v2399 = vunpack.c.l.b16 %v1627
        %v2400 = vunpack.c.h.b16 %v1627
        %v2401 = vunpack.c.l.b16 %v1628
        %v2402 = vunpack.c.h.b16 %v1628
        %v2403 = vunpack.c.l.b16 %v1629
        %v2404 = vunpack.c.h.b16 %v1629
        %v2405 = vunpack.c.l.b16 %v1630
        %v2406 = vunpack.c.h.b16 %v1630
        %v2407 = vunpack.c.l.b16 %v1631
        %v2408 = vunpack.c.h.b16 %v1631
        %v2409 = vunpack.c.l.b16 %v1632
        %v2410 = vunpack.c.h.b16 %v1632
        %v2411 = vunpack.c.l.b16 %v1633
        %v2412 = vunpack.c.h.b16 %v1633
        %v2413 = vunpack.c.l.b16 %v1634
        %v2414 = vunpack.c.h.b16 %v1634
        %v2415 = vunpack.c.l.b16 %v1635
        %v2416 = vunpack.c.h.b16 %v1635
        %v2417 = vunpack.c.l.b16 %v1636
        %v2418 = vunpack.c.h.b16 %v1636
        %v2419 = vunpack.c.l.b16 %v1637
        %v2420 = vunpack.c.h.b16 %v1637
        %v2421 = vunpack.c.l.b16 %v1638
        %v2422 = vunpack.c.h.b16 %v1638
        %v2423 = vunpack.c.l.b16 %v1639
        %v2424 = vunpack.c.h.b16 %v1639
        %v2425 = vunpack.c.l.b16 %v1640
        %v2426 = vunpack.c.h.b16 %v1640
        %v2427 = vunpack.c.l.b16 %v1641
        %v2428 = vunpack.c.h.b16 %v1641
        %v2429 = vunpack.c.l.b16 %v1642
        %v2430 = vunpack.c.h.b16 %v1642
        %v2431 = vunpack.c.l.b16 %v1643
        %v2432 = vunpack.c.h.b16 %v1643
        %v2433 = vunpack.c.l.b16 %v1644
        %v2434 = vunpack.c.h.b16 %v1644
        %v2435 = vunpack.c.l.b16 %v1645
        %v2436 = vunpack.c.h.b16 %v1645
        %v2437 = vunpack.c.l.b16 %v1646
        %v2438 = vunpack.c.h.b16 %v1646
        %v2439 = vunpack.c.l.b16 %v1647
        %v2440 = vunpack.c.h.b16 %v1647
        %v2441 = vunpack.c.l.b16 %v1648
        %v2442 = vunpack.c.h.b16 %v1648
        %v2443 = vunpack.c.l.b16 %v1649
        %v2444 = vunpack.c.h.b16 %v1649
        %v2445 = vunpack.c.l.b16 %v1650
        %v2446 = vunpack.c.h.b16 %v1650
        %v2447 = vunpack.c.l.b16 %v1651
        %v2448 = vunpack.c.h.b16 %v1651
        %v2449 = vunpack.c.l.b16 %v1652
        %v2450 = vunpack.c.h.b16 %v1652
        %v2451 = vunpack.c.l.b16 %v1653
        %v2452 = vunpack.c.h.b16 %v1653
        %v2453 = vunpack.c.l.b16 %v1654
        %v2454 = vunpack.c.h.b16 %v1654
        %v2455 = vunpack.c.l.b16 %v1655
        %v2456 = vunpack.c.h.b16 %v1655
        %v2457 = vunpack.c.l.b16 %v1656
        %v2458 = vunpack.c.h.b16 %v1656
        %v2459 = vunpack.c.l.b16 %v1657
        %v2460 = vunpack.c.h.b16 %v1657
        %v2461 = vunpack.c.l.b16 %v1658
        %v2462 = vunpack.c.h.b16 %v1658
        %v2463 = vunpack.c.l.b16 %v1659
        %v2464 = vunpack.c.h.b16 %v1659
        %v2465 = vunpack.c.l.b16 %v1660
        %v2466 = vunpack.c.h.b16 %v1660
        %v2467 = vunpack.c.l.b16 %v1661
        %v2468 = vunpack.c.h.b16 %v1661
        %v2469 = vunpack.c.l.b16 %v1662
        %v2470 = vunpack.c.h.b16 %v1662
        %v2471 = vunpack.c.l.b16 %v1663
        %v2472 = vunpack.c.h.b16 %v1663
        %v2473 = vunpack.c.l.b16 %v1664
        %v2474 = vunpack.c.h.b16 %v1664
        %v2475 = vpack.c.b16 %v1971, %v1963
        %v2476 = vpack.c.b16 %v1972, %v1964
        %v2477 = vpack.c.b16 %v1973, %v1965
        %v2478 = vpack.c.b16 %v1974, %v1966
        %v2479 = vpack.c.b16 %v1975, %v1967
        %v2480 = vpack.c.b16 %v1976, %v1968
        %v2481 = vpack.c.b16 %v1977, %v1969
        %v2482 = vpack.c.b16 %v1978, %v1970
        %v2483 = vpack.c.b16 %v1987, %v1979
        %v2484 = vpack.c.b16 %v1988, %v1980
        %v2485 = vpack.c.b16 %v1989, %v1981
        %v2486 = vpack.c.b16 %v1990, %v1982
        %v2487 = vpack.c.b16 %v1991, %v1983
        %v2488 = vpack.c.b16 %v1992, %v1984
        %v2489 = vpack.c.b16 %v1993, %v1985
        %v2490 = vpack.c.b16 %v1994, %v1986
        %v2491 = vpack.c.b16 %v2003, %v1995
        %v2492 = vpack.c.b16 %v2004, %v1996
        %v2493 = vpack.c.b16 %v2005, %v1997
        %v2494 = vpack.c.b16 %v2006, %v1998
        %v2495 = vpack.c.b16 %v2007, %v1999
        %v2496 = vpack.c.b16 %v2008, %v2000
        %v2497 = vpack.c.b16 %v2009, %v2001
        %v2498 = vpack.c.b16 %v2010, %v2002
        %v2499 = vpack.c.b16 %v2019, %v2011
        %v2500 = vpack.c.b16 %v2020, %v2012
        %v2501 = vpack.c.b16 %v2021, %v2013
        %v2502 = vpack.c.b16 %v2022, %v2014
        %v2503 = vpack.c.b16 %v2023, %v2015
        %v2504 = vpack.c.b16 %v2024, %v2016
        %v2505 = vpack.c.b16 %v2025, %v2017
        %v2506 = vpack.c.b16 %v2026, %v2018
        %v2507 = vpack.c.b16 %v2035, %v2027
        %v2508 = vpack.c.b16 %v2036, %v2028
        %v2509 = vpack.c.b16 %v2037, %v2029
        %v2510 = vpack.c.b16 %v2038, %v2030
        %v2511 = vpack.c.b16 %v2039, %v2031
        %v2512 = vpack.c.b16 %v2040, %v2032
        %v2513 = vpack.c.b16 %v2041, %v2033
        %v2514 = vpack.c.b16 %v2042, %v2034
        %v2515 = vpack.c.b16 %v2051, %v2043
        %v2516 = vpack.c.b16 %v2052, %v2044
        %v2517 = vpack.c.b16 %v2053, %v2045
        %v2518 = vpack.c.b16 %v2054, %v2046
        %v2519 = vpack.c.b16 %v2055, %v2047
        %v2520 = vpack.c.b16 %v2056, %v2048
        %v2521 = vpack.c.b16 %v2057, %v2049
        %v2522 = vpack.c.b16 %v2058, %v2050
        %v2523 = vpack.c.b16 %v2067, %v2059
        %v2524 = vpack.c.b16 %v2068, %v2060
        %v2525 = vpack.c.b16 %v2069, %v2061
        %v2526 = vpack.c.b16 %v2070, %v2062
        %v2527 = vpack.c.b16 %v2071, %v2063
        %v2528 = vpack.c.b16 %v2072, %v2064
        %v2529 = vpack.c.b16 %v2073, %v2065
        %v2530 = vpack.c.b16 %v2074, %v2066
        %v2531 = vpack.c.b16 %v2083, %v2075
        %v2532 = vpack.c.b16 %v2084, %v2076
        %v2533 = vpack.c.b16 %v2085, %v2077
        %v2534 = vpack.c.b16 %v2086, %v2078
        %v2535 = vpack.c.b16 %v2087, %v2079
        %v2536 = vpack.c.b16 %v2088, %v2080
        %v2537 = vpack.c.b16 %v2089, %v2081
        %v2538 = vpack.c.b16 %v2090, %v2082
        %v2539 = vpack.c.b16 %v2099, %v2091
        %v2540 = vpack.c.b16 %v2100, %v2092
        %v2541 = vpack.c.b16 %v2101, %v2093
        %v2542 = vpack.c.b16 %v2102, %v2094
        %v2543 = vpack.c.b16 %v2103, %v2095
        %v2544 = vpack.c.b16 %v2104, %v2096
        %v2545 = vpack.c.b16 %v2105, %v2097
        %v2546 = vpack.c.b16 %v2106, %v2098
        %v2547 = vpack.c.b16 %v2115, %v2107
        %v2548 = vpack.c.b16 %v2116, %v2108
        %v2549 = vpack.c.b16 %v2117, %v2109
        %v2550 = vpack.c.b16 %v2118, %v2110
        %v2551 = vpack.c.b16 %v2119, %v2111
        %v2552 = vpack.c.b16 %v2120, %v2112
        %v2553 = vpack.c.b16 %v2121, %v2113
        %v2554 = vpack.c.b16 %v2122, %v2114
        %v2555 = vpack.c.b16 %v2131, %v2123
        %v2556 = vpack.c.b16 %v2132, %v2124
        %v2557 = vpack.c.b16 %v2133, %v2125
        %v2558 = vpack.c.b16 %v2134, %v2126
        %v2559 = vpack.c.b16 %v2135, %v2127
        %v2560 = vpack.c.b16 %v2136, %v2128
        %v2561 = vpack.c.b16 %v2137, %v2129
        %v2562 = vpack.c.b16 %v2138, %v2130
        %v2563 = vpack.c.b16 %v2147, %v2139
        %v2564 = vpack.c.b16 %v2148, %v2140
        %v2565 = vpack.c.b16 %v2149, %v2141
        %v2566 = vpack.c.b16 %v2150, %v2142
        %v2567 = vpack.c.b16 %v2151, %v2143
        %v2568 = vpack.c.b16 %v2152, %v2144
        %v2569 = vpack.c.b16 %v2153, %v2145
        %v2570 = vpack.c.b16 %v2154, %v2146
        %v2571 = vpack.c.b16 %v2163, %v2155
        %v2572 = vpack.c.b16 %v2164, %v2156
        %v2573 = vpack.c.b16 %v2165, %v2157
        %v2574 = vpack.c.b16 %v2166, %v2158
        %v2575 = vpack.c.b16 %v2167, %v2159
        %v2576 = vpack.c.b16 %v2168, %v2160
        %v2577 = vpack.c.b16 %v2169, %v2161
        %v2578 = vpack.c.b16 %v2170, %v2162
        %v2579 = vpack.c.b16 %v2179, %v2171
        %v2580 = vpack.c.b16 %v2180, %v2172
        %v2581 = vpack.c.b16 %v2181, %v2173
        %v2582 = vpack.c.b16 %v2182, %v2174
        %v2583 = vpack.c.b16 %v2183, %v2175
        %v2584 = vpack.c.b16 %v2184, %v2176
        %v2585 = vpack.c.b16 %v2185, %v2177
        %v2586 = vpack.c.b16 %v2186, %v2178
        %v2587 = vpack.c.b16 %v2195, %v2187
        %v2588 = vpack.c.b16 %v2196, %v2188
        %v2589 = vpack.c.b16 %v2197, %v2189
        %v2590 = vpack.c.b16 %v2198, %v2190
        %v2591 = vpack.c.b16 %v2199, %v2191
        %v2592 = vpack.c.b16 %v2200, %v2192
        %v2593 = vpack.c.b16 %v2201, %v2193
        %v2594 = vpack.c.b16 %v2202, %v2194
        %v2595 = vpack.c.b16 %v2211, %v2203
        %v2596 = vpack.c.b16 %v2212, %v2204
        %v2597 = vpack.c.b16 %v2213, %v2205
        %v2598 = vpack.c.b16 %v2214, %v2206
        %v2599 = vpack.c.b16 %v2215, %v2207
        %v2600 = vpack.c.b16 %v2216, %v2208
        %v2601 = vpack.c.b16 %v2217, %v2209
        %v2602 = vpack.c.b16 %v2218, %v2210
        %v2603 = vpack.c.b16 %v2227, %v2219
        %v2604 = vpack.c.b16 %v2228, %v2220
        %v2605 = vpack.c.b16 %v2229, %v2221
        %v2606 = vpack.c.b16 %v2230, %v2222
        %v2607 = vpack.c.b16 %v2231, %v2223
        %v2608 = vpack.c.b16 %v2232, %v2224
        %v2609 = vpack.c.b16 %v2233, %v2225
        %v2610 = vpack.c.b16 %v2234, %v2226
        %v2611 = vpack.c.b16 %v2243, %v2235
        %v2612 = vpack.c.b16 %v2244, %v2236
        %v2613 = vpack.c.b16 %v2245, %v2237
        %v2614 = vpack.c.b16 %v2246, %v2238
        %v2615 = vpack.c.b16 %v2247, %v2239
        %v2616 = vpack.c.b16 %v2248, %v2240
        %v2617 = vpack.c.b16 %v2249, %v2241
        %v2618 = vpack.c.b16 %v2250, %v2242
        %v2619 = vpack.c.b16 %v2259, %v2251
        %v2620 = vpack.c.b16 %v2260, %v2252
        %v2621 = vpack.c.b16 %v2261, %v2253
        %v2622 = vpack.c.b16 %v2262, %v2254
        %v2623 = vpack.c.b16 %v2263, %v2255
        %v2624 = vpack.c.b16 %v2264, %v2256
        %v2625 = vpack.c.b16 %v2265, %v2257
        %v2626 = vpack.c.b16 %v2266, %v2258
        %v2627 = vpack.c.b16 %v2275, %v2267
        %v2628 = vpack.c.b16 %v2276, %v2268
        %v2629 = vpack.c.b16 %v2277, %v2269
        %v2630 = vpack.c.b16 %v2278, %v2270
        %v2631 = vpack.c.b16 %v2279, %v2271
        %v2632 = vpack.c.b16 %v2280, %v2272
        %v2633 = vpack.c.b16 %v2281, %v2273
        %v2634 = vpack.c.b16 %v2282, %v2274
        %v2635 = vpack.c.b16 %v2291, %v2283
        %v2636 = vpack.c.b16 %v2292, %v2284
        %v2637 = vpack.c.b16 %v2293, %v2285
        %v2638 = vpack.c.b16 %v2294, %v2286
        %v2639 = vpack.c.b16 %v2295, %v2287
        %v2640 = vpack.c.b16 %v2296, %v2288
        %v2641 = vpack.c.b16 %v2297, %v2289
        %v2642 = vpack.c.b16 %v2298, %v2290
        %v2643 = vpack.c.b16 %v2307, %v2299
        %v2644 = vpack.c.b16 %v2308, %v2300
        %v2645 = vpack.c.b16 %v2309, %v2301
        %v2646 = vpack.c.b16 %v2310, %v2302
        %v2647 = vpack.c.b16 %v2311, %v2303
        %v2648 = vpack.c.b16 %v2312, %v2304
        %v2649 = vpack.c.b16 %v2313, %v2305
        %v2650 = vpack.c.b16 %v2314, %v2306
        %v2651 = vpack.c.b16 %v2323, %v2315
        %v2652 = vpack.c.b16 %v2324, %v2316
        %v2653 = vpack.c.b16 %v2325, %v2317
        %v2654 = vpack.c.b16 %v2326, %v2318
        %v2655 = vpack.c.b16 %v2327, %v2319
        %v2656 = vpack.c.b16 %v2328, %v2320
        %v2657 = vpack.c.b16 %v2329, %v2321
        %v2658 = vpack.c.b16 %v2330, %v2322
        %v2659 = vpack.c.b16 %v2339, %v2331
        %v2660 = vpack.c.b16 %v2340, %v2332
        %v2661 = vpack.c.b16 %v2341, %v2333
        %v2662 = vpack.c.b16 %v2342, %v2334
        %v2663 = vpack.c.b16 %v2343, %v2335
        %v2664 = vpack.c.b16 %v2344, %v2336
        %v2665 = vpack.c.b16 %v2345, %v2337
        %v2666 = vpack.c.b16 %v2346, %v2338
        %v2667 = vpack.c.b16 %v2355, %v2347
        %v2668 = vpack.c.b16 %v2356, %v2348
        %v2669 = vpack.c.b16 %v2357, %v2349
        %v2670 = vpack.c.b16 %v2358, %v2350
        %v2671 = vpack.c.b16 %v2359, %v2351
        %v2672 = vpack.c.b16 %v2360, %v2352
        %v2673 = vpack.c.b16 %v2361, %v2353
        %v2674 = vpack.c.b16 %v2362, %v2354
        %v2675 = vpack.c.b16 %v2371, %v2363
        %v2676 = vpack.c.b16 %v2372, %v2364
        %v2677 = vpack.c.b16 %v2373, %v2365
        %v2678 = vpack.c.b16 %v2374, %v2366
        %v2679 = vpack.c.b16 %v2375, %v2367
        %v2680 = vpack.c.b16 %v2376, %v2368
        %v2681 = vpack.c.b16 %v2377, %v2369
        %v2682 = vpack.c.b16 %v2378, %v2370
        %v2683 = vpack.c.b16 %v2387, %v2379
        %v2684 = vpack.c.b16 %v2388, %v2380
        %v2685 = vpack.c.b16 %v2389, %v2381
        %v2686 = vpack.c.b16 %v2390, %v2382
        %v2687 = vpack.c.b16 %v2391, %v2383
        %v2688 = vpack.c.b16 %v2392, %v2384
        %v2689 = vpack.c.b16 %v2393, %v2385
        %v2690 = vpack.c.b16 %v2394, %v2386
        %v2691 = vpack.c.b16 %v2403, %v2395
        %v2692 = vpack.c.b16 %v2404, %v2396
        %v2693 = vpack.c.b16 %v2405, %v2397
        %v2694 = vpack.c.b16 %v2406, %v2398
        %v2695 = vpack.c.b16 %v2407, %v2399
        %v2696 = vpack.c.b16 %v2408, %v2400
        %v2697 = vpack.c.b16 %v2409, %v2401
        %v2698 = vpack.c.b16 %v2410, %v2402
        %v2699 = vpack.c.b16 %v2419, %v2411
        %v2700 = vpack.c.b16 %v2420, %v2412
        %v2701 = vpack.c.b16 %v2421, %v2413
        %v2702 = vpack.c.b16 %v2422, %v2414
        %v2703 = vpack.c.b16 %v2423, %v2415
        %v2704 = vpack.c.b16 %v2424, %v2416
        %v2705 = vpack.c.b16 %v2425, %v2417
        %v2706 = vpack.c.b16 %v2426, %v2418
        %v2707 = vpack.c.b16 %v2435, %v2427
        %v2708 = vpack.c.b16 %v2436, %v2428
        %v2709 = vpack.c.b16 %v2437, %v2429
        %v2710 = vpack.c.b16 %v2438, %v2430
        %v2711 = vpack.c.b16 %v2439, %v2431
        %v2712 = vpack.c.b16 %v2440, %v2432
        %v2713 = vpack.c.b16 %v2441, %v2433
        %v2714 = vpack.c.b16 %v2442, %v2434
        %v2715 = vpack.c.b16 %v2451, %v2443
        %v2716 = vpack.c.b16 %v2452, %v2444
        %v2717 = vpack.c.b16 %v2453, %v2445
        %v2718 = vpack.c.b16 %v2454, %v2446
        %v2719 = vpack.c.b16 %v2455, %v2447
        %v2720 = vpack.c.b16 %v2456, %v2448
        %v2721 = vpack.c.b16 %v2457, %v2449
        %v2722 = vpack.c.b16 %v2458, %v2450
        %v2723 = vpack.c.b16 %v2467, %v2459
        %v2724 = vpack.c.b16 %v2468, %v2460
        %v2725 = vpack.c.b16 %v2469, %v2461
        %v2726 = vpack.c.b16 %v2470, %v2462
        %v2727 = vpack.c.b16 %v2471, %v2463
        %v2728 = vpack.c.b16 %v2472, %v2464
        %v2729 = vpack.c.b16 %v2473, %v2465
        %v2730 = vpack.c.b16 %v2474, %v2466
        %2987 = vmatprep.subr.bf16.mxu0 %v2476
        %2988 = vmatpush1.bf16.msra.mxu0 %v2475
        %2989 = vmatprep.subr.bf16.mxu0 %v2484
        %2990 = vmatpush1.bf16.msra.mxu0 %v2483
        %2991 = vmatprep.subr.bf16.mxu0 %v2492
        %2992 = vmatpush1.bf16.msra.mxu0 %v2491
        %2993 = vmatprep.subr.bf16.mxu0 %v2500
        %2994 = vmatpush1.bf16.msra.mxu0 %v2499
        %2995 = vmatprep.subr.bf16.mxu0 %v2508
        %2996 = vmatpush1.bf16.msra.mxu0 %v2507
        %2997 = vmatprep.subr.bf16.mxu0 %v2516
        %2998 = vmatpush1.bf16.msra.mxu0 %v2515
        %2999 = vmatprep.subr.bf16.mxu0 %v2524
        %3000 = vmatpush1.bf16.msra.mxu0 %v2523
        %3001 = vmatprep.subr.bf16.mxu0 %v2532
        %3002 = vmatpush1.bf16.msra.mxu0 %v2531
        %3003 = vmatprep.subr.bf16.mxu0 %v2540
        %3004 = vmatpush1.bf16.msra.mxu0 %v2539
        %3005 = vmatprep.subr.bf16.mxu0 %v2548
        %3006 = vmatpush1.bf16.msra.mxu0 %v2547
        %3007 = vmatprep.subr.bf16.mxu0 %v2556
        %3008 = vmatpush1.bf16.msra.mxu0 %v2555
        %3009 = vmatprep.subr.bf16.mxu0 %v2564
        %3010 = vmatpush1.bf16.msra.mxu0 %v2563
        %3011 = vmatprep.subr.bf16.mxu0 %v2572
        %3012 = vmatpush1.bf16.msra.mxu0 %v2571
        %3013 = vmatprep.subr.bf16.mxu0 %v2580
        %3014 = vmatpush1.bf16.msra.mxu0 %v2579
        %3015 = vmatprep.subr.bf16.mxu0 %v2588
        %3016 = vmatpush1.bf16.msra.mxu0 %v2587
        %3017 = vmatprep.subr.bf16.mxu0 %v2596
        %3018 = vmatpush1.bf16.msra.mxu0 %v2595
        %3019 = vmatprep.mubr.bf16.mxu0 %v1394
        %3020 = vmatmul.mubr.bf16.gmra.mrb[0].mxu0 %v1393
        %v3021 = vpop.f32.mrb[0].mxu0
        %v3022 = vadd.f32 %v1670, %v3021
        %v3023 = vpop.f32.mrb[0].mxu0
        %v3024 = vadd.f32 %v1674, %v3023
        %v3025 = vpop.f32.mrb[0].mxu0
        %v3026 = vadd.f32 %v1670, %v3025
        %v3027 = vpop.f32.mrb[0].mxu0
        %v3028 = vadd.f32 %v1674, %v3027
        %3029 = vmatprep.mubr.bf16.mxu0 %v1398
        %3030 = vmatmul.mubr.bf16.gmra.mrb[0].mxu0 %v1397
        %v3031 = vpop.f32.mrb[0].mxu0
        %v3032 = vadd.f32 %v1670, %v3031
        %v3033 = vpop.f32.mrb[0].mxu0
        %v3034 = vadd.f32 %v1674, %v3033
        %v3035 = vpop.f32.mrb[0].mxu0
        %v3036 = vadd.f32 %v1670, %v3035
        %v3037 = vpop.f32.mrb[0].mxu0
        %v3038 = vadd.f32 %v1674, %v3037
        %3039 = vmatprep.mubr.bf16.mxu0 %v1402
        %3040 = vmatmul.mubr.bf16.gmra.mrb[0].mxu0 %v1401
        %v3041 = vpop.f32.mrb[0].mxu0
        %v3042 = vadd.f32 %v1670, %v3041
        %v3043 = vpop.f32.mrb[0].mxu0
        %v3044 = vadd.f32 %v1674, %v3043
        %v3045 = vpop.f32.mrb[0].mxu0
        %v3046 = vadd.f32 %v1670, %v3045
        %v3047 = vpop.f32.mrb[0].mxu0
        %v3048 = vadd.f32 %v1674, %v3047
        %3049 = vmatprep.mubr.bf16.mxu0 %v1406
        %3050 = vmatmul.mubr.bf16.gmra.mrb[0].mxu0 %v1405
        %v3051 = vpop.f32.mrb[0].mxu0
        %v3052 = vadd.f32 %v1670, %v3051
        %v3053 = vpop.f32.mrb[0].mxu0
        %v3054 = vadd.f32 %v1674, %v3053
        %v3055 = vpop.f32.mrb[0].mxu0
        %v3056 = vadd.f32 %v1670, %v3055
        %v3057 = vpop.f32.mrb[0].mxu0
        %v3058 = vadd.f32 %v1674, %v3057
        %3059 = vdwg.mxu0
        %3060 = vmatprep.subr.bf16.mxu0 %v2604
        %3061 = vmatpush1.bf16.msra.mxu0 %v2603
        %3062 = vmatprep.subr.bf16.mxu0 %v2612
        %3063 = vmatpush1.bf16.msra.mxu0 %v2611
        %3064 = vmatprep.subr.bf16.mxu0 %v2620
        %3065 = vmatpush1.bf16.msra.mxu0 %v2619
        %3066 = vmatprep.subr.bf16.mxu0 %v2628
        %3067 = vmatpush1.bf16.msra.mxu0 %v2627
        %3068 = vmatprep.subr.bf16.mxu0 %v2636
        %3069 = vmatpush1.bf16.msra.mxu0 %v2635
        %3070 = vmatprep.subr.bf16.mxu0 %v2644
        %3071 = vmatpush1.bf16.msra.mxu0 %v2643
        %3072 = vmatprep.subr.bf16.mxu0 %v2652
        %3073 = vmatpush1.bf16.msra.mxu0 %v2651
        %3074 = vmatprep.subr.bf16.mxu0 %v2660
        %3075 = vmatpush1.bf16.msra.mxu0 %v2659
        %3076 = vmatprep.subr.bf16.mxu0 %v2668
        %3077 = vmatpush1.bf16.msra.mxu0 %v2667
        %3078 = vmatprep.subr.bf16.mxu0 %v2676
        %3079 = vmatpush1.bf16.msra.mxu0 %v2675
        %3080 = vmatprep.subr.bf16.mxu0 %v2684
        %3081 = vmatpush1.bf16.msra.mxu0 %v2683
        %3082 = vmatprep.subr.bf16.mxu0 %v2692
        %3083 = vmatpush1.bf16.msra.mxu0 %v2691
        %3084 = vmatprep.subr.bf16.mxu0 %v2700
        %3085 = vmatpush1.bf16.msra.mxu0 %v2699
        %3086 = vmatprep.subr.bf16.mxu0 %v2708
        %3087 = vmatpush1.bf16.msra.mxu0 %v2707
        %3088 = vmatprep.subr.bf16.mxu0 %v2716
        %3089 = vmatpush1.bf16.msra.mxu0 %v2715
        %3090 = vmatprep.subr.bf16.mxu0 %v2724
        %3091 = vmatpush1.bf16.msra.mxu0 %v2723
        %3092 = vmatprep.mubr.bf16.mxu0 %v1396
        %3093 = vmatmul.mubr.bf16.gmra.mrb[0].mxu0 %v1395
        %v3094 = vpop.f32.mrb[0].mxu0
        %v3095 = vadd.f32 %v3022, %v3094
        %v3096 = vpop.f32.mrb[0].mxu0
        %v3097 = vadd.f32 %v3024, %v3096
        %v3098 = vpop.f32.mrb[0].mxu0
        %v3099 = vadd.f32 %v3026, %v3098
        %v3100 = vpop.f32.mrb[0].mxu0
        %v3101 = vadd.f32 %v3028, %v3100
        %3102 = vmatprep.mubr.bf16.mxu0 %v1400
        %3103 = vmatmul.mubr.bf16.gmra.mrb[0].mxu0 %v1399
        %v3104 = vpop.f32.mrb[0].mxu0
        %v3105 = vadd.f32 %v3032, %v3104
        %v3106 = vpop.f32.mrb[0].mxu0
        %v3107 = vadd.f32 %v3034, %v3106
        %v3108 = vpop.f32.mrb[0].mxu0
        %v3109 = vadd.f32 %v3036, %v3108
        %v3110 = vpop.f32.mrb[0].mxu0
        %v3111 = vadd.f32 %v3038, %v3110
        %3112 = vmatprep.mubr.bf16.mxu0 %v1404
        %3113 = vmatmul.mubr.bf16.gmra.mrb[0].mxu0 %v1403
        %v3114 = vpop.f32.mrb[0].mxu0
        %v3115 = vadd.f32 %v3042, %v3114
        %v3116 = vpop.f32.mrb[0].mxu0
        %v3117 = vadd.f32 %v3044, %v3116
        %v3118 = vpop.f32.mrb[0].mxu0
        %v3119 = vadd.f32 %v3046, %v3118
        %v3120 = vpop.f32.mrb[0].mxu0
        %v3121 = vadd.f32 %v3048, %v3120
        %3122 = vmatprep.mubr.bf16.mxu0 %v1408
        %3123 = vmatmul.mubr.bf16.gmra.mrb[0].mxu0 %v1407
        %v3124 = vpop.f32.mrb[0].mxu0
        %v3125 = vadd.f32 %v3052, %v3124
        %v3126 = vpop.f32.mrb[0].mxu0
        %v3127 = vadd.f32 %v3054, %v3126
        %v3128 = vpop.f32.mrb[0].mxu0
        %v3129 = vadd.f32 %v3056, %v3128
        %v3130 = vpop.f32.mrb[0].mxu0
        %v3131 = vadd.f32 %v3058, %v3130
        %3132 = vdwg.mxu0
        %3133 = vmatprep.subr.bf16.mxu0 %v2478
        %3134 = vmatpush1.bf16.msra.mxu0 %v2477
        %3135 = vmatprep.subr.bf16.mxu0 %v2486
        %3136 = vmatpush1.bf16.msra.mxu0 %v2485
        %3137 = vmatprep.subr.bf16.mxu0 %v2494
        %3138 = vmatpush1.bf16.msra.mxu0 %v2493
        %3139 = vmatprep.subr.bf16.mxu0 %v2502
        %3140 = vmatpush1.bf16.msra.mxu0 %v2501
        %3141 = vmatprep.subr.bf16.mxu0 %v2510
        %3142 = vmatpush1.bf16.msra.mxu0 %v2509
        %3143 = vmatprep.subr.bf16.mxu0 %v2518
        %3144 = vmatpush1.bf16.msra.mxu0 %v2517
        %3145 = vmatprep.subr.bf16.mxu0 %v2526
        %3146 = vmatpush1.bf16.msra.mxu0 %v2525
        %3147 = vmatprep.subr.bf16.mxu0 %v2534
        %3148 = vmatpush1.bf16.msra.mxu0 %v2533
        %3149 = vmatprep.subr.bf16.mxu0 %v2542
        %3150 = vmatpush1.bf16.msra.mxu0 %v2541
        %3151 = vmatprep.subr.bf16.mxu0 %v2550
        %3152 = vmatpush1.bf16.msra.mxu0 %v2549
        %3153 = vmatprep.subr.bf16.mxu0 %v2558
        %3154 = vmatpush1.bf16.msra.mxu0 %v2557
        %3155 = vmatprep.subr.bf16.mxu0 %v2566
        %3156 = vmatpush1.bf16.msra.mxu0 %v2565
        %3157 = vmatprep.subr.bf16.mxu0 %v2574
        %3158 = vmatpush1.bf16.msra.mxu0 %v2573
        %3159 = vmatprep.subr.bf16.mxu0 %v2582
        %3160 = vmatpush1.bf16.msra.mxu0 %v2581
        %3161 = vmatprep.subr.bf16.mxu0 %v2590
        %3162 = vmatpush1.bf16.msra.mxu0 %v2589
        %3163 = vmatprep.subr.bf16.mxu0 %v2598
        %3164 = vmatpush1.bf16.msra.mxu0 %v2597
        %3165 = vmatprep.mubr.bf16.mxu0 %v1394
        %3166 = vmatmul.mubr.bf16.gmra.mrb[0].mxu0 %v1393
        %v3167 = vpop.f32.mrb[0].mxu0
        %v3168 = vadd.f32 %v1678, %v3167
        %v3169 = vpop.f32.mrb[0].mxu0
        %v3170 = vadd.f32 %v1682, %v3169
        %v3171 = vpop.f32.mrb[0].mxu0
        %v3172 = vadd.f32 %v1678, %v3171
        %v3173 = vpop.f32.mrb[0].mxu0
        %v3174 = vadd.f32 %v1682, %v3173
        %3175 = vmatprep.mubr.bf16.mxu0 %v1398
        %3176 = vmatmul.mubr.bf16.gmra.mrb[0].mxu0 %v1397
        %v3177 = vpop.f32.mrb[0].mxu0
        %v3178 = vadd.f32 %v1678, %v3177
        %v3179 = vpop.f32.mrb[0].mxu0
        %v3180 = vadd.f32 %v1682, %v3179
        %v3181 = vpop.f32.mrb[0].mxu0
        %v3182 = vadd.f32 %v1678, %v3181
        %v3183 = vpop.f32.mrb[0].mxu0
        %v3184 = vadd.f32 %v1682, %v3183
        %3185 = vmatprep.mubr.bf16.mxu0 %v1402
        %3186 = vmatmul.mubr.bf16.gmra.mrb[0].mxu0 %v1401
        %v3187 = vpop.f32.mrb[0].mxu0
        %v3188 = vadd.f32 %v1678, %v3187
        %v3189 = vpop.f32.mrb[0].mxu0
        %v3190 = vadd.f32 %v1682, %v3189
        %v3191 = vpop.f32.mrb[0].mxu0
        %v3192 = vadd.f32 %v1678, %v3191
        %v3193 = vpop.f32.mrb[0].mxu0
        %v3194 = vadd.f32 %v1682, %v3193
        %3195 = vmatprep.mubr.bf16.mxu0 %v1406
        %3196 = vmatmul.mubr.bf16.gmra.mrb[0].mxu0 %v1405
        %v3197 = vpop.f32.mrb[0].mxu0
        %v3198 = vadd.f32 %v1678, %v3197
        %v3199 = vpop.f32.mrb[0].mxu0
        %v3200 = vadd.f32 %v1682, %v3199
        %v3201 = vpop.f32.mrb[0].mxu0
        %v3202 = vadd.f32 %v1678, %v3201
        %v3203 = vpop.f32.mrb[0].mxu0
        %v3204 = vadd.f32 %v1682, %v3203
        %3205 = vdwg.mxu0
        %3206 = vmatprep.subr.bf16.mxu0 %v2606
        %3207 = vmatpush1.bf16.msra.mxu0 %v2605
        %3208 = vmatprep.subr.bf16.mxu0 %v2614
        %3209 = vmatpush1.bf16.msra.mxu0 %v2613
        %3210 = vmatprep.subr.bf16.mxu0 %v2622
        %3211 = vmatpush1.bf16.msra.mxu0 %v2621
        %3212 = vmatprep.subr.bf16.mxu0 %v2630
        %3213 = vmatpush1.bf16.msra.mxu0 %v2629
        %3214 = vmatprep.subr.bf16.mxu0 %v2638
        %3215 = vmatpush1.bf16.msra.mxu0 %v2637
        %3216 = vmatprep.subr.bf16.mxu0 %v2646
        %3217 = vmatpush1.bf16.msra.mxu0 %v2645
        %3218 = vmatprep.subr.bf16.mxu0 %v2654
        %3219 = vmatpush1.bf16.msra.mxu0 %v2653
        %3220 = vmatprep.subr.bf16.mxu0 %v2662
        %3221 = vmatpush1.bf16.msra.mxu0 %v2661
        %3222 = vmatprep.subr.bf16.mxu0 %v2670
        %3223 = vmatpush1.bf16.msra.mxu0 %v2669
        %3224 = vmatprep.subr.bf16.mxu0 %v2678
        %3225 = vmatpush1.bf16.msra.mxu0 %v2677
        %3226 = vmatprep.subr.bf16.mxu0 %v2686
        %3227 = vmatpush1.bf16.msra.mxu0 %v2685
        %3228 = vmatprep.subr.bf16.mxu0 %v2694
        %3229 = vmatpush1.bf16.msra.mxu0 %v2693
        %3230 = vmatprep.subr.bf16.mxu0 %v2702
        %3231 = vmatpush1.bf16.msra.mxu0 %v2701
        %3232 = vmatprep.subr.bf16.mxu0 %v2710
        %3233 = vmatpush1.bf16.msra.mxu0 %v2709
        %3234 = vmatprep.subr.bf16.mxu0 %v2718
        %3235 = vmatpush1.bf16.msra.mxu0 %v2717
        %3236 = vmatprep.subr.bf16.mxu0 %v2726
        %3237 = vmatpush1.bf16.msra.mxu0 %v2725
        %3238 = vmatprep.mubr.bf16.mxu0 %v1396
        %3239 = vmatmul.mubr.bf16.gmra.mrb[0].mxu0 %v1395
        %v3240 = vpop.f32.mrb[0].mxu0
        %v3241 = vadd.f32 %v3168, %v3240
        %v3242 = vpop.f32.mrb[0].mxu0
        %v3243 = vadd.f32 %v3170, %v3242
        %v3244 = vpop.f32.mrb[0].mxu0
        %v3245 = vadd.f32 %v3172, %v3244
        %v3246 = vpop.f32.mrb[0].mxu0
        %v3247 = vadd.f32 %v3174, %v3246
        %3248 = vmatprep.mubr.bf16.mxu0 %v1400
        %3249 = vmatmul.mubr.bf16.gmra.mrb[0].mxu0 %v1399
        %v3250 = vpop.f32.mrb[0].mxu0
        %v3251 = vadd.f32 %v3178, %v3250
        %v3252 = vpop.f32.mrb[0].mxu0
        %v3253 = vadd.f32 %v3180, %v3252
        %v3254 = vpop.f32.mrb[0].mxu0
        %v3255 = vadd.f32 %v3182, %v3254
        %v3256 = vpop.f32.mrb[0].mxu0
        %v3257 = vadd.f32 %v3184, %v3256
        %3258 = vmatprep.mubr.bf16.mxu0 %v1404
        %3259 = vmatmul.mubr.bf16.gmra.mrb[0].mxu0 %v1403
        %v3260 = vpop.f32.mrb[0].mxu0
        %v3261 = vadd.f32 %v3188, %v3260
        %v3262 = vpop.f32.mrb[0].mxu0
        %v3263 = vadd.f32 %v3190, %v3262
        %v3264 = vpop.f32.mrb[0].mxu0
        %v3265 = vadd.f32 %v3192, %v3264
        %v3266 = vpop.f32.mrb[0].mxu0
        %v3267 = vadd.f32 %v3194, %v3266
        %3268 = vmatprep.mubr.bf16.mxu0 %v1408
        %3269 = vmatmul.mubr.bf16.gmra.mrb[0].mxu0 %v1407
        %v3270 = vpop.f32.mrb[0].mxu0
        %v3271 = vadd.f32 %v3198, %v3270
        %v3272 = vpop.f32.mrb[0].mxu0
        %v3273 = vadd.f32 %v3200, %v3272
        %v3274 = vpop.f32.mrb[0].mxu0
        %v3275 = vadd.f32 %v3202, %v3274
        %v3276 = vpop.f32.mrb[0].mxu0
        %v3277 = vadd.f32 %v3204, %v3276
        %3278 = vdwg.mxu0
        %3279 = vmatprep.subr.bf16.mxu0 %v2480
        %3280 = vmatpush1.bf16.msra.mxu0 %v2479
        %3281 = vmatprep.subr.bf16.mxu0 %v2488
        %3282 = vmatpush1.bf16.msra.mxu0 %v2487
        %3283 = vmatprep.subr.bf16.mxu0 %v2496
        %3284 = vmatpush1.bf16.msra.mxu0 %v2495
        %3285 = vmatprep.subr.bf16.mxu0 %v2504
        %3286 = vmatpush1.bf16.msra.mxu0 %v2503
        %3287 = vmatprep.subr.bf16.mxu0 %v2512
        %3288 = vmatpush1.bf16.msra.mxu0 %v2511
        %3289 = vmatprep.subr.bf16.mxu0 %v2520
        %3290 = vmatpush1.bf16.msra.mxu0 %v2519
        %3291 = vmatprep.subr.bf16.mxu0 %v2528
        %3292 = vmatpush1.bf16.msra.mxu0 %v2527
        %3293 = vmatprep.subr.bf16.mxu0 %v2536
        %3294 = vmatpush1.bf16.msra.mxu0 %v2535
        %3295 = vmatprep.subr.bf16.mxu0 %v2544
        %3296 = vmatpush1.bf16.msra.mxu0 %v2543
        %3297 = vmatprep.subr.bf16.mxu0 %v2552
        %3298 = vmatpush1.bf16.msra.mxu0 %v2551
        %3299 = vmatprep.subr.bf16.mxu0 %v2560
        %3300 = vmatpush1.bf16.msra.mxu0 %v2559
        %3301 = vmatprep.subr.bf16.mxu0 %v2568
        %3302 = vmatpush1.bf16.msra.mxu0 %v2567
        %3303 = vmatprep.subr.bf16.mxu0 %v2576
        %3304 = vmatpush1.bf16.msra.mxu0 %v2575
        %3305 = vmatprep.subr.bf16.mxu0 %v2584
        %3306 = vmatpush1.bf16.msra.mxu0 %v2583
        %3307 = vmatprep.subr.bf16.mxu0 %v2592
        %3308 = vmatpush1.bf16.msra.mxu0 %v2591
        %3309 = vmatprep.subr.bf16.mxu0 %v2600
        %3310 = vmatpush1.bf16.msra.mxu0 %v2599
        %3311 = vmatprep.mubr.bf16.mxu0 %v1394
        %3312 = vmatmul.mubr.bf16.gmra.mrb[0].mxu0 %v1393
        %v3313 = vpop.f32.mrb[0].mxu0
        %v3314 = vadd.f32 %v1686, %v3313
        %v3315 = vpop.f32.mrb[0].mxu0
        %v3316 = vadd.f32 %v1690, %v3315
        %v3317 = vpop.f32.mrb[0].mxu0
        %v3318 = vadd.f32 %v1686, %v3317
        %v3319 = vpop.f32.mrb[0].mxu0
        %v3320 = vadd.f32 %v1690, %v3319
        %3321 = vmatprep.mubr.bf16.mxu0 %v1398
        %3322 = vmatmul.mubr.bf16.gmra.mrb[0].mxu0 %v1397
        %v3323 = vpop.f32.mrb[0].mxu0
        %v3324 = vadd.f32 %v1686, %v3323
        %v3325 = vpop.f32.mrb[0].mxu0
        %v3326 = vadd.f32 %v1690, %v3325
        %v3327 = vpop.f32.mrb[0].mxu0
        %v3328 = vadd.f32 %v1686, %v3327
        %v3329 = vpop.f32.mrb[0].mxu0
        %v3330 = vadd.f32 %v1690, %v3329
        %3331 = vmatprep.mubr.bf16.mxu0 %v1402
        %3332 = vmatmul.mubr.bf16.gmra.mrb[0].mxu0 %v1401
        %v3333 = vpop.f32.mrb[0].mxu0
        %v3334 = vadd.f32 %v1686, %v3333
        %v3335 = vpop.f32.mrb[0].mxu0
        %v3336 = vadd.f32 %v1690, %v3335
        %v3337 = vpop.f32.mrb[0].mxu0
        %v3338 = vadd.f32 %v1686, %v3337
        %v3339 = vpop.f32.mrb[0].mxu0
        %v3340 = vadd.f32 %v1690, %v3339
        %3341 = vmatprep.mubr.bf16.mxu0 %v1406
        %3342 = vmatmul.mubr.bf16.gmra.mrb[0].mxu0 %v1405
        %v3343 = vpop.f32.mrb[0].mxu0
        %v3344 = vadd.f32 %v1686, %v3343
        %v3345 = vpop.f32.mrb[0].mxu0
        %v3346 = vadd.f32 %v1690, %v3345
        %v3347 = vpop.f32.mrb[0].mxu0
        %v3348 = vadd.f32 %v1686, %v3347
        %v3349 = vpop.f32.mrb[0].mxu0
        %v3350 = vadd.f32 %v1690, %v3349
        %3351 = vdwg.mxu0
        %3352 = vmatprep.subr.bf16.mxu0 %v2608
        %3353 = vmatpush1.bf16.msra.mxu0 %v2607
        %3354 = vmatprep.subr.bf16.mxu0 %v2616
        %3355 = vmatpush1.bf16.msra.mxu0 %v2615
        %3356 = vmatprep.subr.bf16.mxu0 %v2624
        %3357 = vmatpush1.bf16.msra.mxu0 %v2623
        %3358 = vmatprep.subr.bf16.mxu0 %v2632
        %3359 = vmatpush1.bf16.msra.mxu0 %v2631
        %3360 = vmatprep.subr.bf16.mxu0 %v2640
        %3361 = vmatpush1.bf16.msra.mxu0 %v2639
        %3362 = vmatprep.subr.bf16.mxu0 %v2648
        %3363 = vmatpush1.bf16.msra.mxu0 %v2647
        %3364 = vmatprep.subr.bf16.mxu0 %v2656
        %3365 = vmatpush1.bf16.msra.mxu0 %v2655
        %3366 = vmatprep.subr.bf16.mxu0 %v2664
        %3367 = vmatpush1.bf16.msra.mxu0 %v2663
        %3368 = vmatprep.subr.bf16.mxu0 %v2672
        %3369 = vmatpush1.bf16.msra.mxu0 %v2671
        %3370 = vmatprep.subr.bf16.mxu0 %v2680
        %3371 = vmatpush1.bf16.msra.mxu0 %v2679
        %3372 = vmatprep.subr.bf16.mxu0 %v2688
        %3373 = vmatpush1.bf16.msra.mxu0 %v2687
        %3374 = vmatprep.subr.bf16.mxu0 %v2696
        %3375 = vmatpush1.bf16.msra.mxu0 %v2695
        %3376 = vmatprep.subr.bf16.mxu0 %v2704
        %3377 = vmatpush1.bf16.msra.mxu0 %v2703
        %3378 = vmatprep.subr.bf16.mxu0 %v2712
        %3379 = vmatpush1.bf16.msra.mxu0 %v2711
        %3380 = vmatprep.subr.bf16.mxu0 %v2720
        %3381 = vmatpush1.bf16.msra.mxu0 %v2719
        %3382 = vmatprep.subr.bf16.mxu0 %v2728
        %3383 = vmatpush1.bf16.msra.mxu0 %v2727
        %3384 = vmatprep.mubr.bf16.mxu0 %v1396
        %3385 = vmatmul.mubr.bf16.gmra.mrb[0].mxu0 %v1395
        %v3386 = vpop.f32.mrb[0].mxu0
        %v3387 = vadd.f32 %v3314, %v3386
        %v3388 = vpop.f32.mrb[0].mxu0
        %v3389 = vadd.f32 %v3316, %v3388
        %v3390 = vpop.f32.mrb[0].mxu0
        %v3391 = vadd.f32 %v3318, %v3390
        %v3392 = vpop.f32.mrb[0].mxu0
        %v3393 = vadd.f32 %v3320, %v3392
        %3394 = vmatprep.mubr.bf16.mxu0 %v1400
        %3395 = vmatmul.mubr.bf16.gmra.mrb[0].mxu0 %v1399
        %v3396 = vpop.f32.mrb[0].mxu0
        %v3397 = vadd.f32 %v3324, %v3396
        %v3398 = vpop.f32.mrb[0].mxu0
        %v3399 = vadd.f32 %v3326, %v3398
        %v3400 = vpop.f32.mrb[0].mxu0
        %v3401 = vadd.f32 %v3328, %v3400
        %v3402 = vpop.f32.mrb[0].mxu0
        %v3403 = vadd.f32 %v3330, %v3402
        %3404 = vmatprep.mubr.bf16.mxu0 %v1404
        %3405 = vmatmul.mubr.bf16.gmra.mrb[0].mxu0 %v1403
        %v3406 = vpop.f32.mrb[0].mxu0
        %v3407 = vadd.f32 %v3334, %v3406
        %v3408 = vpop.f32.mrb[0].mxu0
        %v3409 = vadd.f32 %v3336, %v3408
        %v3410 = vpop.f32.mrb[0].mxu0
        %v3411 = vadd.f32 %v3338, %v3410
        %v3412 = vpop.f32.mrb[0].mxu0
        %v3413 = vadd.f32 %v3340, %v3412
        %3414 = vmatprep.mubr.bf16.mxu0 %v1408
        %3415 = vmatmul.mubr.bf16.gmra.mrb[0].mxu0 %v1407
        %v3416 = vpop.f32.mrb[0].mxu0
        %v3417 = vadd.f32 %v3344, %v3416
        %v3418 = vpop.f32.mrb[0].mxu0
        %v3419 = vadd.f32 %v3346, %v3418
        %v3420 = vpop.f32.mrb[0].mxu0
        %v3421 = vadd.f32 %v3348, %v3420
        %v3422 = vpop.f32.mrb[0].mxu0
        %v3423 = vadd.f32 %v3350, %v3422
        %3424 = vdwg.mxu0
        %3425 = vmatprep.subr.bf16.mxu0 %v2482
        %3426 = vmatpush1.bf16.msra.mxu0 %v2481
        %3427 = vmatprep.subr.bf16.mxu0 %v2490
        %3428 = vmatpush1.bf16.msra.mxu0 %v2489
        %3429 = vmatprep.subr.bf16.mxu0 %v2498
        %3430 = vmatpush1.bf16.msra.mxu0 %v2497
        %3431 = vmatprep.subr.bf16.mxu0 %v2506
        %3432 = vmatpush1.bf16.msra.mxu0 %v2505
        %3433 = vmatprep.subr.bf16.mxu0 %v2514
        %3434 = vmatpush1.bf16.msra.mxu0 %v2513
        %3435 = vmatprep.subr.bf16.mxu0 %v2522
        %3436 = vmatpush1.bf16.msra.mxu0 %v2521
        %3437 = vmatprep.subr.bf16.mxu0 %v2530
        %3438 = vmatpush1.bf16.msra.mxu0 %v2529
        %3439 = vmatprep.subr.bf16.mxu0 %v2538
        %3440 = vmatpush1.bf16.msra.mxu0 %v2537
        %3441 = vmatprep.subr.bf16.mxu0 %v2546
        %3442 = vmatpush1.bf16.msra.mxu0 %v2545
        %3443 = vmatprep.subr.bf16.mxu0 %v2554
        %3444 = vmatpush1.bf16.msra.mxu0 %v2553
        %3445 = vmatprep.subr.bf16.mxu0 %v2562
        %3446 = vmatpush1.bf16.msra.mxu0 %v2561
        %3447 = vmatprep.subr.bf16.mxu0 %v2570
        %3448 = vmatpush1.bf16.msra.mxu0 %v2569
        %3449 = vmatprep.subr.bf16.mxu0 %v2578
        %3450 = vmatpush1.bf16.msra.mxu0 %v2577
        %3451 = vmatprep.subr.bf16.mxu0 %v2586
        %3452 = vmatpush1.bf16.msra.mxu0 %v2585
        %3453 = vmatprep.subr.bf16.mxu0 %v2594
        %3454 = vmatpush1.bf16.msra.mxu0 %v2593
        %3455 = vmatprep.subr.bf16.mxu0 %v2602
        %3456 = vmatpush1.bf16.msra.mxu0 %v2601
        %3457 = vmatprep.mubr.bf16.mxu0 %v1394
        %3458 = vmatmul.mubr.bf16.gmra.mrb[0].mxu0 %v1393
        %v3459 = vpop.f32.mrb[0].mxu0
        %v3460 = vadd.f32 %v1694, %v3459
        %v3461 = vpop.f32.mrb[0].mxu0
        %v3462 = vadd.f32 %v1698, %v3461
        %v3463 = vpop.f32.mrb[0].mxu0
        %v3464 = vadd.f32 %v1694, %v3463
        %v3465 = vpop.f32.mrb[0].mxu0
        %v3466 = vadd.f32 %v1698, %v3465
        %3467 = vmatprep.mubr.bf16.mxu0 %v1398
        %3468 = vmatmul.mubr.bf16.gmra.mrb[0].mxu0 %v1397
        %v3469 = vpop.f32.mrb[0].mxu0
        %v3470 = vadd.f32 %v1694, %v3469
        %v3471 = vpop.f32.mrb[0].mxu0
        %v3472 = vadd.f32 %v1698, %v3471
        %v3473 = vpop.f32.mrb[0].mxu0
        %v3474 = vadd.f32 %v1694, %v3473
        %v3475 = vpop.f32.mrb[0].mxu0
        %v3476 = vadd.f32 %v1698, %v3475
        %3477 = vmatprep.mubr.bf16.mxu0 %v1402
        %3478 = vmatmul.mubr.bf16.gmra.mrb[0].mxu0 %v1401
        %v3479 = vpop.f32.mrb[0].mxu0
        %v3480 = vadd.f32 %v1694, %v3479
        %v3481 = vpop.f32.mrb[0].mxu0
        %v3482 = vadd.f32 %v1698, %v3481
        %v3483 = vpop.f32.mrb[0].mxu0
        %v3484 = vadd.f32 %v1694, %v3483
        %v3485 = vpop.f32.mrb[0].mxu0
        %v3486 = vadd.f32 %v1698, %v3485
        %3487 = vmatprep.mubr.bf16.mxu0 %v1406
        %3488 = vmatmul.mubr.bf16.gmra.mrb[0].mxu0 %v1405
        %v3489 = vpop.f32.mrb[0].mxu0
        %v3490 = vadd.f32 %v1694, %v3489
        %v3491 = vpop.f32.mrb[0].mxu0
        %v3492 = vadd.f32 %v1698, %v3491
        %v3493 = vpop.f32.mrb[0].mxu0
        %v3494 = vadd.f32 %v1694, %v3493
        %v3495 = vpop.f32.mrb[0].mxu0
        %v3496 = vadd.f32 %v1698, %v3495
        %3497 = vdwg.mxu0
        %3498 = vmatprep.subr.bf16.mxu0 %v2610
        %3499 = vmatpush1.bf16.msra.mxu0 %v2609
        %3500 = vmatprep.subr.bf16.mxu0 %v2618
        %3501 = vmatpush1.bf16.msra.mxu0 %v2617
        %3502 = vmatprep.subr.bf16.mxu0 %v2626
        %3503 = vmatpush1.bf16.msra.mxu0 %v2625
        %3504 = vmatprep.subr.bf16.mxu0 %v2634
        %3505 = vmatpush1.bf16.msra.mxu0 %v2633
        %3506 = vmatprep.subr.bf16.mxu0 %v2642
        %3507 = vmatpush1.bf16.msra.mxu0 %v2641
        %3508 = vmatprep.subr.bf16.mxu0 %v2650
        %3509 = vmatpush1.bf16.msra.mxu0 %v2649
        %3510 = vmatprep.subr.bf16.mxu0 %v2658
        %3511 = vmatpush1.bf16.msra.mxu0 %v2657
        %3512 = vmatprep.subr.bf16.mxu0 %v2666
        %3513 = vmatpush1.bf16.msra.mxu0 %v2665
        %3514 = vmatprep.subr.bf16.mxu0 %v2674
        %3515 = vmatpush1.bf16.msra.mxu0 %v2673
        %3516 = vmatprep.subr.bf16.mxu0 %v2682
        %3517 = vmatpush1.bf16.msra.mxu0 %v2681
        %3518 = vmatprep.subr.bf16.mxu0 %v2690
        %3519 = vmatpush1.bf16.msra.mxu0 %v2689
        %3520 = vmatprep.subr.bf16.mxu0 %v2698
        %3521 = vmatpush1.bf16.msra.mxu0 %v2697
        %3522 = vmatprep.subr.bf16.mxu0 %v2706
        %3523 = vmatpush1.bf16.msra.mxu0 %v2705
        %3524 = vmatprep.subr.bf16.mxu0 %v2714
        %3525 = vmatpush1.bf16.msra.mxu0 %v2713
        %3526 = vmatprep.subr.bf16.mxu0 %v2722
        %3527 = vmatpush1.bf16.msra.mxu0 %v2721
        %3528 = vmatprep.subr.bf16.mxu0 %v2730
        %3529 = vmatpush1.bf16.msra.mxu0 %v2729
        %3530 = vmatprep.mubr.bf16.mxu0 %v1396
        %3531 = vmatmul.mubr.bf16.gmra.mrb[0].mxu0 %v1395
        %v3532 = vpop.f32.mrb[0].mxu0
        %v3533 = vadd.f32 %v3460, %v3532
        %v3534 = vpop.f32.mrb[0].mxu0
        %v3535 = vadd.f32 %v3462, %v3534
        %v3536 = vpop.f32.mrb[0].mxu0
        %v3537 = vadd.f32 %v3464, %v3536
        %v3538 = vpop.f32.mrb[0].mxu0
        %v3539 = vadd.f32 %v3466, %v3538
        %3540 = vmatprep.mubr.bf16.mxu0 %v1400
        %3541 = vmatmul.mubr.bf16.gmra.mrb[0].mxu0 %v1399
        %v3542 = vpop.f32.mrb[0].mxu0
        %v3543 = vadd.f32 %v3470, %v3542
        %v3544 = vpop.f32.mrb[0].mxu0
        %v3545 = vadd.f32 %v3472, %v3544
        %v3546 = vpop.f32.mrb[0].mxu0
        %v3547 = vadd.f32 %v3474, %v3546
        %v3548 = vpop.f32.mrb[0].mxu0
        %v3549 = vadd.f32 %v3476, %v3548
        %3550 = vmatprep.mubr.bf16.mxu0 %v1404
        %3551 = vmatmul.mubr.bf16.gmra.mrb[0].mxu0 %v1403
        %v3552 = vpop.f32.mrb[0].mxu0
        %v3553 = vadd.f32 %v3480, %v3552
        %v3554 = vpop.f32.mrb[0].mxu0
        %v3555 = vadd.f32 %v3482, %v3554
        %v3556 = vpop.f32.mrb[0].mxu0
        %v3557 = vadd.f32 %v3484, %v3556
        %v3558 = vpop.f32.mrb[0].mxu0
        %v3559 = vadd.f32 %v3486, %v3558
        %3560 = vmatprep.mubr.bf16.mxu0 %v1408
        %3561 = vmatmul.mubr.bf16.gmra.mrb[0].mxu0 %v1407
        %v3562 = vpop.f32.mrb[0].mxu0
        %v3563 = vadd.f32 %v3490, %v3562
        %v3564 = vpop.f32.mrb[0].mxu0
        %v3565 = vadd.f32 %v3492, %v3564
        %v3566 = vpop.f32.mrb[0].mxu0
        %v3567 = vadd.f32 %v3494, %v3566
        %v3568 = vpop.f32.mrb[0].mxu0
        %v3569 = vadd.f32 %v3496, %v3568
        %3570 = vdwg.mxu0
        %v3571 = vmax.f32 %v3095, 0.0
        %v3572 = vmax.f32 %v3097, 0.0
        %v3573 = vmax.f32 %v3241, 0.0
        %v3574 = vmax.f32 %v3243, 0.0
        %v3575 = vmax.f32 %v3387, 0.0
        %v3576 = vmax.f32 %v3389, 0.0
        %v3577 = vmax.f32 %v3533, 0.0
        %v3578 = vmax.f32 %v3535, 0.0
        %v3579 = vmax.f32 %v3099, 0.0
        %v3580 = vmax.f32 %v3101, 0.0
        %v3581 = vmax.f32 %v3245, 0.0
        %v3582 = vmax.f32 %v3247, 0.0
        %v3583 = vmax.f32 %v3391, 0.0
        %v3584 = vmax.f32 %v3393, 0.0
        %v3585 = vmax.f32 %v3537, 0.0
        %v3586 = vmax.f32 %v3539, 0.0
        %v3587 = vmax.f32 %v3105, 0.0
        %v3588 = vmax.f32 %v3107, 0.0
        %v3589 = vmax.f32 %v3251, 0.0
        %v3590 = vmax.f32 %v3253, 0.0
        %v3591 = vmax.f32 %v3397, 0.0
        %v3592 = vmax.f32 %v3399, 0.0
        %v3593 = vmax.f32 %v3543, 0.0
        %v3594 = vmax.f32 %v3545, 0.0
        %v3595 = vmax.f32 %v3109, 0.0
        %v3596 = vmax.f32 %v3111, 0.0
        %v3597 = vmax.f32 %v3255, 0.0
        %v3598 = vmax.f32 %v3257, 0.0
        %v3599 = vmax.f32 %v3401, 0.0
        %v3600 = vmax.f32 %v3403, 0.0
        %v3601 = vmax.f32 %v3547, 0.0
        %v3602 = vmax.f32 %v3549, 0.0
        %v3603 = vmax.f32 %v3115, 0.0
        %v3604 = vmax.f32 %v3117, 0.0
        %v3605 = vmax.f32 %v3261, 0.0
        %v3606 = vmax.f32 %v3263, 0.0
        %v3607 = vmax.f32 %v3407, 0.0
        %v3608 = vmax.f32 %v3409, 0.0
        %v3609 = vmax.f32 %v3553, 0.0
        %v3610 = vmax.f32 %v3555, 0.0
        %v3611 = vmax.f32 %v3119, 0.0
        %v3612 = vmax.f32 %v3121, 0.0
        %v3613 = vmax.f32 %v3265, 0.0
        %v3614 = vmax.f32 %v3267, 0.0
        %v3615 = vmax.f32 %v3411, 0.0
        %v3616 = vmax.f32 %v3413, 0.0
        %v3617 = vmax.f32 %v3557, 0.0
        %v3618 = vmax.f32 %v3559, 0.0
        %v3619 = vmax.f32 %v3125, 0.0
        %v3620 = vmax.f32 %v3127, 0.0
        %v3621 = vmax.f32 %v3271, 0.0
        %v3622 = vmax.f32 %v3273, 0.0
        %v3623 = vmax.f32 %v3417, 0.0
        %v3624 = vmax.f32 %v3419, 0.0
        %v3625 = vmax.f32 %v3563, 0.0
        %v3626 = vmax.f32 %v3565, 0.0
        %v3627 = vmax.f32 %v3129, 0.0
        %v3628 = vmax.f32 %v3131, 0.0
        %v3629 = vmax.f32 %v3275, 0.0
        %v3630 = vmax.f32 %v3277, 0.0
        %v3631 = vmax.f32 %v3421, 0.0
        %v3632 = vmax.f32 %v3423, 0.0
        %v3633 = vmax.f32 %v3567, 0.0
        %v3634 = vmax.f32 %v3569, 0.0
        %v3635 = vmax.f32 %v3571, %v3579
        %v3636 = vmax.f32 %v3635, %v3587
        %v3637 = vmax.f32 %v3636, %v3595
        %v3638 = vmax.f32 %v3637, %v3603
        %v3639 = vmax.f32 %v3638, %v3611
        %v3640 = vmax.f32 %v3639, %v3619
        %v3641 = vmax.f32 %v3640, %v3627
        %v3642 = vrot.slane %v3641, 4
        %v3643 = vmax.f32 %v3641, %v3642
        %v3644 = vrot.slane %v3643, 2
        %v3645 = vmax.f32 %v3643, %v3644
        %v3646 = vrot.slane %v3645, 1
        %v3647 = vmax.f32 %v3645, %v3646
        %v3648 = vmax.f32 %v3572, %v3580
        %v3649 = vmax.f32 %v3648, %v3588
        %v3650 = vmax.f32 %v3649, %v3596
        %v3651 = vmax.f32 %v3650, %v3604
        %v3652 = vmax.f32 %v3651, %v3612
        %v3653 = vmax.f32 %v3652, %v3620
        %v3654 = vmax.f32 %v3653, %v3628
        %v3655 = vrot.slane %v3654, 4
        %v3656 = vmax.f32 %v3654, %v3655
        %v3657 = vrot.slane %v3656, 2
        %v3658 = vmax.f32 %v3656, %v3657
        %v3659 = vrot.slane %v3658, 1
        %v3660 = vmax.f32 %v3658, %v3659
        %v3661 = vmax.f32 %v3573, %v3581
        %v3662 = vmax.f32 %v3661, %v3589
        %v3663 = vmax.f32 %v3662, %v3597
        %v3664 = vmax.f32 %v3663, %v3605
        %v3665 = vmax.f32 %v3664, %v3613
        %v3666 = vmax.f32 %v3665, %v3621
        %v3667 = vmax.f32 %v3666, %v3629
        %v3668 = vrot.slane %v3667, 4
        %v3669 = vmax.f32 %v3667, %v3668
        %v3670 = vrot.slane %v3669, 2
        %v3671 = vmax.f32 %v3669, %v3670
        %v3672 = vrot.slane %v3671, 1
        %v3673 = vmax.f32 %v3671, %v3672
        %v3674 = vmax.f32 %v3574, %v3582
        %v3675 = vmax.f32 %v3674, %v3590
        %v3676 = vmax.f32 %v3675, %v3598
        %v3677 = vmax.f32 %v3676, %v3606
        %v3678 = vmax.f32 %v3677, %v3614
        %v3679 = vmax.f32 %v3678, %v3622
        %v3680 = vmax.f32 %v3679, %v3630
        %v3681 = vrot.slane %v3680, 4
        %v3682 = vmax.f32 %v3680, %v3681
        %v3683 = vrot.slane %v3682, 2
        %v3684 = vmax.f32 %v3682, %v3683
        %v3685 = vrot.slane %v3684, 1
        %v3686 = vmax.f32 %v3684, %v3685
        %v3687 = vmax.f32 %v3575, %v3583
        %v3688 = vmax.f32 %v3687, %v3591
        %v3689 = vmax.f32 %v3688, %v3599
        %v3690 = vmax.f32 %v3689, %v3607
        %v3691 = vmax.f32 %v3690, %v3615
        %v3692 = vmax.f32 %v3691, %v3623
        %v3693 = vmax.f32 %v3692, %v3631
        %v3694 = vrot.slane %v3693, 4
        %v3695 = vmax.f32 %v3693, %v3694
        %v3696 = vrot.slane %v3695, 2
        %v3697 = vmax.f32 %v3695, %v3696
        %v3698 = vrot.slane %v3697, 1
        %v3699 = vmax.f32 %v3697, %v3698
        %v3700 = vmax.f32 %v3576, %v3584
        %v3701 = vmax.f32 %v3700, %v3592
        %v3702 = vmax.f32 %v3701, %v3600
        %v3703 = vmax.f32 %v3702, %v3608
        %v3704 = vmax.f32 %v3703, %v3616
        %v3705 = vmax.f32 %v3704, %v3624
        %v3706 = vmax.f32 %v3705, %v3632
        %v3707 = vrot.slane %v3706, 4
        %v3708 = vmax.f32 %v3706, %v3707
        %v3709 = vrot.slane %v3708, 2
        %v3710 = vmax.f32 %v3708, %v3709
        %v3711 = vrot.slane %v3710, 1
        %v3712 = vmax.f32 %v3710, %v3711
        %v3713 = vmax.f32 %v3577, %v3585
        %v3714 = vmax.f32 %v3713, %v3593
        %v3715 = vmax.f32 %v3714, %v3601
        %v3716 = vmax.f32 %v3715, %v3609
        %v3717 = vmax.f32 %v3716, %v3617
        %v3718 = vmax.f32 %v3717, %v3625
        %v3719 = vmax.f32 %v3718, %v3633
        %v3720 = vrot.slane %v3719, 4
        %v3721 = vmax.f32 %v3719, %v3720
        %v3722 = vrot.slane %v3721, 2
        %v3723 = vmax.f32 %v3721, %v3722
        %v3724 = vrot.slane %v3723, 1
        %v3725 = vmax.f32 %v3723, %v3724
        %v3726 = vmax.f32 %v3578, %v3586
        %v3727 = vmax.f32 %v3726, %v3594
        %v3728 = vmax.f32 %v3727, %v3602
        %v3729 = vmax.f32 %v3728, %v3610
        %v3730 = vmax.f32 %v3729, %v3618
        %v3731 = vmax.f32 %v3730, %v3626
        %v3732 = vmax.f32 %v3731, %v3634
        %v3733 = vrot.slane %v3732, 4
        %v3734 = vmax.f32 %v3732, %v3733
        %v3735 = vrot.slane %v3734, 2
        %v3736 = vmax.f32 %v3734, %v3735
        %v3737 = vrot.slane %v3736, 1
        %v3738 = vmax.f32 %v3736, %v3737
        %p3739 = scmp.eq.s32.totalorder %s26, 0
        // Predicated region
        $region61: #{dpcn_forward.4} parent=55 // pred_check
          %p3740 = pneg %p3739
        $region62: #{dpcn_forward.4} parent=55 // pred_check_branch
          %3742 = sbr.rel (%p3740) target = $region64
        $region63: #{dpcn_forward.4} parent=55 // pred_region
          %3743 = vst [vmem:[%s426] sm:$0xff] %v3647
          %3744 = vst [vmem:[%s426 + $0x8] sm:$0xff] %v3660
          %3745 = vst [vmem:[%s426 + $0x10] sm:$0xff] %v3673
          %3746 = vst [vmem:[%s426 + $0x18] sm:$0xff] %v3686
          %3747 = vst [vmem:[%s426 + $0x20] sm:$0xff] %v3699
          %3748 = vst [vmem:[%s426 + $0x28] sm:$0xff] %v3712
          %3749 = vst [vmem:[%s426 + $0x30] sm:$0xff] %v3725
          %3750 = vst [vmem:[%s426 + $0x38] sm:$0xff] %v3738
        $region64: #{dpcn_forward.4} parent=55 // pred_fallthru
          _
        %p3751 = scmp.gt.s32.totalorder %s26, 0
        // Predicated region
        $region65: #{dpcn_forward.4} parent=55 // pred_check
          %p3752 = pneg %p3751
        $region66: #{dpcn_forward.4} parent=55 // pred_check_branch
          %3754 = sbr.rel (%p3752) target = $region68
        $region67: #{dpcn_forward.4} parent=55 // pred_region
          %v3755 = vld [vmem:[%s426] sm:$0xff]
          %v3756 = vld [vmem:[%s426 + $0x8] sm:$0xff]
          %v3757 = vld [vmem:[%s426 + $0x10] sm:$0xff]
          %v3758 = vld [vmem:[%s426 + $0x18] sm:$0xff]
          %v3759 = vld [vmem:[%s426 + $0x20] sm:$0xff]
          %v3760 = vld [vmem:[%s426 + $0x28] sm:$0xff]
          %v3761 = vld [vmem:[%s426 + $0x30] sm:$0xff]
          %v3762 = vld [vmem:[%s426 + $0x38] sm:$0xff]
          %v3763 = vmax.f32 %v3755, %v3647
          %v3764 = vmax.f32 %v3756, %v3660
          %v3765 = vmax.f32 %v3757, %v3673
          %v3766 = vmax.f32 %v3758, %v3686
          %v3767 = vmax.f32 %v3759, %v3699
          %v3768 = vmax.f32 %v3760, %v3712
          %v3769 = vmax.f32 %v3761, %v3725
          %v3770 = vmax.f32 %v3762, %v3738
          %3771 = vst [vmem:[%s426] sm:$0xff] %v3763
          %3772 = vst [vmem:[%s426 + $0x8] sm:$0xff] %v3764
          %3773 = vst [vmem:[%s426 + $0x10] sm:$0xff] %v3765
          %3774 = vst [vmem:[%s426 + $0x18] sm:$0xff] %v3766
          %3775 = vst [vmem:[%s426 + $0x20] sm:$0xff] %v3767
          %3776 = vst [vmem:[%s426 + $0x28] sm:$0xff] %v3768
          %3777 = vst [vmem:[%s426 + $0x30] sm:$0xff] %v3769
          %3778 = vst [vmem:[%s426 + $0x38] sm:$0xff] %v3770
        $region68: #{dpcn_forward.4} parent=55 // pred_fallthru
          _
        %p3779 = scmp.lt.s32.totalorder %s25, 1
        %s3780 = scalar_select %p3779, %s25, 1
        %s3781 = smul.addr %s3780, 8
        %s3782 = smul.addr %s3781, 8
        %s3783 = scalar_lea.vmem %s9, %s3782
        // Predicated region
        $region69: #{dpcn_forward.4} parent=55 // pred_check
          %p3784 = pneg %p261
        $region70: #{dpcn_forward.4} parent=55 // pred_check_branch
          %3786 = sbr.rel (%p3784) target = $region72
        $region71: #{dpcn_forward.4} parent=55 // pred_region
          _
        $region72: #{dpcn_forward.4} parent=55 // pred_fallthru
          _
      $region56: #{dpcn_forward.4} parent=5 // pred_fallthru
        _
      %p3787 = scmp.le.s32.totalorder 2, %s16
      // Predicated region
      $region73: #{dpcn_forward.4} parent=5 // pred_check
        %p3788 = pneg %p3787
      $region74: #{dpcn_forward.4} parent=5 // pred_check_branch
        %3790 = sbr.rel (%p3788) target = $region76
      $region75: #{dpcn_forward.4} parent=5 // pred_region
        %s3791 = ssub.s32 %s16, 2
        // Predicated region
        $region77: #{dpcn_forward.4} parent=75 // pred_check
          %p3792 = pneg %p267
        $region78: #{dpcn_forward.4} parent=75 // pred_check_branch
          %3794 = sbr.rel (%p3792) target = $region80
        $region79: #{dpcn_forward.4} parent=75 // pred_region
          %p3795 = scmp.lt.s32.totalorder %s27, 1
          %s3796 = scalar_select %p3795, %s27, 1
          %s3797 = smul.addr %s3796, 8
          %s3798 = smul.addr %s3797, 8
          %s3799 = scalar_lea.vmem %s9, %s3798
        $region80: #{dpcn_forward.4} parent=75 // pred_fallthru
          _
      $region76: #{dpcn_forward.4} parent=5 // pred_fallthru
        _
    $region6: #{dpcn_forward.4} parent=1 // loop_footer
      %s20 = sadd.s32 1, %s16
    $region7: #{dpcn_forward.4} parent=1 // loop_footer_branch
      %15 = sbr.rel target = $region3
    $region8: #{dpcn_forward.4} parent=1 // loop_exit
      _
    %3800 = vsyncpa [#allocation3], 1
    %s3801 = scalar_lea.sflag [#allocation3], 1
    %3802 = vsyncpa %s3801, 1

</llo_original>
